<compile_context>
chip_gen: v7x
topology: tpu7x:2x2x1
jax: 0.10.0
libtpu: 0.0.40
codegen_flags: <defaults>
</compile_context>

<pallas_src>
import jax
import jax.numpy as jnp
import numpy as np
from jax.experimental import pallas as pl
from jax.experimental.pallas import tpu as pltpu

C1_OUT = 10
K1 = 3
C2_OUT = 20
K2 = 32
KF = K1 + K2 - 1          # 34: kernel length of the fused conv1∘conv2
POOL = 512


def _cnn_kernel(x_ref, w_ref, b_ref, o_ref):
    """Fused conv1∘conv2 (valid, kernel KF) + MaxPool1d(512) + flatten.

    x_ref: (B, L)            block of B input signals
    w_ref: (C2_OUT, KF)      fused conv weight (20, 34)
    b_ref: (C2_OUT, 1)       fused bias
    o_ref: (B, C2_OUT*n_pool) flattened logits block
    """
    B, L = x_ref.shape
    L2 = L - (KF - 1)                       # fused conv output length
    n_pool = o_ref.shape[-1] // C2_OUT

    x = x_ref[...]                          # (B, L)
    w = w_ref[...]                          # (20, 34)
    b = b_ref[...]                          # (20, 1)

    # Fused conv: 34 broadcast multiply-accumulates on the VPU, vectorized
    # over the whole batch block and all 20 output channels (the shifted
    # reads are lane rotations handled by the XLU slot).
    acc = jnp.zeros((B, C2_OUT, L2), jnp.float32)
    for k in range(KF):
        acc = acc + x[:, k:k + L2][:, None, :] * w[:, k:k + 1][None, :, :]
    acc = acc + b[None, :, :]               # (B, 20, L2)

    # MaxPool1d(512, 512): split lanes into (n_pool, 512) and lane-reduce.
    pooled = acc[:, :, :n_pool * POOL].reshape(B, C2_OUT, n_pool, POOL)
    pooled = jnp.max(pooled, axis=-1)       # (B, 20, n_pool)

    # logit = x.view(batch, -1): lane-dense flattened output slab.
    o_ref[...] = pooled.reshape(B, C2_OUT * n_pool).astype(o_ref.dtype)


def _fuse_params(w1, b1, w2, b2):
    """Fold conv1 into conv2 (valid: no nonlinearity between them).

    W_eff[o, k1+k2] = sum_c w1[c, k1] * w2[o, c, k2]          shape (20, 34)
    b_eff[o]        = b2[o] + sum_{c,k2} w2[o, c, k2] * b1[c] shape (20, 1)
    Computed with broadcast-multiply + f32 sums (no reduced-precision dots).
    """
    w1 = w1.reshape(C1_OUT, K1).astype(jnp.float32)       # (10, 3)
    w2 = w2.astype(jnp.float32)                           # (20, 10, 32)
    b1 = b1.reshape(C1_OUT).astype(jnp.float32)
    b2 = b2.reshape(C2_OUT).astype(jnp.float32)

    w_eff = jnp.zeros((C2_OUT, KF), jnp.float32)
    for k1 in range(K1):
        contrib = (w1[None, :, k1, None] * w2).sum(axis=1)  # (20, 32)
        w_eff = w_eff.at[:, k1:k1 + K2].add(contrib)
    b_eff = b2 + (w2 * b1[None, :, None]).sum(axis=(1, 2))  # (20,)
    return w_eff, b_eff.reshape(C2_OUT, 1)


def oned_cnn_pre(x, w1, b1, w2, b2, *, block_b=8):
    """x: (N, 1, L) float32. Returns logits (N, 20 * ((L - 33) // 512))."""
    N, cin, L = x.shape
    assert cin == 1
    L2 = L - (KF - 1)
    n_pool = L2 // POOL
    assert n_pool >= 1, "input too short for MaxPool1d(512)"
    out_f = C2_OUT * n_pool

    w_eff, b_eff = _fuse_params(w1, b1, w2, b2)

    # Batch-block size: either the whole (small) batch, or a multiple of 8 so
    # the sublane dim of every x/out block satisfies the (8, 128) tiling rule.
    if N <= block_b:
        B = N
    else:
        B = max(8, (block_b // 8) * 8)
    n_pad = (-N) % B
    x_f = x.reshape(N, L).astype(jnp.float32)      # squeeze channel dim
    if n_pad:
        x_f = jnp.pad(x_f, ((0, n_pad), (0, 0)))
    n_blocks = (N + n_pad) // B

    out = pl.pallas_call(
        _cnn_kernel,
        out_shape=jax.ShapeDtypeStruct((N + n_pad, out_f), jnp.float32),
        grid=(n_blocks,),
        in_specs=[
            pl.BlockSpec((B, L), lambda n: (n, 0)),
            pl.BlockSpec((C2_OUT, KF), lambda n: (0, 0)),
            pl.BlockSpec((C2_OUT, 1), lambda n: (0, 0)),
        ],
        out_specs=pl.BlockSpec((B, out_f), lambda n: (n, 0)),
        compiler_params=pltpu.CompilerParams(
            # Independent batch blocks -> shard across both TCs on v7x.
            dimension_semantics=("parallel",),
            # Raise the scoped-VMEM ceiling (v5e default is only 16 MiB).
            vmem_limit_bytes=32 * 1024 * 1024,
        ),
    )(x_f, w_eff, b_eff)

    return out[:N]


def _reference_forward(x, w1, b1, w2, b2):
    """Pure-JAX two-stage reference matching the PyTorch semantics."""
    dn = ("NCH", "OIH", "NCH")
    hp = jax.lax.Precision.HIGHEST
    y = jax.lax.conv_general_dilated(x, w1, (1,), "VALID",
                                     dimension_numbers=dn,
                                     precision=hp) + b1[None, :, None]
    y = jax.lax.conv_general_dilated(y, w2, (1,), "VALID",
                                     dimension_numbers=dn,
                                     precision=hp) + b2[None, :, None]
    N, C, Lc = y.shape
    n_pool = Lc // POOL
    y = y[:, :, :n_pool * POOL].reshape(N, C, n_pool, POOL).max(axis=-1)
    return y.reshape(N, -1)


if __name__ == "__main__":
    key = jax.random.PRNGKey(0)
    k_x, k_w1, k_b1, k_w2, k_b2 = jax.random.split(key, 5)

    # Small shapes consistent with the module: need (L - 33) >= 512.
    N, L = 2, 1057                      # fused conv output 1024 -> 2 pool windows
    x = jax.random.normal(k_x, (N, 1, L), dtype=jnp.float32)

    # Deterministic parameter init (PyTorch-like uniform(-1/sqrt(fan_in), +)).
    bnd1 = 1.0 / np.sqrt(1 * K1)
    w1 = jax.random.uniform(k_w1, (C1_OUT, 1, K1), jnp.float32, -bnd1, bnd1)
    b1 = jax.random.uniform(k_b1, (C1_OUT,), jnp.float32, -bnd1, bnd1)
    bnd2 = 1.0 / np.sqrt(C1_OUT * K2)
    w2 = jax.random.uniform(k_w2, (C2_OUT, C1_OUT, K2), jnp.float32, -bnd2, bnd2)
    b2 = jax.random.uniform(k_b2, (C2_OUT,), jnp.float32, -bnd2, bnd2)

    logits = jax.block_until_ready(oned_cnn_pre(x, w1, b1, w2, b2))
    ref = jax.block_until_ready(_reference_forward(x, w1, b1, w2, b2))

    assert logits.shape == (N, C2_OUT * ((L - 33) // POOL)), logits.shape
    np.testing.assert_allclose(np.asarray(logits), np.asarray(ref),
                               rtol=1e-4, atol=1e-4)
    print("KERNEL_OK")
</pallas_src>

<mosaic_0001>
module attributes {stable_mosaic.version = 11 : i64} {
  func.func @_cnn_kernel(%arg0: i32, %arg1: memref<2x1057xf32, #tpu.memory_space<vmem>>, %arg2: memref<20x34xf32, #tpu.memory_space<vmem>>, %arg3: memref<20x1xf32, #tpu.memory_space<vmem>>, %arg4: memref<2x40xf32, #tpu.memory_space<vmem>>) attributes {dimension_semantics = [#tpu.dimension_semantics<parallel>], iteration_bounds = array<i64: 1>, scalar_prefetch = 0 : i64, scratch_operands = 0 : i64, tpu.core_type = #tpu.core_type<tc>, window_params = [{transform_indices = @transform_0, window_bounds = array<i64: 2, 1057>}, {pipeline_mode = #tpu.pipeline_mode<synchronous>, transform_indices = @transform_1, window_bounds = array<i64: 20, 34>}, {pipeline_mode = #tpu.pipeline_mode<synchronous>, transform_indices = @transform_2, window_bounds = array<i64: 20, 1>}, {transform_indices = @transform_3, window_bounds = array<i64: 2, 40>}]} {
    %c0 = arith.constant 0 : index
    %c0_0 = arith.constant 0 : index
    %0 = vector.load %arg1[%c0, %c0_0] : memref<2x1057xf32, #tpu.memory_space<vmem>>, vector<2x1057xf32>
    %c0_1 = arith.constant 0 : index
    %c0_2 = arith.constant 0 : index
    %1 = vector.load %arg2[%c0_1, %c0_2] : memref<20x34xf32, #tpu.memory_space<vmem>>, vector<20x34xf32>
    %c0_3 = arith.constant 0 : index
    %c0_4 = arith.constant 0 : index
    %2 = vector.load %arg3[%c0_3, %c0_4] : memref<20x1xf32, #tpu.memory_space<vmem>>, vector<20x1xf32>
    %cst = arith.constant 0.000000e+00 : f32
    %3 = vector.broadcast %cst : f32 to vector<2x20x1024xf32>
    %4 = vector.extract_strided_slice %0 {offsets = [0, 0], sizes = [2, 1024], strides = [1, 1]} : vector<2x1057xf32> to vector<2x1024xf32>
    %5 = vector.shape_cast %4 : vector<2x1024xf32> to vector<2x1x1024xf32>
    %6 = vector.extract_strided_slice %1 {offsets = [0, 0], sizes = [20, 1], strides = [1, 1]} : vector<20x34xf32> to vector<20x1xf32>
    %7 = vector.shape_cast %6 : vector<20x1xf32> to vector<1x20x1xf32>
    %8 = vector.broadcast %5 : vector<2x1x1024xf32> to vector<2x20x1024xf32>
    %9 = vector.broadcast %7 : vector<1x20x1xf32> to vector<2x20x1024xf32>
    %10 = arith.mulf %8, %9 : vector<2x20x1024xf32>
    %11 = arith.addf %3, %10 : vector<2x20x1024xf32>
    %12 = vector.extract_strided_slice %0 {offsets = [0, 1], sizes = [2, 1024], strides = [1, 1]} : vector<2x1057xf32> to vector<2x1024xf32>
    %13 = vector.shape_cast %12 : vector<2x1024xf32> to vector<2x1x1024xf32>
    %14 = vector.extract_strided_slice %1 {offsets = [0, 1], sizes = [20, 1], strides = [1, 1]} : vector<20x34xf32> to vector<20x1xf32>
    %15 = vector.shape_cast %14 : vector<20x1xf32> to vector<1x20x1xf32>
    %16 = vector.broadcast %13 : vector<2x1x1024xf32> to vector<2x20x1024xf32>
    %17 = vector.broadcast %15 : vector<1x20x1xf32> to vector<2x20x1024xf32>
    %18 = arith.mulf %16, %17 : vector<2x20x1024xf32>
    %19 = arith.addf %11, %18 : vector<2x20x1024xf32>
    %20 = vector.extract_strided_slice %0 {offsets = [0, 2], sizes = [2, 1024], strides = [1, 1]} : vector<2x1057xf32> to vector<2x1024xf32>
    %21 = vector.shape_cast %20 : vector<2x1024xf32> to vector<2x1x1024xf32>
    %22 = vector.extract_strided_slice %1 {offsets = [0, 2], sizes = [20, 1], strides = [1, 1]} : vector<20x34xf32> to vector<20x1xf32>
    %23 = vector.shape_cast %22 : vector<20x1xf32> to vector<1x20x1xf32>
    %24 = vector.broadcast %21 : vector<2x1x1024xf32> to vector<2x20x1024xf32>
    %25 = vector.broadcast %23 : vector<1x20x1xf32> to vector<2x20x1024xf32>
    %26 = arith.mulf %24, %25 : vector<2x20x1024xf32>
    %27 = arith.addf %19, %26 : vector<2x20x1024xf32>
    %28 = vector.extract_strided_slice %0 {offsets = [0, 3], sizes = [2, 1024], strides = [1, 1]} : vector<2x1057xf32> to vector<2x1024xf32>
    %29 = vector.shape_cast %28 : vector<2x1024xf32> to vector<2x1x1024xf32>
    %30 = vector.extract_strided_slice %1 {offsets = [0, 3], sizes = [20, 1], strides = [1, 1]} : vector<20x34xf32> to vector<20x1xf32>
    %31 = vector.shape_cast %30 : vector<20x1xf32> to vector<1x20x1xf32>
    %32 = vector.broadcast %29 : vector<2x1x1024xf32> to vector<2x20x1024xf32>
    %33 = vector.broadcast %31 : vector<1x20x1xf32> to vector<2x20x1024xf32>
    %34 = arith.mulf %32, %33 : vector<2x20x1024xf32>
    %35 = arith.addf %27, %34 : vector<2x20x1024xf32>
    %36 = vector.extract_strided_slice %0 {offsets = [0, 4], sizes = [2, 1024], strides = [1, 1]} : vector<2x1057xf32> to vector<2x1024xf32>
    %37 = vector.shape_cast %36 : vector<2x1024xf32> to vector<2x1x1024xf32>
    %38 = vector.extract_strided_slice %1 {offsets = [0, 4], sizes = [20, 1], strides = [1, 1]} : vector<20x34xf32> to vector<20x1xf32>
    %39 = vector.shape_cast %38 : vector<20x1xf32> to vector<1x20x1xf32>
    %40 = vector.broadcast %37 : vector<2x1x1024xf32> to vector<2x20x1024xf32>
    %41 = vector.broadcast %39 : vector<1x20x1xf32> to vector<2x20x1024xf32>
    %42 = arith.mulf %40, %41 : vector<2x20x1024xf32>
    %43 = arith.addf %35, %42 : vector<2x20x1024xf32>
    %44 = vector.extract_strided_slice %0 {offsets = [0, 5], sizes = [2, 1024], strides = [1, 1]} : vector<2x1057xf32> to vector<2x1024xf32>
    %45 = vector.shape_cast %44 : vector<2x1024xf32> to vector<2x1x1024xf32>
    %46 = vector.extract_strided_slice %1 {offsets = [0, 5], sizes = [20, 1], strides = [1, 1]} : vector<20x34xf32> to vector<20x1xf32>
    %47 = vector.shape_cast %46 : vector<20x1xf32> to vector<1x20x1xf32>
    %48 = vector.broadcast %45 : vector<2x1x1024xf32> to vector<2x20x1024xf32>
    %49 = vector.broadcast %47 : vector<1x20x1xf32> to vector<2x20x1024xf32>
    %50 = arith.mulf %48, %49 : vector<2x20x1024xf32>
    %51 = arith.addf %43, %50 : vector<2x20x1024xf32>
    %52 = vector.extract_strided_slice %0 {offsets = [0, 6], sizes = [2, 1024], strides = [1, 1]} : vector<2x1057xf32> to vector<2x1024xf32>
    %53 = vector.shape_cast %52 : vector<2x1024xf32> to vector<2x1x1024xf32>
    %54 = vector.extract_strided_slice %1 {offsets = [0, 6], sizes = [20, 1], strides = [1, 1]} : vector<20x34xf32> to vector<20x1xf32>
    %55 = vector.shape_cast %54 : vector<20x1xf32> to vector<1x20x1xf32>
    %56 = vector.broadcast %53 : vector<2x1x1024xf32> to vector<2x20x1024xf32>
    %57 = vector.broadcast %55 : vector<1x20x1xf32> to vector<2x20x1024xf32>
    %58 = arith.mulf %56, %57 : vector<2x20x1024xf32>
    %59 = arith.addf %51, %58 : vector<2x20x1024xf32>
    %60 = vector.extract_strided_slice %0 {offsets = [0, 7], sizes = [2, 1024], strides = [1, 1]} : vector<2x1057xf32> to vector<2x1024xf32>
    %61 = vector.shape_cast %60 : vector<2x1024xf32> to vector<2x1x1024xf32>
    %62 = vector.extract_strided_slice %1 {offsets = [0, 7], sizes = [20, 1], strides = [1, 1]} : vector<20x34xf32> to vector<20x1xf32>
    %63 = vector.shape_cast %62 : vector<20x1xf32> to vector<1x20x1xf32>
    %64 = vector.broadcast %61 : vector<2x1x1024xf32> to vector<2x20x1024xf32>
    %65 = vector.broadcast %63 : vector<1x20x1xf32> to vector<2x20x1024xf32>
    %66 = arith.mulf %64, %65 : vector<2x20x1024xf32>
    %67 = arith.addf %59, %66 : vector<2x20x1024xf32>
    %68 = vector.extract_strided_slice %0 {offsets = [0, 8], sizes = [2, 1024], strides = [1, 1]} : vector<2x1057xf32> to vector<2x1024xf32>
    %69 = vector.shape_cast %68 : vector<2x1024xf32> to vector<2x1x1024xf32>
    %70 = vector.extract_strided_slice %1 {offsets = [0, 8], sizes = [20, 1], strides = [1, 1]} : vector<20x34xf32> to vector<20x1xf32>
    %71 = vector.shape_cast %70 : vector<20x1xf32> to vector<1x20x1xf32>
    %72 = vector.broadcast %69 : vector<2x1x1024xf32> to vector<2x20x1024xf32>
    %73 = vector.broadcast %71 : vector<1x20x1xf32> to vector<2x20x1024xf32>
    %74 = arith.mulf %72, %73 : vector<2x20x1024xf32>
    %75 = arith.addf %67, %74 : vector<2x20x1024xf32>
    %76 = vector.extract_strided_slice %0 {offsets = [0, 9], sizes = [2, 1024], strides = [1, 1]} : vector<2x1057xf32> to vector<2x1024xf32>
    %77 = vector.shape_cast %76 : vector<2x1024xf32> to vector<2x1x1024xf32>
    %78 = vector.extract_strided_slice %1 {offsets = [0, 9], sizes = [20, 1], strides = [1, 1]} : vector<20x34xf32> to vector<20x1xf32>
    %79 = vector.shape_cast %78 : vector<20x1xf32> to vector<1x20x1xf32>
    %80 = vector.broadcast %77 : vector<2x1x1024xf32> to vector<2x20x1024xf32>
    %81 = vector.broadcast %79 : vector<1x20x1xf32> to vector<2x20x1024xf32>
    %82 = arith.mulf %80, %81 : vector<2x20x1024xf32>
    %83 = arith.addf %75, %82 : vector<2x20x1024xf32>
    %84 = vector.extract_strided_slice %0 {offsets = [0, 10], sizes = [2, 1024], strides = [1, 1]} : vector<2x1057xf32> to vector<2x1024xf32>
    %85 = vector.shape_cast %84 : vector<2x1024xf32> to vector<2x1x1024xf32>
    %86 = vector.extract_strided_slice %1 {offsets = [0, 10], sizes = [20, 1], strides = [1, 1]} : vector<20x34xf32> to vector<20x1xf32>
    %87 = vector.shape_cast %86 : vector<20x1xf32> to vector<1x20x1xf32>
    %88 = vector.broadcast %85 : vector<2x1x1024xf32> to vector<2x20x1024xf32>
    %89 = vector.broadcast %87 : vector<1x20x1xf32> to vector<2x20x1024xf32>
    %90 = arith.mulf %88, %89 : vector<2x20x1024xf32>
    %91 = arith.addf %83, %90 : vector<2x20x1024xf32>
    %92 = vector.extract_strided_slice %0 {offsets = [0, 11], sizes = [2, 1024], strides = [1, 1]} : vector<2x1057xf32> to vector<2x1024xf32>
    %93 = vector.shape_cast %92 : vector<2x1024xf32> to vector<2x1x1024xf32>
    %94 = vector.extract_strided_slice %1 {offsets = [0, 11], sizes = [20, 1], strides = [1, 1]} : vector<20x34xf32> to vector<20x1xf32>
    %95 = vector.shape_cast %94 : vector<20x1xf32> to vector<1x20x1xf32>
    %96 = vector.broadcast %93 : vector<2x1x1024xf32> to vector<2x20x1024xf32>
    %97 = vector.broadcast %95 : vector<1x20x1xf32> to vector<2x20x1024xf32>
    %98 = arith.mulf %96, %97 : vector<2x20x1024xf32>
    %99 = arith.addf %91, %98 : vector<2x20x1024xf32>
    %100 = vector.extract_strided_slice %0 {offsets = [0, 12], sizes = [2, 1024], strides = [1, 1]} : vector<2x1057xf32> to vector<2x1024xf32>
    %101 = vector.shape_cast %100 : vector<2x1024xf32> to vector<2x1x1024xf32>
    %102 = vector.extract_strided_slice %1 {offsets = [0, 12], sizes = [20, 1], strides = [1, 1]} : vector<20x34xf32> to vector<20x1xf32>
    %103 = vector.shape_cast %102 : vector<20x1xf32> to vector<1x20x1xf32>
    %104 = vector.broadcast %101 : vector<2x1x1024xf32> to vector<2x20x1024xf32>
    %105 = vector.broadcast %103 : vector<1x20x1xf32> to vector<2x20x1024xf32>
    %106 = arith.mulf %104, %105 : vector<2x20x1024xf32>
    %107 = arith.addf %99, %106 : vector<2x20x1024xf32>
    %108 = vector.extract_strided_slice %0 {offsets = [0, 13], sizes = [2, 1024], strides = [1, 1]} : vector<2x1057xf32> to vector<2x1024xf32>
    %109 = vector.shape_cast %108 : vector<2x1024xf32> to vector<2x1x1024xf32>
    %110 = vector.extract_strided_slice %1 {offsets = [0, 13], sizes = [20, 1], strides = [1, 1]} : vector<20x34xf32> to vector<20x1xf32>
    %111 = vector.shape_cast %110 : vector<20x1xf32> to vector<1x20x1xf32>
    %112 = vector.broadcast %109 : vector<2x1x1024xf32> to vector<2x20x1024xf32>
    %113 = vector.broadcast %111 : vector<1x20x1xf32> to vector<2x20x1024xf32>
    %114 = arith.mulf %112, %113 : vector<2x20x1024xf32>
    %115 = arith.addf %107, %114 : vector<2x20x1024xf32>
    %116 = vector.extract_strided_slice %0 {offsets = [0, 14], sizes = [2, 1024], strides = [1, 1]} : vector<2x1057xf32> to vector<2x1024xf32>
    %117 = vector.shape_cast %116 : vector<2x1024xf32> to vector<2x1x1024xf32>
    %118 = vector.extract_strided_slice %1 {offsets = [0, 14], sizes = [20, 1], strides = [1, 1]} : vector<20x34xf32> to vector<20x1xf32>
    %119 = vector.shape_cast %118 : vector<20x1xf32> to vector<1x20x1xf32>
    %120 = vector.broadcast %117 : vector<2x1x1024xf32> to vector<2x20x1024xf32>
    %121 = vector.broadcast %119 : vector<1x20x1xf32> to vector<2x20x1024xf32>
    %122 = arith.mulf %120, %121 : vector<2x20x1024xf32>
    %123 = arith.addf %115, %122 : vector<2x20x1024xf32>
    %124 = vector.extract_strided_slice %0 {offsets = [0, 15], sizes = [2, 1024], strides = [1, 1]} : vector<2x1057xf32> to vector<2x1024xf32>
    %125 = vector.shape_cast %124 : vector<2x1024xf32> to vector<2x1x1024xf32>
    %126 = vector.extract_strided_slice %1 {offsets = [0, 15], sizes = [20, 1], strides = [1, 1]} : vector<20x34xf32> to vector<20x1xf32>
    %127 = vector.shape_cast %126 : vector<20x1xf32> to vector<1x20x1xf32>
    %128 = vector.broadcast %125 : vector<2x1x1024xf32> to vector<2x20x1024xf32>
    %129 = vector.broadcast %127 : vector<1x20x1xf32> to vector<2x20x1024xf32>
    %130 = arith.mulf %128, %129 : vector<2x20x1024xf32>
    %131 = arith.addf %123, %130 : vector<2x20x1024xf32>
    %132 = vector.extract_strided_slice %0 {offsets = [0, 16], sizes = [2, 1024], strides = [1, 1]} : vector<2x1057xf32> to vector<2x1024xf32>
    %133 = vector.shape_cast %132 : vector<2x1024xf32> to vector<2x1x1024xf32>
    %134 = vector.extract_strided_slice %1 {offsets = [0, 16], sizes = [20, 1], strides = [1, 1]} : vector<20x34xf32> to vector<20x1xf32>
    %135 = vector.shape_cast %134 : vector<20x1xf32> to vector<1x20x1xf32>
    %136 = vector.broadcast %133 : vector<2x1x1024xf32> to vector<2x20x1024xf32>
    %137 = vector.broadcast %135 : vector<1x20x1xf32> to vector<2x20x1024xf32>
    %138 = arith.mulf %136, %137 : vector<2x20x1024xf32>
    %139 = arith.addf %131, %138 : vector<2x20x1024xf32>
    %140 = vector.extract_strided_slice %0 {offsets = [0, 17], sizes = [2, 1024], strides = [1, 1]} : vector<2x1057xf32> to vector<2x1024xf32>
    %141 = vector.shape_cast %140 : vector<2x1024xf32> to vector<2x1x1024xf32>
    %142 = vector.extract_strided_slice %1 {offsets = [0, 17], sizes = [20, 1], strides = [1, 1]} : vector<20x34xf32> to vector<20x1xf32>
    %143 = vector.shape_cast %142 : vector<20x1xf32> to vector<1x20x1xf32>
    %144 = vector.broadcast %141 : vector<2x1x1024xf32> to vector<2x20x1024xf32>
    %145 = vector.broadcast %143 : vector<1x20x1xf32> to vector<2x20x1024xf32>
    %146 = arith.mulf %144, %145 : vector<2x20x1024xf32>
    %147 = arith.addf %139, %146 : vector<2x20x1024xf32>
    %148 = vector.extract_strided_slice %0 {offsets = [0, 18], sizes = [2, 1024], strides = [1, 1]} : vector<2x1057xf32> to vector<2x1024xf32>
    %149 = vector.shape_cast %148 : vector<2x1024xf32> to vector<2x1x1024xf32>
    %150 = vector.extract_strided_slice %1 {offsets = [0, 18], sizes = [20, 1], strides = [1, 1]} : vector<20x34xf32> to vector<20x1xf32>
    %151 = vector.shape_cast %150 : vector<20x1xf32> to vector<1x20x1xf32>
    %152 = vector.broadcast %149 : vector<2x1x1024xf32> to vector<2x20x1024xf32>
    %153 = vector.broadcast %151 : vector<1x20x1xf32> to vector<2x20x1024xf32>
    %154 = arith.mulf %152, %153 : vector<2x20x1024xf32>
    %155 = arith.addf %147, %154 : vector<2x20x1024xf32>
    %156 = vector.extract_strided_slice %0 {offsets = [0, 19], sizes = [2, 1024], strides = [1, 1]} : vector<2x1057xf32> to vector<2x1024xf32>
    %157 = vector.shape_cast %156 : vector<2x1024xf32> to vector<2x1x1024xf32>
    %158 = vector.extract_strided_slice %1 {offsets = [0, 19], sizes = [20, 1], strides = [1, 1]} : vector<20x34xf32> to vector<20x1xf32>
    %159 = vector.shape_cast %158 : vector<20x1xf32> to vector<1x20x1xf32>
    %160 = vector.broadcast %157 : vector<2x1x1024xf32> to vector<2x20x1024xf32>
    %161 = vector.broadcast %159 : vector<1x20x1xf32> to vector<2x20x1024xf32>
    %162 = arith.mulf %160, %161 : vector<2x20x1024xf32>
    %163 = arith.addf %155, %162 : vector<2x20x1024xf32>
    %164 = vector.extract_strided_slice %0 {offsets = [0, 20], sizes = [2, 1024], strides = [1, 1]} : vector<2x1057xf32> to vector<2x1024xf32>
    %165 = vector.shape_cast %164 : vector<2x1024xf32> to vector<2x1x1024xf32>
    %166 = vector.extract_strided_slice %1 {offsets = [0, 20], sizes = [20, 1], strides = [1, 1]} : vector<20x34xf32> to vector<20x1xf32>
    %167 = vector.shape_cast %166 : vector<20x1xf32> to vector<1x20x1xf32>
    %168 = vector.broadcast %165 : vector<2x1x1024xf32> to vector<2x20x1024xf32>
    %169 = vector.broadcast %167 : vector<1x20x1xf32> to vector<2x20x1024xf32>
    %170 = arith.mulf %168, %169 : vector<2x20x1024xf32>
    %171 = arith.addf %163, %170 : vector<2x20x1024xf32>
    %172 = vector.extract_strided_slice %0 {offsets = [0, 21], sizes = [2, 1024], strides = [1, 1]} : vector<2x1057xf32> to vector<2x1024xf32>
    %173 = vector.shape_cast %172 : vector<2x1024xf32> to vector<2x1x1024xf32>
    %174 = vector.extract_strided_slice %1 {offsets = [0, 21], sizes = [20, 1], strides = [1, 1]} : vector<20x34xf32> to vector<20x1xf32>
    %175 = vector.shape_cast %174 : vector<20x1xf32> to vector<1x20x1xf32>
    %176 = vector.broadcast %173 : vector<2x1x1024xf32> to vector<2x20x1024xf32>
    %177 = vector.broadcast %175 : vector<1x20x1xf32> to vector<2x20x1024xf32>
    %178 = arith.mulf %176, %177 : vector<2x20x1024xf32>
    %179 = arith.addf %171, %178 : vector<2x20x1024xf32>
    %180 = vector.extract_strided_slice %0 {offsets = [0, 22], sizes = [2, 1024], strides = [1, 1]} : vector<2x1057xf32> to vector<2x1024xf32>
    %181 = vector.shape_cast %180 : vector<2x1024xf32> to vector<2x1x1024xf32>
    %182 = vector.extract_strided_slice %1 {offsets = [0, 22], sizes = [20, 1], strides = [1, 1]} : vector<20x34xf32> to vector<20x1xf32>
    %183 = vector.shape_cast %182 : vector<20x1xf32> to vector<1x20x1xf32>
    %184 = vector.broadcast %181 : vector<2x1x1024xf32> to vector<2x20x1024xf32>
    %185 = vector.broadcast %183 : vector<1x20x1xf32> to vector<2x20x1024xf32>
    %186 = arith.mulf %184, %185 : vector<2x20x1024xf32>
    %187 = arith.addf %179, %186 : vector<2x20x1024xf32>
    %188 = vector.extract_strided_slice %0 {offsets = [0, 23], sizes = [2, 1024], strides = [1, 1]} : vector<2x1057xf32> to vector<2x1024xf32>
    %189 = vector.shape_cast %188 : vector<2x1024xf32> to vector<2x1x1024xf32>
    %190 = vector.extract_strided_slice %1 {offsets = [0, 23], sizes = [20, 1], strides = [1, 1]} : vector<20x34xf32> to vector<20x1xf32>
    %191 = vector.shape_cast %190 : vector<20x1xf32> to vector<1x20x1xf32>
    %192 = vector.broadcast %189 : vector<2x1x1024xf32> to vector<2x20x1024xf32>
    %193 = vector.broadcast %191 : vector<1x20x1xf32> to vector<2x20x1024xf32>
    %194 = arith.mulf %192, %193 : vector<2x20x1024xf32>
    %195 = arith.addf %187, %194 : vector<2x20x1024xf32>
    %196 = vector.extract_strided_slice %0 {offsets = [0, 24], sizes = [2, 1024], strides = [1, 1]} : vector<2x1057xf32> to vector<2x1024xf32>
    %197 = vector.shape_cast %196 : vector<2x1024xf32> to vector<2x1x1024xf32>
    %198 = vector.extract_strided_slice %1 {offsets = [0, 24], sizes = [20, 1], strides = [1, 1]} : vector<20x34xf32> to vector<20x1xf32>
    %199 = vector.shape_cast %198 : vector<20x1xf32> to vector<1x20x1xf32>
    %200 = vector.broadcast %197 : vector<2x1x1024xf32> to vector<2x20x1024xf32>
    %201 = vector.broadcast %199 : vector<1x20x1xf32> to vector<2x20x1024xf32>
    %202 = arith.mulf %200, %201 : vector<2x20x1024xf32>
    %203 = arith.addf %195, %202 : vector<2x20x1024xf32>
    %204 = vector.extract_strided_slice %0 {offsets = [0, 25], sizes = [2, 1024], strides = [1, 1]} : vector<2x1057xf32> to vector<2x1024xf32>
    %205 = vector.shape_cast %204 : vector<2x1024xf32> to vector<2x1x1024xf32>
    %206 = vector.extract_strided_slice %1 {offsets = [0, 25], sizes = [20, 1], strides = [1, 1]} : vector<20x34xf32> to vector<20x1xf32>
    %207 = vector.shape_cast %206 : vector<20x1xf32> to vector<1x20x1xf32>
    %208 = vector.broadcast %205 : vector<2x1x1024xf32> to vector<2x20x1024xf32>
    %209 = vector.broadcast %207 : vector<1x20x1xf32> to vector<2x20x1024xf32>
    %210 = arith.mulf %208, %209 : vector<2x20x1024xf32>
    %211 = arith.addf %203, %210 : vector<2x20x1024xf32>
    %212 = vector.extract_strided_slice %0 {offsets = [0, 26], sizes = [2, 1024], strides = [1, 1]} : vector<2x1057xf32> to vector<2x1024xf32>
    %213 = vector.shape_cast %212 : vector<2x1024xf32> to vector<2x1x1024xf32>
    %214 = vector.extract_strided_slice %1 {offsets = [0, 26], sizes = [20, 1], strides = [1, 1]} : vector<20x34xf32> to vector<20x1xf32>
    %215 = vector.shape_cast %214 : vector<20x1xf32> to vector<1x20x1xf32>
    %216 = vector.broadcast %213 : vector<2x1x1024xf32> to vector<2x20x1024xf32>
    %217 = vector.broadcast %215 : vector<1x20x1xf32> to vector<2x20x1024xf32>
    %218 = arith.mulf %216, %217 : vector<2x20x1024xf32>
    %219 = arith.addf %211, %218 : vector<2x20x1024xf32>
    %220 = vector.extract_strided_slice %0 {offsets = [0, 27], sizes = [2, 1024], strides = [1, 1]} : vector<2x1057xf32> to vector<2x1024xf32>
    %221 = vector.shape_cast %220 : vector<2x1024xf32> to vector<2x1x1024xf32>
    %222 = vector.extract_strided_slice %1 {offsets = [0, 27], sizes = [20, 1], strides = [1, 1]} : vector<20x34xf32> to vector<20x1xf32>
    %223 = vector.shape_cast %222 : vector<20x1xf32> to vector<1x20x1xf32>
    %224 = vector.broadcast %221 : vector<2x1x1024xf32> to vector<2x20x1024xf32>
    %225 = vector.broadcast %223 : vector<1x20x1xf32> to vector<2x20x1024xf32>
    %226 = arith.mulf %224, %225 : vector<2x20x1024xf32>
    %227 = arith.addf %219, %226 : vector<2x20x1024xf32>
    %228 = vector.extract_strided_slice %0 {offsets = [0, 28], sizes = [2, 1024], strides = [1, 1]} : vector<2x1057xf32> to vector<2x1024xf32>
    %229 = vector.shape_cast %228 : vector<2x1024xf32> to vector<2x1x1024xf32>
    %230 = vector.extract_strided_slice %1 {offsets = [0, 28], sizes = [20, 1], strides = [1, 1]} : vector<20x34xf32> to vector<20x1xf32>
    %231 = vector.shape_cast %230 : vector<20x1xf32> to vector<1x20x1xf32>
    %232 = vector.broadcast %229 : vector<2x1x1024xf32> to vector<2x20x1024xf32>
    %233 = vector.broadcast %231 : vector<1x20x1xf32> to vector<2x20x1024xf32>
    %234 = arith.mulf %232, %233 : vector<2x20x1024xf32>
    %235 = arith.addf %227, %234 : vector<2x20x1024xf32>
    %236 = vector.extract_strided_slice %0 {offsets = [0, 29], sizes = [2, 1024], strides = [1, 1]} : vector<2x1057xf32> to vector<2x1024xf32>
    %237 = vector.shape_cast %236 : vector<2x1024xf32> to vector<2x1x1024xf32>
    %238 = vector.extract_strided_slice %1 {offsets = [0, 29], sizes = [20, 1], strides = [1, 1]} : vector<20x34xf32> to vector<20x1xf32>
    %239 = vector.shape_cast %238 : vector<20x1xf32> to vector<1x20x1xf32>
    %240 = vector.broadcast %237 : vector<2x1x1024xf32> to vector<2x20x1024xf32>
    %241 = vector.broadcast %239 : vector<1x20x1xf32> to vector<2x20x1024xf32>
    %242 = arith.mulf %240, %241 : vector<2x20x1024xf32>
    %243 = arith.addf %235, %242 : vector<2x20x1024xf32>
    %244 = vector.extract_strided_slice %0 {offsets = [0, 30], sizes = [2, 1024], strides = [1, 1]} : vector<2x1057xf32> to vector<2x1024xf32>
    %245 = vector.shape_cast %244 : vector<2x1024xf32> to vector<2x1x1024xf32>
    %246 = vector.extract_strided_slice %1 {offsets = [0, 30], sizes = [20, 1], strides = [1, 1]} : vector<20x34xf32> to vector<20x1xf32>
    %247 = vector.shape_cast %246 : vector<20x1xf32> to vector<1x20x1xf32>
    %248 = vector.broadcast %245 : vector<2x1x1024xf32> to vector<2x20x1024xf32>
    %249 = vector.broadcast %247 : vector<1x20x1xf32> to vector<2x20x1024xf32>
    %250 = arith.mulf %248, %249 : vector<2x20x1024xf32>
    %251 = arith.addf %243, %250 : vector<2x20x1024xf32>
    %252 = vector.extract_strided_slice %0 {offsets = [0, 31], sizes = [2, 1024], strides = [1, 1]} : vector<2x1057xf32> to vector<2x1024xf32>
    %253 = vector.shape_cast %252 : vector<2x1024xf32> to vector<2x1x1024xf32>
    %254 = vector.extract_strided_slice %1 {offsets = [0, 31], sizes = [20, 1], strides = [1, 1]} : vector<20x34xf32> to vector<20x1xf32>
    %255 = vector.shape_cast %254 : vector<20x1xf32> to vector<1x20x1xf32>
    %256 = vector.broadcast %253 : vector<2x1x1024xf32> to vector<2x20x1024xf32>
    %257 = vector.broadcast %255 : vector<1x20x1xf32> to vector<2x20x1024xf32>
    %258 = arith.mulf %256, %257 : vector<2x20x1024xf32>
    %259 = arith.addf %251, %258 : vector<2x20x1024xf32>
    %260 = vector.extract_strided_slice %0 {offsets = [0, 32], sizes = [2, 1024], strides = [1, 1]} : vector<2x1057xf32> to vector<2x1024xf32>
    %261 = vector.shape_cast %260 : vector<2x1024xf32> to vector<2x1x1024xf32>
    %262 = vector.extract_strided_slice %1 {offsets = [0, 32], sizes = [20, 1], strides = [1, 1]} : vector<20x34xf32> to vector<20x1xf32>
    %263 = vector.shape_cast %262 : vector<20x1xf32> to vector<1x20x1xf32>
    %264 = vector.broadcast %261 : vector<2x1x1024xf32> to vector<2x20x1024xf32>
    %265 = vector.broadcast %263 : vector<1x20x1xf32> to vector<2x20x1024xf32>
    %266 = arith.mulf %264, %265 : vector<2x20x1024xf32>
    %267 = arith.addf %259, %266 : vector<2x20x1024xf32>
    %268 = vector.extract_strided_slice %0 {offsets = [0, 33], sizes = [2, 1024], strides = [1, 1]} : vector<2x1057xf32> to vector<2x1024xf32>
    %269 = vector.shape_cast %268 : vector<2x1024xf32> to vector<2x1x1024xf32>
    %270 = vector.extract_strided_slice %1 {offsets = [0, 33], sizes = [20, 1], strides = [1, 1]} : vector<20x34xf32> to vector<20x1xf32>
    %271 = vector.shape_cast %270 : vector<20x1xf32> to vector<1x20x1xf32>
    %272 = vector.broadcast %269 : vector<2x1x1024xf32> to vector<2x20x1024xf32>
    %273 = vector.broadcast %271 : vector<1x20x1xf32> to vector<2x20x1024xf32>
    %274 = arith.mulf %272, %273 : vector<2x20x1024xf32>
    %275 = arith.addf %267, %274 : vector<2x20x1024xf32>
    %276 = vector.shape_cast %2 : vector<20x1xf32> to vector<1x20x1xf32>
    %277 = vector.broadcast %276 : vector<1x20x1xf32> to vector<2x20x1024xf32>
    %278 = arith.addf %275, %277 : vector<2x20x1024xf32>
    %279 = vector.shape_cast %278 : vector<2x20x1024xf32> to vector<2x20x2x512xf32>
    %cst_5 = arith.constant dense<0xFF800000> : vector<2x20x2xf32>
    %280 = vector.multi_reduction <maximumf>, %279, %cst_5 [3] : vector<2x20x2x512xf32> to vector<2x20x2xf32>
    %281 = vector.shape_cast %280 : vector<2x20x2xf32> to vector<2x40xf32>
    %c0_6 = arith.constant 0 : index
    %c0_7 = arith.constant 0 : index
    %282 = vector.load %arg4[%c0_6, %c0_7] : memref<2x40xf32, #tpu.memory_space<vmem>>, vector<2x40xf32>
    tpu.vector_store %arg4[%c0_6, %c0_7], %281 {strides = array<i32>} : memref<2x40xf32, #tpu.memory_space<vmem>>, vector<2x40xf32>,
    return
  }
  func.func @transform_0(%arg0: i32) -> (i32, i32) {
    %c0_i32 = arith.constant 0 : i32
    %c0_i32_0 = arith.constant 0 : i32
    return %arg0, %c0_i32 : i32, i32
  }
  func.func @transform_1(%arg0: i32) -> (i32, i32) {
    %c0_i32 = arith.constant 0 : i32
    %c0_i32_0 = arith.constant 0 : i32
    %c0_i32_1 = arith.constant 0 : i32
    return %c0_i32, %c0_i32_0 : i32, i32
  }
  func.func @transform_2(%arg0: i32) -> (i32, i32) {
    %c0_i32 = arith.constant 0 : i32
    %c0_i32_0 = arith.constant 0 : i32
    %c0_i32_1 = arith.constant 0 : i32
    return %c0_i32, %c0_i32_0 : i32, i32
  }
  func.func @transform_3(%arg0: i32) -> (i32, i32) {
    %c0_i32 = arith.constant 0 : i32
    %c0_i32_0 = arith.constant 0 : i32
    return %arg0, %c0_i32 : i32, i32
  }
}

</mosaic_0001>

<llo_original>
// kernel: tpu_custom_call.1
$region0: #{tpu_custom_call.1}
  #allocation0 [shape = 'u32[]', space=smem, size = 0x4, offset = 0x4, fixed_abs, tag = 'smem constant byte address 0x4 - core index']
  #allocation1 [shape = 'u32[144,128]{1,0:T(1,128)}', space=vmem, size = 0x12000, scoped, tag = 'internal scratch']
  %s0 = inlined_call_operand.hbm [shape: f32[2,1057], index: 0, kind: input, shape index: {}]
  %s1 = inlined_call_operand.vmem [shape: f32[20,34], index: 1, kind: input, shape index: {}]
  %s2 = inlined_call_operand.vmem [shape: f32[20,1], index: 2, kind: input, shape index: {}]
  %s3 = inlined_call_operand.hbm [shape: f32[2,40], index: 3, kind: output, shape index: {}]
  %s4 = sld [smem:[#allocation0]]
  $region26: #{tpu_custom_call.1} parent=0
    _
  %s6 = ssub.s32 1, %s4
  %s7 = scalar_select 0, %s6, %s4
  $region1: #{tpu_custom_call.1} parent=0
    #allocation2 [shape = 'u8[9216]{0}', space=vmem, size = 0x2400, scoped, tag = 'input window, operand 0, single buffered']
    #allocation3 [shape = 's32[1]{0}', space=sflag, size = 0x4, scoped, tag = 'scoped memory for tpu_custom_call.1']
    #allocation4 [shape = 's32[1]{0}', space=sflag, size = 0x4, scoped, tag = 'scoped memory for tpu_custom_call.1']
    #allocation5 [shape = 'u8[1024]{0}', space=vmem, size = 0x400, scoped, tag = 'output window, operand 0, single buffered']
    %8 = vsyncpa [#allocation3], 0
    %9 = vsyncpa [#allocation4], 0
    // Predicated region
    $region2: #{tpu_custom_call.1} parent=1 // pred_check
      _
    $region3: #{tpu_custom_call.1} parent=1 // pred_check_branch
      %11 = sbr.rel (0) target = $region5
    $region4: #{tpu_custom_call.1} parent=1 // pred_region
      %s13 = ssub.s32 288, 288
      %14 = vsyncadd [#allocation3], %s13
      %s16 = sshll.u32 [#allocation2], 4
      %s17 = int_to_ptr.vmem [resolvable:$true] %s16
      %19 = dma.hbm_to_vmem [thread:$0]  %s0, 288, %s17, [#allocation3]
    $region5: #{tpu_custom_call.1} parent=1 // pred_fallthru
      _
    // Predicated region
    $region6: #{tpu_custom_call.1} parent=1 // pred_check
      _
    $region7: #{tpu_custom_call.1} parent=1 // pred_check_branch
      %21 = sbr.rel (0) target = $region9
    $region8: #{tpu_custom_call.1} parent=1 // pred_region
      _
    $region9: #{tpu_custom_call.1} parent=1 // pred_fallthru
      _
    // Predicated region
    $region10: #{tpu_custom_call.1} parent=1 // pred_check
      _
    $region11: #{tpu_custom_call.1} parent=1 // pred_check_branch
      %23 = sbr.rel (0) target = $region13
    $region12: #{tpu_custom_call.1} parent=1 // pred_region
      _
    $region13: #{tpu_custom_call.1} parent=1 // pred_fallthru
      _
    // Predicated region
    $region14: #{tpu_custom_call.1} parent=1 // pred_check
      _
    $region15: #{tpu_custom_call.1} parent=1 // pred_check_branch
      %25 = sbr.rel (0) target = $region17
    $region16: #{tpu_custom_call.1} parent=1 // pred_region
      %26 = dma.done [#allocation3], 288
    $region17: #{tpu_custom_call.1} parent=1 // pred_fallthru
      _
    %v27 = vld [vmem:[#allocation2] sm:$0xff]
    %v28 = vld [vmem:[#allocation2 + $0x8] sm:$0xff]
    %v29 = vld [vmem:[#allocation2 + $0x10] sm:$0x3]
    %v30 = vld [vmem:[%s1] sm:$0xff]
    %v31 = vld [vmem:[%s1 + $0x8] sm:$0xff]
    %v32 = vld [vmem:[%s1 + $0x10] sm:$0xf]
    %v33 = vld [vmem:[%s2] sm:$0xff]
    %v34 = vld [vmem:[%s2 + $0x8] sm:$0xff]
    %v35 = vld [vmem:[%s2 + $0x10] sm:$0xf]
    %v39 = vunpack.c.l.s4 1966171168
    %v40 = vunpack.c.0.s8 %v39
    %v41 = vlaneseq
    %v42 = vshrl.u32 %v41, 7
    %v43 = vsub.s32 %v40, %v42
    %v44 = vrot.slane %v27, %v43
    %v46 = vunpack.c.l.s4 1966171168
    %v47 = vunpack.c.0.s8 %v46
    %v48 = vlaneseq
    %v49 = vshrl.u32 %v48, 7
    %v50 = vsub.s32 %v47, %v49
    %v51 = vrot.slane %v28, %v50
    %v52 = vcombine.low %v44, %v51
    %v53 = vcombine.high %v44, %v51
    %v54 = vlaneseq
    %v55 = vshrl.u32 %v54, 7
    %v56 = vsub.s32 0, %v55
    %v57 = vrot.slane %v52, %v56
    %v58 = vlaneseq
    %v59 = vshrl.u32 %v58, 7
    %v60 = vsub.s32 1, %v59
    %v61 = vrot.slane %v52, %v60
    %v62 = vlaneseq
    %v63 = vshrl.u32 %v62, 7
    %v64 = vsub.s32 2, %v63
    %v65 = vrot.slane %v52, %v64
    %v66 = vlaneseq
    %v67 = vshrl.u32 %v66, 7
    %v68 = vsub.s32 3, %v67
    %v69 = vrot.slane %v52, %v68
    %v70 = vlaneseq
    %v71 = vshrl.u32 %v70, 7
    %v72 = vsub.s32 4, %v71
    %v73 = vrot.slane %v52, %v72
    %v74 = vlaneseq
    %v75 = vshrl.u32 %v74, 7
    %v76 = vsub.s32 5, %v75
    %v77 = vrot.slane %v52, %v76
    %v78 = vlaneseq
    %v79 = vshrl.u32 %v78, 7
    %v80 = vsub.s32 6, %v79
    %v81 = vrot.slane %v52, %v80
    %v82 = vlaneseq
    %v83 = vshrl.u32 %v82, 7
    %v84 = vsub.s32 7, %v83
    %v85 = vrot.slane %v52, %v84
    %v86 = vlaneseq
    %v87 = vshrl.u32 %v86, 7
    %v88 = vsub.s32 0, %v87
    %v89 = vrot.slane %v53, %v88
    %v90 = vlaneseq
    %v91 = vshrl.u32 %v90, 7
    %v92 = vsub.s32 1, %v91
    %v93 = vrot.slane %v53, %v92
    %v94 = vlaneseq
    %v95 = vshrl.u32 %v94, 7
    %v96 = vsub.s32 2, %v95
    %v97 = vrot.slane %v53, %v96
    %v98 = vlaneseq
    %v99 = vshrl.u32 %v98, 7
    %v100 = vsub.s32 3, %v99
    %v101 = vrot.slane %v53, %v100
    %v102 = vlaneseq
    %v103 = vshrl.u32 %v102, 7
    %v104 = vsub.s32 4, %v103
    %v105 = vrot.slane %v53, %v104
    %v106 = vlaneseq
    %v107 = vshrl.u32 %v106, 7
    %v108 = vsub.s32 5, %v107
    %v109 = vrot.slane %v53, %v108
    %v110 = vlaneseq
    %v111 = vshrl.u32 %v110, 7
    %v112 = vsub.s32 6, %v111
    %v113 = vrot.slane %v53, %v112
    %v114 = vlaneseq
    %v115 = vshrl.u32 %v114, 7
    %v116 = vsub.s32 7, %v115
    %v117 = vrot.slane %v53, %v116
    %135 = vset.pattern.permute.xlu0 0
    %136 = vperm.xlu0 %135, %v30
    %v137 = vpop.permute.xlu0 %136
    %140 = vset.pattern.permute.xlu0 0
    %141 = vperm.xlu0 %140, %v31
    %v142 = vpop.permute.xlu0 %141
    %145 = vset.pattern.permute.xlu0 0
    %146 = vperm.xlu0 %145, %v32
    %v147 = vpop.permute.xlu0 %146
    %v149 = vmul.f32 %v57, %v137
    %v150 = vmul.f32 %v61, %v137
    %v151 = vmul.f32 %v65, %v137
    %v152 = vmul.f32 %v69, %v137
    %v153 = vmul.f32 %v73, %v137
    %v154 = vmul.f32 %v77, %v137
    %v155 = vmul.f32 %v81, %v137
    %v156 = vmul.f32 %v85, %v137
    %v157 = vmul.f32 %v57, %v142
    %v158 = vmul.f32 %v61, %v142
    %v159 = vmul.f32 %v65, %v142
    %v160 = vmul.f32 %v69, %v142
    %v161 = vmul.f32 %v73, %v142
    %v162 = vmul.f32 %v77, %v142
    %v163 = vmul.f32 %v81, %v142
    %v164 = vmul.f32 %v85, %v142
    %v165 = vmul.f32 %v57, %v147
    %v166 = vmul.f32 %v61, %v147
    %v167 = vmul.f32 %v65, %v147
    %v168 = vmul.f32 %v69, %v147
    %v169 = vmul.f32 %v73, %v147
    %v170 = vmul.f32 %v77, %v147
    %v171 = vmul.f32 %v81, %v147
    %v172 = vmul.f32 %v85, %v147
    %v173 = vmul.f32 %v89, %v137
    %v174 = vmul.f32 %v93, %v137
    %v175 = vmul.f32 %v97, %v137
    %v176 = vmul.f32 %v101, %v137
    %v177 = vmul.f32 %v105, %v137
    %v178 = vmul.f32 %v109, %v137
    %v179 = vmul.f32 %v113, %v137
    %v180 = vmul.f32 %v117, %v137
    %v181 = vmul.f32 %v89, %v142
    %v182 = vmul.f32 %v93, %v142
    %v183 = vmul.f32 %v97, %v142
    %v184 = vmul.f32 %v101, %v142
    %v185 = vmul.f32 %v105, %v142
    %v186 = vmul.f32 %v109, %v142
    %v187 = vmul.f32 %v113, %v142
    %v188 = vmul.f32 %v117, %v142
    %v189 = vmul.f32 %v89, %v147
    %v190 = vmul.f32 %v93, %v147
    %v191 = vmul.f32 %v97, %v147
    %v192 = vmul.f32 %v101, %v147
    %v193 = vmul.f32 %v105, %v147
    %v194 = vmul.f32 %v109, %v147
    %v195 = vmul.f32 %v113, %v147
    %v196 = vmul.f32 %v117, %v147
    %v197 = vadd.f32 %v149, 0.0
    %v198 = vadd.f32 %v150, 0.0
    %v199 = vadd.f32 %v151, 0.0
    %v200 = vadd.f32 %v152, 0.0
    %v201 = vadd.f32 %v153, 0.0
    %v202 = vadd.f32 %v154, 0.0
    %v203 = vadd.f32 %v155, 0.0
    %v204 = vadd.f32 %v156, 0.0
    %v205 = vadd.f32 %v157, 0.0
    %v206 = vadd.f32 %v158, 0.0
    %v207 = vadd.f32 %v159, 0.0
    %v208 = vadd.f32 %v160, 0.0
    %v209 = vadd.f32 %v161, 0.0
    %v210 = vadd.f32 %v162, 0.0
    %v211 = vadd.f32 %v163, 0.0
    %v212 = vadd.f32 %v164, 0.0
    %v213 = vadd.f32 %v165, 0.0
    %v214 = vadd.f32 %v166, 0.0
    %v215 = vadd.f32 %v167, 0.0
    %v216 = vadd.f32 %v168, 0.0
    %v217 = vadd.f32 %v169, 0.0
    %v218 = vadd.f32 %v170, 0.0
    %v219 = vadd.f32 %v171, 0.0
    %v220 = vadd.f32 %v172, 0.0
    %v221 = vadd.f32 %v173, 0.0
    %v222 = vadd.f32 %v174, 0.0
    %v223 = vadd.f32 %v175, 0.0
    %v224 = vadd.f32 %v176, 0.0
    %v225 = vadd.f32 %v177, 0.0
    %v226 = vadd.f32 %v178, 0.0
    %v227 = vadd.f32 %v179, 0.0
    %v228 = vadd.f32 %v180, 0.0
    %v229 = vadd.f32 %v181, 0.0
    %v230 = vadd.f32 %v182, 0.0
    %v231 = vadd.f32 %v183, 0.0
    %v232 = vadd.f32 %v184, 0.0
    %v233 = vadd.f32 %v185, 0.0
    %v234 = vadd.f32 %v186, 0.0
    %v235 = vadd.f32 %v187, 0.0
    %v236 = vadd.f32 %v188, 0.0
    %v237 = vadd.f32 %v189, 0.0
    %v238 = vadd.f32 %v190, 0.0
    %v239 = vadd.f32 %v191, 0.0
    %v240 = vadd.f32 %v192, 0.0
    %v241 = vadd.f32 %v193, 0.0
    %v242 = vadd.f32 %v194, 0.0
    %v243 = vadd.f32 %v195, 0.0
    %v244 = vadd.f32 %v196, 0.0
    %v247 = vunpack.c.l.s4 1966171168
    %v248 = vunpack.c.0.s8 %v247
    %v249 = vlaneseq
    %v250 = vshrl.u32 %v249, 7
    %v251 = vsub.s32 %v248, %v250
    %v252 = vrot.slane %v29, %v251
    %v253 = vcombine.high %v252, %v252
    %v254 = vlaneseq
    %v255 = vshrl.u32 %v254, 7
    %v256 = vsub.s32 0, %v255
    %v257 = vrot.slane %v252, %v256
    %v258 = vlaneseq
    %v259 = vshrl.u32 %v258, 7
    %v260 = vsub.s32 0, %v259
    %v261 = vrot.slane %v253, %v260
    %264 = vset.pattern.permute.xlu0 1
    %265 = vperm.xlu0 %264, %v30
    %v266 = vpop.permute.xlu0 %265
    %268 = vset.pattern.permute.xlu0 1
    %269 = vperm.xlu0 %268, %v31
    %v270 = vpop.permute.xlu0 %269
    %272 = vset.pattern.permute.xlu0 1
    %273 = vperm.xlu0 %272, %v32
    %v274 = vpop.permute.xlu0 %273
    %v276 = vmul.f32 %v57, %v266
    %v277 = vmul.f32 %v61, %v266
    %v278 = vmul.f32 %v65, %v266
    %v279 = vmul.f32 %v69, %v266
    %v280 = vmul.f32 %v73, %v266
    %v281 = vmul.f32 %v77, %v266
    %v282 = vmul.f32 %v81, %v266
    %v283 = vmul.f32 %v85, %v266
    %v284 = vmul.f32 %v257, %v266
    %v285 = vmul.f32 %v57, %v270
    %v286 = vmul.f32 %v61, %v270
    %v287 = vmul.f32 %v65, %v270
    %v288 = vmul.f32 %v69, %v270
    %v289 = vmul.f32 %v73, %v270
    %v290 = vmul.f32 %v77, %v270
    %v291 = vmul.f32 %v81, %v270
    %v292 = vmul.f32 %v85, %v270
    %v293 = vmul.f32 %v257, %v270
    %v294 = vmul.f32 %v57, %v274
    %v295 = vmul.f32 %v61, %v274
    %v296 = vmul.f32 %v65, %v274
    %v297 = vmul.f32 %v69, %v274
    %v298 = vmul.f32 %v73, %v274
    %v299 = vmul.f32 %v77, %v274
    %v300 = vmul.f32 %v81, %v274
    %v301 = vmul.f32 %v85, %v274
    %v302 = vmul.f32 %v257, %v274
    %v303 = vmul.f32 %v89, %v266
    %v304 = vmul.f32 %v93, %v266
    %v305 = vmul.f32 %v97, %v266
    %v306 = vmul.f32 %v101, %v266
    %v307 = vmul.f32 %v105, %v266
    %v308 = vmul.f32 %v109, %v266
    %v309 = vmul.f32 %v113, %v266
    %v310 = vmul.f32 %v117, %v266
    %v311 = vmul.f32 %v261, %v266
    %v312 = vmul.f32 %v89, %v270
    %v313 = vmul.f32 %v93, %v270
    %v314 = vmul.f32 %v97, %v270
    %v315 = vmul.f32 %v101, %v270
    %v316 = vmul.f32 %v105, %v270
    %v317 = vmul.f32 %v109, %v270
    %v318 = vmul.f32 %v113, %v270
    %v319 = vmul.f32 %v117, %v270
    %v320 = vmul.f32 %v261, %v270
    %v321 = vmul.f32 %v89, %v274
    %v322 = vmul.f32 %v93, %v274
    %v323 = vmul.f32 %v97, %v274
    %v324 = vmul.f32 %v101, %v274
    %v325 = vmul.f32 %v105, %v274
    %v326 = vmul.f32 %v109, %v274
    %v327 = vmul.f32 %v113, %v274
    %v328 = vmul.f32 %v117, %v274
    %v329 = vmul.f32 %v261, %v274
    %384 = vrot.lane.b32.xlu0 %v276, 127
    %v385 = vpop.permute.xlu0 %384
    %386 = vrot.lane.b32.xlu0 %v277, 127
    %v387 = vpop.permute.xlu0 %386
    %388 = vrot.lane.b32.xlu0 %v278, 127
    %v389 = vpop.permute.xlu0 %388
    %390 = vrot.lane.b32.xlu0 %v279, 127
    %v391 = vpop.permute.xlu0 %390
    %392 = vrot.lane.b32.xlu0 %v280, 127
    %v393 = vpop.permute.xlu0 %392
    %394 = vrot.lane.b32.xlu0 %v281, 127
    %v395 = vpop.permute.xlu0 %394
    %396 = vrot.lane.b32.xlu0 %v282, 127
    %v397 = vpop.permute.xlu0 %396
    %398 = vrot.lane.b32.xlu0 %v283, 127
    %v399 = vpop.permute.xlu0 %398
    %400 = vrot.lane.b32.xlu0 %v284, 127
    %v401 = vpop.permute.xlu0 %400
    %402 = vrot.lane.b32.xlu0 %v285, 127
    %v403 = vpop.permute.xlu0 %402
    %404 = vrot.lane.b32.xlu0 %v286, 127
    %v405 = vpop.permute.xlu0 %404
    %406 = vrot.lane.b32.xlu0 %v287, 127
    %v407 = vpop.permute.xlu0 %406
    %408 = vrot.lane.b32.xlu0 %v288, 127
    %v409 = vpop.permute.xlu0 %408
    %410 = vrot.lane.b32.xlu0 %v289, 127
    %v411 = vpop.permute.xlu0 %410
    %412 = vrot.lane.b32.xlu0 %v290, 127
    %v413 = vpop.permute.xlu0 %412
    %414 = vrot.lane.b32.xlu0 %v291, 127
    %v415 = vpop.permute.xlu0 %414
    %416 = vrot.lane.b32.xlu0 %v292, 127
    %v417 = vpop.permute.xlu0 %416
    %418 = vrot.lane.b32.xlu0 %v293, 127
    %v419 = vpop.permute.xlu0 %418
    %420 = vrot.lane.b32.xlu0 %v294, 127
    %v421 = vpop.permute.xlu0 %420
    %422 = vrot.lane.b32.xlu0 %v295, 127
    %v423 = vpop.permute.xlu0 %422
    %424 = vrot.lane.b32.xlu0 %v296, 127
    %v425 = vpop.permute.xlu0 %424
    %426 = vrot.lane.b32.xlu0 %v297, 127
    %v427 = vpop.permute.xlu0 %426
    %428 = vrot.lane.b32.xlu0 %v298, 127
    %v429 = vpop.permute.xlu0 %428
    %430 = vrot.lane.b32.xlu0 %v299, 127
    %v431 = vpop.permute.xlu0 %430
    %432 = vrot.lane.b32.xlu0 %v300, 127
    %v433 = vpop.permute.xlu0 %432
    %434 = vrot.lane.b32.xlu0 %v301, 127
    %v435 = vpop.permute.xlu0 %434
    %436 = vrot.lane.b32.xlu0 %v302, 127
    %v437 = vpop.permute.xlu0 %436
    %438 = vrot.lane.b32.xlu0 %v303, 127
    %v439 = vpop.permute.xlu0 %438
    %440 = vrot.lane.b32.xlu0 %v304, 127
    %v441 = vpop.permute.xlu0 %440
    %442 = vrot.lane.b32.xlu0 %v305, 127
    %v443 = vpop.permute.xlu0 %442
    %444 = vrot.lane.b32.xlu0 %v306, 127
    %v445 = vpop.permute.xlu0 %444
    %446 = vrot.lane.b32.xlu0 %v307, 127
    %v447 = vpop.permute.xlu0 %446
    %448 = vrot.lane.b32.xlu0 %v308, 127
    %v449 = vpop.permute.xlu0 %448
    %450 = vrot.lane.b32.xlu0 %v309, 127
    %v451 = vpop.permute.xlu0 %450
    %452 = vrot.lane.b32.xlu0 %v310, 127
    %v453 = vpop.permute.xlu0 %452
    %454 = vrot.lane.b32.xlu0 %v311, 127
    %v455 = vpop.permute.xlu0 %454
    %456 = vrot.lane.b32.xlu0 %v312, 127
    %v457 = vpop.permute.xlu0 %456
    %458 = vrot.lane.b32.xlu0 %v313, 127
    %v459 = vpop.permute.xlu0 %458
    %460 = vrot.lane.b32.xlu0 %v314, 127
    %v461 = vpop.permute.xlu0 %460
    %462 = vrot.lane.b32.xlu0 %v315, 127
    %v463 = vpop.permute.xlu0 %462
    %464 = vrot.lane.b32.xlu0 %v316, 127
    %v465 = vpop.permute.xlu0 %464
    %466 = vrot.lane.b32.xlu0 %v317, 127
    %v467 = vpop.permute.xlu0 %466
    %468 = vrot.lane.b32.xlu0 %v318, 127
    %v469 = vpop.permute.xlu0 %468
    %470 = vrot.lane.b32.xlu0 %v319, 127
    %v471 = vpop.permute.xlu0 %470
    %472 = vrot.lane.b32.xlu0 %v320, 127
    %v473 = vpop.permute.xlu0 %472
    %474 = vrot.lane.b32.xlu0 %v321, 127
    %v475 = vpop.permute.xlu0 %474
    %476 = vrot.lane.b32.xlu0 %v322, 127
    %v477 = vpop.permute.xlu0 %476
    %478 = vrot.lane.b32.xlu0 %v323, 127
    %v479 = vpop.permute.xlu0 %478
    %480 = vrot.lane.b32.xlu0 %v324, 127
    %v481 = vpop.permute.xlu0 %480
    %482 = vrot.lane.b32.xlu0 %v325, 127
    %v483 = vpop.permute.xlu0 %482
    %484 = vrot.lane.b32.xlu0 %v326, 127
    %v485 = vpop.permute.xlu0 %484
    %486 = vrot.lane.b32.xlu0 %v327, 127
    %v487 = vpop.permute.xlu0 %486
    %488 = vrot.lane.b32.xlu0 %v328, 127
    %v489 = vpop.permute.xlu0 %488
    %490 = vrot.lane.b32.xlu0 %v329, 127
    %v491 = vpop.permute.xlu0 %490
    %vm492 = vcmask 1039360
    %v493 = vsel %vm492, %v385, %v387
    %v494 = vsel %vm492, %v387, %v389
    %v495 = vsel %vm492, %v389, %v391
    %v496 = vsel %vm492, %v391, %v393
    %v497 = vsel %vm492, %v393, %v395
    %v498 = vsel %vm492, %v395, %v397
    %v499 = vsel %vm492, %v397, %v399
    %v500 = vsel %vm492, %v399, %v401
    %v501 = vsel %vm492, %v403, %v405
    %v502 = vsel %vm492, %v405, %v407
    %v503 = vsel %vm492, %v407, %v409
    %v504 = vsel %vm492, %v409, %v411
    %v505 = vsel %vm492, %v411, %v413
    %v506 = vsel %vm492, %v413, %v415
    %v507 = vsel %vm492, %v415, %v417
    %v508 = vsel %vm492, %v417, %v419
    %v509 = vsel %vm492, %v421, %v423
    %v510 = vsel %vm492, %v423, %v425
    %v511 = vsel %vm492, %v425, %v427
    %v512 = vsel %vm492, %v427, %v429
    %v513 = vsel %vm492, %v429, %v431
    %v514 = vsel %vm492, %v431, %v433
    %v515 = vsel %vm492, %v433, %v435
    %v516 = vsel %vm492, %v435, %v437
    %v517 = vsel %vm492, %v439, %v441
    %v518 = vsel %vm492, %v441, %v443
    %v519 = vsel %vm492, %v443, %v445
    %v520 = vsel %vm492, %v445, %v447
    %v521 = vsel %vm492, %v447, %v449
    %v522 = vsel %vm492, %v449, %v451
    %v523 = vsel %vm492, %v451, %v453
    %v524 = vsel %vm492, %v453, %v455
    %v525 = vsel %vm492, %v457, %v459
    %v526 = vsel %vm492, %v459, %v461
    %v527 = vsel %vm492, %v461, %v463
    %v528 = vsel %vm492, %v463, %v465
    %v529 = vsel %vm492, %v465, %v467
    %v530 = vsel %vm492, %v467, %v469
    %v531 = vsel %vm492, %v469, %v471
    %v532 = vsel %vm492, %v471, %v473
    %v533 = vsel %vm492, %v475, %v477
    %v534 = vsel %vm492, %v477, %v479
    %v535 = vsel %vm492, %v479, %v481
    %v536 = vsel %vm492, %v481, %v483
    %v537 = vsel %vm492, %v483, %v485
    %v538 = vsel %vm492, %v485, %v487
    %v539 = vsel %vm492, %v487, %v489
    %v540 = vsel %vm492, %v489, %v491
    %v589 = vadd.f32 %v197, %v493
    %v590 = vadd.f32 %v198, %v494
    %v591 = vadd.f32 %v199, %v495
    %v592 = vadd.f32 %v200, %v496
    %v593 = vadd.f32 %v201, %v497
    %v594 = vadd.f32 %v202, %v498
    %v595 = vadd.f32 %v203, %v499
    %v596 = vadd.f32 %v204, %v500
    %v597 = vadd.f32 %v205, %v501
    %v598 = vadd.f32 %v206, %v502
    %v599 = vadd.f32 %v207, %v503
    %v600 = vadd.f32 %v208, %v504
    %v601 = vadd.f32 %v209, %v505
    %v602 = vadd.f32 %v210, %v506
    %v603 = vadd.f32 %v211, %v507
    %v604 = vadd.f32 %v212, %v508
    %v605 = vadd.f32 %v213, %v509
    %v606 = vadd.f32 %v214, %v510
    %v607 = vadd.f32 %v215, %v511
    %v608 = vadd.f32 %v216, %v512
    %v609 = vadd.f32 %v217, %v513
    %v610 = vadd.f32 %v218, %v514
    %v611 = vadd.f32 %v219, %v515
    %v612 = vadd.f32 %v220, %v516
    %v613 = vadd.f32 %v221, %v517
    %v614 = vadd.f32 %v222, %v518
    %v615 = vadd.f32 %v223, %v519
    %v616 = vadd.f32 %v224, %v520
    %v617 = vadd.f32 %v225, %v521
    %v618 = vadd.f32 %v226, %v522
    %v619 = vadd.f32 %v227, %v523
    %v620 = vadd.f32 %v228, %v524
    %v621 = vadd.f32 %v229, %v525
    %v622 = vadd.f32 %v230, %v526
    %v623 = vadd.f32 %v231, %v527
    %v624 = vadd.f32 %v232, %v528
    %v625 = vadd.f32 %v233, %v529
    %v626 = vadd.f32 %v234, %v530
    %v627 = vadd.f32 %v235, %v531
    %v628 = vadd.f32 %v236, %v532
    %v629 = vadd.f32 %v237, %v533
    %v630 = vadd.f32 %v238, %v534
    %v631 = vadd.f32 %v239, %v535
    %v632 = vadd.f32 %v240, %v536
    %v633 = vadd.f32 %v241, %v537
    %v634 = vadd.f32 %v242, %v538
    %v635 = vadd.f32 %v243, %v539
    %v636 = vadd.f32 %v244, %v540
    %637 = vset.pattern.permute.xlu0 2
    %638 = vperm.xlu0 %637, %v30
    %v639 = vpop.permute.xlu0 %638
    %641 = vset.pattern.permute.xlu0 2
    %642 = vperm.xlu0 %641, %v31
    %v643 = vpop.permute.xlu0 %642
    %645 = vset.pattern.permute.xlu0 2
    %646 = vperm.xlu0 %645, %v32
    %v647 = vpop.permute.xlu0 %646
    %v649 = vmul.f32 %v57, %v639
    %v650 = vmul.f32 %v61, %v639
    %v651 = vmul.f32 %v65, %v639
    %v652 = vmul.f32 %v69, %v639
    %v653 = vmul.f32 %v73, %v639
    %v654 = vmul.f32 %v77, %v639
    %v655 = vmul.f32 %v81, %v639
    %v656 = vmul.f32 %v85, %v639
    %v657 = vmul.f32 %v257, %v639
    %v658 = vmul.f32 %v57, %v643
    %v659 = vmul.f32 %v61, %v643
    %v660 = vmul.f32 %v65, %v643
    %v661 = vmul.f32 %v69, %v643
    %v662 = vmul.f32 %v73, %v643
    %v663 = vmul.f32 %v77, %v643
    %v664 = vmul.f32 %v81, %v643
    %v665 = vmul.f32 %v85, %v643
    %v666 = vmul.f32 %v257, %v643
    %v667 = vmul.f32 %v57, %v647
    %v668 = vmul.f32 %v61, %v647
    %v669 = vmul.f32 %v65, %v647
    %v670 = vmul.f32 %v69, %v647
    %v671 = vmul.f32 %v73, %v647
    %v672 = vmul.f32 %v77, %v647
    %v673 = vmul.f32 %v81, %v647
    %v674 = vmul.f32 %v85, %v647
    %v675 = vmul.f32 %v257, %v647
    %v676 = vmul.f32 %v89, %v639
    %v677 = vmul.f32 %v93, %v639
    %v678 = vmul.f32 %v97, %v639
    %v679 = vmul.f32 %v101, %v639
    %v680 = vmul.f32 %v105, %v639
    %v681 = vmul.f32 %v109, %v639
    %v682 = vmul.f32 %v113, %v639
    %v683 = vmul.f32 %v117, %v639
    %v684 = vmul.f32 %v261, %v639
    %v685 = vmul.f32 %v89, %v643
    %v686 = vmul.f32 %v93, %v643
    %v687 = vmul.f32 %v97, %v643
    %v688 = vmul.f32 %v101, %v643
    %v689 = vmul.f32 %v105, %v643
    %v690 = vmul.f32 %v109, %v643
    %v691 = vmul.f32 %v113, %v643
    %v692 = vmul.f32 %v117, %v643
    %v693 = vmul.f32 %v261, %v643
    %v694 = vmul.f32 %v89, %v647
    %v695 = vmul.f32 %v93, %v647
    %v696 = vmul.f32 %v97, %v647
    %v697 = vmul.f32 %v101, %v647
    %v698 = vmul.f32 %v105, %v647
    %v699 = vmul.f32 %v109, %v647
    %v700 = vmul.f32 %v113, %v647
    %v701 = vmul.f32 %v117, %v647
    %v702 = vmul.f32 %v261, %v647
    %757 = vrot.lane.b32.xlu0 %v649, 126
    %v758 = vpop.permute.xlu0 %757
    %759 = vrot.lane.b32.xlu0 %v650, 126
    %v760 = vpop.permute.xlu0 %759
    %761 = vrot.lane.b32.xlu0 %v651, 126
    %v762 = vpop.permute.xlu0 %761
    %763 = vrot.lane.b32.xlu0 %v652, 126
    %v764 = vpop.permute.xlu0 %763
    %765 = vrot.lane.b32.xlu0 %v653, 126
    %v766 = vpop.permute.xlu0 %765
    %767 = vrot.lane.b32.xlu0 %v654, 126
    %v768 = vpop.permute.xlu0 %767
    %769 = vrot.lane.b32.xlu0 %v655, 126
    %v770 = vpop.permute.xlu0 %769
    %771 = vrot.lane.b32.xlu0 %v656, 126
    %v772 = vpop.permute.xlu0 %771
    %773 = vrot.lane.b32.xlu0 %v657, 126
    %v774 = vpop.permute.xlu0 %773
    %775 = vrot.lane.b32.xlu0 %v658, 126
    %v776 = vpop.permute.xlu0 %775
    %777 = vrot.lane.b32.xlu0 %v659, 126
    %v778 = vpop.permute.xlu0 %777
    %779 = vrot.lane.b32.xlu0 %v660, 126
    %v780 = vpop.permute.xlu0 %779
    %781 = vrot.lane.b32.xlu0 %v661, 126
    %v782 = vpop.permute.xlu0 %781
    %783 = vrot.lane.b32.xlu0 %v662, 126
    %v784 = vpop.permute.xlu0 %783
    %785 = vrot.lane.b32.xlu0 %v663, 126
    %v786 = vpop.permute.xlu0 %785
    %787 = vrot.lane.b32.xlu0 %v664, 126
    %v788 = vpop.permute.xlu0 %787
    %789 = vrot.lane.b32.xlu0 %v665, 126
    %v790 = vpop.permute.xlu0 %789
    %791 = vrot.lane.b32.xlu0 %v666, 126
    %v792 = vpop.permute.xlu0 %791
    %793 = vrot.lane.b32.xlu0 %v667, 126
    %v794 = vpop.permute.xlu0 %793
    %795 = vrot.lane.b32.xlu0 %v668, 126
    %v796 = vpop.permute.xlu0 %795
    %797 = vrot.lane.b32.xlu0 %v669, 126
    %v798 = vpop.permute.xlu0 %797
    %799 = vrot.lane.b32.xlu0 %v670, 126
    %v800 = vpop.permute.xlu0 %799
    %801 = vrot.lane.b32.xlu0 %v671, 126
    %v802 = vpop.permute.xlu0 %801
    %803 = vrot.lane.b32.xlu0 %v672, 126
    %v804 = vpop.permute.xlu0 %803
    %805 = vrot.lane.b32.xlu0 %v673, 126
    %v806 = vpop.permute.xlu0 %805
    %807 = vrot.lane.b32.xlu0 %v674, 126
    %v808 = vpop.permute.xlu0 %807
    %809 = vrot.lane.b32.xlu0 %v675, 126
    %v810 = vpop.permute.xlu0 %809
    %811 = vrot.lane.b32.xlu0 %v676, 126
    %v812 = vpop.permute.xlu0 %811
    %813 = vrot.lane.b32.xlu0 %v677, 126
    %v814 = vpop.permute.xlu0 %813
    %815 = vrot.lane.b32.xlu0 %v678, 126
    %v816 = vpop.permute.xlu0 %815
    %817 = vrot.lane.b32.xlu0 %v679, 126
    %v818 = vpop.permute.xlu0 %817
    %819 = vrot.lane.b32.xlu0 %v680, 126
    %v820 = vpop.permute.xlu0 %819
    %821 = vrot.lane.b32.xlu0 %v681, 126
    %v822 = vpop.permute.xlu0 %821
    %823 = vrot.lane.b32.xlu0 %v682, 126
    %v824 = vpop.permute.xlu0 %823
    %825 = vrot.lane.b32.xlu0 %v683, 126
    %v826 = vpop.permute.xlu0 %825
    %827 = vrot.lane.b32.xlu0 %v684, 126
    %v828 = vpop.permute.xlu0 %827
    %829 = vrot.lane.b32.xlu0 %v685, 126
    %v830 = vpop.permute.xlu0 %829
    %831 = vrot.lane.b32.xlu0 %v686, 126
    %v832 = vpop.permute.xlu0 %831
    %833 = vrot.lane.b32.xlu0 %v687, 126
    %v834 = vpop.permute.xlu0 %833
    %835 = vrot.lane.b32.xlu0 %v688, 126
    %v836 = vpop.permute.xlu0 %835
    %837 = vrot.lane.b32.xlu0 %v689, 126
    %v838 = vpop.permute.xlu0 %837
    %839 = vrot.lane.b32.xlu0 %v690, 126
    %v840 = vpop.permute.xlu0 %839
    %841 = vrot.lane.b32.xlu0 %v691, 126
    %v842 = vpop.permute.xlu0 %841
    %843 = vrot.lane.b32.xlu0 %v692, 126
    %v844 = vpop.permute.xlu0 %843
    %845 = vrot.lane.b32.xlu0 %v693, 126
    %v846 = vpop.permute.xlu0 %845
    %847 = vrot.lane.b32.xlu0 %v694, 126
    %v848 = vpop.permute.xlu0 %847
    %849 = vrot.lane.b32.xlu0 %v695, 126
    %v850 = vpop.permute.xlu0 %849
    %851 = vrot.lane.b32.xlu0 %v696, 126
    %v852 = vpop.permute.xlu0 %851
    %853 = vrot.lane.b32.xlu0 %v697, 126
    %v854 = vpop.permute.xlu0 %853
    %855 = vrot.lane.b32.xlu0 %v698, 126
    %v856 = vpop.permute.xlu0 %855
    %857 = vrot.lane.b32.xlu0 %v699, 126
    %v858 = vpop.permute.xlu0 %857
    %859 = vrot.lane.b32.xlu0 %v700, 126
    %v860 = vpop.permute.xlu0 %859
    %861 = vrot.lane.b32.xlu0 %v701, 126
    %v862 = vpop.permute.xlu0 %861
    %863 = vrot.lane.b32.xlu0 %v702, 126
    %v864 = vpop.permute.xlu0 %863
    %vm865 = vcmask 1031168
    %v866 = vsel %vm865, %v758, %v760
    %v867 = vsel %vm865, %v760, %v762
    %v868 = vsel %vm865, %v762, %v764
    %v869 = vsel %vm865, %v764, %v766
    %v870 = vsel %vm865, %v766, %v768
    %v871 = vsel %vm865, %v768, %v770
    %v872 = vsel %vm865, %v770, %v772
    %v873 = vsel %vm865, %v772, %v774
    %v874 = vsel %vm865, %v776, %v778
    %v875 = vsel %vm865, %v778, %v780
    %v876 = vsel %vm865, %v780, %v782
    %v877 = vsel %vm865, %v782, %v784
    %v878 = vsel %vm865, %v784, %v786
    %v879 = vsel %vm865, %v786, %v788
    %v880 = vsel %vm865, %v788, %v790
    %v881 = vsel %vm865, %v790, %v792
    %v882 = vsel %vm865, %v794, %v796
    %v883 = vsel %vm865, %v796, %v798
    %v884 = vsel %vm865, %v798, %v800
    %v885 = vsel %vm865, %v800, %v802
    %v886 = vsel %vm865, %v802, %v804
    %v887 = vsel %vm865, %v804, %v806
    %v888 = vsel %vm865, %v806, %v808
    %v889 = vsel %vm865, %v808, %v810
    %v890 = vsel %vm865, %v812, %v814
    %v891 = vsel %vm865, %v814, %v816
    %v892 = vsel %vm865, %v816, %v818
    %v893 = vsel %vm865, %v818, %v820
    %v894 = vsel %vm865, %v820, %v822
    %v895 = vsel %vm865, %v822, %v824
    %v896 = vsel %vm865, %v824, %v826
    %v897 = vsel %vm865, %v826, %v828
    %v898 = vsel %vm865, %v830, %v832
    %v899 = vsel %vm865, %v832, %v834
    %v900 = vsel %vm865, %v834, %v836
    %v901 = vsel %vm865, %v836, %v838
    %v902 = vsel %vm865, %v838, %v840
    %v903 = vsel %vm865, %v840, %v842
    %v904 = vsel %vm865, %v842, %v844
    %v905 = vsel %vm865, %v844, %v846
    %v906 = vsel %vm865, %v848, %v850
    %v907 = vsel %vm865, %v850, %v852
    %v908 = vsel %vm865, %v852, %v854
    %v909 = vsel %vm865, %v854, %v856
    %v910 = vsel %vm865, %v856, %v858
    %v911 = vsel %vm865, %v858, %v860
    %v912 = vsel %vm865, %v860, %v862
    %v913 = vsel %vm865, %v862, %v864
    %v962 = vadd.f32 %v589, %v866
    %v963 = vadd.f32 %v590, %v867
    %v964 = vadd.f32 %v591, %v868
    %v965 = vadd.f32 %v592, %v869
    %v966 = vadd.f32 %v593, %v870
    %v967 = vadd.f32 %v594, %v871
    %v968 = vadd.f32 %v595, %v872
    %v969 = vadd.f32 %v596, %v873
    %v970 = vadd.f32 %v597, %v874
    %v971 = vadd.f32 %v598, %v875
    %v972 = vadd.f32 %v599, %v876
    %v973 = vadd.f32 %v600, %v877
    %v974 = vadd.f32 %v601, %v878
    %v975 = vadd.f32 %v602, %v879
    %v976 = vadd.f32 %v603, %v880
    %v977 = vadd.f32 %v604, %v881
    %v978 = vadd.f32 %v605, %v882
    %v979 = vadd.f32 %v606, %v883
    %v980 = vadd.f32 %v607, %v884
    %v981 = vadd.f32 %v608, %v885
    %v982 = vadd.f32 %v609, %v886
    %v983 = vadd.f32 %v610, %v887
    %v984 = vadd.f32 %v611, %v888
    %v985 = vadd.f32 %v612, %v889
    %v986 = vadd.f32 %v613, %v890
    %v987 = vadd.f32 %v614, %v891
    %v988 = vadd.f32 %v615, %v892
    %v989 = vadd.f32 %v616, %v893
    %v990 = vadd.f32 %v617, %v894
    %v991 = vadd.f32 %v618, %v895
    %v992 = vadd.f32 %v619, %v896
    %v993 = vadd.f32 %v620, %v897
    %v994 = vadd.f32 %v621, %v898
    %v995 = vadd.f32 %v622, %v899
    %v996 = vadd.f32 %v623, %v900
    %v997 = vadd.f32 %v624, %v901
    %v998 = vadd.f32 %v625, %v902
    %v999 = vadd.f32 %v626, %v903
    %v1000 = vadd.f32 %v627, %v904
    %v1001 = vadd.f32 %v628, %v905
    %v1002 = vadd.f32 %v629, %v906
    %v1003 = vadd.f32 %v630, %v907
    %v1004 = vadd.f32 %v631, %v908
    %v1005 = vadd.f32 %v632, %v909
    %v1006 = vadd.f32 %v633, %v910
    %v1007 = vadd.f32 %v634, %v911
    %v1008 = vadd.f32 %v635, %v912
    %v1009 = vadd.f32 %v636, %v913
    %1010 = vset.pattern.permute.xlu0 3
    %1011 = vperm.xlu0 %1010, %v30
    %v1012 = vpop.permute.xlu0 %1011
    %1014 = vset.pattern.permute.xlu0 3
    %1015 = vperm.xlu0 %1014, %v31
    %v1016 = vpop.permute.xlu0 %1015
    %1018 = vset.pattern.permute.xlu0 3
    %1019 = vperm.xlu0 %1018, %v32
    %v1020 = vpop.permute.xlu0 %1019
    %v1022 = vmul.f32 %v57, %v1012
    %v1023 = vmul.f32 %v61, %v1012
    %v1024 = vmul.f32 %v65, %v1012
    %v1025 = vmul.f32 %v69, %v1012
    %v1026 = vmul.f32 %v73, %v1012
    %v1027 = vmul.f32 %v77, %v1012
    %v1028 = vmul.f32 %v81, %v1012
    %v1029 = vmul.f32 %v85, %v1012
    %v1030 = vmul.f32 %v257, %v1012
    %v1031 = vmul.f32 %v57, %v1016
    %v1032 = vmul.f32 %v61, %v1016
    %v1033 = vmul.f32 %v65, %v1016
    %v1034 = vmul.f32 %v69, %v1016
    %v1035 = vmul.f32 %v73, %v1016
    %v1036 = vmul.f32 %v77, %v1016
    %v1037 = vmul.f32 %v81, %v1016
    %v1038 = vmul.f32 %v85, %v1016
    %v1039 = vmul.f32 %v257, %v1016
    %v1040 = vmul.f32 %v57, %v1020
    %v1041 = vmul.f32 %v61, %v1020
    %v1042 = vmul.f32 %v65, %v1020
    %v1043 = vmul.f32 %v69, %v1020
    %v1044 = vmul.f32 %v73, %v1020
    %v1045 = vmul.f32 %v77, %v1020
    %v1046 = vmul.f32 %v81, %v1020
    %v1047 = vmul.f32 %v85, %v1020
    %v1048 = vmul.f32 %v257, %v1020
    %v1049 = vmul.f32 %v89, %v1012
    %v1050 = vmul.f32 %v93, %v1012
    %v1051 = vmul.f32 %v97, %v1012
    %v1052 = vmul.f32 %v101, %v1012
    %v1053 = vmul.f32 %v105, %v1012
    %v1054 = vmul.f32 %v109, %v1012
    %v1055 = vmul.f32 %v113, %v1012
    %v1056 = vmul.f32 %v117, %v1012
    %v1057 = vmul.f32 %v261, %v1012
    %v1058 = vmul.f32 %v89, %v1016
    %v1059 = vmul.f32 %v93, %v1016
    %v1060 = vmul.f32 %v97, %v1016
    %v1061 = vmul.f32 %v101, %v1016
    %v1062 = vmul.f32 %v105, %v1016
    %v1063 = vmul.f32 %v109, %v1016
    %v1064 = vmul.f32 %v113, %v1016
    %v1065 = vmul.f32 %v117, %v1016
    %v1066 = vmul.f32 %v261, %v1016
    %v1067 = vmul.f32 %v89, %v1020
    %v1068 = vmul.f32 %v93, %v1020
    %v1069 = vmul.f32 %v97, %v1020
    %v1070 = vmul.f32 %v101, %v1020
    %v1071 = vmul.f32 %v105, %v1020
    %v1072 = vmul.f32 %v109, %v1020
    %v1073 = vmul.f32 %v113, %v1020
    %v1074 = vmul.f32 %v117, %v1020
    %v1075 = vmul.f32 %v261, %v1020
    %1130 = vrot.lane.b32.xlu0 %v1022, 125
    %v1131 = vpop.permute.xlu0 %1130
    %1132 = vrot.lane.b32.xlu0 %v1023, 125
    %v1133 = vpop.permute.xlu0 %1132
    %1134 = vrot.lane.b32.xlu0 %v1024, 125
    %v1135 = vpop.permute.xlu0 %1134
    %1136 = vrot.lane.b32.xlu0 %v1025, 125
    %v1137 = vpop.permute.xlu0 %1136
    %1138 = vrot.lane.b32.xlu0 %v1026, 125
    %v1139 = vpop.permute.xlu0 %1138
    %1140 = vrot.lane.b32.xlu0 %v1027, 125
    %v1141 = vpop.permute.xlu0 %1140
    %1142 = vrot.lane.b32.xlu0 %v1028, 125
    %v1143 = vpop.permute.xlu0 %1142
    %1144 = vrot.lane.b32.xlu0 %v1029, 125
    %v1145 = vpop.permute.xlu0 %1144
    %1146 = vrot.lane.b32.xlu0 %v1030, 125
    %v1147 = vpop.permute.xlu0 %1146
    %1148 = vrot.lane.b32.xlu0 %v1031, 125
    %v1149 = vpop.permute.xlu0 %1148
    %1150 = vrot.lane.b32.xlu0 %v1032, 125
    %v1151 = vpop.permute.xlu0 %1150
    %1152 = vrot.lane.b32.xlu0 %v1033, 125
    %v1153 = vpop.permute.xlu0 %1152
    %1154 = vrot.lane.b32.xlu0 %v1034, 125
    %v1155 = vpop.permute.xlu0 %1154
    %1156 = vrot.lane.b32.xlu0 %v1035, 125
    %v1157 = vpop.permute.xlu0 %1156
    %1158 = vrot.lane.b32.xlu0 %v1036, 125
    %v1159 = vpop.permute.xlu0 %1158
    %1160 = vrot.lane.b32.xlu0 %v1037, 125
    %v1161 = vpop.permute.xlu0 %1160
    %1162 = vrot.lane.b32.xlu0 %v1038, 125
    %v1163 = vpop.permute.xlu0 %1162
    %1164 = vrot.lane.b32.xlu0 %v1039, 125
    %v1165 = vpop.permute.xlu0 %1164
    %1166 = vrot.lane.b32.xlu0 %v1040, 125
    %v1167 = vpop.permute.xlu0 %1166
    %1168 = vrot.lane.b32.xlu0 %v1041, 125
    %v1169 = vpop.permute.xlu0 %1168
    %1170 = vrot.lane.b32.xlu0 %v1042, 125
    %v1171 = vpop.permute.xlu0 %1170
    %1172 = vrot.lane.b32.xlu0 %v1043, 125
    %v1173 = vpop.permute.xlu0 %1172
    %1174 = vrot.lane.b32.xlu0 %v1044, 125
    %v1175 = vpop.permute.xlu0 %1174
    %1176 = vrot.lane.b32.xlu0 %v1045, 125
    %v1177 = vpop.permute.xlu0 %1176
    %1178 = vrot.lane.b32.xlu0 %v1046, 125
    %v1179 = vpop.permute.xlu0 %1178
    %1180 = vrot.lane.b32.xlu0 %v1047, 125
    %v1181 = vpop.permute.xlu0 %1180
    %1182 = vrot.lane.b32.xlu0 %v1048, 125
    %v1183 = vpop.permute.xlu0 %1182
    %1184 = vrot.lane.b32.xlu0 %v1049, 125
    %v1185 = vpop.permute.xlu0 %1184
    %1186 = vrot.lane.b32.xlu0 %v1050, 125
    %v1187 = vpop.permute.xlu0 %1186
    %1188 = vrot.lane.b32.xlu0 %v1051, 125
    %v1189 = vpop.permute.xlu0 %1188
    %1190 = vrot.lane.b32.xlu0 %v1052, 125
    %v1191 = vpop.permute.xlu0 %1190
    %1192 = vrot.lane.b32.xlu0 %v1053, 125
    %v1193 = vpop.permute.xlu0 %1192
    %1194 = vrot.lane.b32.xlu0 %v1054, 125
    %v1195 = vpop.permute.xlu0 %1194
    %1196 = vrot.lane.b32.xlu0 %v1055, 125
    %v1197 = vpop.permute.xlu0 %1196
    %1198 = vrot.lane.b32.xlu0 %v1056, 125
    %v1199 = vpop.permute.xlu0 %1198
    %1200 = vrot.lane.b32.xlu0 %v1057, 125
    %v1201 = vpop.permute.xlu0 %1200
    %1202 = vrot.lane.b32.xlu0 %v1058, 125
    %v1203 = vpop.permute.xlu0 %1202
    %1204 = vrot.lane.b32.xlu0 %v1059, 125
    %v1205 = vpop.permute.xlu0 %1204
    %1206 = vrot.lane.b32.xlu0 %v1060, 125
    %v1207 = vpop.permute.xlu0 %1206
    %1208 = vrot.lane.b32.xlu0 %v1061, 125
    %v1209 = vpop.permute.xlu0 %1208
    %1210 = vrot.lane.b32.xlu0 %v1062, 125
    %v1211 = vpop.permute.xlu0 %1210
    %1212 = vrot.lane.b32.xlu0 %v1063, 125
    %v1213 = vpop.permute.xlu0 %1212
    %1214 = vrot.lane.b32.xlu0 %v1064, 125
    %v1215 = vpop.permute.xlu0 %1214
    %1216 = vrot.lane.b32.xlu0 %v1065, 125
    %v1217 = vpop.permute.xlu0 %1216
    %1218 = vrot.lane.b32.xlu0 %v1066, 125
    %v1219 = vpop.permute.xlu0 %1218
    %1220 = vrot.lane.b32.xlu0 %v1067, 125
    %v1221 = vpop.permute.xlu0 %1220
    %1222 = vrot.lane.b32.xlu0 %v1068, 125
    %v1223 = vpop.permute.xlu0 %1222
    %1224 = vrot.lane.b32.xlu0 %v1069, 125
    %v1225 = vpop.permute.xlu0 %1224
    %1226 = vrot.lane.b32.xlu0 %v1070, 125
    %v1227 = vpop.permute.xlu0 %1226
    %1228 = vrot.lane.b32.xlu0 %v1071, 125
    %v1229 = vpop.permute.xlu0 %1228
    %1230 = vrot.lane.b32.xlu0 %v1072, 125
    %v1231 = vpop.permute.xlu0 %1230
    %1232 = vrot.lane.b32.xlu0 %v1073, 125
    %v1233 = vpop.permute.xlu0 %1232
    %1234 = vrot.lane.b32.xlu0 %v1074, 125
    %v1235 = vpop.permute.xlu0 %1234
    %1236 = vrot.lane.b32.xlu0 %v1075, 125
    %v1237 = vpop.permute.xlu0 %1236
    %vm1238 = vcmask 1022976
    %v1239 = vsel %vm1238, %v1131, %v1133
    %v1240 = vsel %vm1238, %v1133, %v1135
    %v1241 = vsel %vm1238, %v1135, %v1137
    %v1242 = vsel %vm1238, %v1137, %v1139
    %v1243 = vsel %vm1238, %v1139, %v1141
    %v1244 = vsel %vm1238, %v1141, %v1143
    %v1245 = vsel %vm1238, %v1143, %v1145
    %v1246 = vsel %vm1238, %v1145, %v1147
    %v1247 = vsel %vm1238, %v1149, %v1151
    %v1248 = vsel %vm1238, %v1151, %v1153
    %v1249 = vsel %vm1238, %v1153, %v1155
    %v1250 = vsel %vm1238, %v1155, %v1157
    %v1251 = vsel %vm1238, %v1157, %v1159
    %v1252 = vsel %vm1238, %v1159, %v1161
    %v1253 = vsel %vm1238, %v1161, %v1163
    %v1254 = vsel %vm1238, %v1163, %v1165
    %v1255 = vsel %vm1238, %v1167, %v1169
    %v1256 = vsel %vm1238, %v1169, %v1171
    %v1257 = vsel %vm1238, %v1171, %v1173
    %v1258 = vsel %vm1238, %v1173, %v1175
    %v1259 = vsel %vm1238, %v1175, %v1177
    %v1260 = vsel %vm1238, %v1177, %v1179
    %v1261 = vsel %vm1238, %v1179, %v1181
    %v1262 = vsel %vm1238, %v1181, %v1183
    %v1263 = vsel %vm1238, %v1185, %v1187
    %v1264 = vsel %vm1238, %v1187, %v1189
    %v1265 = vsel %vm1238, %v1189, %v1191
    %v1266 = vsel %vm1238, %v1191, %v1193
    %v1267 = vsel %vm1238, %v1193, %v1195
    %v1268 = vsel %vm1238, %v1195, %v1197
    %v1269 = vsel %vm1238, %v1197, %v1199
    %v1270 = vsel %vm1238, %v1199, %v1201
    %v1271 = vsel %vm1238, %v1203, %v1205
    %v1272 = vsel %vm1238, %v1205, %v1207
    %v1273 = vsel %vm1238, %v1207, %v1209
    %v1274 = vsel %vm1238, %v1209, %v1211
    %v1275 = vsel %vm1238, %v1211, %v1213
    %v1276 = vsel %vm1238, %v1213, %v1215
    %v1277 = vsel %vm1238, %v1215, %v1217
    %v1278 = vsel %vm1238, %v1217, %v1219
    %v1279 = vsel %vm1238, %v1221, %v1223
    %v1280 = vsel %vm1238, %v1223, %v1225
    %v1281 = vsel %vm1238, %v1225, %v1227
    %v1282 = vsel %vm1238, %v1227, %v1229
    %v1283 = vsel %vm1238, %v1229, %v1231
    %v1284 = vsel %vm1238, %v1231, %v1233
    %v1285 = vsel %vm1238, %v1233, %v1235
    %v1286 = vsel %vm1238, %v1235, %v1237
    %v1335 = vadd.f32 %v962, %v1239
    %v1336 = vadd.f32 %v963, %v1240
    %v1337 = vadd.f32 %v964, %v1241
    %v1338 = vadd.f32 %v965, %v1242
    %v1339 = vadd.f32 %v966, %v1243
    %v1340 = vadd.f32 %v967, %v1244
    %v1341 = vadd.f32 %v968, %v1245
    %v1342 = vadd.f32 %v969, %v1246
    %v1343 = vadd.f32 %v970, %v1247
    %v1344 = vadd.f32 %v971, %v1248
    %v1345 = vadd.f32 %v972, %v1249
    %v1346 = vadd.f32 %v973, %v1250
    %v1347 = vadd.f32 %v974, %v1251
    %v1348 = vadd.f32 %v975, %v1252
    %v1349 = vadd.f32 %v976, %v1253
    %v1350 = vadd.f32 %v977, %v1254
    %v1351 = vadd.f32 %v978, %v1255
    %v1352 = vadd.f32 %v979, %v1256
    %v1353 = vadd.f32 %v980, %v1257
    %v1354 = vadd.f32 %v981, %v1258
    %v1355 = vadd.f32 %v982, %v1259
    %v1356 = vadd.f32 %v983, %v1260
    %v1357 = vadd.f32 %v984, %v1261
    %v1358 = vadd.f32 %v985, %v1262
    %v1359 = vadd.f32 %v986, %v1263
    %v1360 = vadd.f32 %v987, %v1264
    %v1361 = vadd.f32 %v988, %v1265
    %v1362 = vadd.f32 %v989, %v1266
    %v1363 = vadd.f32 %v990, %v1267
    %v1364 = vadd.f32 %v991, %v1268
    %v1365 = vadd.f32 %v992, %v1269
    %v1366 = vadd.f32 %v993, %v1270
    %v1367 = vadd.f32 %v994, %v1271
    %v1368 = vadd.f32 %v995, %v1272
    %v1369 = vadd.f32 %v996, %v1273
    %v1370 = vadd.f32 %v997, %v1274
    %v1371 = vadd.f32 %v998, %v1275
    %v1372 = vadd.f32 %v999, %v1276
    %v1373 = vadd.f32 %v1000, %v1277
    %v1374 = vadd.f32 %v1001, %v1278
    %v1375 = vadd.f32 %v1002, %v1279
    %v1376 = vadd.f32 %v1003, %v1280
    %v1377 = vadd.f32 %v1004, %v1281
    %v1378 = vadd.f32 %v1005, %v1282
    %v1379 = vadd.f32 %v1006, %v1283
    %v1380 = vadd.f32 %v1007, %v1284
    %v1381 = vadd.f32 %v1008, %v1285
    %v1382 = vadd.f32 %v1009, %v1286
    %1383 = vset.pattern.permute.xlu0 4
    %1384 = vperm.xlu0 %1383, %v30
    %v1385 = vpop.permute.xlu0 %1384
    %1387 = vset.pattern.permute.xlu0 4
    %1388 = vperm.xlu0 %1387, %v31
    %v1389 = vpop.permute.xlu0 %1388
    %1391 = vset.pattern.permute.xlu0 4
    %1392 = vperm.xlu0 %1391, %v32
    %v1393 = vpop.permute.xlu0 %1392
    %v1395 = vmul.f32 %v57, %v1385
    %v1396 = vmul.f32 %v61, %v1385
    %v1397 = vmul.f32 %v65, %v1385
    %v1398 = vmul.f32 %v69, %v1385
    %v1399 = vmul.f32 %v73, %v1385
    %v1400 = vmul.f32 %v77, %v1385
    %v1401 = vmul.f32 %v81, %v1385
    %v1402 = vmul.f32 %v85, %v1385
    %v1403 = vmul.f32 %v257, %v1385
    %v1404 = vmul.f32 %v57, %v1389
    %v1405 = vmul.f32 %v61, %v1389
    %v1406 = vmul.f32 %v65, %v1389
    %v1407 = vmul.f32 %v69, %v1389
    %v1408 = vmul.f32 %v73, %v1389
    %v1409 = vmul.f32 %v77, %v1389
    %v1410 = vmul.f32 %v81, %v1389
    %v1411 = vmul.f32 %v85, %v1389
    %v1412 = vmul.f32 %v257, %v1389
    %v1413 = vmul.f32 %v57, %v1393
    %v1414 = vmul.f32 %v61, %v1393
    %v1415 = vmul.f32 %v65, %v1393
    %v1416 = vmul.f32 %v69, %v1393
    %v1417 = vmul.f32 %v73, %v1393
    %v1418 = vmul.f32 %v77, %v1393
    %v1419 = vmul.f32 %v81, %v1393
    %v1420 = vmul.f32 %v85, %v1393
    %v1421 = vmul.f32 %v257, %v1393
    %v1422 = vmul.f32 %v89, %v1385
    %v1423 = vmul.f32 %v93, %v1385
    %v1424 = vmul.f32 %v97, %v1385
    %v1425 = vmul.f32 %v101, %v1385
    %v1426 = vmul.f32 %v105, %v1385
    %v1427 = vmul.f32 %v109, %v1385
    %v1428 = vmul.f32 %v113, %v1385
    %v1429 = vmul.f32 %v117, %v1385
    %v1430 = vmul.f32 %v261, %v1385
    %v1431 = vmul.f32 %v89, %v1389
    %v1432 = vmul.f32 %v93, %v1389
    %v1433 = vmul.f32 %v97, %v1389
    %v1434 = vmul.f32 %v101, %v1389
    %v1435 = vmul.f32 %v105, %v1389
    %v1436 = vmul.f32 %v109, %v1389
    %v1437 = vmul.f32 %v113, %v1389
    %v1438 = vmul.f32 %v117, %v1389
    %v1439 = vmul.f32 %v261, %v1389
    %v1440 = vmul.f32 %v89, %v1393
    %v1441 = vmul.f32 %v93, %v1393
    %v1442 = vmul.f32 %v97, %v1393
    %v1443 = vmul.f32 %v101, %v1393
    %v1444 = vmul.f32 %v105, %v1393
    %v1445 = vmul.f32 %v109, %v1393
    %v1446 = vmul.f32 %v113, %v1393
    %v1447 = vmul.f32 %v117, %v1393
    %v1448 = vmul.f32 %v261, %v1393
    %1503 = vrot.lane.b32.xlu0 %v1395, 124
    %v1504 = vpop.permute.xlu0 %1503
    %1505 = vrot.lane.b32.xlu0 %v1396, 124
    %v1506 = vpop.permute.xlu0 %1505
    %1507 = vrot.lane.b32.xlu0 %v1397, 124
    %v1508 = vpop.permute.xlu0 %1507
    %1509 = vrot.lane.b32.xlu0 %v1398, 124
    %v1510 = vpop.permute.xlu0 %1509
    %1511 = vrot.lane.b32.xlu0 %v1399, 124
    %v1512 = vpop.permute.xlu0 %1511
    %1513 = vrot.lane.b32.xlu0 %v1400, 124
    %v1514 = vpop.permute.xlu0 %1513
    %1515 = vrot.lane.b32.xlu0 %v1401, 124
    %v1516 = vpop.permute.xlu0 %1515
    %1517 = vrot.lane.b32.xlu0 %v1402, 124
    %v1518 = vpop.permute.xlu0 %1517
    %1519 = vrot.lane.b32.xlu0 %v1403, 124
    %v1520 = vpop.permute.xlu0 %1519
    %1521 = vrot.lane.b32.xlu0 %v1404, 124
    %v1522 = vpop.permute.xlu0 %1521
    %1523 = vrot.lane.b32.xlu0 %v1405, 124
    %v1524 = vpop.permute.xlu0 %1523
    %1525 = vrot.lane.b32.xlu0 %v1406, 124
    %v1526 = vpop.permute.xlu0 %1525
    %1527 = vrot.lane.b32.xlu0 %v1407, 124
    %v1528 = vpop.permute.xlu0 %1527
    %1529 = vrot.lane.b32.xlu0 %v1408, 124
    %v1530 = vpop.permute.xlu0 %1529
    %1531 = vrot.lane.b32.xlu0 %v1409, 124
    %v1532 = vpop.permute.xlu0 %1531
    %1533 = vrot.lane.b32.xlu0 %v1410, 124
    %v1534 = vpop.permute.xlu0 %1533
    %1535 = vrot.lane.b32.xlu0 %v1411, 124
    %v1536 = vpop.permute.xlu0 %1535
    %1537 = vrot.lane.b32.xlu0 %v1412, 124
    %v1538 = vpop.permute.xlu0 %1537
    %1539 = vrot.lane.b32.xlu0 %v1413, 124
    %v1540 = vpop.permute.xlu0 %1539
    %1541 = vrot.lane.b32.xlu0 %v1414, 124
    %v1542 = vpop.permute.xlu0 %1541
    %1543 = vrot.lane.b32.xlu0 %v1415, 124
    %v1544 = vpop.permute.xlu0 %1543
    %1545 = vrot.lane.b32.xlu0 %v1416, 124
    %v1546 = vpop.permute.xlu0 %1545
    %1547 = vrot.lane.b32.xlu0 %v1417, 124
    %v1548 = vpop.permute.xlu0 %1547
    %1549 = vrot.lane.b32.xlu0 %v1418, 124
    %v1550 = vpop.permute.xlu0 %1549
    %1551 = vrot.lane.b32.xlu0 %v1419, 124
    %v1552 = vpop.permute.xlu0 %1551
    %1553 = vrot.lane.b32.xlu0 %v1420, 124
    %v1554 = vpop.permute.xlu0 %1553
    %1555 = vrot.lane.b32.xlu0 %v1421, 124
    %v1556 = vpop.permute.xlu0 %1555
    %1557 = vrot.lane.b32.xlu0 %v1422, 124
    %v1558 = vpop.permute.xlu0 %1557
    %1559 = vrot.lane.b32.xlu0 %v1423, 124
    %v1560 = vpop.permute.xlu0 %1559
    %1561 = vrot.lane.b32.xlu0 %v1424, 124
    %v1562 = vpop.permute.xlu0 %1561
    %1563 = vrot.lane.b32.xlu0 %v1425, 124
    %v1564 = vpop.permute.xlu0 %1563
    %1565 = vrot.lane.b32.xlu0 %v1426, 124
    %v1566 = vpop.permute.xlu0 %1565
    %1567 = vrot.lane.b32.xlu0 %v1427, 124
    %v1568 = vpop.permute.xlu0 %1567
    %1569 = vrot.lane.b32.xlu0 %v1428, 124
    %v1570 = vpop.permute.xlu0 %1569
    %1571 = vrot.lane.b32.xlu0 %v1429, 124
    %v1572 = vpop.permute.xlu0 %1571
    %1573 = vrot.lane.b32.xlu0 %v1430, 124
    %v1574 = vpop.permute.xlu0 %1573
    %1575 = vrot.lane.b32.xlu0 %v1431, 124
    %v1576 = vpop.permute.xlu0 %1575
    %1577 = vrot.lane.b32.xlu0 %v1432, 124
    %v1578 = vpop.permute.xlu0 %1577
    %1579 = vrot.lane.b32.xlu0 %v1433, 124
    %v1580 = vpop.permute.xlu0 %1579
    %1581 = vrot.lane.b32.xlu0 %v1434, 124
    %v1582 = vpop.permute.xlu0 %1581
    %1583 = vrot.lane.b32.xlu0 %v1435, 124
    %v1584 = vpop.permute.xlu0 %1583
    %1585 = vrot.lane.b32.xlu0 %v1436, 124
    %v1586 = vpop.permute.xlu0 %1585
    %1587 = vrot.lane.b32.xlu0 %v1437, 124
    %v1588 = vpop.permute.xlu0 %1587
    %1589 = vrot.lane.b32.xlu0 %v1438, 124
    %v1590 = vpop.permute.xlu0 %1589
    %1591 = vrot.lane.b32.xlu0 %v1439, 124
    %v1592 = vpop.permute.xlu0 %1591
    %1593 = vrot.lane.b32.xlu0 %v1440, 124
    %v1594 = vpop.permute.xlu0 %1593
    %1595 = vrot.lane.b32.xlu0 %v1441, 124
    %v1596 = vpop.permute.xlu0 %1595
    %1597 = vrot.lane.b32.xlu0 %v1442, 124
    %v1598 = vpop.permute.xlu0 %1597
    %1599 = vrot.lane.b32.xlu0 %v1443, 124
    %v1600 = vpop.permute.xlu0 %1599
    %1601 = vrot.lane.b32.xlu0 %v1444, 124
    %v1602 = vpop.permute.xlu0 %1601
    %1603 = vrot.lane.b32.xlu0 %v1445, 124
    %v1604 = vpop.permute.xlu0 %1603
    %1605 = vrot.lane.b32.xlu0 %v1446, 124
    %v1606 = vpop.permute.xlu0 %1605
    %1607 = vrot.lane.b32.xlu0 %v1447, 124
    %v1608 = vpop.permute.xlu0 %1607
    %1609 = vrot.lane.b32.xlu0 %v1448, 124
    %v1610 = vpop.permute.xlu0 %1609
    %vm1611 = vcmask 1014784
    %v1612 = vsel %vm1611, %v1504, %v1506
    %v1613 = vsel %vm1611, %v1506, %v1508
    %v1614 = vsel %vm1611, %v1508, %v1510
    %v1615 = vsel %vm1611, %v1510, %v1512
    %v1616 = vsel %vm1611, %v1512, %v1514
    %v1617 = vsel %vm1611, %v1514, %v1516
    %v1618 = vsel %vm1611, %v1516, %v1518
    %v1619 = vsel %vm1611, %v1518, %v1520
    %v1620 = vsel %vm1611, %v1522, %v1524
    %v1621 = vsel %vm1611, %v1524, %v1526
    %v1622 = vsel %vm1611, %v1526, %v1528
    %v1623 = vsel %vm1611, %v1528, %v1530
    %v1624 = vsel %vm1611, %v1530, %v1532
    %v1625 = vsel %vm1611, %v1532, %v1534
    %v1626 = vsel %vm1611, %v1534, %v1536
    %v1627 = vsel %vm1611, %v1536, %v1538
    %v1628 = vsel %vm1611, %v1540, %v1542
    %v1629 = vsel %vm1611, %v1542, %v1544
    %v1630 = vsel %vm1611, %v1544, %v1546
    %v1631 = vsel %vm1611, %v1546, %v1548
    %v1632 = vsel %vm1611, %v1548, %v1550
    %v1633 = vsel %vm1611, %v1550, %v1552
    %v1634 = vsel %vm1611, %v1552, %v1554
    %v1635 = vsel %vm1611, %v1554, %v1556
    %v1636 = vsel %vm1611, %v1558, %v1560
    %v1637 = vsel %vm1611, %v1560, %v1562
    %v1638 = vsel %vm1611, %v1562, %v1564
    %v1639 = vsel %vm1611, %v1564, %v1566
    %v1640 = vsel %vm1611, %v1566, %v1568
    %v1641 = vsel %vm1611, %v1568, %v1570
    %v1642 = vsel %vm1611, %v1570, %v1572
    %v1643 = vsel %vm1611, %v1572, %v1574
    %v1644 = vsel %vm1611, %v1576, %v1578
    %v1645 = vsel %vm1611, %v1578, %v1580
    %v1646 = vsel %vm1611, %v1580, %v1582
    %v1647 = vsel %vm1611, %v1582, %v1584
    %v1648 = vsel %vm1611, %v1584, %v1586
    %v1649 = vsel %vm1611, %v1586, %v1588
    %v1650 = vsel %vm1611, %v1588, %v1590
    %v1651 = vsel %vm1611, %v1590, %v1592
    %v1652 = vsel %vm1611, %v1594, %v1596
    %v1653 = vsel %vm1611, %v1596, %v1598
    %v1654 = vsel %vm1611, %v1598, %v1600
    %v1655 = vsel %vm1611, %v1600, %v1602
    %v1656 = vsel %vm1611, %v1602, %v1604
    %v1657 = vsel %vm1611, %v1604, %v1606
    %v1658 = vsel %vm1611, %v1606, %v1608
    %v1659 = vsel %vm1611, %v1608, %v1610
    %v1708 = vadd.f32 %v1335, %v1612
    %v1709 = vadd.f32 %v1336, %v1613
    %v1710 = vadd.f32 %v1337, %v1614
    %v1711 = vadd.f32 %v1338, %v1615
    %v1712 = vadd.f32 %v1339, %v1616
    %v1713 = vadd.f32 %v1340, %v1617
    %v1714 = vadd.f32 %v1341, %v1618
    %v1715 = vadd.f32 %v1342, %v1619
    %v1716 = vadd.f32 %v1343, %v1620
    %v1717 = vadd.f32 %v1344, %v1621
    %v1718 = vadd.f32 %v1345, %v1622
    %v1719 = vadd.f32 %v1346, %v1623
    %v1720 = vadd.f32 %v1347, %v1624
    %v1721 = vadd.f32 %v1348, %v1625
    %v1722 = vadd.f32 %v1349, %v1626
    %v1723 = vadd.f32 %v1350, %v1627
    %v1724 = vadd.f32 %v1351, %v1628
    %v1725 = vadd.f32 %v1352, %v1629
    %v1726 = vadd.f32 %v1353, %v1630
    %v1727 = vadd.f32 %v1354, %v1631
    %v1728 = vadd.f32 %v1355, %v1632
    %v1729 = vadd.f32 %v1356, %v1633
    %v1730 = vadd.f32 %v1357, %v1634
    %v1731 = vadd.f32 %v1358, %v1635
    %v1732 = vadd.f32 %v1359, %v1636
    %v1733 = vadd.f32 %v1360, %v1637
    %v1734 = vadd.f32 %v1361, %v1638
    %v1735 = vadd.f32 %v1362, %v1639
    %v1736 = vadd.f32 %v1363, %v1640
    %v1737 = vadd.f32 %v1364, %v1641
    %v1738 = vadd.f32 %v1365, %v1642
    %v1739 = vadd.f32 %v1366, %v1643
    %v1740 = vadd.f32 %v1367, %v1644
    %v1741 = vadd.f32 %v1368, %v1645
    %v1742 = vadd.f32 %v1369, %v1646
    %v1743 = vadd.f32 %v1370, %v1647
    %v1744 = vadd.f32 %v1371, %v1648
    %v1745 = vadd.f32 %v1372, %v1649
    %v1746 = vadd.f32 %v1373, %v1650
    %v1747 = vadd.f32 %v1374, %v1651
    %v1748 = vadd.f32 %v1375, %v1652
    %v1749 = vadd.f32 %v1376, %v1653
    %v1750 = vadd.f32 %v1377, %v1654
    %v1751 = vadd.f32 %v1378, %v1655
    %v1752 = vadd.f32 %v1379, %v1656
    %v1753 = vadd.f32 %v1380, %v1657
    %v1754 = vadd.f32 %v1381, %v1658
    %v1755 = vadd.f32 %v1382, %v1659
    %1756 = vset.pattern.permute.xlu0 5
    %1757 = vperm.xlu0 %1756, %v30
    %v1758 = vpop.permute.xlu0 %1757
    %1760 = vset.pattern.permute.xlu0 5
    %1761 = vperm.xlu0 %1760, %v31
    %v1762 = vpop.permute.xlu0 %1761
    %1764 = vset.pattern.permute.xlu0 5
    %1765 = vperm.xlu0 %1764, %v32
    %v1766 = vpop.permute.xlu0 %1765
    %v1768 = vmul.f32 %v57, %v1758
    %v1769 = vmul.f32 %v61, %v1758
    %v1770 = vmul.f32 %v65, %v1758
    %v1771 = vmul.f32 %v69, %v1758
    %v1772 = vmul.f32 %v73, %v1758
    %v1773 = vmul.f32 %v77, %v1758
    %v1774 = vmul.f32 %v81, %v1758
    %v1775 = vmul.f32 %v85, %v1758
    %v1776 = vmul.f32 %v257, %v1758
    %v1777 = vmul.f32 %v57, %v1762
    %v1778 = vmul.f32 %v61, %v1762
    %v1779 = vmul.f32 %v65, %v1762
    %v1780 = vmul.f32 %v69, %v1762
    %v1781 = vmul.f32 %v73, %v1762
    %v1782 = vmul.f32 %v77, %v1762
    %v1783 = vmul.f32 %v81, %v1762
    %v1784 = vmul.f32 %v85, %v1762
    %v1785 = vmul.f32 %v257, %v1762
    %v1786 = vmul.f32 %v57, %v1766
    %v1787 = vmul.f32 %v61, %v1766
    %v1788 = vmul.f32 %v65, %v1766
    %v1789 = vmul.f32 %v69, %v1766
    %v1790 = vmul.f32 %v73, %v1766
    %v1791 = vmul.f32 %v77, %v1766
    %v1792 = vmul.f32 %v81, %v1766
    %v1793 = vmul.f32 %v85, %v1766
    %v1794 = vmul.f32 %v257, %v1766
    %v1795 = vmul.f32 %v89, %v1758
    %v1796 = vmul.f32 %v93, %v1758
    %v1797 = vmul.f32 %v97, %v1758
    %v1798 = vmul.f32 %v101, %v1758
    %v1799 = vmul.f32 %v105, %v1758
    %v1800 = vmul.f32 %v109, %v1758
    %v1801 = vmul.f32 %v113, %v1758
    %v1802 = vmul.f32 %v117, %v1758
    %v1803 = vmul.f32 %v261, %v1758
    %v1804 = vmul.f32 %v89, %v1762
    %v1805 = vmul.f32 %v93, %v1762
    %v1806 = vmul.f32 %v97, %v1762
    %v1807 = vmul.f32 %v101, %v1762
    %v1808 = vmul.f32 %v105, %v1762
    %v1809 = vmul.f32 %v109, %v1762
    %v1810 = vmul.f32 %v113, %v1762
    %v1811 = vmul.f32 %v117, %v1762
    %v1812 = vmul.f32 %v261, %v1762
    %v1813 = vmul.f32 %v89, %v1766
    %v1814 = vmul.f32 %v93, %v1766
    %v1815 = vmul.f32 %v97, %v1766
    %v1816 = vmul.f32 %v101, %v1766
    %v1817 = vmul.f32 %v105, %v1766
    %v1818 = vmul.f32 %v109, %v1766
    %v1819 = vmul.f32 %v113, %v1766
    %v1820 = vmul.f32 %v117, %v1766
    %v1821 = vmul.f32 %v261, %v1766
    %1876 = vrot.lane.b32.xlu0 %v1768, 123
    %v1877 = vpop.permute.xlu0 %1876
    %1878 = vrot.lane.b32.xlu0 %v1769, 123
    %v1879 = vpop.permute.xlu0 %1878
    %1880 = vrot.lane.b32.xlu0 %v1770, 123
    %v1881 = vpop.permute.xlu0 %1880
    %1882 = vrot.lane.b32.xlu0 %v1771, 123
    %v1883 = vpop.permute.xlu0 %1882
    %1884 = vrot.lane.b32.xlu0 %v1772, 123
    %v1885 = vpop.permute.xlu0 %1884
    %1886 = vrot.lane.b32.xlu0 %v1773, 123
    %v1887 = vpop.permute.xlu0 %1886
    %1888 = vrot.lane.b32.xlu0 %v1774, 123
    %v1889 = vpop.permute.xlu0 %1888
    %1890 = vrot.lane.b32.xlu0 %v1775, 123
    %v1891 = vpop.permute.xlu0 %1890
    %1892 = vrot.lane.b32.xlu0 %v1776, 123
    %v1893 = vpop.permute.xlu0 %1892
    %1894 = vrot.lane.b32.xlu0 %v1777, 123
    %v1895 = vpop.permute.xlu0 %1894
    %1896 = vrot.lane.b32.xlu0 %v1778, 123
    %v1897 = vpop.permute.xlu0 %1896
    %1898 = vrot.lane.b32.xlu0 %v1779, 123
    %v1899 = vpop.permute.xlu0 %1898
    %1900 = vrot.lane.b32.xlu0 %v1780, 123
    %v1901 = vpop.permute.xlu0 %1900
    %1902 = vrot.lane.b32.xlu0 %v1781, 123
    %v1903 = vpop.permute.xlu0 %1902
    %1904 = vrot.lane.b32.xlu0 %v1782, 123
    %v1905 = vpop.permute.xlu0 %1904
    %1906 = vrot.lane.b32.xlu0 %v1783, 123
    %v1907 = vpop.permute.xlu0 %1906
    %1908 = vrot.lane.b32.xlu0 %v1784, 123
    %v1909 = vpop.permute.xlu0 %1908
    %1910 = vrot.lane.b32.xlu0 %v1785, 123
    %v1911 = vpop.permute.xlu0 %1910
    %1912 = vrot.lane.b32.xlu0 %v1786, 123
    %v1913 = vpop.permute.xlu0 %1912
    %1914 = vrot.lane.b32.xlu0 %v1787, 123
    %v1915 = vpop.permute.xlu0 %1914
    %1916 = vrot.lane.b32.xlu0 %v1788, 123
    %v1917 = vpop.permute.xlu0 %1916
    %1918 = vrot.lane.b32.xlu0 %v1789, 123
    %v1919 = vpop.permute.xlu0 %1918
    %1920 = vrot.lane.b32.xlu0 %v1790, 123
    %v1921 = vpop.permute.xlu0 %1920
    %1922 = vrot.lane.b32.xlu0 %v1791, 123
    %v1923 = vpop.permute.xlu0 %1922
    %1924 = vrot.lane.b32.xlu0 %v1792, 123
    %v1925 = vpop.permute.xlu0 %1924
    %1926 = vrot.lane.b32.xlu0 %v1793, 123
    %v1927 = vpop.permute.xlu0 %1926
    %1928 = vrot.lane.b32.xlu0 %v1794, 123
    %v1929 = vpop.permute.xlu0 %1928
    %1930 = vrot.lane.b32.xlu0 %v1795, 123
    %v1931 = vpop.permute.xlu0 %1930
    %1932 = vrot.lane.b32.xlu0 %v1796, 123
    %v1933 = vpop.permute.xlu0 %1932
    %1934 = vrot.lane.b32.xlu0 %v1797, 123
    %v1935 = vpop.permute.xlu0 %1934
    %1936 = vrot.lane.b32.xlu0 %v1798, 123
    %v1937 = vpop.permute.xlu0 %1936
    %1938 = vrot.lane.b32.xlu0 %v1799, 123
    %v1939 = vpop.permute.xlu0 %1938
    %1940 = vrot.lane.b32.xlu0 %v1800, 123
    %v1941 = vpop.permute.xlu0 %1940
    %1942 = vrot.lane.b32.xlu0 %v1801, 123
    %v1943 = vpop.permute.xlu0 %1942
    %1944 = vrot.lane.b32.xlu0 %v1802, 123
    %v1945 = vpop.permute.xlu0 %1944
    %1946 = vrot.lane.b32.xlu0 %v1803, 123
    %v1947 = vpop.permute.xlu0 %1946
    %1948 = vrot.lane.b32.xlu0 %v1804, 123
    %v1949 = vpop.permute.xlu0 %1948
    %1950 = vrot.lane.b32.xlu0 %v1805, 123
    %v1951 = vpop.permute.xlu0 %1950
    %1952 = vrot.lane.b32.xlu0 %v1806, 123
    %v1953 = vpop.permute.xlu0 %1952
    %1954 = vrot.lane.b32.xlu0 %v1807, 123
    %v1955 = vpop.permute.xlu0 %1954
    %1956 = vrot.lane.b32.xlu0 %v1808, 123
    %v1957 = vpop.permute.xlu0 %1956
    %1958 = vrot.lane.b32.xlu0 %v1809, 123
    %v1959 = vpop.permute.xlu0 %1958
    %1960 = vrot.lane.b32.xlu0 %v1810, 123
    %v1961 = vpop.permute.xlu0 %1960
    %1962 = vrot.lane.b32.xlu0 %v1811, 123
    %v1963 = vpop.permute.xlu0 %1962
    %1964 = vrot.lane.b32.xlu0 %v1812, 123
    %v1965 = vpop.permute.xlu0 %1964
    %1966 = vrot.lane.b32.xlu0 %v1813, 123
    %v1967 = vpop.permute.xlu0 %1966
    %1968 = vrot.lane.b32.xlu0 %v1814, 123
    %v1969 = vpop.permute.xlu0 %1968
    %1970 = vrot.lane.b32.xlu0 %v1815, 123
    %v1971 = vpop.permute.xlu0 %1970
    %1972 = vrot.lane.b32.xlu0 %v1816, 123
    %v1973 = vpop.permute.xlu0 %1972
    %1974 = vrot.lane.b32.xlu0 %v1817, 123
    %v1975 = vpop.permute.xlu0 %1974
    %1976 = vrot.lane.b32.xlu0 %v1818, 123
    %v1977 = vpop.permute.xlu0 %1976
    %1978 = vrot.lane.b32.xlu0 %v1819, 123
    %v1979 = vpop.permute.xlu0 %1978
    %1980 = vrot.lane.b32.xlu0 %v1820, 123
    %v1981 = vpop.permute.xlu0 %1980
    %1982 = vrot.lane.b32.xlu0 %v1821, 123
    %v1983 = vpop.permute.xlu0 %1982
    %vm1984 = vcmask 1006592
    %v1985 = vsel %vm1984, %v1877, %v1879
    %v1986 = vsel %vm1984, %v1879, %v1881
    %v1987 = vsel %vm1984, %v1881, %v1883
    %v1988 = vsel %vm1984, %v1883, %v1885
    %v1989 = vsel %vm1984, %v1885, %v1887
    %v1990 = vsel %vm1984, %v1887, %v1889
    %v1991 = vsel %vm1984, %v1889, %v1891
    %v1992 = vsel %vm1984, %v1891, %v1893
    %v1993 = vsel %vm1984, %v1895, %v1897
    %v1994 = vsel %vm1984, %v1897, %v1899
    %v1995 = vsel %vm1984, %v1899, %v1901
    %v1996 = vsel %vm1984, %v1901, %v1903
    %v1997 = vsel %vm1984, %v1903, %v1905
    %v1998 = vsel %vm1984, %v1905, %v1907
    %v1999 = vsel %vm1984, %v1907, %v1909
    %v2000 = vsel %vm1984, %v1909, %v1911
    %v2001 = vsel %vm1984, %v1913, %v1915
    %v2002 = vsel %vm1984, %v1915, %v1917
    %v2003 = vsel %vm1984, %v1917, %v1919
    %v2004 = vsel %vm1984, %v1919, %v1921
    %v2005 = vsel %vm1984, %v1921, %v1923
    %v2006 = vsel %vm1984, %v1923, %v1925
    %v2007 = vsel %vm1984, %v1925, %v1927
    %v2008 = vsel %vm1984, %v1927, %v1929
    %v2009 = vsel %vm1984, %v1931, %v1933
    %v2010 = vsel %vm1984, %v1933, %v1935
    %v2011 = vsel %vm1984, %v1935, %v1937
    %v2012 = vsel %vm1984, %v1937, %v1939
    %v2013 = vsel %vm1984, %v1939, %v1941
    %v2014 = vsel %vm1984, %v1941, %v1943
    %v2015 = vsel %vm1984, %v1943, %v1945
    %v2016 = vsel %vm1984, %v1945, %v1947
    %v2017 = vsel %vm1984, %v1949, %v1951
    %v2018 = vsel %vm1984, %v1951, %v1953
    %v2019 = vsel %vm1984, %v1953, %v1955
    %v2020 = vsel %vm1984, %v1955, %v1957
    %v2021 = vsel %vm1984, %v1957, %v1959
    %v2022 = vsel %vm1984, %v1959, %v1961
    %v2023 = vsel %vm1984, %v1961, %v1963
    %v2024 = vsel %vm1984, %v1963, %v1965
    %v2025 = vsel %vm1984, %v1967, %v1969
    %v2026 = vsel %vm1984, %v1969, %v1971
    %v2027 = vsel %vm1984, %v1971, %v1973
    %v2028 = vsel %vm1984, %v1973, %v1975
    %v2029 = vsel %vm1984, %v1975, %v1977
    %v2030 = vsel %vm1984, %v1977, %v1979
    %v2031 = vsel %vm1984, %v1979, %v1981
    %v2032 = vsel %vm1984, %v1981, %v1983
    %v2081 = vadd.f32 %v1708, %v1985
    %v2082 = vadd.f32 %v1709, %v1986
    %v2083 = vadd.f32 %v1710, %v1987
    %v2084 = vadd.f32 %v1711, %v1988
    %v2085 = vadd.f32 %v1712, %v1989
    %v2086 = vadd.f32 %v1713, %v1990
    %v2087 = vadd.f32 %v1714, %v1991
    %v2088 = vadd.f32 %v1715, %v1992
    %v2089 = vadd.f32 %v1716, %v1993
    %v2090 = vadd.f32 %v1717, %v1994
    %v2091 = vadd.f32 %v1718, %v1995
    %v2092 = vadd.f32 %v1719, %v1996
    %v2093 = vadd.f32 %v1720, %v1997
    %v2094 = vadd.f32 %v1721, %v1998
    %v2095 = vadd.f32 %v1722, %v1999
    %v2096 = vadd.f32 %v1723, %v2000
    %v2097 = vadd.f32 %v1724, %v2001
    %v2098 = vadd.f32 %v1725, %v2002
    %v2099 = vadd.f32 %v1726, %v2003
    %v2100 = vadd.f32 %v1727, %v2004
    %v2101 = vadd.f32 %v1728, %v2005
    %v2102 = vadd.f32 %v1729, %v2006
    %v2103 = vadd.f32 %v1730, %v2007
    %v2104 = vadd.f32 %v1731, %v2008
    %v2105 = vadd.f32 %v1732, %v2009
    %v2106 = vadd.f32 %v1733, %v2010
    %v2107 = vadd.f32 %v1734, %v2011
    %v2108 = vadd.f32 %v1735, %v2012
    %v2109 = vadd.f32 %v1736, %v2013
    %v2110 = vadd.f32 %v1737, %v2014
    %v2111 = vadd.f32 %v1738, %v2015
    %v2112 = vadd.f32 %v1739, %v2016
    %v2113 = vadd.f32 %v1740, %v2017
    %v2114 = vadd.f32 %v1741, %v2018
    %v2115 = vadd.f32 %v1742, %v2019
    %v2116 = vadd.f32 %v1743, %v2020
    %v2117 = vadd.f32 %v1744, %v2021
    %v2118 = vadd.f32 %v1745, %v2022
    %v2119 = vadd.f32 %v1746, %v2023
    %v2120 = vadd.f32 %v1747, %v2024
    %v2121 = vadd.f32 %v1748, %v2025
    %v2122 = vadd.f32 %v1749, %v2026
    %v2123 = vadd.f32 %v1750, %v2027
    %v2124 = vadd.f32 %v1751, %v2028
    %v2125 = vadd.f32 %v1752, %v2029
    %v2126 = vadd.f32 %v1753, %v2030
    %v2127 = vadd.f32 %v1754, %v2031
    %v2128 = vadd.f32 %v1755, %v2032
    %2129 = vset.pattern.permute.xlu0 6
    %2130 = vperm.xlu0 %2129, %v30
    %v2131 = vpop.permute.xlu0 %2130
    %2133 = vset.pattern.permute.xlu0 6
    %2134 = vperm.xlu0 %2133, %v31
    %v2135 = vpop.permute.xlu0 %2134
    %2137 = vset.pattern.permute.xlu0 6
    %2138 = vperm.xlu0 %2137, %v32
    %v2139 = vpop.permute.xlu0 %2138
    %v2141 = vmul.f32 %v57, %v2131
    %v2142 = vmul.f32 %v61, %v2131
    %v2143 = vmul.f32 %v65, %v2131
    %v2144 = vmul.f32 %v69, %v2131
    %v2145 = vmul.f32 %v73, %v2131
    %v2146 = vmul.f32 %v77, %v2131
    %v2147 = vmul.f32 %v81, %v2131
    %v2148 = vmul.f32 %v85, %v2131
    %v2149 = vmul.f32 %v257, %v2131
    %v2150 = vmul.f32 %v57, %v2135
    %v2151 = vmul.f32 %v61, %v2135
    %v2152 = vmul.f32 %v65, %v2135
    %v2153 = vmul.f32 %v69, %v2135
    %v2154 = vmul.f32 %v73, %v2135
    %v2155 = vmul.f32 %v77, %v2135
    %v2156 = vmul.f32 %v81, %v2135
    %v2157 = vmul.f32 %v85, %v2135
    %v2158 = vmul.f32 %v257, %v2135
    %v2159 = vmul.f32 %v57, %v2139
    %v2160 = vmul.f32 %v61, %v2139
    %v2161 = vmul.f32 %v65, %v2139
    %v2162 = vmul.f32 %v69, %v2139
    %v2163 = vmul.f32 %v73, %v2139
    %v2164 = vmul.f32 %v77, %v2139
    %v2165 = vmul.f32 %v81, %v2139
    %v2166 = vmul.f32 %v85, %v2139
    %v2167 = vmul.f32 %v257, %v2139
    %v2168 = vmul.f32 %v89, %v2131
    %v2169 = vmul.f32 %v93, %v2131
    %v2170 = vmul.f32 %v97, %v2131
    %v2171 = vmul.f32 %v101, %v2131
    %v2172 = vmul.f32 %v105, %v2131
    %v2173 = vmul.f32 %v109, %v2131
    %v2174 = vmul.f32 %v113, %v2131
    %v2175 = vmul.f32 %v117, %v2131
    %v2176 = vmul.f32 %v261, %v2131
    %v2177 = vmul.f32 %v89, %v2135
    %v2178 = vmul.f32 %v93, %v2135
    %v2179 = vmul.f32 %v97, %v2135
    %v2180 = vmul.f32 %v101, %v2135
    %v2181 = vmul.f32 %v105, %v2135
    %v2182 = vmul.f32 %v109, %v2135
    %v2183 = vmul.f32 %v113, %v2135
    %v2184 = vmul.f32 %v117, %v2135
    %v2185 = vmul.f32 %v261, %v2135
    %v2186 = vmul.f32 %v89, %v2139
    %v2187 = vmul.f32 %v93, %v2139
    %v2188 = vmul.f32 %v97, %v2139
    %v2189 = vmul.f32 %v101, %v2139
    %v2190 = vmul.f32 %v105, %v2139
    %v2191 = vmul.f32 %v109, %v2139
    %v2192 = vmul.f32 %v113, %v2139
    %v2193 = vmul.f32 %v117, %v2139
    %v2194 = vmul.f32 %v261, %v2139
    %2249 = vrot.lane.b32.xlu0 %v2141, 122
    %v2250 = vpop.permute.xlu0 %2249
    %2251 = vrot.lane.b32.xlu0 %v2142, 122
    %v2252 = vpop.permute.xlu0 %2251
    %2253 = vrot.lane.b32.xlu0 %v2143, 122
    %v2254 = vpop.permute.xlu0 %2253
    %2255 = vrot.lane.b32.xlu0 %v2144, 122
    %v2256 = vpop.permute.xlu0 %2255
    %2257 = vrot.lane.b32.xlu0 %v2145, 122
    %v2258 = vpop.permute.xlu0 %2257
    %2259 = vrot.lane.b32.xlu0 %v2146, 122
    %v2260 = vpop.permute.xlu0 %2259
    %2261 = vrot.lane.b32.xlu0 %v2147, 122
    %v2262 = vpop.permute.xlu0 %2261
    %2263 = vrot.lane.b32.xlu0 %v2148, 122
    %v2264 = vpop.permute.xlu0 %2263
    %2265 = vrot.lane.b32.xlu0 %v2149, 122
    %v2266 = vpop.permute.xlu0 %2265
    %2267 = vrot.lane.b32.xlu0 %v2150, 122
    %v2268 = vpop.permute.xlu0 %2267
    %2269 = vrot.lane.b32.xlu0 %v2151, 122
    %v2270 = vpop.permute.xlu0 %2269
    %2271 = vrot.lane.b32.xlu0 %v2152, 122
    %v2272 = vpop.permute.xlu0 %2271
    %2273 = vrot.lane.b32.xlu0 %v2153, 122
    %v2274 = vpop.permute.xlu0 %2273
    %2275 = vrot.lane.b32.xlu0 %v2154, 122
    %v2276 = vpop.permute.xlu0 %2275
    %2277 = vrot.lane.b32.xlu0 %v2155, 122
    %v2278 = vpop.permute.xlu0 %2277
    %2279 = vrot.lane.b32.xlu0 %v2156, 122
    %v2280 = vpop.permute.xlu0 %2279
    %2281 = vrot.lane.b32.xlu0 %v2157, 122
    %v2282 = vpop.permute.xlu0 %2281
    %2283 = vrot.lane.b32.xlu0 %v2158, 122
    %v2284 = vpop.permute.xlu0 %2283
    %2285 = vrot.lane.b32.xlu0 %v2159, 122
    %v2286 = vpop.permute.xlu0 %2285
    %2287 = vrot.lane.b32.xlu0 %v2160, 122
    %v2288 = vpop.permute.xlu0 %2287
    %2289 = vrot.lane.b32.xlu0 %v2161, 122
    %v2290 = vpop.permute.xlu0 %2289
    %2291 = vrot.lane.b32.xlu0 %v2162, 122
    %v2292 = vpop.permute.xlu0 %2291
    %2293 = vrot.lane.b32.xlu0 %v2163, 122
    %v2294 = vpop.permute.xlu0 %2293
    %2295 = vrot.lane.b32.xlu0 %v2164, 122
    %v2296 = vpop.permute.xlu0 %2295
    %2297 = vrot.lane.b32.xlu0 %v2165, 122
    %v2298 = vpop.permute.xlu0 %2297
    %2299 = vrot.lane.b32.xlu0 %v2166, 122
    %v2300 = vpop.permute.xlu0 %2299
    %2301 = vrot.lane.b32.xlu0 %v2167, 122
    %v2302 = vpop.permute.xlu0 %2301
    %2303 = vrot.lane.b32.xlu0 %v2168, 122
    %v2304 = vpop.permute.xlu0 %2303
    %2305 = vrot.lane.b32.xlu0 %v2169, 122
    %v2306 = vpop.permute.xlu0 %2305
    %2307 = vrot.lane.b32.xlu0 %v2170, 122
    %v2308 = vpop.permute.xlu0 %2307
    %2309 = vrot.lane.b32.xlu0 %v2171, 122
    %v2310 = vpop.permute.xlu0 %2309
    %2311 = vrot.lane.b32.xlu0 %v2172, 122
    %v2312 = vpop.permute.xlu0 %2311
    %2313 = vrot.lane.b32.xlu0 %v2173, 122
    %v2314 = vpop.permute.xlu0 %2313
    %2315 = vrot.lane.b32.xlu0 %v2174, 122
    %v2316 = vpop.permute.xlu0 %2315
    %2317 = vrot.lane.b32.xlu0 %v2175, 122
    %v2318 = vpop.permute.xlu0 %2317
    %2319 = vrot.lane.b32.xlu0 %v2176, 122
    %v2320 = vpop.permute.xlu0 %2319
    %2321 = vrot.lane.b32.xlu0 %v2177, 122
    %v2322 = vpop.permute.xlu0 %2321
    %2323 = vrot.lane.b32.xlu0 %v2178, 122
    %v2324 = vpop.permute.xlu0 %2323
    %2325 = vrot.lane.b32.xlu0 %v2179, 122
    %v2326 = vpop.permute.xlu0 %2325
    %2327 = vrot.lane.b32.xlu0 %v2180, 122
    %v2328 = vpop.permute.xlu0 %2327
    %2329 = vrot.lane.b32.xlu0 %v2181, 122
    %v2330 = vpop.permute.xlu0 %2329
    %2331 = vrot.lane.b32.xlu0 %v2182, 122
    %v2332 = vpop.permute.xlu0 %2331
    %2333 = vrot.lane.b32.xlu0 %v2183, 122
    %v2334 = vpop.permute.xlu0 %2333
    %2335 = vrot.lane.b32.xlu0 %v2184, 122
    %v2336 = vpop.permute.xlu0 %2335
    %2337 = vrot.lane.b32.xlu0 %v2185, 122
    %v2338 = vpop.permute.xlu0 %2337
    %2339 = vrot.lane.b32.xlu0 %v2186, 122
    %v2340 = vpop.permute.xlu0 %2339
    %2341 = vrot.lane.b32.xlu0 %v2187, 122
    %v2342 = vpop.permute.xlu0 %2341
    %2343 = vrot.lane.b32.xlu0 %v2188, 122
    %v2344 = vpop.permute.xlu0 %2343
    %2345 = vrot.lane.b32.xlu0 %v2189, 122
    %v2346 = vpop.permute.xlu0 %2345
    %2347 = vrot.lane.b32.xlu0 %v2190, 122
    %v2348 = vpop.permute.xlu0 %2347
    %2349 = vrot.lane.b32.xlu0 %v2191, 122
    %v2350 = vpop.permute.xlu0 %2349
    %2351 = vrot.lane.b32.xlu0 %v2192, 122
    %v2352 = vpop.permute.xlu0 %2351
    %2353 = vrot.lane.b32.xlu0 %v2193, 122
    %v2354 = vpop.permute.xlu0 %2353
    %2355 = vrot.lane.b32.xlu0 %v2194, 122
    %v2356 = vpop.permute.xlu0 %2355
    %vm2357 = vcmask 998400
    %v2358 = vsel %vm2357, %v2250, %v2252
    %v2359 = vsel %vm2357, %v2252, %v2254
    %v2360 = vsel %vm2357, %v2254, %v2256
    %v2361 = vsel %vm2357, %v2256, %v2258
    %v2362 = vsel %vm2357, %v2258, %v2260
    %v2363 = vsel %vm2357, %v2260, %v2262
    %v2364 = vsel %vm2357, %v2262, %v2264
    %v2365 = vsel %vm2357, %v2264, %v2266
    %v2366 = vsel %vm2357, %v2268, %v2270
    %v2367 = vsel %vm2357, %v2270, %v2272
    %v2368 = vsel %vm2357, %v2272, %v2274
    %v2369 = vsel %vm2357, %v2274, %v2276
    %v2370 = vsel %vm2357, %v2276, %v2278
    %v2371 = vsel %vm2357, %v2278, %v2280
    %v2372 = vsel %vm2357, %v2280, %v2282
    %v2373 = vsel %vm2357, %v2282, %v2284
    %v2374 = vsel %vm2357, %v2286, %v2288
    %v2375 = vsel %vm2357, %v2288, %v2290
    %v2376 = vsel %vm2357, %v2290, %v2292
    %v2377 = vsel %vm2357, %v2292, %v2294
    %v2378 = vsel %vm2357, %v2294, %v2296
    %v2379 = vsel %vm2357, %v2296, %v2298
    %v2380 = vsel %vm2357, %v2298, %v2300
    %v2381 = vsel %vm2357, %v2300, %v2302
    %v2382 = vsel %vm2357, %v2304, %v2306
    %v2383 = vsel %vm2357, %v2306, %v2308
    %v2384 = vsel %vm2357, %v2308, %v2310
    %v2385 = vsel %vm2357, %v2310, %v2312
    %v2386 = vsel %vm2357, %v2312, %v2314
    %v2387 = vsel %vm2357, %v2314, %v2316
    %v2388 = vsel %vm2357, %v2316, %v2318
    %v2389 = vsel %vm2357, %v2318, %v2320
    %v2390 = vsel %vm2357, %v2322, %v2324
    %v2391 = vsel %vm2357, %v2324, %v2326
    %v2392 = vsel %vm2357, %v2326, %v2328
    %v2393 = vsel %vm2357, %v2328, %v2330
    %v2394 = vsel %vm2357, %v2330, %v2332
    %v2395 = vsel %vm2357, %v2332, %v2334
    %v2396 = vsel %vm2357, %v2334, %v2336
    %v2397 = vsel %vm2357, %v2336, %v2338
    %v2398 = vsel %vm2357, %v2340, %v2342
    %v2399 = vsel %vm2357, %v2342, %v2344
    %v2400 = vsel %vm2357, %v2344, %v2346
    %v2401 = vsel %vm2357, %v2346, %v2348
    %v2402 = vsel %vm2357, %v2348, %v2350
    %v2403 = vsel %vm2357, %v2350, %v2352
    %v2404 = vsel %vm2357, %v2352, %v2354
    %v2405 = vsel %vm2357, %v2354, %v2356
    %v2454 = vadd.f32 %v2081, %v2358
    %v2455 = vadd.f32 %v2082, %v2359
    %v2456 = vadd.f32 %v2083, %v2360
    %v2457 = vadd.f32 %v2084, %v2361
    %v2458 = vadd.f32 %v2085, %v2362
    %v2459 = vadd.f32 %v2086, %v2363
    %v2460 = vadd.f32 %v2087, %v2364
    %v2461 = vadd.f32 %v2088, %v2365
    %v2462 = vadd.f32 %v2089, %v2366
    %v2463 = vadd.f32 %v2090, %v2367
    %v2464 = vadd.f32 %v2091, %v2368
    %v2465 = vadd.f32 %v2092, %v2369
    %v2466 = vadd.f32 %v2093, %v2370
    %v2467 = vadd.f32 %v2094, %v2371
    %v2468 = vadd.f32 %v2095, %v2372
    %v2469 = vadd.f32 %v2096, %v2373
    %v2470 = vadd.f32 %v2097, %v2374
    %v2471 = vadd.f32 %v2098, %v2375
    %v2472 = vadd.f32 %v2099, %v2376
    %v2473 = vadd.f32 %v2100, %v2377
    %v2474 = vadd.f32 %v2101, %v2378
    %v2475 = vadd.f32 %v2102, %v2379
    %v2476 = vadd.f32 %v2103, %v2380
    %v2477 = vadd.f32 %v2104, %v2381
    %v2478 = vadd.f32 %v2105, %v2382
    %v2479 = vadd.f32 %v2106, %v2383
    %v2480 = vadd.f32 %v2107, %v2384
    %v2481 = vadd.f32 %v2108, %v2385
    %v2482 = vadd.f32 %v2109, %v2386
    %v2483 = vadd.f32 %v2110, %v2387
    %v2484 = vadd.f32 %v2111, %v2388
    %v2485 = vadd.f32 %v2112, %v2389
    %v2486 = vadd.f32 %v2113, %v2390
    %v2487 = vadd.f32 %v2114, %v2391
    %v2488 = vadd.f32 %v2115, %v2392
    %v2489 = vadd.f32 %v2116, %v2393
    %v2490 = vadd.f32 %v2117, %v2394
    %v2491 = vadd.f32 %v2118, %v2395
    %v2492 = vadd.f32 %v2119, %v2396
    %v2493 = vadd.f32 %v2120, %v2397
    %v2494 = vadd.f32 %v2121, %v2398
    %v2495 = vadd.f32 %v2122, %v2399
    %v2496 = vadd.f32 %v2123, %v2400
    %v2497 = vadd.f32 %v2124, %v2401
    %v2498 = vadd.f32 %v2125, %v2402
    %v2499 = vadd.f32 %v2126, %v2403
    %v2500 = vadd.f32 %v2127, %v2404
    %v2501 = vadd.f32 %v2128, %v2405
    %2502 = vset.pattern.permute.xlu0 7
    %2503 = vperm.xlu0 %2502, %v30
    %v2504 = vpop.permute.xlu0 %2503
    %2506 = vset.pattern.permute.xlu0 7
    %2507 = vperm.xlu0 %2506, %v31
    %v2508 = vpop.permute.xlu0 %2507
    %2510 = vset.pattern.permute.xlu0 7
    %2511 = vperm.xlu0 %2510, %v32
    %v2512 = vpop.permute.xlu0 %2511
    %v2514 = vmul.f32 %v57, %v2504
    %v2515 = vmul.f32 %v61, %v2504
    %v2516 = vmul.f32 %v65, %v2504
    %v2517 = vmul.f32 %v69, %v2504
    %v2518 = vmul.f32 %v73, %v2504
    %v2519 = vmul.f32 %v77, %v2504
    %v2520 = vmul.f32 %v81, %v2504
    %v2521 = vmul.f32 %v85, %v2504
    %v2522 = vmul.f32 %v257, %v2504
    %v2523 = vmul.f32 %v57, %v2508
    %v2524 = vmul.f32 %v61, %v2508
    %v2525 = vmul.f32 %v65, %v2508
    %v2526 = vmul.f32 %v69, %v2508
    %v2527 = vmul.f32 %v73, %v2508
    %v2528 = vmul.f32 %v77, %v2508
    %v2529 = vmul.f32 %v81, %v2508
    %v2530 = vmul.f32 %v85, %v2508
    %v2531 = vmul.f32 %v257, %v2508
    %v2532 = vmul.f32 %v57, %v2512
    %v2533 = vmul.f32 %v61, %v2512
    %v2534 = vmul.f32 %v65, %v2512
    %v2535 = vmul.f32 %v69, %v2512
    %v2536 = vmul.f32 %v73, %v2512
    %v2537 = vmul.f32 %v77, %v2512
    %v2538 = vmul.f32 %v81, %v2512
    %v2539 = vmul.f32 %v85, %v2512
    %v2540 = vmul.f32 %v257, %v2512
    %v2541 = vmul.f32 %v89, %v2504
    %v2542 = vmul.f32 %v93, %v2504
    %v2543 = vmul.f32 %v97, %v2504
    %v2544 = vmul.f32 %v101, %v2504
    %v2545 = vmul.f32 %v105, %v2504
    %v2546 = vmul.f32 %v109, %v2504
    %v2547 = vmul.f32 %v113, %v2504
    %v2548 = vmul.f32 %v117, %v2504
    %v2549 = vmul.f32 %v261, %v2504
    %v2550 = vmul.f32 %v89, %v2508
    %v2551 = vmul.f32 %v93, %v2508
    %v2552 = vmul.f32 %v97, %v2508
    %v2553 = vmul.f32 %v101, %v2508
    %v2554 = vmul.f32 %v105, %v2508
    %v2555 = vmul.f32 %v109, %v2508
    %v2556 = vmul.f32 %v113, %v2508
    %v2557 = vmul.f32 %v117, %v2508
    %v2558 = vmul.f32 %v261, %v2508
    %v2559 = vmul.f32 %v89, %v2512
    %v2560 = vmul.f32 %v93, %v2512
    %v2561 = vmul.f32 %v97, %v2512
    %v2562 = vmul.f32 %v101, %v2512
    %v2563 = vmul.f32 %v105, %v2512
    %v2564 = vmul.f32 %v109, %v2512
    %v2565 = vmul.f32 %v113, %v2512
    %v2566 = vmul.f32 %v117, %v2512
    %v2567 = vmul.f32 %v261, %v2512
    %2622 = vrot.lane.b32.xlu0 %v2514, 121
    %v2623 = vpop.permute.xlu0 %2622
    %2624 = vrot.lane.b32.xlu0 %v2515, 121
    %v2625 = vpop.permute.xlu0 %2624
    %2626 = vrot.lane.b32.xlu0 %v2516, 121
    %v2627 = vpop.permute.xlu0 %2626
    %2628 = vrot.lane.b32.xlu0 %v2517, 121
    %v2629 = vpop.permute.xlu0 %2628
    %2630 = vrot.lane.b32.xlu0 %v2518, 121
    %v2631 = vpop.permute.xlu0 %2630
    %2632 = vrot.lane.b32.xlu0 %v2519, 121
    %v2633 = vpop.permute.xlu0 %2632
    %2634 = vrot.lane.b32.xlu0 %v2520, 121
    %v2635 = vpop.permute.xlu0 %2634
    %2636 = vrot.lane.b32.xlu0 %v2521, 121
    %v2637 = vpop.permute.xlu0 %2636
    %2638 = vrot.lane.b32.xlu0 %v2522, 121
    %v2639 = vpop.permute.xlu0 %2638
    %2640 = vrot.lane.b32.xlu0 %v2523, 121
    %v2641 = vpop.permute.xlu0 %2640
    %2642 = vrot.lane.b32.xlu0 %v2524, 121
    %v2643 = vpop.permute.xlu0 %2642
    %2644 = vrot.lane.b32.xlu0 %v2525, 121
    %v2645 = vpop.permute.xlu0 %2644
    %2646 = vrot.lane.b32.xlu0 %v2526, 121
    %v2647 = vpop.permute.xlu0 %2646
    %2648 = vrot.lane.b32.xlu0 %v2527, 121
    %v2649 = vpop.permute.xlu0 %2648
    %2650 = vrot.lane.b32.xlu0 %v2528, 121
    %v2651 = vpop.permute.xlu0 %2650
    %2652 = vrot.lane.b32.xlu0 %v2529, 121
    %v2653 = vpop.permute.xlu0 %2652
    %2654 = vrot.lane.b32.xlu0 %v2530, 121
    %v2655 = vpop.permute.xlu0 %2654
    %2656 = vrot.lane.b32.xlu0 %v2531, 121
    %v2657 = vpop.permute.xlu0 %2656
    %2658 = vrot.lane.b32.xlu0 %v2532, 121
    %v2659 = vpop.permute.xlu0 %2658
    %2660 = vrot.lane.b32.xlu0 %v2533, 121
    %v2661 = vpop.permute.xlu0 %2660
    %2662 = vrot.lane.b32.xlu0 %v2534, 121
    %v2663 = vpop.permute.xlu0 %2662
    %2664 = vrot.lane.b32.xlu0 %v2535, 121
    %v2665 = vpop.permute.xlu0 %2664
    %2666 = vrot.lane.b32.xlu0 %v2536, 121
    %v2667 = vpop.permute.xlu0 %2666
    %2668 = vrot.lane.b32.xlu0 %v2537, 121
    %v2669 = vpop.permute.xlu0 %2668
    %2670 = vrot.lane.b32.xlu0 %v2538, 121
    %v2671 = vpop.permute.xlu0 %2670
    %2672 = vrot.lane.b32.xlu0 %v2539, 121
    %v2673 = vpop.permute.xlu0 %2672
    %2674 = vrot.lane.b32.xlu0 %v2540, 121
    %v2675 = vpop.permute.xlu0 %2674
    %2676 = vrot.lane.b32.xlu0 %v2541, 121
    %v2677 = vpop.permute.xlu0 %2676
    %2678 = vrot.lane.b32.xlu0 %v2542, 121
    %v2679 = vpop.permute.xlu0 %2678
    %2680 = vrot.lane.b32.xlu0 %v2543, 121
    %v2681 = vpop.permute.xlu0 %2680
    %2682 = vrot.lane.b32.xlu0 %v2544, 121
    %v2683 = vpop.permute.xlu0 %2682
    %2684 = vrot.lane.b32.xlu0 %v2545, 121
    %v2685 = vpop.permute.xlu0 %2684
    %2686 = vrot.lane.b32.xlu0 %v2546, 121
    %v2687 = vpop.permute.xlu0 %2686
    %2688 = vrot.lane.b32.xlu0 %v2547, 121
    %v2689 = vpop.permute.xlu0 %2688
    %2690 = vrot.lane.b32.xlu0 %v2548, 121
    %v2691 = vpop.permute.xlu0 %2690
    %2692 = vrot.lane.b32.xlu0 %v2549, 121
    %v2693 = vpop.permute.xlu0 %2692
    %2694 = vrot.lane.b32.xlu0 %v2550, 121
    %v2695 = vpop.permute.xlu0 %2694
    %2696 = vrot.lane.b32.xlu0 %v2551, 121
    %v2697 = vpop.permute.xlu0 %2696
    %2698 = vrot.lane.b32.xlu0 %v2552, 121
    %v2699 = vpop.permute.xlu0 %2698
    %2700 = vrot.lane.b32.xlu0 %v2553, 121
    %v2701 = vpop.permute.xlu0 %2700
    %2702 = vrot.lane.b32.xlu0 %v2554, 121
    %v2703 = vpop.permute.xlu0 %2702
    %2704 = vrot.lane.b32.xlu0 %v2555, 121
    %v2705 = vpop.permute.xlu0 %2704
    %2706 = vrot.lane.b32.xlu0 %v2556, 121
    %v2707 = vpop.permute.xlu0 %2706
    %2708 = vrot.lane.b32.xlu0 %v2557, 121
    %v2709 = vpop.permute.xlu0 %2708
    %2710 = vrot.lane.b32.xlu0 %v2558, 121
    %v2711 = vpop.permute.xlu0 %2710
    %2712 = vrot.lane.b32.xlu0 %v2559, 121
    %v2713 = vpop.permute.xlu0 %2712
    %2714 = vrot.lane.b32.xlu0 %v2560, 121
    %v2715 = vpop.permute.xlu0 %2714
    %2716 = vrot.lane.b32.xlu0 %v2561, 121
    %v2717 = vpop.permute.xlu0 %2716
    %2718 = vrot.lane.b32.xlu0 %v2562, 121
    %v2719 = vpop.permute.xlu0 %2718
    %2720 = vrot.lane.b32.xlu0 %v2563, 121
    %v2721 = vpop.permute.xlu0 %2720
    %2722 = vrot.lane.b32.xlu0 %v2564, 121
    %v2723 = vpop.permute.xlu0 %2722
    %2724 = vrot.lane.b32.xlu0 %v2565, 121
    %v2725 = vpop.permute.xlu0 %2724
    %2726 = vrot.lane.b32.xlu0 %v2566, 121
    %v2727 = vpop.permute.xlu0 %2726
    %2728 = vrot.lane.b32.xlu0 %v2567, 121
    %v2729 = vpop.permute.xlu0 %2728
    %vm2730 = vcmask 990208
    %v2731 = vsel %vm2730, %v2623, %v2625
    %v2732 = vsel %vm2730, %v2625, %v2627
    %v2733 = vsel %vm2730, %v2627, %v2629
    %v2734 = vsel %vm2730, %v2629, %v2631
    %v2735 = vsel %vm2730, %v2631, %v2633
    %v2736 = vsel %vm2730, %v2633, %v2635
    %v2737 = vsel %vm2730, %v2635, %v2637
    %v2738 = vsel %vm2730, %v2637, %v2639
    %v2739 = vsel %vm2730, %v2641, %v2643
    %v2740 = vsel %vm2730, %v2643, %v2645
    %v2741 = vsel %vm2730, %v2645, %v2647
    %v2742 = vsel %vm2730, %v2647, %v2649
    %v2743 = vsel %vm2730, %v2649, %v2651
    %v2744 = vsel %vm2730, %v2651, %v2653
    %v2745 = vsel %vm2730, %v2653, %v2655
    %v2746 = vsel %vm2730, %v2655, %v2657
    %v2747 = vsel %vm2730, %v2659, %v2661
    %v2748 = vsel %vm2730, %v2661, %v2663
    %v2749 = vsel %vm2730, %v2663, %v2665
    %v2750 = vsel %vm2730, %v2665, %v2667
    %v2751 = vsel %vm2730, %v2667, %v2669
    %v2752 = vsel %vm2730, %v2669, %v2671
    %v2753 = vsel %vm2730, %v2671, %v2673
    %v2754 = vsel %vm2730, %v2673, %v2675
    %v2755 = vsel %vm2730, %v2677, %v2679
    %v2756 = vsel %vm2730, %v2679, %v2681
    %v2757 = vsel %vm2730, %v2681, %v2683
    %v2758 = vsel %vm2730, %v2683, %v2685
    %v2759 = vsel %vm2730, %v2685, %v2687
    %v2760 = vsel %vm2730, %v2687, %v2689
    %v2761 = vsel %vm2730, %v2689, %v2691
    %v2762 = vsel %vm2730, %v2691, %v2693
    %v2763 = vsel %vm2730, %v2695, %v2697
    %v2764 = vsel %vm2730, %v2697, %v2699
    %v2765 = vsel %vm2730, %v2699, %v2701
    %v2766 = vsel %vm2730, %v2701, %v2703
    %v2767 = vsel %vm2730, %v2703, %v2705
    %v2768 = vsel %vm2730, %v2705, %v2707
    %v2769 = vsel %vm2730, %v2707, %v2709
    %v2770 = vsel %vm2730, %v2709, %v2711
    %v2771 = vsel %vm2730, %v2713, %v2715
    %v2772 = vsel %vm2730, %v2715, %v2717
    %v2773 = vsel %vm2730, %v2717, %v2719
    %v2774 = vsel %vm2730, %v2719, %v2721
    %v2775 = vsel %vm2730, %v2721, %v2723
    %v2776 = vsel %vm2730, %v2723, %v2725
    %v2777 = vsel %vm2730, %v2725, %v2727
    %v2778 = vsel %vm2730, %v2727, %v2729
    %v2827 = vadd.f32 %v2454, %v2731
    %v2828 = vadd.f32 %v2455, %v2732
    %v2829 = vadd.f32 %v2456, %v2733
    %v2830 = vadd.f32 %v2457, %v2734
    %v2831 = vadd.f32 %v2458, %v2735
    %v2832 = vadd.f32 %v2459, %v2736
    %v2833 = vadd.f32 %v2460, %v2737
    %v2834 = vadd.f32 %v2461, %v2738
    %v2835 = vadd.f32 %v2462, %v2739
    %v2836 = vadd.f32 %v2463, %v2740
    %v2837 = vadd.f32 %v2464, %v2741
    %v2838 = vadd.f32 %v2465, %v2742
    %v2839 = vadd.f32 %v2466, %v2743
    %v2840 = vadd.f32 %v2467, %v2744
    %v2841 = vadd.f32 %v2468, %v2745
    %v2842 = vadd.f32 %v2469, %v2746
    %v2843 = vadd.f32 %v2470, %v2747
    %v2844 = vadd.f32 %v2471, %v2748
    %v2845 = vadd.f32 %v2472, %v2749
    %v2846 = vadd.f32 %v2473, %v2750
    %v2847 = vadd.f32 %v2474, %v2751
    %v2848 = vadd.f32 %v2475, %v2752
    %v2849 = vadd.f32 %v2476, %v2753
    %v2850 = vadd.f32 %v2477, %v2754
    %v2851 = vadd.f32 %v2478, %v2755
    %v2852 = vadd.f32 %v2479, %v2756
    %v2853 = vadd.f32 %v2480, %v2757
    %v2854 = vadd.f32 %v2481, %v2758
    %v2855 = vadd.f32 %v2482, %v2759
    %v2856 = vadd.f32 %v2483, %v2760
    %v2857 = vadd.f32 %v2484, %v2761
    %v2858 = vadd.f32 %v2485, %v2762
    %v2859 = vadd.f32 %v2486, %v2763
    %v2860 = vadd.f32 %v2487, %v2764
    %v2861 = vadd.f32 %v2488, %v2765
    %v2862 = vadd.f32 %v2489, %v2766
    %v2863 = vadd.f32 %v2490, %v2767
    %v2864 = vadd.f32 %v2491, %v2768
    %v2865 = vadd.f32 %v2492, %v2769
    %v2866 = vadd.f32 %v2493, %v2770
    %v2867 = vadd.f32 %v2494, %v2771
    %v2868 = vadd.f32 %v2495, %v2772
    %v2869 = vadd.f32 %v2496, %v2773
    %v2870 = vadd.f32 %v2497, %v2774
    %v2871 = vadd.f32 %v2498, %v2775
    %v2872 = vadd.f32 %v2499, %v2776
    %v2873 = vadd.f32 %v2500, %v2777
    %v2874 = vadd.f32 %v2501, %v2778
    %2875 = vset.pattern.permute.xlu0 8
    %2876 = vperm.xlu0 %2875, %v30
    %v2877 = vpop.permute.xlu0 %2876
    %2879 = vset.pattern.permute.xlu0 8
    %2880 = vperm.xlu0 %2879, %v31
    %v2881 = vpop.permute.xlu0 %2880
    %2883 = vset.pattern.permute.xlu0 8
    %2884 = vperm.xlu0 %2883, %v32
    %v2885 = vpop.permute.xlu0 %2884
    %v2887 = vmul.f32 %v57, %v2877
    %v2888 = vmul.f32 %v61, %v2877
    %v2889 = vmul.f32 %v65, %v2877
    %v2890 = vmul.f32 %v69, %v2877
    %v2891 = vmul.f32 %v73, %v2877
    %v2892 = vmul.f32 %v77, %v2877
    %v2893 = vmul.f32 %v81, %v2877
    %v2894 = vmul.f32 %v85, %v2877
    %v2895 = vmul.f32 %v257, %v2877
    %v2896 = vmul.f32 %v57, %v2881
    %v2897 = vmul.f32 %v61, %v2881
    %v2898 = vmul.f32 %v65, %v2881
    %v2899 = vmul.f32 %v69, %v2881
    %v2900 = vmul.f32 %v73, %v2881
    %v2901 = vmul.f32 %v77, %v2881
    %v2902 = vmul.f32 %v81, %v2881
    %v2903 = vmul.f32 %v85, %v2881
    %v2904 = vmul.f32 %v257, %v2881
    %v2905 = vmul.f32 %v57, %v2885
    %v2906 = vmul.f32 %v61, %v2885
    %v2907 = vmul.f32 %v65, %v2885
    %v2908 = vmul.f32 %v69, %v2885
    %v2909 = vmul.f32 %v73, %v2885
    %v2910 = vmul.f32 %v77, %v2885
    %v2911 = vmul.f32 %v81, %v2885
    %v2912 = vmul.f32 %v85, %v2885
    %v2913 = vmul.f32 %v257, %v2885
    %v2914 = vmul.f32 %v89, %v2877
    %v2915 = vmul.f32 %v93, %v2877
    %v2916 = vmul.f32 %v97, %v2877
    %v2917 = vmul.f32 %v101, %v2877
    %v2918 = vmul.f32 %v105, %v2877
    %v2919 = vmul.f32 %v109, %v2877
    %v2920 = vmul.f32 %v113, %v2877
    %v2921 = vmul.f32 %v117, %v2877
    %v2922 = vmul.f32 %v261, %v2877
    %v2923 = vmul.f32 %v89, %v2881
    %v2924 = vmul.f32 %v93, %v2881
    %v2925 = vmul.f32 %v97, %v2881
    %v2926 = vmul.f32 %v101, %v2881
    %v2927 = vmul.f32 %v105, %v2881
    %v2928 = vmul.f32 %v109, %v2881
    %v2929 = vmul.f32 %v113, %v2881
    %v2930 = vmul.f32 %v117, %v2881
    %v2931 = vmul.f32 %v261, %v2881
    %v2932 = vmul.f32 %v89, %v2885
    %v2933 = vmul.f32 %v93, %v2885
    %v2934 = vmul.f32 %v97, %v2885
    %v2935 = vmul.f32 %v101, %v2885
    %v2936 = vmul.f32 %v105, %v2885
    %v2937 = vmul.f32 %v109, %v2885
    %v2938 = vmul.f32 %v113, %v2885
    %v2939 = vmul.f32 %v117, %v2885
    %v2940 = vmul.f32 %v261, %v2885
    %2995 = vrot.lane.b32.xlu0 %v2887, 120
    %v2996 = vpop.permute.xlu0 %2995
    %2997 = vrot.lane.b32.xlu0 %v2888, 120
    %v2998 = vpop.permute.xlu0 %2997
    %2999 = vrot.lane.b32.xlu0 %v2889, 120
    %v3000 = vpop.permute.xlu0 %2999
    %3001 = vrot.lane.b32.xlu0 %v2890, 120
    %v3002 = vpop.permute.xlu0 %3001
    %3003 = vrot.lane.b32.xlu0 %v2891, 120
    %v3004 = vpop.permute.xlu0 %3003
    %3005 = vrot.lane.b32.xlu0 %v2892, 120
    %v3006 = vpop.permute.xlu0 %3005
    %3007 = vrot.lane.b32.xlu0 %v2893, 120
    %v3008 = vpop.permute.xlu0 %3007
    %3009 = vrot.lane.b32.xlu0 %v2894, 120
    %v3010 = vpop.permute.xlu0 %3009
    %3011 = vrot.lane.b32.xlu0 %v2895, 120
    %v3012 = vpop.permute.xlu0 %3011
    %3013 = vrot.lane.b32.xlu0 %v2896, 120
    %v3014 = vpop.permute.xlu0 %3013
    %3015 = vrot.lane.b32.xlu0 %v2897, 120
    %v3016 = vpop.permute.xlu0 %3015
    %3017 = vrot.lane.b32.xlu0 %v2898, 120
    %v3018 = vpop.permute.xlu0 %3017
    %3019 = vrot.lane.b32.xlu0 %v2899, 120
    %v3020 = vpop.permute.xlu0 %3019
    %3021 = vrot.lane.b32.xlu0 %v2900, 120
    %v3022 = vpop.permute.xlu0 %3021
    %3023 = vrot.lane.b32.xlu0 %v2901, 120
    %v3024 = vpop.permute.xlu0 %3023
    %3025 = vrot.lane.b32.xlu0 %v2902, 120
    %v3026 = vpop.permute.xlu0 %3025
    %3027 = vrot.lane.b32.xlu0 %v2903, 120
    %v3028 = vpop.permute.xlu0 %3027
    %3029 = vrot.lane.b32.xlu0 %v2904, 120
    %v3030 = vpop.permute.xlu0 %3029
    %3031 = vrot.lane.b32.xlu0 %v2905, 120
    %v3032 = vpop.permute.xlu0 %3031
    %3033 = vrot.lane.b32.xlu0 %v2906, 120
    %v3034 = vpop.permute.xlu0 %3033
    %3035 = vrot.lane.b32.xlu0 %v2907, 120
    %v3036 = vpop.permute.xlu0 %3035
    %3037 = vrot.lane.b32.xlu0 %v2908, 120
    %v3038 = vpop.permute.xlu0 %3037
    %3039 = vrot.lane.b32.xlu0 %v2909, 120
    %v3040 = vpop.permute.xlu0 %3039
    %3041 = vrot.lane.b32.xlu0 %v2910, 120
    %v3042 = vpop.permute.xlu0 %3041
    %3043 = vrot.lane.b32.xlu0 %v2911, 120
    %v3044 = vpop.permute.xlu0 %3043
    %3045 = vrot.lane.b32.xlu0 %v2912, 120
    %v3046 = vpop.permute.xlu0 %3045
    %3047 = vrot.lane.b32.xlu0 %v2913, 120
    %v3048 = vpop.permute.xlu0 %3047
    %3049 = vrot.lane.b32.xlu0 %v2914, 120
    %v3050 = vpop.permute.xlu0 %3049
    %3051 = vrot.lane.b32.xlu0 %v2915, 120
    %v3052 = vpop.permute.xlu0 %3051
    %3053 = vrot.lane.b32.xlu0 %v2916, 120
    %v3054 = vpop.permute.xlu0 %3053
    %3055 = vrot.lane.b32.xlu0 %v2917, 120
    %v3056 = vpop.permute.xlu0 %3055
    %3057 = vrot.lane.b32.xlu0 %v2918, 120
    %v3058 = vpop.permute.xlu0 %3057
    %3059 = vrot.lane.b32.xlu0 %v2919, 120
    %v3060 = vpop.permute.xlu0 %3059
    %3061 = vrot.lane.b32.xlu0 %v2920, 120
    %v3062 = vpop.permute.xlu0 %3061
    %3063 = vrot.lane.b32.xlu0 %v2921, 120
    %v3064 = vpop.permute.xlu0 %3063
    %3065 = vrot.lane.b32.xlu0 %v2922, 120
    %v3066 = vpop.permute.xlu0 %3065
    %3067 = vrot.lane.b32.xlu0 %v2923, 120
    %v3068 = vpop.permute.xlu0 %3067
    %3069 = vrot.lane.b32.xlu0 %v2924, 120
    %v3070 = vpop.permute.xlu0 %3069
    %3071 = vrot.lane.b32.xlu0 %v2925, 120
    %v3072 = vpop.permute.xlu0 %3071
    %3073 = vrot.lane.b32.xlu0 %v2926, 120
    %v3074 = vpop.permute.xlu0 %3073
    %3075 = vrot.lane.b32.xlu0 %v2927, 120
    %v3076 = vpop.permute.xlu0 %3075
    %3077 = vrot.lane.b32.xlu0 %v2928, 120
    %v3078 = vpop.permute.xlu0 %3077
    %3079 = vrot.lane.b32.xlu0 %v2929, 120
    %v3080 = vpop.permute.xlu0 %3079
    %3081 = vrot.lane.b32.xlu0 %v2930, 120
    %v3082 = vpop.permute.xlu0 %3081
    %3083 = vrot.lane.b32.xlu0 %v2931, 120
    %v3084 = vpop.permute.xlu0 %3083
    %3085 = vrot.lane.b32.xlu0 %v2932, 120
    %v3086 = vpop.permute.xlu0 %3085
    %3087 = vrot.lane.b32.xlu0 %v2933, 120
    %v3088 = vpop.permute.xlu0 %3087
    %3089 = vrot.lane.b32.xlu0 %v2934, 120
    %v3090 = vpop.permute.xlu0 %3089
    %3091 = vrot.lane.b32.xlu0 %v2935, 120
    %v3092 = vpop.permute.xlu0 %3091
    %3093 = vrot.lane.b32.xlu0 %v2936, 120
    %v3094 = vpop.permute.xlu0 %3093
    %3095 = vrot.lane.b32.xlu0 %v2937, 120
    %v3096 = vpop.permute.xlu0 %3095
    %3097 = vrot.lane.b32.xlu0 %v2938, 120
    %v3098 = vpop.permute.xlu0 %3097
    %3099 = vrot.lane.b32.xlu0 %v2939, 120
    %v3100 = vpop.permute.xlu0 %3099
    %3101 = vrot.lane.b32.xlu0 %v2940, 120
    %v3102 = vpop.permute.xlu0 %3101
    %vm3103 = vcmask 982016
    %v3104 = vsel %vm3103, %v2996, %v2998
    %v3105 = vsel %vm3103, %v2998, %v3000
    %v3106 = vsel %vm3103, %v3000, %v3002
    %v3107 = vsel %vm3103, %v3002, %v3004
    %v3108 = vsel %vm3103, %v3004, %v3006
    %v3109 = vsel %vm3103, %v3006, %v3008
    %v3110 = vsel %vm3103, %v3008, %v3010
    %v3111 = vsel %vm3103, %v3010, %v3012
    %v3112 = vsel %vm3103, %v3014, %v3016
    %v3113 = vsel %vm3103, %v3016, %v3018
    %v3114 = vsel %vm3103, %v3018, %v3020
    %v3115 = vsel %vm3103, %v3020, %v3022
    %v3116 = vsel %vm3103, %v3022, %v3024
    %v3117 = vsel %vm3103, %v3024, %v3026
    %v3118 = vsel %vm3103, %v3026, %v3028
    %v3119 = vsel %vm3103, %v3028, %v3030
    %v3120 = vsel %vm3103, %v3032, %v3034
    %v3121 = vsel %vm3103, %v3034, %v3036
    %v3122 = vsel %vm3103, %v3036, %v3038
    %v3123 = vsel %vm3103, %v3038, %v3040
    %v3124 = vsel %vm3103, %v3040, %v3042
    %v3125 = vsel %vm3103, %v3042, %v3044
    %v3126 = vsel %vm3103, %v3044, %v3046
    %v3127 = vsel %vm3103, %v3046, %v3048
    %v3128 = vsel %vm3103, %v3050, %v3052
    %v3129 = vsel %vm3103, %v3052, %v3054
    %v3130 = vsel %vm3103, %v3054, %v3056
    %v3131 = vsel %vm3103, %v3056, %v3058
    %v3132 = vsel %vm3103, %v3058, %v3060
    %v3133 = vsel %vm3103, %v3060, %v3062
    %v3134 = vsel %vm3103, %v3062, %v3064
    %v3135 = vsel %vm3103, %v3064, %v3066
    %v3136 = vsel %vm3103, %v3068, %v3070
    %v3137 = vsel %vm3103, %v3070, %v3072
    %v3138 = vsel %vm3103, %v3072, %v3074
    %v3139 = vsel %vm3103, %v3074, %v3076
    %v3140 = vsel %vm3103, %v3076, %v3078
    %v3141 = vsel %vm3103, %v3078, %v3080
    %v3142 = vsel %vm3103, %v3080, %v3082
    %v3143 = vsel %vm3103, %v3082, %v3084
    %v3144 = vsel %vm3103, %v3086, %v3088
    %v3145 = vsel %vm3103, %v3088, %v3090
    %v3146 = vsel %vm3103, %v3090, %v3092
    %v3147 = vsel %vm3103, %v3092, %v3094
    %v3148 = vsel %vm3103, %v3094, %v3096
    %v3149 = vsel %vm3103, %v3096, %v3098
    %v3150 = vsel %vm3103, %v3098, %v3100
    %v3151 = vsel %vm3103, %v3100, %v3102
    %v3200 = vadd.f32 %v2827, %v3104
    %v3201 = vadd.f32 %v2828, %v3105
    %v3202 = vadd.f32 %v2829, %v3106
    %v3203 = vadd.f32 %v2830, %v3107
    %v3204 = vadd.f32 %v2831, %v3108
    %v3205 = vadd.f32 %v2832, %v3109
    %v3206 = vadd.f32 %v2833, %v3110
    %v3207 = vadd.f32 %v2834, %v3111
    %v3208 = vadd.f32 %v2835, %v3112
    %v3209 = vadd.f32 %v2836, %v3113
    %v3210 = vadd.f32 %v2837, %v3114
    %v3211 = vadd.f32 %v2838, %v3115
    %v3212 = vadd.f32 %v2839, %v3116
    %v3213 = vadd.f32 %v2840, %v3117
    %v3214 = vadd.f32 %v2841, %v3118
    %v3215 = vadd.f32 %v2842, %v3119
    %v3216 = vadd.f32 %v2843, %v3120
    %v3217 = vadd.f32 %v2844, %v3121
    %v3218 = vadd.f32 %v2845, %v3122
    %v3219 = vadd.f32 %v2846, %v3123
    %v3220 = vadd.f32 %v2847, %v3124
    %v3221 = vadd.f32 %v2848, %v3125
    %v3222 = vadd.f32 %v2849, %v3126
    %v3223 = vadd.f32 %v2850, %v3127
    %v3224 = vadd.f32 %v2851, %v3128
    %v3225 = vadd.f32 %v2852, %v3129
    %v3226 = vadd.f32 %v2853, %v3130
    %v3227 = vadd.f32 %v2854, %v3131
    %v3228 = vadd.f32 %v2855, %v3132
    %v3229 = vadd.f32 %v2856, %v3133
    %v3230 = vadd.f32 %v2857, %v3134
    %v3231 = vadd.f32 %v2858, %v3135
    %v3232 = vadd.f32 %v2859, %v3136
    %v3233 = vadd.f32 %v2860, %v3137
    %v3234 = vadd.f32 %v2861, %v3138
    %v3235 = vadd.f32 %v2862, %v3139
    %v3236 = vadd.f32 %v2863, %v3140
    %v3237 = vadd.f32 %v2864, %v3141
    %v3238 = vadd.f32 %v2865, %v3142
    %v3239 = vadd.f32 %v2866, %v3143
    %v3240 = vadd.f32 %v2867, %v3144
    %v3241 = vadd.f32 %v2868, %v3145
    %v3242 = vadd.f32 %v2869, %v3146
    %v3243 = vadd.f32 %v2870, %v3147
    %v3244 = vadd.f32 %v2871, %v3148
    %v3245 = vadd.f32 %v2872, %v3149
    %v3246 = vadd.f32 %v2873, %v3150
    %v3247 = vadd.f32 %v2874, %v3151
    %3248 = vset.pattern.permute.xlu0 9
    %3249 = vperm.xlu0 %3248, %v30
    %v3250 = vpop.permute.xlu0 %3249
    %3252 = vset.pattern.permute.xlu0 9
    %3253 = vperm.xlu0 %3252, %v31
    %v3254 = vpop.permute.xlu0 %3253
    %3256 = vset.pattern.permute.xlu0 9
    %3257 = vperm.xlu0 %3256, %v32
    %v3258 = vpop.permute.xlu0 %3257
    %v3260 = vmul.f32 %v57, %v3250
    %v3261 = vmul.f32 %v61, %v3250
    %v3262 = vmul.f32 %v65, %v3250
    %v3263 = vmul.f32 %v69, %v3250
    %v3264 = vmul.f32 %v73, %v3250
    %v3265 = vmul.f32 %v77, %v3250
    %v3266 = vmul.f32 %v81, %v3250
    %v3267 = vmul.f32 %v85, %v3250
    %v3268 = vmul.f32 %v257, %v3250
    %v3269 = vmul.f32 %v57, %v3254
    %v3270 = vmul.f32 %v61, %v3254
    %v3271 = vmul.f32 %v65, %v3254
    %v3272 = vmul.f32 %v69, %v3254
    %v3273 = vmul.f32 %v73, %v3254
    %v3274 = vmul.f32 %v77, %v3254
    %v3275 = vmul.f32 %v81, %v3254
    %v3276 = vmul.f32 %v85, %v3254
    %v3277 = vmul.f32 %v257, %v3254
    %v3278 = vmul.f32 %v57, %v3258
    %v3279 = vmul.f32 %v61, %v3258
    %v3280 = vmul.f32 %v65, %v3258
    %v3281 = vmul.f32 %v69, %v3258
    %v3282 = vmul.f32 %v73, %v3258
    %v3283 = vmul.f32 %v77, %v3258
    %v3284 = vmul.f32 %v81, %v3258
    %v3285 = vmul.f32 %v85, %v3258
    %v3286 = vmul.f32 %v257, %v3258
    %v3287 = vmul.f32 %v89, %v3250
    %v3288 = vmul.f32 %v93, %v3250
    %v3289 = vmul.f32 %v97, %v3250
    %v3290 = vmul.f32 %v101, %v3250
    %v3291 = vmul.f32 %v105, %v3250
    %v3292 = vmul.f32 %v109, %v3250
    %v3293 = vmul.f32 %v113, %v3250
    %v3294 = vmul.f32 %v117, %v3250
    %v3295 = vmul.f32 %v261, %v3250
    %v3296 = vmul.f32 %v89, %v3254
    %v3297 = vmul.f32 %v93, %v3254
    %v3298 = vmul.f32 %v97, %v3254
    %v3299 = vmul.f32 %v101, %v3254
    %v3300 = vmul.f32 %v105, %v3254
    %v3301 = vmul.f32 %v109, %v3254
    %v3302 = vmul.f32 %v113, %v3254
    %v3303 = vmul.f32 %v117, %v3254
    %v3304 = vmul.f32 %v261, %v3254
    %v3305 = vmul.f32 %v89, %v3258
    %v3306 = vmul.f32 %v93, %v3258
    %v3307 = vmul.f32 %v97, %v3258
    %v3308 = vmul.f32 %v101, %v3258
    %v3309 = vmul.f32 %v105, %v3258
    %v3310 = vmul.f32 %v109, %v3258
    %v3311 = vmul.f32 %v113, %v3258
    %v3312 = vmul.f32 %v117, %v3258
    %v3313 = vmul.f32 %v261, %v3258
    %3368 = vrot.lane.b32.xlu0 %v3260, 119
    %v3369 = vpop.permute.xlu0 %3368
    %3370 = vrot.lane.b32.xlu0 %v3261, 119
    %v3371 = vpop.permute.xlu0 %3370
    %3372 = vrot.lane.b32.xlu0 %v3262, 119
    %v3373 = vpop.permute.xlu0 %3372
    %3374 = vrot.lane.b32.xlu0 %v3263, 119
    %v3375 = vpop.permute.xlu0 %3374
    %3376 = vrot.lane.b32.xlu0 %v3264, 119
    %v3377 = vpop.permute.xlu0 %3376
    %3378 = vrot.lane.b32.xlu0 %v3265, 119
    %v3379 = vpop.permute.xlu0 %3378
    %3380 = vrot.lane.b32.xlu0 %v3266, 119
    %v3381 = vpop.permute.xlu0 %3380
    %3382 = vrot.lane.b32.xlu0 %v3267, 119
    %v3383 = vpop.permute.xlu0 %3382
    %3384 = vrot.lane.b32.xlu0 %v3268, 119
    %v3385 = vpop.permute.xlu0 %3384
    %3386 = vrot.lane.b32.xlu0 %v3269, 119
    %v3387 = vpop.permute.xlu0 %3386
    %3388 = vrot.lane.b32.xlu0 %v3270, 119
    %v3389 = vpop.permute.xlu0 %3388
    %3390 = vrot.lane.b32.xlu0 %v3271, 119
    %v3391 = vpop.permute.xlu0 %3390
    %3392 = vrot.lane.b32.xlu0 %v3272, 119
    %v3393 = vpop.permute.xlu0 %3392
    %3394 = vrot.lane.b32.xlu0 %v3273, 119
    %v3395 = vpop.permute.xlu0 %3394
    %3396 = vrot.lane.b32.xlu0 %v3274, 119
    %v3397 = vpop.permute.xlu0 %3396
    %3398 = vrot.lane.b32.xlu0 %v3275, 119
    %v3399 = vpop.permute.xlu0 %3398
    %3400 = vrot.lane.b32.xlu0 %v3276, 119
    %v3401 = vpop.permute.xlu0 %3400
    %3402 = vrot.lane.b32.xlu0 %v3277, 119
    %v3403 = vpop.permute.xlu0 %3402
    %3404 = vrot.lane.b32.xlu0 %v3278, 119
    %v3405 = vpop.permute.xlu0 %3404
    %3406 = vrot.lane.b32.xlu0 %v3279, 119
    %v3407 = vpop.permute.xlu0 %3406
    %3408 = vrot.lane.b32.xlu0 %v3280, 119
    %v3409 = vpop.permute.xlu0 %3408
    %3410 = vrot.lane.b32.xlu0 %v3281, 119
    %v3411 = vpop.permute.xlu0 %3410
    %3412 = vrot.lane.b32.xlu0 %v3282, 119
    %v3413 = vpop.permute.xlu0 %3412
    %3414 = vrot.lane.b32.xlu0 %v3283, 119
    %v3415 = vpop.permute.xlu0 %3414
    %3416 = vrot.lane.b32.xlu0 %v3284, 119
    %v3417 = vpop.permute.xlu0 %3416
    %3418 = vrot.lane.b32.xlu0 %v3285, 119
    %v3419 = vpop.permute.xlu0 %3418
    %3420 = vrot.lane.b32.xlu0 %v3286, 119
    %v3421 = vpop.permute.xlu0 %3420
    %3422 = vrot.lane.b32.xlu0 %v3287, 119
    %v3423 = vpop.permute.xlu0 %3422
    %3424 = vrot.lane.b32.xlu0 %v3288, 119
    %v3425 = vpop.permute.xlu0 %3424
    %3426 = vrot.lane.b32.xlu0 %v3289, 119
    %v3427 = vpop.permute.xlu0 %3426
    %3428 = vrot.lane.b32.xlu0 %v3290, 119
    %v3429 = vpop.permute.xlu0 %3428
    %3430 = vrot.lane.b32.xlu0 %v3291, 119
    %v3431 = vpop.permute.xlu0 %3430
    %3432 = vrot.lane.b32.xlu0 %v3292, 119
    %v3433 = vpop.permute.xlu0 %3432
    %3434 = vrot.lane.b32.xlu0 %v3293, 119
    %v3435 = vpop.permute.xlu0 %3434
    %3436 = vrot.lane.b32.xlu0 %v3294, 119
    %v3437 = vpop.permute.xlu0 %3436
    %3438 = vrot.lane.b32.xlu0 %v3295, 119
    %v3439 = vpop.permute.xlu0 %3438
    %3440 = vrot.lane.b32.xlu0 %v3296, 119
    %v3441 = vpop.permute.xlu0 %3440
    %3442 = vrot.lane.b32.xlu0 %v3297, 119
    %v3443 = vpop.permute.xlu0 %3442
    %3444 = vrot.lane.b32.xlu0 %v3298, 119
    %v3445 = vpop.permute.xlu0 %3444
    %3446 = vrot.lane.b32.xlu0 %v3299, 119
    %v3447 = vpop.permute.xlu0 %3446
    %3448 = vrot.lane.b32.xlu0 %v3300, 119
    %v3449 = vpop.permute.xlu0 %3448
    %3450 = vrot.lane.b32.xlu0 %v3301, 119
    %v3451 = vpop.permute.xlu0 %3450
    %3452 = vrot.lane.b32.xlu0 %v3302, 119
    %v3453 = vpop.permute.xlu0 %3452
    %3454 = vrot.lane.b32.xlu0 %v3303, 119
    %v3455 = vpop.permute.xlu0 %3454
    %3456 = vrot.lane.b32.xlu0 %v3304, 119
    %v3457 = vpop.permute.xlu0 %3456
    %3458 = vrot.lane.b32.xlu0 %v3305, 119
    %v3459 = vpop.permute.xlu0 %3458
    %3460 = vrot.lane.b32.xlu0 %v3306, 119
    %v3461 = vpop.permute.xlu0 %3460
    %3462 = vrot.lane.b32.xlu0 %v3307, 119
    %v3463 = vpop.permute.xlu0 %3462
    %3464 = vrot.lane.b32.xlu0 %v3308, 119
    %v3465 = vpop.permute.xlu0 %3464
    %3466 = vrot.lane.b32.xlu0 %v3309, 119
    %v3467 = vpop.permute.xlu0 %3466
    %3468 = vrot.lane.b32.xlu0 %v3310, 119
    %v3469 = vpop.permute.xlu0 %3468
    %3470 = vrot.lane.b32.xlu0 %v3311, 119
    %v3471 = vpop.permute.xlu0 %3470
    %3472 = vrot.lane.b32.xlu0 %v3312, 119
    %v3473 = vpop.permute.xlu0 %3472
    %3474 = vrot.lane.b32.xlu0 %v3313, 119
    %v3475 = vpop.permute.xlu0 %3474
    %vm3476 = vcmask 973824
    %v3477 = vsel %vm3476, %v3369, %v3371
    %v3478 = vsel %vm3476, %v3371, %v3373
    %v3479 = vsel %vm3476, %v3373, %v3375
    %v3480 = vsel %vm3476, %v3375, %v3377
    %v3481 = vsel %vm3476, %v3377, %v3379
    %v3482 = vsel %vm3476, %v3379, %v3381
    %v3483 = vsel %vm3476, %v3381, %v3383
    %v3484 = vsel %vm3476, %v3383, %v3385
    %v3485 = vsel %vm3476, %v3387, %v3389
    %v3486 = vsel %vm3476, %v3389, %v3391
    %v3487 = vsel %vm3476, %v3391, %v3393
    %v3488 = vsel %vm3476, %v3393, %v3395
    %v3489 = vsel %vm3476, %v3395, %v3397
    %v3490 = vsel %vm3476, %v3397, %v3399
    %v3491 = vsel %vm3476, %v3399, %v3401
    %v3492 = vsel %vm3476, %v3401, %v3403
    %v3493 = vsel %vm3476, %v3405, %v3407
    %v3494 = vsel %vm3476, %v3407, %v3409
    %v3495 = vsel %vm3476, %v3409, %v3411
    %v3496 = vsel %vm3476, %v3411, %v3413
    %v3497 = vsel %vm3476, %v3413, %v3415
    %v3498 = vsel %vm3476, %v3415, %v3417
    %v3499 = vsel %vm3476, %v3417, %v3419
    %v3500 = vsel %vm3476, %v3419, %v3421
    %v3501 = vsel %vm3476, %v3423, %v3425
    %v3502 = vsel %vm3476, %v3425, %v3427
    %v3503 = vsel %vm3476, %v3427, %v3429
    %v3504 = vsel %vm3476, %v3429, %v3431
    %v3505 = vsel %vm3476, %v3431, %v3433
    %v3506 = vsel %vm3476, %v3433, %v3435
    %v3507 = vsel %vm3476, %v3435, %v3437
    %v3508 = vsel %vm3476, %v3437, %v3439
    %v3509 = vsel %vm3476, %v3441, %v3443
    %v3510 = vsel %vm3476, %v3443, %v3445
    %v3511 = vsel %vm3476, %v3445, %v3447
    %v3512 = vsel %vm3476, %v3447, %v3449
    %v3513 = vsel %vm3476, %v3449, %v3451
    %v3514 = vsel %vm3476, %v3451, %v3453
    %v3515 = vsel %vm3476, %v3453, %v3455
    %v3516 = vsel %vm3476, %v3455, %v3457
    %v3517 = vsel %vm3476, %v3459, %v3461
    %v3518 = vsel %vm3476, %v3461, %v3463
    %v3519 = vsel %vm3476, %v3463, %v3465
    %v3520 = vsel %vm3476, %v3465, %v3467
    %v3521 = vsel %vm3476, %v3467, %v3469
    %v3522 = vsel %vm3476, %v3469, %v3471
    %v3523 = vsel %vm3476, %v3471, %v3473
    %v3524 = vsel %vm3476, %v3473, %v3475
    %v3573 = vadd.f32 %v3200, %v3477
    %v3574 = vadd.f32 %v3201, %v3478
    %v3575 = vadd.f32 %v3202, %v3479
    %v3576 = vadd.f32 %v3203, %v3480
    %v3577 = vadd.f32 %v3204, %v3481
    %v3578 = vadd.f32 %v3205, %v3482
    %v3579 = vadd.f32 %v3206, %v3483
    %v3580 = vadd.f32 %v3207, %v3484
    %v3581 = vadd.f32 %v3208, %v3485
    %v3582 = vadd.f32 %v3209, %v3486
    %v3583 = vadd.f32 %v3210, %v3487
    %v3584 = vadd.f32 %v3211, %v3488
    %v3585 = vadd.f32 %v3212, %v3489
    %v3586 = vadd.f32 %v3213, %v3490
    %v3587 = vadd.f32 %v3214, %v3491
    %v3588 = vadd.f32 %v3215, %v3492
    %v3589 = vadd.f32 %v3216, %v3493
    %v3590 = vadd.f32 %v3217, %v3494
    %v3591 = vadd.f32 %v3218, %v3495
    %v3592 = vadd.f32 %v3219, %v3496
    %v3593 = vadd.f32 %v3220, %v3497
    %v3594 = vadd.f32 %v3221, %v3498
    %v3595 = vadd.f32 %v3222, %v3499
    %v3596 = vadd.f32 %v3223, %v3500
    %v3597 = vadd.f32 %v3224, %v3501
    %v3598 = vadd.f32 %v3225, %v3502
    %v3599 = vadd.f32 %v3226, %v3503
    %v3600 = vadd.f32 %v3227, %v3504
    %v3601 = vadd.f32 %v3228, %v3505
    %v3602 = vadd.f32 %v3229, %v3506
    %v3603 = vadd.f32 %v3230, %v3507
    %v3604 = vadd.f32 %v3231, %v3508
    %v3605 = vadd.f32 %v3232, %v3509
    %v3606 = vadd.f32 %v3233, %v3510
    %v3607 = vadd.f32 %v3234, %v3511
    %v3608 = vadd.f32 %v3235, %v3512
    %v3609 = vadd.f32 %v3236, %v3513
    %v3610 = vadd.f32 %v3237, %v3514
    %v3611 = vadd.f32 %v3238, %v3515
    %v3612 = vadd.f32 %v3239, %v3516
    %v3613 = vadd.f32 %v3240, %v3517
    %v3614 = vadd.f32 %v3241, %v3518
    %v3615 = vadd.f32 %v3242, %v3519
    %v3616 = vadd.f32 %v3243, %v3520
    %v3617 = vadd.f32 %v3244, %v3521
    %v3618 = vadd.f32 %v3245, %v3522
    %v3619 = vadd.f32 %v3246, %v3523
    %v3620 = vadd.f32 %v3247, %v3524
    %3621 = vset.pattern.permute.xlu0 10
    %3622 = vperm.xlu0 %3621, %v30
    %v3623 = vpop.permute.xlu0 %3622
    %3625 = vset.pattern.permute.xlu0 10
    %3626 = vperm.xlu0 %3625, %v31
    %v3627 = vpop.permute.xlu0 %3626
    %3629 = vset.pattern.permute.xlu0 10
    %3630 = vperm.xlu0 %3629, %v32
    %v3631 = vpop.permute.xlu0 %3630
    %v3633 = vmul.f32 %v57, %v3623
    %v3634 = vmul.f32 %v61, %v3623
    %v3635 = vmul.f32 %v65, %v3623
    %v3636 = vmul.f32 %v69, %v3623
    %v3637 = vmul.f32 %v73, %v3623
    %v3638 = vmul.f32 %v77, %v3623
    %v3639 = vmul.f32 %v81, %v3623
    %v3640 = vmul.f32 %v85, %v3623
    %v3641 = vmul.f32 %v257, %v3623
    %v3642 = vmul.f32 %v57, %v3627
    %v3643 = vmul.f32 %v61, %v3627
    %v3644 = vmul.f32 %v65, %v3627
    %v3645 = vmul.f32 %v69, %v3627
    %v3646 = vmul.f32 %v73, %v3627
    %v3647 = vmul.f32 %v77, %v3627
    %v3648 = vmul.f32 %v81, %v3627
    %v3649 = vmul.f32 %v85, %v3627
    %v3650 = vmul.f32 %v257, %v3627
    %v3651 = vmul.f32 %v57, %v3631
    %v3652 = vmul.f32 %v61, %v3631
    %v3653 = vmul.f32 %v65, %v3631
    %v3654 = vmul.f32 %v69, %v3631
    %v3655 = vmul.f32 %v73, %v3631
    %v3656 = vmul.f32 %v77, %v3631
    %v3657 = vmul.f32 %v81, %v3631
    %v3658 = vmul.f32 %v85, %v3631
    %v3659 = vmul.f32 %v257, %v3631
    %v3660 = vmul.f32 %v89, %v3623
    %v3661 = vmul.f32 %v93, %v3623
    %v3662 = vmul.f32 %v97, %v3623
    %v3663 = vmul.f32 %v101, %v3623
    %v3664 = vmul.f32 %v105, %v3623
    %v3665 = vmul.f32 %v109, %v3623
    %v3666 = vmul.f32 %v113, %v3623
    %v3667 = vmul.f32 %v117, %v3623
    %v3668 = vmul.f32 %v261, %v3623
    %v3669 = vmul.f32 %v89, %v3627
    %v3670 = vmul.f32 %v93, %v3627
    %v3671 = vmul.f32 %v97, %v3627
    %v3672 = vmul.f32 %v101, %v3627
    %v3673 = vmul.f32 %v105, %v3627
    %v3674 = vmul.f32 %v109, %v3627
    %v3675 = vmul.f32 %v113, %v3627
    %v3676 = vmul.f32 %v117, %v3627
    %v3677 = vmul.f32 %v261, %v3627
    %v3678 = vmul.f32 %v89, %v3631
    %v3679 = vmul.f32 %v93, %v3631
    %v3680 = vmul.f32 %v97, %v3631
    %v3681 = vmul.f32 %v101, %v3631
    %v3682 = vmul.f32 %v105, %v3631
    %v3683 = vmul.f32 %v109, %v3631
    %v3684 = vmul.f32 %v113, %v3631
    %v3685 = vmul.f32 %v117, %v3631
    %v3686 = vmul.f32 %v261, %v3631
    %3741 = vrot.lane.b32.xlu0 %v3633, 118
    %v3742 = vpop.permute.xlu0 %3741
    %3743 = vrot.lane.b32.xlu0 %v3634, 118
    %v3744 = vpop.permute.xlu0 %3743
    %3745 = vrot.lane.b32.xlu0 %v3635, 118
    %v3746 = vpop.permute.xlu0 %3745
    %3747 = vrot.lane.b32.xlu0 %v3636, 118
    %v3748 = vpop.permute.xlu0 %3747
    %3749 = vrot.lane.b32.xlu0 %v3637, 118
    %v3750 = vpop.permute.xlu0 %3749
    %3751 = vrot.lane.b32.xlu0 %v3638, 118
    %v3752 = vpop.permute.xlu0 %3751
    %3753 = vrot.lane.b32.xlu0 %v3639, 118
    %v3754 = vpop.permute.xlu0 %3753
    %3755 = vrot.lane.b32.xlu0 %v3640, 118
    %v3756 = vpop.permute.xlu0 %3755
    %3757 = vrot.lane.b32.xlu0 %v3641, 118
    %v3758 = vpop.permute.xlu0 %3757
    %3759 = vrot.lane.b32.xlu0 %v3642, 118
    %v3760 = vpop.permute.xlu0 %3759
    %3761 = vrot.lane.b32.xlu0 %v3643, 118
    %v3762 = vpop.permute.xlu0 %3761
    %3763 = vrot.lane.b32.xlu0 %v3644, 118
    %v3764 = vpop.permute.xlu0 %3763
    %3765 = vrot.lane.b32.xlu0 %v3645, 118
    %v3766 = vpop.permute.xlu0 %3765
    %3767 = vrot.lane.b32.xlu0 %v3646, 118
    %v3768 = vpop.permute.xlu0 %3767
    %3769 = vrot.lane.b32.xlu0 %v3647, 118
    %v3770 = vpop.permute.xlu0 %3769
    %3771 = vrot.lane.b32.xlu0 %v3648, 118
    %v3772 = vpop.permute.xlu0 %3771
    %3773 = vrot.lane.b32.xlu0 %v3649, 118
    %v3774 = vpop.permute.xlu0 %3773
    %3775 = vrot.lane.b32.xlu0 %v3650, 118
    %v3776 = vpop.permute.xlu0 %3775
    %3777 = vrot.lane.b32.xlu0 %v3651, 118
    %v3778 = vpop.permute.xlu0 %3777
    %3779 = vrot.lane.b32.xlu0 %v3652, 118
    %v3780 = vpop.permute.xlu0 %3779
    %3781 = vrot.lane.b32.xlu0 %v3653, 118
    %v3782 = vpop.permute.xlu0 %3781
    %3783 = vrot.lane.b32.xlu0 %v3654, 118
    %v3784 = vpop.permute.xlu0 %3783
    %3785 = vrot.lane.b32.xlu0 %v3655, 118
    %v3786 = vpop.permute.xlu0 %3785
    %3787 = vrot.lane.b32.xlu0 %v3656, 118
    %v3788 = vpop.permute.xlu0 %3787
    %3789 = vrot.lane.b32.xlu0 %v3657, 118
    %v3790 = vpop.permute.xlu0 %3789
    %3791 = vrot.lane.b32.xlu0 %v3658, 118
    %v3792 = vpop.permute.xlu0 %3791
    %3793 = vrot.lane.b32.xlu0 %v3659, 118
    %v3794 = vpop.permute.xlu0 %3793
    %3795 = vrot.lane.b32.xlu0 %v3660, 118
    %v3796 = vpop.permute.xlu0 %3795
    %3797 = vrot.lane.b32.xlu0 %v3661, 118
    %v3798 = vpop.permute.xlu0 %3797
    %3799 = vrot.lane.b32.xlu0 %v3662, 118
    %v3800 = vpop.permute.xlu0 %3799
    %3801 = vrot.lane.b32.xlu0 %v3663, 118
    %v3802 = vpop.permute.xlu0 %3801
    %3803 = vrot.lane.b32.xlu0 %v3664, 118
    %v3804 = vpop.permute.xlu0 %3803
    %3805 = vrot.lane.b32.xlu0 %v3665, 118
    %v3806 = vpop.permute.xlu0 %3805
    %3807 = vrot.lane.b32.xlu0 %v3666, 118
    %v3808 = vpop.permute.xlu0 %3807
    %3809 = vrot.lane.b32.xlu0 %v3667, 118
    %v3810 = vpop.permute.xlu0 %3809
    %3811 = vrot.lane.b32.xlu0 %v3668, 118
    %v3812 = vpop.permute.xlu0 %3811
    %3813 = vrot.lane.b32.xlu0 %v3669, 118
    %v3814 = vpop.permute.xlu0 %3813
    %3815 = vrot.lane.b32.xlu0 %v3670, 118
    %v3816 = vpop.permute.xlu0 %3815
    %3817 = vrot.lane.b32.xlu0 %v3671, 118
    %v3818 = vpop.permute.xlu0 %3817
    %3819 = vrot.lane.b32.xlu0 %v3672, 118
    %v3820 = vpop.permute.xlu0 %3819
    %3821 = vrot.lane.b32.xlu0 %v3673, 118
    %v3822 = vpop.permute.xlu0 %3821
    %3823 = vrot.lane.b32.xlu0 %v3674, 118
    %v3824 = vpop.permute.xlu0 %3823
    %3825 = vrot.lane.b32.xlu0 %v3675, 118
    %v3826 = vpop.permute.xlu0 %3825
    %3827 = vrot.lane.b32.xlu0 %v3676, 118
    %v3828 = vpop.permute.xlu0 %3827
    %3829 = vrot.lane.b32.xlu0 %v3677, 118
    %v3830 = vpop.permute.xlu0 %3829
    %3831 = vrot.lane.b32.xlu0 %v3678, 118
    %v3832 = vpop.permute.xlu0 %3831
    %3833 = vrot.lane.b32.xlu0 %v3679, 118
    %v3834 = vpop.permute.xlu0 %3833
    %3835 = vrot.lane.b32.xlu0 %v3680, 118
    %v3836 = vpop.permute.xlu0 %3835
    %3837 = vrot.lane.b32.xlu0 %v3681, 118
    %v3838 = vpop.permute.xlu0 %3837
    %3839 = vrot.lane.b32.xlu0 %v3682, 118
    %v3840 = vpop.permute.xlu0 %3839
    %3841 = vrot.lane.b32.xlu0 %v3683, 118
    %v3842 = vpop.permute.xlu0 %3841
    %3843 = vrot.lane.b32.xlu0 %v3684, 118
    %v3844 = vpop.permute.xlu0 %3843
    %3845 = vrot.lane.b32.xlu0 %v3685, 118
    %v3846 = vpop.permute.xlu0 %3845
    %3847 = vrot.lane.b32.xlu0 %v3686, 118
    %v3848 = vpop.permute.xlu0 %3847
    %vm3849 = vcmask 965632
    %v3850 = vsel %vm3849, %v3742, %v3744
    %v3851 = vsel %vm3849, %v3744, %v3746
    %v3852 = vsel %vm3849, %v3746, %v3748
    %v3853 = vsel %vm3849, %v3748, %v3750
    %v3854 = vsel %vm3849, %v3750, %v3752
    %v3855 = vsel %vm3849, %v3752, %v3754
    %v3856 = vsel %vm3849, %v3754, %v3756
    %v3857 = vsel %vm3849, %v3756, %v3758
    %v3858 = vsel %vm3849, %v3760, %v3762
    %v3859 = vsel %vm3849, %v3762, %v3764
    %v3860 = vsel %vm3849, %v3764, %v3766
    %v3861 = vsel %vm3849, %v3766, %v3768
    %v3862 = vsel %vm3849, %v3768, %v3770
    %v3863 = vsel %vm3849, %v3770, %v3772
    %v3864 = vsel %vm3849, %v3772, %v3774
    %v3865 = vsel %vm3849, %v3774, %v3776
    %v3866 = vsel %vm3849, %v3778, %v3780
    %v3867 = vsel %vm3849, %v3780, %v3782
    %v3868 = vsel %vm3849, %v3782, %v3784
    %v3869 = vsel %vm3849, %v3784, %v3786
    %v3870 = vsel %vm3849, %v3786, %v3788
    %v3871 = vsel %vm3849, %v3788, %v3790
    %v3872 = vsel %vm3849, %v3790, %v3792
    %v3873 = vsel %vm3849, %v3792, %v3794
    %v3874 = vsel %vm3849, %v3796, %v3798
    %v3875 = vsel %vm3849, %v3798, %v3800
    %v3876 = vsel %vm3849, %v3800, %v3802
    %v3877 = vsel %vm3849, %v3802, %v3804
    %v3878 = vsel %vm3849, %v3804, %v3806
    %v3879 = vsel %vm3849, %v3806, %v3808
    %v3880 = vsel %vm3849, %v3808, %v3810
    %v3881 = vsel %vm3849, %v3810, %v3812
    %v3882 = vsel %vm3849, %v3814, %v3816
    %v3883 = vsel %vm3849, %v3816, %v3818
    %v3884 = vsel %vm3849, %v3818, %v3820
    %v3885 = vsel %vm3849, %v3820, %v3822
    %v3886 = vsel %vm3849, %v3822, %v3824
    %v3887 = vsel %vm3849, %v3824, %v3826
    %v3888 = vsel %vm3849, %v3826, %v3828
    %v3889 = vsel %vm3849, %v3828, %v3830
    %v3890 = vsel %vm3849, %v3832, %v3834
    %v3891 = vsel %vm3849, %v3834, %v3836
    %v3892 = vsel %vm3849, %v3836, %v3838
    %v3893 = vsel %vm3849, %v3838, %v3840
    %v3894 = vsel %vm3849, %v3840, %v3842
    %v3895 = vsel %vm3849, %v3842, %v3844
    %v3896 = vsel %vm3849, %v3844, %v3846
    %v3897 = vsel %vm3849, %v3846, %v3848
    %v3946 = vadd.f32 %v3573, %v3850
    %v3947 = vadd.f32 %v3574, %v3851
    %v3948 = vadd.f32 %v3575, %v3852
    %v3949 = vadd.f32 %v3576, %v3853
    %v3950 = vadd.f32 %v3577, %v3854
    %v3951 = vadd.f32 %v3578, %v3855
    %v3952 = vadd.f32 %v3579, %v3856
    %v3953 = vadd.f32 %v3580, %v3857
    %v3954 = vadd.f32 %v3581, %v3858
    %v3955 = vadd.f32 %v3582, %v3859
    %v3956 = vadd.f32 %v3583, %v3860
    %v3957 = vadd.f32 %v3584, %v3861
    %v3958 = vadd.f32 %v3585, %v3862
    %v3959 = vadd.f32 %v3586, %v3863
    %v3960 = vadd.f32 %v3587, %v3864
    %v3961 = vadd.f32 %v3588, %v3865
    %v3962 = vadd.f32 %v3589, %v3866
    %v3963 = vadd.f32 %v3590, %v3867
    %v3964 = vadd.f32 %v3591, %v3868
    %v3965 = vadd.f32 %v3592, %v3869
    %v3966 = vadd.f32 %v3593, %v3870
    %v3967 = vadd.f32 %v3594, %v3871
    %v3968 = vadd.f32 %v3595, %v3872
    %v3969 = vadd.f32 %v3596, %v3873
    %v3970 = vadd.f32 %v3597, %v3874
    %v3971 = vadd.f32 %v3598, %v3875
    %v3972 = vadd.f32 %v3599, %v3876
    %v3973 = vadd.f32 %v3600, %v3877
    %v3974 = vadd.f32 %v3601, %v3878
    %v3975 = vadd.f32 %v3602, %v3879
    %v3976 = vadd.f32 %v3603, %v3880
    %v3977 = vadd.f32 %v3604, %v3881
    %v3978 = vadd.f32 %v3605, %v3882
    %v3979 = vadd.f32 %v3606, %v3883
    %v3980 = vadd.f32 %v3607, %v3884
    %v3981 = vadd.f32 %v3608, %v3885
    %v3982 = vadd.f32 %v3609, %v3886
    %v3983 = vadd.f32 %v3610, %v3887
    %v3984 = vadd.f32 %v3611, %v3888
    %v3985 = vadd.f32 %v3612, %v3889
    %v3986 = vadd.f32 %v3613, %v3890
    %v3987 = vadd.f32 %v3614, %v3891
    %v3988 = vadd.f32 %v3615, %v3892
    %v3989 = vadd.f32 %v3616, %v3893
    %v3990 = vadd.f32 %v3617, %v3894
    %v3991 = vadd.f32 %v3618, %v3895
    %v3992 = vadd.f32 %v3619, %v3896
    %v3993 = vadd.f32 %v3620, %v3897
    %3994 = vset.pattern.permute.xlu0 11
    %3995 = vperm.xlu0 %3994, %v30
    %v3996 = vpop.permute.xlu0 %3995
    %3998 = vset.pattern.permute.xlu0 11
    %3999 = vperm.xlu0 %3998, %v31
    %v4000 = vpop.permute.xlu0 %3999
    %4002 = vset.pattern.permute.xlu0 11
    %4003 = vperm.xlu0 %4002, %v32
    %v4004 = vpop.permute.xlu0 %4003
    %v4006 = vmul.f32 %v57, %v3996
    %v4007 = vmul.f32 %v61, %v3996
    %v4008 = vmul.f32 %v65, %v3996
    %v4009 = vmul.f32 %v69, %v3996
    %v4010 = vmul.f32 %v73, %v3996
    %v4011 = vmul.f32 %v77, %v3996
    %v4012 = vmul.f32 %v81, %v3996
    %v4013 = vmul.f32 %v85, %v3996
    %v4014 = vmul.f32 %v257, %v3996
    %v4015 = vmul.f32 %v57, %v4000
    %v4016 = vmul.f32 %v61, %v4000
    %v4017 = vmul.f32 %v65, %v4000
    %v4018 = vmul.f32 %v69, %v4000
    %v4019 = vmul.f32 %v73, %v4000
    %v4020 = vmul.f32 %v77, %v4000
    %v4021 = vmul.f32 %v81, %v4000
    %v4022 = vmul.f32 %v85, %v4000
    %v4023 = vmul.f32 %v257, %v4000
    %v4024 = vmul.f32 %v57, %v4004
    %v4025 = vmul.f32 %v61, %v4004
    %v4026 = vmul.f32 %v65, %v4004
    %v4027 = vmul.f32 %v69, %v4004
    %v4028 = vmul.f32 %v73, %v4004
    %v4029 = vmul.f32 %v77, %v4004
    %v4030 = vmul.f32 %v81, %v4004
    %v4031 = vmul.f32 %v85, %v4004
    %v4032 = vmul.f32 %v257, %v4004
    %v4033 = vmul.f32 %v89, %v3996
    %v4034 = vmul.f32 %v93, %v3996
    %v4035 = vmul.f32 %v97, %v3996
    %v4036 = vmul.f32 %v101, %v3996
    %v4037 = vmul.f32 %v105, %v3996
    %v4038 = vmul.f32 %v109, %v3996
    %v4039 = vmul.f32 %v113, %v3996
    %v4040 = vmul.f32 %v117, %v3996
    %v4041 = vmul.f32 %v261, %v3996
    %v4042 = vmul.f32 %v89, %v4000
    %v4043 = vmul.f32 %v93, %v4000
    %v4044 = vmul.f32 %v97, %v4000
    %v4045 = vmul.f32 %v101, %v4000
    %v4046 = vmul.f32 %v105, %v4000
    %v4047 = vmul.f32 %v109, %v4000
    %v4048 = vmul.f32 %v113, %v4000
    %v4049 = vmul.f32 %v117, %v4000
    %v4050 = vmul.f32 %v261, %v4000
    %v4051 = vmul.f32 %v89, %v4004
    %v4052 = vmul.f32 %v93, %v4004
    %v4053 = vmul.f32 %v97, %v4004
    %v4054 = vmul.f32 %v101, %v4004
    %v4055 = vmul.f32 %v105, %v4004
    %v4056 = vmul.f32 %v109, %v4004
    %v4057 = vmul.f32 %v113, %v4004
    %v4058 = vmul.f32 %v117, %v4004
    %v4059 = vmul.f32 %v261, %v4004
    %4114 = vrot.lane.b32.xlu0 %v4006, 117
    %v4115 = vpop.permute.xlu0 %4114
    %4116 = vrot.lane.b32.xlu0 %v4007, 117
    %v4117 = vpop.permute.xlu0 %4116
    %4118 = vrot.lane.b32.xlu0 %v4008, 117
    %v4119 = vpop.permute.xlu0 %4118
    %4120 = vrot.lane.b32.xlu0 %v4009, 117
    %v4121 = vpop.permute.xlu0 %4120
    %4122 = vrot.lane.b32.xlu0 %v4010, 117
    %v4123 = vpop.permute.xlu0 %4122
    %4124 = vrot.lane.b32.xlu0 %v4011, 117
    %v4125 = vpop.permute.xlu0 %4124
    %4126 = vrot.lane.b32.xlu0 %v4012, 117
    %v4127 = vpop.permute.xlu0 %4126
    %4128 = vrot.lane.b32.xlu0 %v4013, 117
    %v4129 = vpop.permute.xlu0 %4128
    %4130 = vrot.lane.b32.xlu0 %v4014, 117
    %v4131 = vpop.permute.xlu0 %4130
    %4132 = vrot.lane.b32.xlu0 %v4015, 117
    %v4133 = vpop.permute.xlu0 %4132
    %4134 = vrot.lane.b32.xlu0 %v4016, 117
    %v4135 = vpop.permute.xlu0 %4134
    %4136 = vrot.lane.b32.xlu0 %v4017, 117
    %v4137 = vpop.permute.xlu0 %4136
    %4138 = vrot.lane.b32.xlu0 %v4018, 117
    %v4139 = vpop.permute.xlu0 %4138
    %4140 = vrot.lane.b32.xlu0 %v4019, 117
    %v4141 = vpop.permute.xlu0 %4140
    %4142 = vrot.lane.b32.xlu0 %v4020, 117
    %v4143 = vpop.permute.xlu0 %4142
    %4144 = vrot.lane.b32.xlu0 %v4021, 117
    %v4145 = vpop.permute.xlu0 %4144
    %4146 = vrot.lane.b32.xlu0 %v4022, 117
    %v4147 = vpop.permute.xlu0 %4146
    %4148 = vrot.lane.b32.xlu0 %v4023, 117
    %v4149 = vpop.permute.xlu0 %4148
    %4150 = vrot.lane.b32.xlu0 %v4024, 117
    %v4151 = vpop.permute.xlu0 %4150
    %4152 = vrot.lane.b32.xlu0 %v4025, 117
    %v4153 = vpop.permute.xlu0 %4152
    %4154 = vrot.lane.b32.xlu0 %v4026, 117
    %v4155 = vpop.permute.xlu0 %4154
    %4156 = vrot.lane.b32.xlu0 %v4027, 117
    %v4157 = vpop.permute.xlu0 %4156
    %4158 = vrot.lane.b32.xlu0 %v4028, 117
    %v4159 = vpop.permute.xlu0 %4158
    %4160 = vrot.lane.b32.xlu0 %v4029, 117
    %v4161 = vpop.permute.xlu0 %4160
    %4162 = vrot.lane.b32.xlu0 %v4030, 117
    %v4163 = vpop.permute.xlu0 %4162
    %4164 = vrot.lane.b32.xlu0 %v4031, 117
    %v4165 = vpop.permute.xlu0 %4164
    %4166 = vrot.lane.b32.xlu0 %v4032, 117
    %v4167 = vpop.permute.xlu0 %4166
    %4168 = vrot.lane.b32.xlu0 %v4033, 117
    %v4169 = vpop.permute.xlu0 %4168
    %4170 = vrot.lane.b32.xlu0 %v4034, 117
    %v4171 = vpop.permute.xlu0 %4170
    %4172 = vrot.lane.b32.xlu0 %v4035, 117
    %v4173 = vpop.permute.xlu0 %4172
    %4174 = vrot.lane.b32.xlu0 %v4036, 117
    %v4175 = vpop.permute.xlu0 %4174
    %4176 = vrot.lane.b32.xlu0 %v4037, 117
    %v4177 = vpop.permute.xlu0 %4176
    %4178 = vrot.lane.b32.xlu0 %v4038, 117
    %v4179 = vpop.permute.xlu0 %4178
    %4180 = vrot.lane.b32.xlu0 %v4039, 117
    %v4181 = vpop.permute.xlu0 %4180
    %4182 = vrot.lane.b32.xlu0 %v4040, 117
    %v4183 = vpop.permute.xlu0 %4182
    %4184 = vrot.lane.b32.xlu0 %v4041, 117
    %v4185 = vpop.permute.xlu0 %4184
    %4186 = vrot.lane.b32.xlu0 %v4042, 117
    %v4187 = vpop.permute.xlu0 %4186
    %4188 = vrot.lane.b32.xlu0 %v4043, 117
    %v4189 = vpop.permute.xlu0 %4188
    %4190 = vrot.lane.b32.xlu0 %v4044, 117
    %v4191 = vpop.permute.xlu0 %4190
    %4192 = vrot.lane.b32.xlu0 %v4045, 117
    %v4193 = vpop.permute.xlu0 %4192
    %4194 = vrot.lane.b32.xlu0 %v4046, 117
    %v4195 = vpop.permute.xlu0 %4194
    %4196 = vrot.lane.b32.xlu0 %v4047, 117
    %v4197 = vpop.permute.xlu0 %4196
    %4198 = vrot.lane.b32.xlu0 %v4048, 117
    %v4199 = vpop.permute.xlu0 %4198
    %4200 = vrot.lane.b32.xlu0 %v4049, 117
    %v4201 = vpop.permute.xlu0 %4200
    %4202 = vrot.lane.b32.xlu0 %v4050, 117
    %v4203 = vpop.permute.xlu0 %4202
    %4204 = vrot.lane.b32.xlu0 %v4051, 117
    %v4205 = vpop.permute.xlu0 %4204
    %4206 = vrot.lane.b32.xlu0 %v4052, 117
    %v4207 = vpop.permute.xlu0 %4206
    %4208 = vrot.lane.b32.xlu0 %v4053, 117
    %v4209 = vpop.permute.xlu0 %4208
    %4210 = vrot.lane.b32.xlu0 %v4054, 117
    %v4211 = vpop.permute.xlu0 %4210
    %4212 = vrot.lane.b32.xlu0 %v4055, 117
    %v4213 = vpop.permute.xlu0 %4212
    %4214 = vrot.lane.b32.xlu0 %v4056, 117
    %v4215 = vpop.permute.xlu0 %4214
    %4216 = vrot.lane.b32.xlu0 %v4057, 117
    %v4217 = vpop.permute.xlu0 %4216
    %4218 = vrot.lane.b32.xlu0 %v4058, 117
    %v4219 = vpop.permute.xlu0 %4218
    %4220 = vrot.lane.b32.xlu0 %v4059, 117
    %v4221 = vpop.permute.xlu0 %4220
    %vm4222 = vcmask 957440
    %v4223 = vsel %vm4222, %v4115, %v4117
    %v4224 = vsel %vm4222, %v4117, %v4119
    %v4225 = vsel %vm4222, %v4119, %v4121
    %v4226 = vsel %vm4222, %v4121, %v4123
    %v4227 = vsel %vm4222, %v4123, %v4125
    %v4228 = vsel %vm4222, %v4125, %v4127
    %v4229 = vsel %vm4222, %v4127, %v4129
    %v4230 = vsel %vm4222, %v4129, %v4131
    %v4231 = vsel %vm4222, %v4133, %v4135
    %v4232 = vsel %vm4222, %v4135, %v4137
    %v4233 = vsel %vm4222, %v4137, %v4139
    %v4234 = vsel %vm4222, %v4139, %v4141
    %v4235 = vsel %vm4222, %v4141, %v4143
    %v4236 = vsel %vm4222, %v4143, %v4145
    %v4237 = vsel %vm4222, %v4145, %v4147
    %v4238 = vsel %vm4222, %v4147, %v4149
    %v4239 = vsel %vm4222, %v4151, %v4153
    %v4240 = vsel %vm4222, %v4153, %v4155
    %v4241 = vsel %vm4222, %v4155, %v4157
    %v4242 = vsel %vm4222, %v4157, %v4159
    %v4243 = vsel %vm4222, %v4159, %v4161
    %v4244 = vsel %vm4222, %v4161, %v4163
    %v4245 = vsel %vm4222, %v4163, %v4165
    %v4246 = vsel %vm4222, %v4165, %v4167
    %v4247 = vsel %vm4222, %v4169, %v4171
    %v4248 = vsel %vm4222, %v4171, %v4173
    %v4249 = vsel %vm4222, %v4173, %v4175
    %v4250 = vsel %vm4222, %v4175, %v4177
    %v4251 = vsel %vm4222, %v4177, %v4179
    %v4252 = vsel %vm4222, %v4179, %v4181
    %v4253 = vsel %vm4222, %v4181, %v4183
    %v4254 = vsel %vm4222, %v4183, %v4185
    %v4255 = vsel %vm4222, %v4187, %v4189
    %v4256 = vsel %vm4222, %v4189, %v4191
    %v4257 = vsel %vm4222, %v4191, %v4193
    %v4258 = vsel %vm4222, %v4193, %v4195
    %v4259 = vsel %vm4222, %v4195, %v4197
    %v4260 = vsel %vm4222, %v4197, %v4199
    %v4261 = vsel %vm4222, %v4199, %v4201
    %v4262 = vsel %vm4222, %v4201, %v4203
    %v4263 = vsel %vm4222, %v4205, %v4207
    %v4264 = vsel %vm4222, %v4207, %v4209
    %v4265 = vsel %vm4222, %v4209, %v4211
    %v4266 = vsel %vm4222, %v4211, %v4213
    %v4267 = vsel %vm4222, %v4213, %v4215
    %v4268 = vsel %vm4222, %v4215, %v4217
    %v4269 = vsel %vm4222, %v4217, %v4219
    %v4270 = vsel %vm4222, %v4219, %v4221
    %v4319 = vadd.f32 %v3946, %v4223
    %v4320 = vadd.f32 %v3947, %v4224
    %v4321 = vadd.f32 %v3948, %v4225
    %v4322 = vadd.f32 %v3949, %v4226
    %v4323 = vadd.f32 %v3950, %v4227
    %v4324 = vadd.f32 %v3951, %v4228
    %v4325 = vadd.f32 %v3952, %v4229
    %v4326 = vadd.f32 %v3953, %v4230
    %v4327 = vadd.f32 %v3954, %v4231
    %v4328 = vadd.f32 %v3955, %v4232
    %v4329 = vadd.f32 %v3956, %v4233
    %v4330 = vadd.f32 %v3957, %v4234
    %v4331 = vadd.f32 %v3958, %v4235
    %v4332 = vadd.f32 %v3959, %v4236
    %v4333 = vadd.f32 %v3960, %v4237
    %v4334 = vadd.f32 %v3961, %v4238
    %v4335 = vadd.f32 %v3962, %v4239
    %v4336 = vadd.f32 %v3963, %v4240
    %v4337 = vadd.f32 %v3964, %v4241
    %v4338 = vadd.f32 %v3965, %v4242
    %v4339 = vadd.f32 %v3966, %v4243
    %v4340 = vadd.f32 %v3967, %v4244
    %v4341 = vadd.f32 %v3968, %v4245
    %v4342 = vadd.f32 %v3969, %v4246
    %v4343 = vadd.f32 %v3970, %v4247
    %v4344 = vadd.f32 %v3971, %v4248
    %v4345 = vadd.f32 %v3972, %v4249
    %v4346 = vadd.f32 %v3973, %v4250
    %v4347 = vadd.f32 %v3974, %v4251
    %v4348 = vadd.f32 %v3975, %v4252
    %v4349 = vadd.f32 %v3976, %v4253
    %v4350 = vadd.f32 %v3977, %v4254
    %v4351 = vadd.f32 %v3978, %v4255
    %v4352 = vadd.f32 %v3979, %v4256
    %v4353 = vadd.f32 %v3980, %v4257
    %v4354 = vadd.f32 %v3981, %v4258
    %v4355 = vadd.f32 %v3982, %v4259
    %v4356 = vadd.f32 %v3983, %v4260
    %v4357 = vadd.f32 %v3984, %v4261
    %v4358 = vadd.f32 %v3985, %v4262
    %v4359 = vadd.f32 %v3986, %v4263
    %v4360 = vadd.f32 %v3987, %v4264
    %v4361 = vadd.f32 %v3988, %v4265
    %v4362 = vadd.f32 %v3989, %v4266
    %v4363 = vadd.f32 %v3990, %v4267
    %v4364 = vadd.f32 %v3991, %v4268
    %v4365 = vadd.f32 %v3992, %v4269
    %v4366 = vadd.f32 %v3993, %v4270
    %4367 = vset.pattern.permute.xlu0 12
    %4368 = vperm.xlu0 %4367, %v30
    %v4369 = vpop.permute.xlu0 %4368
    %4371 = vset.pattern.permute.xlu0 12
    %4372 = vperm.xlu0 %4371, %v31
    %v4373 = vpop.permute.xlu0 %4372
    %4375 = vset.pattern.permute.xlu0 12
    %4376 = vperm.xlu0 %4375, %v32
    %v4377 = vpop.permute.xlu0 %4376
    %v4379 = vmul.f32 %v57, %v4369
    %v4380 = vmul.f32 %v61, %v4369
    %v4381 = vmul.f32 %v65, %v4369
    %v4382 = vmul.f32 %v69, %v4369
    %v4383 = vmul.f32 %v73, %v4369
    %v4384 = vmul.f32 %v77, %v4369
    %v4385 = vmul.f32 %v81, %v4369
    %v4386 = vmul.f32 %v85, %v4369
    %v4387 = vmul.f32 %v257, %v4369
    %v4388 = vmul.f32 %v57, %v4373
    %v4389 = vmul.f32 %v61, %v4373
    %v4390 = vmul.f32 %v65, %v4373
    %v4391 = vmul.f32 %v69, %v4373
    %v4392 = vmul.f32 %v73, %v4373
    %v4393 = vmul.f32 %v77, %v4373
    %v4394 = vmul.f32 %v81, %v4373
    %v4395 = vmul.f32 %v85, %v4373
    %v4396 = vmul.f32 %v257, %v4373
    %v4397 = vmul.f32 %v57, %v4377
    %v4398 = vmul.f32 %v61, %v4377
    %v4399 = vmul.f32 %v65, %v4377
    %v4400 = vmul.f32 %v69, %v4377
    %v4401 = vmul.f32 %v73, %v4377
    %v4402 = vmul.f32 %v77, %v4377
    %v4403 = vmul.f32 %v81, %v4377
    %v4404 = vmul.f32 %v85, %v4377
    %v4405 = vmul.f32 %v257, %v4377
    %v4406 = vmul.f32 %v89, %v4369
    %v4407 = vmul.f32 %v93, %v4369
    %v4408 = vmul.f32 %v97, %v4369
    %v4409 = vmul.f32 %v101, %v4369
    %v4410 = vmul.f32 %v105, %v4369
    %v4411 = vmul.f32 %v109, %v4369
    %v4412 = vmul.f32 %v113, %v4369
    %v4413 = vmul.f32 %v117, %v4369
    %v4414 = vmul.f32 %v261, %v4369
    %v4415 = vmul.f32 %v89, %v4373
    %v4416 = vmul.f32 %v93, %v4373
    %v4417 = vmul.f32 %v97, %v4373
    %v4418 = vmul.f32 %v101, %v4373
    %v4419 = vmul.f32 %v105, %v4373
    %v4420 = vmul.f32 %v109, %v4373
    %v4421 = vmul.f32 %v113, %v4373
    %v4422 = vmul.f32 %v117, %v4373
    %v4423 = vmul.f32 %v261, %v4373
    %v4424 = vmul.f32 %v89, %v4377
    %v4425 = vmul.f32 %v93, %v4377
    %v4426 = vmul.f32 %v97, %v4377
    %v4427 = vmul.f32 %v101, %v4377
    %v4428 = vmul.f32 %v105, %v4377
    %v4429 = vmul.f32 %v109, %v4377
    %v4430 = vmul.f32 %v113, %v4377
    %v4431 = vmul.f32 %v117, %v4377
    %v4432 = vmul.f32 %v261, %v4377
    %4487 = vrot.lane.b32.xlu0 %v4379, 116
    %v4488 = vpop.permute.xlu0 %4487
    %4489 = vrot.lane.b32.xlu0 %v4380, 116
    %v4490 = vpop.permute.xlu0 %4489
    %4491 = vrot.lane.b32.xlu0 %v4381, 116
    %v4492 = vpop.permute.xlu0 %4491
    %4493 = vrot.lane.b32.xlu0 %v4382, 116
    %v4494 = vpop.permute.xlu0 %4493
    %4495 = vrot.lane.b32.xlu0 %v4383, 116
    %v4496 = vpop.permute.xlu0 %4495
    %4497 = vrot.lane.b32.xlu0 %v4384, 116
    %v4498 = vpop.permute.xlu0 %4497
    %4499 = vrot.lane.b32.xlu0 %v4385, 116
    %v4500 = vpop.permute.xlu0 %4499
    %4501 = vrot.lane.b32.xlu0 %v4386, 116
    %v4502 = vpop.permute.xlu0 %4501
    %4503 = vrot.lane.b32.xlu0 %v4387, 116
    %v4504 = vpop.permute.xlu0 %4503
    %4505 = vrot.lane.b32.xlu0 %v4388, 116
    %v4506 = vpop.permute.xlu0 %4505
    %4507 = vrot.lane.b32.xlu0 %v4389, 116
    %v4508 = vpop.permute.xlu0 %4507
    %4509 = vrot.lane.b32.xlu0 %v4390, 116
    %v4510 = vpop.permute.xlu0 %4509
    %4511 = vrot.lane.b32.xlu0 %v4391, 116
    %v4512 = vpop.permute.xlu0 %4511
    %4513 = vrot.lane.b32.xlu0 %v4392, 116
    %v4514 = vpop.permute.xlu0 %4513
    %4515 = vrot.lane.b32.xlu0 %v4393, 116
    %v4516 = vpop.permute.xlu0 %4515
    %4517 = vrot.lane.b32.xlu0 %v4394, 116
    %v4518 = vpop.permute.xlu0 %4517
    %4519 = vrot.lane.b32.xlu0 %v4395, 116
    %v4520 = vpop.permute.xlu0 %4519
    %4521 = vrot.lane.b32.xlu0 %v4396, 116
    %v4522 = vpop.permute.xlu0 %4521
    %4523 = vrot.lane.b32.xlu0 %v4397, 116
    %v4524 = vpop.permute.xlu0 %4523
    %4525 = vrot.lane.b32.xlu0 %v4398, 116
    %v4526 = vpop.permute.xlu0 %4525
    %4527 = vrot.lane.b32.xlu0 %v4399, 116
    %v4528 = vpop.permute.xlu0 %4527
    %4529 = vrot.lane.b32.xlu0 %v4400, 116
    %v4530 = vpop.permute.xlu0 %4529
    %4531 = vrot.lane.b32.xlu0 %v4401, 116
    %v4532 = vpop.permute.xlu0 %4531
    %4533 = vrot.lane.b32.xlu0 %v4402, 116
    %v4534 = vpop.permute.xlu0 %4533
    %4535 = vrot.lane.b32.xlu0 %v4403, 116
    %v4536 = vpop.permute.xlu0 %4535
    %4537 = vrot.lane.b32.xlu0 %v4404, 116
    %v4538 = vpop.permute.xlu0 %4537
    %4539 = vrot.lane.b32.xlu0 %v4405, 116
    %v4540 = vpop.permute.xlu0 %4539
    %4541 = vrot.lane.b32.xlu0 %v4406, 116
    %v4542 = vpop.permute.xlu0 %4541
    %4543 = vrot.lane.b32.xlu0 %v4407, 116
    %v4544 = vpop.permute.xlu0 %4543
    %4545 = vrot.lane.b32.xlu0 %v4408, 116
    %v4546 = vpop.permute.xlu0 %4545
    %4547 = vrot.lane.b32.xlu0 %v4409, 116
    %v4548 = vpop.permute.xlu0 %4547
    %4549 = vrot.lane.b32.xlu0 %v4410, 116
    %v4550 = vpop.permute.xlu0 %4549
    %4551 = vrot.lane.b32.xlu0 %v4411, 116
    %v4552 = vpop.permute.xlu0 %4551
    %4553 = vrot.lane.b32.xlu0 %v4412, 116
    %v4554 = vpop.permute.xlu0 %4553
    %4555 = vrot.lane.b32.xlu0 %v4413, 116
    %v4556 = vpop.permute.xlu0 %4555
    %4557 = vrot.lane.b32.xlu0 %v4414, 116
    %v4558 = vpop.permute.xlu0 %4557
    %4559 = vrot.lane.b32.xlu0 %v4415, 116
    %v4560 = vpop.permute.xlu0 %4559
    %4561 = vrot.lane.b32.xlu0 %v4416, 116
    %v4562 = vpop.permute.xlu0 %4561
    %4563 = vrot.lane.b32.xlu0 %v4417, 116
    %v4564 = vpop.permute.xlu0 %4563
    %4565 = vrot.lane.b32.xlu0 %v4418, 116
    %v4566 = vpop.permute.xlu0 %4565
    %4567 = vrot.lane.b32.xlu0 %v4419, 116
    %v4568 = vpop.permute.xlu0 %4567
    %4569 = vrot.lane.b32.xlu0 %v4420, 116
    %v4570 = vpop.permute.xlu0 %4569
    %4571 = vrot.lane.b32.xlu0 %v4421, 116
    %v4572 = vpop.permute.xlu0 %4571
    %4573 = vrot.lane.b32.xlu0 %v4422, 116
    %v4574 = vpop.permute.xlu0 %4573
    %4575 = vrot.lane.b32.xlu0 %v4423, 116
    %v4576 = vpop.permute.xlu0 %4575
    %4577 = vrot.lane.b32.xlu0 %v4424, 116
    %v4578 = vpop.permute.xlu0 %4577
    %4579 = vrot.lane.b32.xlu0 %v4425, 116
    %v4580 = vpop.permute.xlu0 %4579
    %4581 = vrot.lane.b32.xlu0 %v4426, 116
    %v4582 = vpop.permute.xlu0 %4581
    %4583 = vrot.lane.b32.xlu0 %v4427, 116
    %v4584 = vpop.permute.xlu0 %4583
    %4585 = vrot.lane.b32.xlu0 %v4428, 116
    %v4586 = vpop.permute.xlu0 %4585
    %4587 = vrot.lane.b32.xlu0 %v4429, 116
    %v4588 = vpop.permute.xlu0 %4587
    %4589 = vrot.lane.b32.xlu0 %v4430, 116
    %v4590 = vpop.permute.xlu0 %4589
    %4591 = vrot.lane.b32.xlu0 %v4431, 116
    %v4592 = vpop.permute.xlu0 %4591
    %4593 = vrot.lane.b32.xlu0 %v4432, 116
    %v4594 = vpop.permute.xlu0 %4593
    %vm4595 = vcmask 949248
    %v4596 = vsel %vm4595, %v4488, %v4490
    %v4597 = vsel %vm4595, %v4490, %v4492
    %v4598 = vsel %vm4595, %v4492, %v4494
    %v4599 = vsel %vm4595, %v4494, %v4496
    %v4600 = vsel %vm4595, %v4496, %v4498
    %v4601 = vsel %vm4595, %v4498, %v4500
    %v4602 = vsel %vm4595, %v4500, %v4502
    %v4603 = vsel %vm4595, %v4502, %v4504
    %v4604 = vsel %vm4595, %v4506, %v4508
    %v4605 = vsel %vm4595, %v4508, %v4510
    %v4606 = vsel %vm4595, %v4510, %v4512
    %v4607 = vsel %vm4595, %v4512, %v4514
    %v4608 = vsel %vm4595, %v4514, %v4516
    %v4609 = vsel %vm4595, %v4516, %v4518
    %v4610 = vsel %vm4595, %v4518, %v4520
    %v4611 = vsel %vm4595, %v4520, %v4522
    %v4612 = vsel %vm4595, %v4524, %v4526
    %v4613 = vsel %vm4595, %v4526, %v4528
    %v4614 = vsel %vm4595, %v4528, %v4530
    %v4615 = vsel %vm4595, %v4530, %v4532
    %v4616 = vsel %vm4595, %v4532, %v4534
    %v4617 = vsel %vm4595, %v4534, %v4536
    %v4618 = vsel %vm4595, %v4536, %v4538
    %v4619 = vsel %vm4595, %v4538, %v4540
    %v4620 = vsel %vm4595, %v4542, %v4544
    %v4621 = vsel %vm4595, %v4544, %v4546
    %v4622 = vsel %vm4595, %v4546, %v4548
    %v4623 = vsel %vm4595, %v4548, %v4550
    %v4624 = vsel %vm4595, %v4550, %v4552
    %v4625 = vsel %vm4595, %v4552, %v4554
    %v4626 = vsel %vm4595, %v4554, %v4556
    %v4627 = vsel %vm4595, %v4556, %v4558
    %v4628 = vsel %vm4595, %v4560, %v4562
    %v4629 = vsel %vm4595, %v4562, %v4564
    %v4630 = vsel %vm4595, %v4564, %v4566
    %v4631 = vsel %vm4595, %v4566, %v4568
    %v4632 = vsel %vm4595, %v4568, %v4570
    %v4633 = vsel %vm4595, %v4570, %v4572
    %v4634 = vsel %vm4595, %v4572, %v4574
    %v4635 = vsel %vm4595, %v4574, %v4576
    %v4636 = vsel %vm4595, %v4578, %v4580
    %v4637 = vsel %vm4595, %v4580, %v4582
    %v4638 = vsel %vm4595, %v4582, %v4584
    %v4639 = vsel %vm4595, %v4584, %v4586
    %v4640 = vsel %vm4595, %v4586, %v4588
    %v4641 = vsel %vm4595, %v4588, %v4590
    %v4642 = vsel %vm4595, %v4590, %v4592
    %v4643 = vsel %vm4595, %v4592, %v4594
    %v4692 = vadd.f32 %v4319, %v4596
    %v4693 = vadd.f32 %v4320, %v4597
    %v4694 = vadd.f32 %v4321, %v4598
    %v4695 = vadd.f32 %v4322, %v4599
    %v4696 = vadd.f32 %v4323, %v4600
    %v4697 = vadd.f32 %v4324, %v4601
    %v4698 = vadd.f32 %v4325, %v4602
    %v4699 = vadd.f32 %v4326, %v4603
    %v4700 = vadd.f32 %v4327, %v4604
    %v4701 = vadd.f32 %v4328, %v4605
    %v4702 = vadd.f32 %v4329, %v4606
    %v4703 = vadd.f32 %v4330, %v4607
    %v4704 = vadd.f32 %v4331, %v4608
    %v4705 = vadd.f32 %v4332, %v4609
    %v4706 = vadd.f32 %v4333, %v4610
    %v4707 = vadd.f32 %v4334, %v4611
    %v4708 = vadd.f32 %v4335, %v4612
    %v4709 = vadd.f32 %v4336, %v4613
    %v4710 = vadd.f32 %v4337, %v4614
    %v4711 = vadd.f32 %v4338, %v4615
    %v4712 = vadd.f32 %v4339, %v4616
    %v4713 = vadd.f32 %v4340, %v4617
    %v4714 = vadd.f32 %v4341, %v4618
    %v4715 = vadd.f32 %v4342, %v4619
    %v4716 = vadd.f32 %v4343, %v4620
    %v4717 = vadd.f32 %v4344, %v4621
    %v4718 = vadd.f32 %v4345, %v4622
    %v4719 = vadd.f32 %v4346, %v4623
    %v4720 = vadd.f32 %v4347, %v4624
    %v4721 = vadd.f32 %v4348, %v4625
    %v4722 = vadd.f32 %v4349, %v4626
    %v4723 = vadd.f32 %v4350, %v4627
    %v4724 = vadd.f32 %v4351, %v4628
    %v4725 = vadd.f32 %v4352, %v4629
    %v4726 = vadd.f32 %v4353, %v4630
    %v4727 = vadd.f32 %v4354, %v4631
    %v4728 = vadd.f32 %v4355, %v4632
    %v4729 = vadd.f32 %v4356, %v4633
    %v4730 = vadd.f32 %v4357, %v4634
    %v4731 = vadd.f32 %v4358, %v4635
    %v4732 = vadd.f32 %v4359, %v4636
    %v4733 = vadd.f32 %v4360, %v4637
    %v4734 = vadd.f32 %v4361, %v4638
    %v4735 = vadd.f32 %v4362, %v4639
    %v4736 = vadd.f32 %v4363, %v4640
    %v4737 = vadd.f32 %v4364, %v4641
    %v4738 = vadd.f32 %v4365, %v4642
    %v4739 = vadd.f32 %v4366, %v4643
    %4740 = vset.pattern.permute.xlu0 13
    %4741 = vperm.xlu0 %4740, %v30
    %v4742 = vpop.permute.xlu0 %4741
    %4744 = vset.pattern.permute.xlu0 13
    %4745 = vperm.xlu0 %4744, %v31
    %v4746 = vpop.permute.xlu0 %4745
    %4748 = vset.pattern.permute.xlu0 13
    %4749 = vperm.xlu0 %4748, %v32
    %v4750 = vpop.permute.xlu0 %4749
    %v4752 = vmul.f32 %v57, %v4742
    %v4753 = vmul.f32 %v61, %v4742
    %v4754 = vmul.f32 %v65, %v4742
    %v4755 = vmul.f32 %v69, %v4742
    %v4756 = vmul.f32 %v73, %v4742
    %v4757 = vmul.f32 %v77, %v4742
    %v4758 = vmul.f32 %v81, %v4742
    %v4759 = vmul.f32 %v85, %v4742
    %v4760 = vmul.f32 %v257, %v4742
    %v4761 = vmul.f32 %v57, %v4746
    %v4762 = vmul.f32 %v61, %v4746
    %v4763 = vmul.f32 %v65, %v4746
    %v4764 = vmul.f32 %v69, %v4746
    %v4765 = vmul.f32 %v73, %v4746
    %v4766 = vmul.f32 %v77, %v4746
    %v4767 = vmul.f32 %v81, %v4746
    %v4768 = vmul.f32 %v85, %v4746
    %v4769 = vmul.f32 %v257, %v4746
    %v4770 = vmul.f32 %v57, %v4750
    %v4771 = vmul.f32 %v61, %v4750
    %v4772 = vmul.f32 %v65, %v4750
    %v4773 = vmul.f32 %v69, %v4750
    %v4774 = vmul.f32 %v73, %v4750
    %v4775 = vmul.f32 %v77, %v4750
    %v4776 = vmul.f32 %v81, %v4750
    %v4777 = vmul.f32 %v85, %v4750
    %v4778 = vmul.f32 %v257, %v4750
    %v4779 = vmul.f32 %v89, %v4742
    %v4780 = vmul.f32 %v93, %v4742
    %v4781 = vmul.f32 %v97, %v4742
    %v4782 = vmul.f32 %v101, %v4742
    %v4783 = vmul.f32 %v105, %v4742
    %v4784 = vmul.f32 %v109, %v4742
    %v4785 = vmul.f32 %v113, %v4742
    %v4786 = vmul.f32 %v117, %v4742
    %v4787 = vmul.f32 %v261, %v4742
    %v4788 = vmul.f32 %v89, %v4746
    %v4789 = vmul.f32 %v93, %v4746
    %v4790 = vmul.f32 %v97, %v4746
    %v4791 = vmul.f32 %v101, %v4746
    %v4792 = vmul.f32 %v105, %v4746
    %v4793 = vmul.f32 %v109, %v4746
    %v4794 = vmul.f32 %v113, %v4746
    %v4795 = vmul.f32 %v117, %v4746
    %v4796 = vmul.f32 %v261, %v4746
    %v4797 = vmul.f32 %v89, %v4750
    %v4798 = vmul.f32 %v93, %v4750
    %v4799 = vmul.f32 %v97, %v4750
    %v4800 = vmul.f32 %v101, %v4750
    %v4801 = vmul.f32 %v105, %v4750
    %v4802 = vmul.f32 %v109, %v4750
    %v4803 = vmul.f32 %v113, %v4750
    %v4804 = vmul.f32 %v117, %v4750
    %v4805 = vmul.f32 %v261, %v4750
    %4860 = vrot.lane.b32.xlu0 %v4752, 115
    %v4861 = vpop.permute.xlu0 %4860
    %4862 = vrot.lane.b32.xlu0 %v4753, 115
    %v4863 = vpop.permute.xlu0 %4862
    %4864 = vrot.lane.b32.xlu0 %v4754, 115
    %v4865 = vpop.permute.xlu0 %4864
    %4866 = vrot.lane.b32.xlu0 %v4755, 115
    %v4867 = vpop.permute.xlu0 %4866
    %4868 = vrot.lane.b32.xlu0 %v4756, 115
    %v4869 = vpop.permute.xlu0 %4868
    %4870 = vrot.lane.b32.xlu0 %v4757, 115
    %v4871 = vpop.permute.xlu0 %4870
    %4872 = vrot.lane.b32.xlu0 %v4758, 115
    %v4873 = vpop.permute.xlu0 %4872
    %4874 = vrot.lane.b32.xlu0 %v4759, 115
    %v4875 = vpop.permute.xlu0 %4874
    %4876 = vrot.lane.b32.xlu0 %v4760, 115
    %v4877 = vpop.permute.xlu0 %4876
    %4878 = vrot.lane.b32.xlu0 %v4761, 115
    %v4879 = vpop.permute.xlu0 %4878
    %4880 = vrot.lane.b32.xlu0 %v4762, 115
    %v4881 = vpop.permute.xlu0 %4880
    %4882 = vrot.lane.b32.xlu0 %v4763, 115
    %v4883 = vpop.permute.xlu0 %4882
    %4884 = vrot.lane.b32.xlu0 %v4764, 115
    %v4885 = vpop.permute.xlu0 %4884
    %4886 = vrot.lane.b32.xlu0 %v4765, 115
    %v4887 = vpop.permute.xlu0 %4886
    %4888 = vrot.lane.b32.xlu0 %v4766, 115
    %v4889 = vpop.permute.xlu0 %4888
    %4890 = vrot.lane.b32.xlu0 %v4767, 115
    %v4891 = vpop.permute.xlu0 %4890
    %4892 = vrot.lane.b32.xlu0 %v4768, 115
    %v4893 = vpop.permute.xlu0 %4892
    %4894 = vrot.lane.b32.xlu0 %v4769, 115
    %v4895 = vpop.permute.xlu0 %4894
    %4896 = vrot.lane.b32.xlu0 %v4770, 115
    %v4897 = vpop.permute.xlu0 %4896
    %4898 = vrot.lane.b32.xlu0 %v4771, 115
    %v4899 = vpop.permute.xlu0 %4898
    %4900 = vrot.lane.b32.xlu0 %v4772, 115
    %v4901 = vpop.permute.xlu0 %4900
    %4902 = vrot.lane.b32.xlu0 %v4773, 115
    %v4903 = vpop.permute.xlu0 %4902
    %4904 = vrot.lane.b32.xlu0 %v4774, 115
    %v4905 = vpop.permute.xlu0 %4904
    %4906 = vrot.lane.b32.xlu0 %v4775, 115
    %v4907 = vpop.permute.xlu0 %4906
    %4908 = vrot.lane.b32.xlu0 %v4776, 115
    %v4909 = vpop.permute.xlu0 %4908
    %4910 = vrot.lane.b32.xlu0 %v4777, 115
    %v4911 = vpop.permute.xlu0 %4910
    %4912 = vrot.lane.b32.xlu0 %v4778, 115
    %v4913 = vpop.permute.xlu0 %4912
    %4914 = vrot.lane.b32.xlu0 %v4779, 115
    %v4915 = vpop.permute.xlu0 %4914
    %4916 = vrot.lane.b32.xlu0 %v4780, 115
    %v4917 = vpop.permute.xlu0 %4916
    %4918 = vrot.lane.b32.xlu0 %v4781, 115
    %v4919 = vpop.permute.xlu0 %4918
    %4920 = vrot.lane.b32.xlu0 %v4782, 115
    %v4921 = vpop.permute.xlu0 %4920
    %4922 = vrot.lane.b32.xlu0 %v4783, 115
    %v4923 = vpop.permute.xlu0 %4922
    %4924 = vrot.lane.b32.xlu0 %v4784, 115
    %v4925 = vpop.permute.xlu0 %4924
    %4926 = vrot.lane.b32.xlu0 %v4785, 115
    %v4927 = vpop.permute.xlu0 %4926
    %4928 = vrot.lane.b32.xlu0 %v4786, 115
    %v4929 = vpop.permute.xlu0 %4928
    %4930 = vrot.lane.b32.xlu0 %v4787, 115
    %v4931 = vpop.permute.xlu0 %4930
    %4932 = vrot.lane.b32.xlu0 %v4788, 115
    %v4933 = vpop.permute.xlu0 %4932
    %4934 = vrot.lane.b32.xlu0 %v4789, 115
    %v4935 = vpop.permute.xlu0 %4934
    %4936 = vrot.lane.b32.xlu0 %v4790, 115
    %v4937 = vpop.permute.xlu0 %4936
    %4938 = vrot.lane.b32.xlu0 %v4791, 115
    %v4939 = vpop.permute.xlu0 %4938
    %4940 = vrot.lane.b32.xlu0 %v4792, 115
    %v4941 = vpop.permute.xlu0 %4940
    %4942 = vrot.lane.b32.xlu0 %v4793, 115
    %v4943 = vpop.permute.xlu0 %4942
    %4944 = vrot.lane.b32.xlu0 %v4794, 115
    %v4945 = vpop.permute.xlu0 %4944
    %4946 = vrot.lane.b32.xlu0 %v4795, 115
    %v4947 = vpop.permute.xlu0 %4946
    %4948 = vrot.lane.b32.xlu0 %v4796, 115
    %v4949 = vpop.permute.xlu0 %4948
    %4950 = vrot.lane.b32.xlu0 %v4797, 115
    %v4951 = vpop.permute.xlu0 %4950
    %4952 = vrot.lane.b32.xlu0 %v4798, 115
    %v4953 = vpop.permute.xlu0 %4952
    %4954 = vrot.lane.b32.xlu0 %v4799, 115
    %v4955 = vpop.permute.xlu0 %4954
    %4956 = vrot.lane.b32.xlu0 %v4800, 115
    %v4957 = vpop.permute.xlu0 %4956
    %4958 = vrot.lane.b32.xlu0 %v4801, 115
    %v4959 = vpop.permute.xlu0 %4958
    %4960 = vrot.lane.b32.xlu0 %v4802, 115
    %v4961 = vpop.permute.xlu0 %4960
    %4962 = vrot.lane.b32.xlu0 %v4803, 115
    %v4963 = vpop.permute.xlu0 %4962
    %4964 = vrot.lane.b32.xlu0 %v4804, 115
    %v4965 = vpop.permute.xlu0 %4964
    %4966 = vrot.lane.b32.xlu0 %v4805, 115
    %v4967 = vpop.permute.xlu0 %4966
    %vm4968 = vcmask 941056
    %v4969 = vsel %vm4968, %v4861, %v4863
    %v4970 = vsel %vm4968, %v4863, %v4865
    %v4971 = vsel %vm4968, %v4865, %v4867
    %v4972 = vsel %vm4968, %v4867, %v4869
    %v4973 = vsel %vm4968, %v4869, %v4871
    %v4974 = vsel %vm4968, %v4871, %v4873
    %v4975 = vsel %vm4968, %v4873, %v4875
    %v4976 = vsel %vm4968, %v4875, %v4877
    %v4977 = vsel %vm4968, %v4879, %v4881
    %v4978 = vsel %vm4968, %v4881, %v4883
    %v4979 = vsel %vm4968, %v4883, %v4885
    %v4980 = vsel %vm4968, %v4885, %v4887
    %v4981 = vsel %vm4968, %v4887, %v4889
    %v4982 = vsel %vm4968, %v4889, %v4891
    %v4983 = vsel %vm4968, %v4891, %v4893
    %v4984 = vsel %vm4968, %v4893, %v4895
    %v4985 = vsel %vm4968, %v4897, %v4899
    %v4986 = vsel %vm4968, %v4899, %v4901
    %v4987 = vsel %vm4968, %v4901, %v4903
    %v4988 = vsel %vm4968, %v4903, %v4905
    %v4989 = vsel %vm4968, %v4905, %v4907
    %v4990 = vsel %vm4968, %v4907, %v4909
    %v4991 = vsel %vm4968, %v4909, %v4911
    %v4992 = vsel %vm4968, %v4911, %v4913
    %v4993 = vsel %vm4968, %v4915, %v4917
    %v4994 = vsel %vm4968, %v4917, %v4919
    %v4995 = vsel %vm4968, %v4919, %v4921
    %v4996 = vsel %vm4968, %v4921, %v4923
    %v4997 = vsel %vm4968, %v4923, %v4925
    %v4998 = vsel %vm4968, %v4925, %v4927
    %v4999 = vsel %vm4968, %v4927, %v4929
    %v5000 = vsel %vm4968, %v4929, %v4931
    %v5001 = vsel %vm4968, %v4933, %v4935
    %v5002 = vsel %vm4968, %v4935, %v4937
    %v5003 = vsel %vm4968, %v4937, %v4939
    %v5004 = vsel %vm4968, %v4939, %v4941
    %v5005 = vsel %vm4968, %v4941, %v4943
    %v5006 = vsel %vm4968, %v4943, %v4945
    %v5007 = vsel %vm4968, %v4945, %v4947
    %v5008 = vsel %vm4968, %v4947, %v4949
    %v5009 = vsel %vm4968, %v4951, %v4953
    %v5010 = vsel %vm4968, %v4953, %v4955
    %v5011 = vsel %vm4968, %v4955, %v4957
    %v5012 = vsel %vm4968, %v4957, %v4959
    %v5013 = vsel %vm4968, %v4959, %v4961
    %v5014 = vsel %vm4968, %v4961, %v4963
    %v5015 = vsel %vm4968, %v4963, %v4965
    %v5016 = vsel %vm4968, %v4965, %v4967
    %v5065 = vadd.f32 %v4692, %v4969
    %v5066 = vadd.f32 %v4693, %v4970
    %v5067 = vadd.f32 %v4694, %v4971
    %v5068 = vadd.f32 %v4695, %v4972
    %v5069 = vadd.f32 %v4696, %v4973
    %v5070 = vadd.f32 %v4697, %v4974
    %v5071 = vadd.f32 %v4698, %v4975
    %v5072 = vadd.f32 %v4699, %v4976
    %v5073 = vadd.f32 %v4700, %v4977
    %v5074 = vadd.f32 %v4701, %v4978
    %v5075 = vadd.f32 %v4702, %v4979
    %v5076 = vadd.f32 %v4703, %v4980
    %v5077 = vadd.f32 %v4704, %v4981
    %v5078 = vadd.f32 %v4705, %v4982
    %v5079 = vadd.f32 %v4706, %v4983
    %v5080 = vadd.f32 %v4707, %v4984
    %v5081 = vadd.f32 %v4708, %v4985
    %v5082 = vadd.f32 %v4709, %v4986
    %v5083 = vadd.f32 %v4710, %v4987
    %v5084 = vadd.f32 %v4711, %v4988
    %v5085 = vadd.f32 %v4712, %v4989
    %v5086 = vadd.f32 %v4713, %v4990
    %v5087 = vadd.f32 %v4714, %v4991
    %v5088 = vadd.f32 %v4715, %v4992
    %v5089 = vadd.f32 %v4716, %v4993
    %v5090 = vadd.f32 %v4717, %v4994
    %v5091 = vadd.f32 %v4718, %v4995
    %v5092 = vadd.f32 %v4719, %v4996
    %v5093 = vadd.f32 %v4720, %v4997
    %v5094 = vadd.f32 %v4721, %v4998
    %v5095 = vadd.f32 %v4722, %v4999
    %v5096 = vadd.f32 %v4723, %v5000
    %v5097 = vadd.f32 %v4724, %v5001
    %v5098 = vadd.f32 %v4725, %v5002
    %v5099 = vadd.f32 %v4726, %v5003
    %v5100 = vadd.f32 %v4727, %v5004
    %v5101 = vadd.f32 %v4728, %v5005
    %v5102 = vadd.f32 %v4729, %v5006
    %v5103 = vadd.f32 %v4730, %v5007
    %v5104 = vadd.f32 %v4731, %v5008
    %v5105 = vadd.f32 %v4732, %v5009
    %v5106 = vadd.f32 %v4733, %v5010
    %v5107 = vadd.f32 %v4734, %v5011
    %v5108 = vadd.f32 %v4735, %v5012
    %v5109 = vadd.f32 %v4736, %v5013
    %v5110 = vadd.f32 %v4737, %v5014
    %v5111 = vadd.f32 %v4738, %v5015
    %v5112 = vadd.f32 %v4739, %v5016
    %5113 = vset.pattern.permute.xlu0 14
    %5114 = vperm.xlu0 %5113, %v30
    %v5115 = vpop.permute.xlu0 %5114
    %5117 = vset.pattern.permute.xlu0 14
    %5118 = vperm.xlu0 %5117, %v31
    %v5119 = vpop.permute.xlu0 %5118
    %5121 = vset.pattern.permute.xlu0 14
    %5122 = vperm.xlu0 %5121, %v32
    %v5123 = vpop.permute.xlu0 %5122
    %v5125 = vmul.f32 %v57, %v5115
    %v5126 = vmul.f32 %v61, %v5115
    %v5127 = vmul.f32 %v65, %v5115
    %v5128 = vmul.f32 %v69, %v5115
    %v5129 = vmul.f32 %v73, %v5115
    %v5130 = vmul.f32 %v77, %v5115
    %v5131 = vmul.f32 %v81, %v5115
    %v5132 = vmul.f32 %v85, %v5115
    %v5133 = vmul.f32 %v257, %v5115
    %v5134 = vmul.f32 %v57, %v5119
    %v5135 = vmul.f32 %v61, %v5119
    %v5136 = vmul.f32 %v65, %v5119
    %v5137 = vmul.f32 %v69, %v5119
    %v5138 = vmul.f32 %v73, %v5119
    %v5139 = vmul.f32 %v77, %v5119
    %v5140 = vmul.f32 %v81, %v5119
    %v5141 = vmul.f32 %v85, %v5119
    %v5142 = vmul.f32 %v257, %v5119
    %v5143 = vmul.f32 %v57, %v5123
    %v5144 = vmul.f32 %v61, %v5123
    %v5145 = vmul.f32 %v65, %v5123
    %v5146 = vmul.f32 %v69, %v5123
    %v5147 = vmul.f32 %v73, %v5123
    %v5148 = vmul.f32 %v77, %v5123
    %v5149 = vmul.f32 %v81, %v5123
    %v5150 = vmul.f32 %v85, %v5123
    %v5151 = vmul.f32 %v257, %v5123
    %v5152 = vmul.f32 %v89, %v5115
    %v5153 = vmul.f32 %v93, %v5115
    %v5154 = vmul.f32 %v97, %v5115
    %v5155 = vmul.f32 %v101, %v5115
    %v5156 = vmul.f32 %v105, %v5115
    %v5157 = vmul.f32 %v109, %v5115
    %v5158 = vmul.f32 %v113, %v5115
    %v5159 = vmul.f32 %v117, %v5115
    %v5160 = vmul.f32 %v261, %v5115
    %v5161 = vmul.f32 %v89, %v5119
    %v5162 = vmul.f32 %v93, %v5119
    %v5163 = vmul.f32 %v97, %v5119
    %v5164 = vmul.f32 %v101, %v5119
    %v5165 = vmul.f32 %v105, %v5119
    %v5166 = vmul.f32 %v109, %v5119
    %v5167 = vmul.f32 %v113, %v5119
    %v5168 = vmul.f32 %v117, %v5119
    %v5169 = vmul.f32 %v261, %v5119
    %v5170 = vmul.f32 %v89, %v5123
    %v5171 = vmul.f32 %v93, %v5123
    %v5172 = vmul.f32 %v97, %v5123
    %v5173 = vmul.f32 %v101, %v5123
    %v5174 = vmul.f32 %v105, %v5123
    %v5175 = vmul.f32 %v109, %v5123
    %v5176 = vmul.f32 %v113, %v5123
    %v5177 = vmul.f32 %v117, %v5123
    %v5178 = vmul.f32 %v261, %v5123
    %5233 = vrot.lane.b32.xlu0 %v5125, 114
    %v5234 = vpop.permute.xlu0 %5233
    %5235 = vrot.lane.b32.xlu0 %v5126, 114
    %v5236 = vpop.permute.xlu0 %5235
    %5237 = vrot.lane.b32.xlu0 %v5127, 114
    %v5238 = vpop.permute.xlu0 %5237
    %5239 = vrot.lane.b32.xlu0 %v5128, 114
    %v5240 = vpop.permute.xlu0 %5239
    %5241 = vrot.lane.b32.xlu0 %v5129, 114
    %v5242 = vpop.permute.xlu0 %5241
    %5243 = vrot.lane.b32.xlu0 %v5130, 114
    %v5244 = vpop.permute.xlu0 %5243
    %5245 = vrot.lane.b32.xlu0 %v5131, 114
    %v5246 = vpop.permute.xlu0 %5245
    %5247 = vrot.lane.b32.xlu0 %v5132, 114
    %v5248 = vpop.permute.xlu0 %5247
    %5249 = vrot.lane.b32.xlu0 %v5133, 114
    %v5250 = vpop.permute.xlu0 %5249
    %5251 = vrot.lane.b32.xlu0 %v5134, 114
    %v5252 = vpop.permute.xlu0 %5251
    %5253 = vrot.lane.b32.xlu0 %v5135, 114
    %v5254 = vpop.permute.xlu0 %5253
    %5255 = vrot.lane.b32.xlu0 %v5136, 114
    %v5256 = vpop.permute.xlu0 %5255
    %5257 = vrot.lane.b32.xlu0 %v5137, 114
    %v5258 = vpop.permute.xlu0 %5257
    %5259 = vrot.lane.b32.xlu0 %v5138, 114
    %v5260 = vpop.permute.xlu0 %5259
    %5261 = vrot.lane.b32.xlu0 %v5139, 114
    %v5262 = vpop.permute.xlu0 %5261
    %5263 = vrot.lane.b32.xlu0 %v5140, 114
    %v5264 = vpop.permute.xlu0 %5263
    %5265 = vrot.lane.b32.xlu0 %v5141, 114
    %v5266 = vpop.permute.xlu0 %5265
    %5267 = vrot.lane.b32.xlu0 %v5142, 114
    %v5268 = vpop.permute.xlu0 %5267
    %5269 = vrot.lane.b32.xlu0 %v5143, 114
    %v5270 = vpop.permute.xlu0 %5269
    %5271 = vrot.lane.b32.xlu0 %v5144, 114
    %v5272 = vpop.permute.xlu0 %5271
    %5273 = vrot.lane.b32.xlu0 %v5145, 114
    %v5274 = vpop.permute.xlu0 %5273
    %5275 = vrot.lane.b32.xlu0 %v5146, 114
    %v5276 = vpop.permute.xlu0 %5275
    %5277 = vrot.lane.b32.xlu0 %v5147, 114
    %v5278 = vpop.permute.xlu0 %5277
    %5279 = vrot.lane.b32.xlu0 %v5148, 114
    %v5280 = vpop.permute.xlu0 %5279
    %5281 = vrot.lane.b32.xlu0 %v5149, 114
    %v5282 = vpop.permute.xlu0 %5281
    %5283 = vrot.lane.b32.xlu0 %v5150, 114
    %v5284 = vpop.permute.xlu0 %5283
    %5285 = vrot.lane.b32.xlu0 %v5151, 114
    %v5286 = vpop.permute.xlu0 %5285
    %5287 = vrot.lane.b32.xlu0 %v5152, 114
    %v5288 = vpop.permute.xlu0 %5287
    %5289 = vrot.lane.b32.xlu0 %v5153, 114
    %v5290 = vpop.permute.xlu0 %5289
    %5291 = vrot.lane.b32.xlu0 %v5154, 114
    %v5292 = vpop.permute.xlu0 %5291
    %5293 = vrot.lane.b32.xlu0 %v5155, 114
    %v5294 = vpop.permute.xlu0 %5293
    %5295 = vrot.lane.b32.xlu0 %v5156, 114
    %v5296 = vpop.permute.xlu0 %5295
    %5297 = vrot.lane.b32.xlu0 %v5157, 114
    %v5298 = vpop.permute.xlu0 %5297
    %5299 = vrot.lane.b32.xlu0 %v5158, 114
    %v5300 = vpop.permute.xlu0 %5299
    %5301 = vrot.lane.b32.xlu0 %v5159, 114
    %v5302 = vpop.permute.xlu0 %5301
    %5303 = vrot.lane.b32.xlu0 %v5160, 114
    %v5304 = vpop.permute.xlu0 %5303
    %5305 = vrot.lane.b32.xlu0 %v5161, 114
    %v5306 = vpop.permute.xlu0 %5305
    %5307 = vrot.lane.b32.xlu0 %v5162, 114
    %v5308 = vpop.permute.xlu0 %5307
    %5309 = vrot.lane.b32.xlu0 %v5163, 114
    %v5310 = vpop.permute.xlu0 %5309
    %5311 = vrot.lane.b32.xlu0 %v5164, 114
    %v5312 = vpop.permute.xlu0 %5311
    %5313 = vrot.lane.b32.xlu0 %v5165, 114
    %v5314 = vpop.permute.xlu0 %5313
    %5315 = vrot.lane.b32.xlu0 %v5166, 114
    %v5316 = vpop.permute.xlu0 %5315
    %5317 = vrot.lane.b32.xlu0 %v5167, 114
    %v5318 = vpop.permute.xlu0 %5317
    %5319 = vrot.lane.b32.xlu0 %v5168, 114
    %v5320 = vpop.permute.xlu0 %5319
    %5321 = vrot.lane.b32.xlu0 %v5169, 114
    %v5322 = vpop.permute.xlu0 %5321
    %5323 = vrot.lane.b32.xlu0 %v5170, 114
    %v5324 = vpop.permute.xlu0 %5323
    %5325 = vrot.lane.b32.xlu0 %v5171, 114
    %v5326 = vpop.permute.xlu0 %5325
    %5327 = vrot.lane.b32.xlu0 %v5172, 114
    %v5328 = vpop.permute.xlu0 %5327
    %5329 = vrot.lane.b32.xlu0 %v5173, 114
    %v5330 = vpop.permute.xlu0 %5329
    %5331 = vrot.lane.b32.xlu0 %v5174, 114
    %v5332 = vpop.permute.xlu0 %5331
    %5333 = vrot.lane.b32.xlu0 %v5175, 114
    %v5334 = vpop.permute.xlu0 %5333
    %5335 = vrot.lane.b32.xlu0 %v5176, 114
    %v5336 = vpop.permute.xlu0 %5335
    %5337 = vrot.lane.b32.xlu0 %v5177, 114
    %v5338 = vpop.permute.xlu0 %5337
    %5339 = vrot.lane.b32.xlu0 %v5178, 114
    %v5340 = vpop.permute.xlu0 %5339
    %vm5341 = vcmask 932864
    %v5342 = vsel %vm5341, %v5234, %v5236
    %v5343 = vsel %vm5341, %v5236, %v5238
    %v5344 = vsel %vm5341, %v5238, %v5240
    %v5345 = vsel %vm5341, %v5240, %v5242
    %v5346 = vsel %vm5341, %v5242, %v5244
    %v5347 = vsel %vm5341, %v5244, %v5246
    %v5348 = vsel %vm5341, %v5246, %v5248
    %v5349 = vsel %vm5341, %v5248, %v5250
    %v5350 = vsel %vm5341, %v5252, %v5254
    %v5351 = vsel %vm5341, %v5254, %v5256
    %v5352 = vsel %vm5341, %v5256, %v5258
    %v5353 = vsel %vm5341, %v5258, %v5260
    %v5354 = vsel %vm5341, %v5260, %v5262
    %v5355 = vsel %vm5341, %v5262, %v5264
    %v5356 = vsel %vm5341, %v5264, %v5266
    %v5357 = vsel %vm5341, %v5266, %v5268
    %v5358 = vsel %vm5341, %v5270, %v5272
    %v5359 = vsel %vm5341, %v5272, %v5274
    %v5360 = vsel %vm5341, %v5274, %v5276
    %v5361 = vsel %vm5341, %v5276, %v5278
    %v5362 = vsel %vm5341, %v5278, %v5280
    %v5363 = vsel %vm5341, %v5280, %v5282
    %v5364 = vsel %vm5341, %v5282, %v5284
    %v5365 = vsel %vm5341, %v5284, %v5286
    %v5366 = vsel %vm5341, %v5288, %v5290
    %v5367 = vsel %vm5341, %v5290, %v5292
    %v5368 = vsel %vm5341, %v5292, %v5294
    %v5369 = vsel %vm5341, %v5294, %v5296
    %v5370 = vsel %vm5341, %v5296, %v5298
    %v5371 = vsel %vm5341, %v5298, %v5300
    %v5372 = vsel %vm5341, %v5300, %v5302
    %v5373 = vsel %vm5341, %v5302, %v5304
    %v5374 = vsel %vm5341, %v5306, %v5308
    %v5375 = vsel %vm5341, %v5308, %v5310
    %v5376 = vsel %vm5341, %v5310, %v5312
    %v5377 = vsel %vm5341, %v5312, %v5314
    %v5378 = vsel %vm5341, %v5314, %v5316
    %v5379 = vsel %vm5341, %v5316, %v5318
    %v5380 = vsel %vm5341, %v5318, %v5320
    %v5381 = vsel %vm5341, %v5320, %v5322
    %v5382 = vsel %vm5341, %v5324, %v5326
    %v5383 = vsel %vm5341, %v5326, %v5328
    %v5384 = vsel %vm5341, %v5328, %v5330
    %v5385 = vsel %vm5341, %v5330, %v5332
    %v5386 = vsel %vm5341, %v5332, %v5334
    %v5387 = vsel %vm5341, %v5334, %v5336
    %v5388 = vsel %vm5341, %v5336, %v5338
    %v5389 = vsel %vm5341, %v5338, %v5340
    %v5438 = vadd.f32 %v5065, %v5342
    %v5439 = vadd.f32 %v5066, %v5343
    %v5440 = vadd.f32 %v5067, %v5344
    %v5441 = vadd.f32 %v5068, %v5345
    %v5442 = vadd.f32 %v5069, %v5346
    %v5443 = vadd.f32 %v5070, %v5347
    %v5444 = vadd.f32 %v5071, %v5348
    %v5445 = vadd.f32 %v5072, %v5349
    %v5446 = vadd.f32 %v5073, %v5350
    %v5447 = vadd.f32 %v5074, %v5351
    %v5448 = vadd.f32 %v5075, %v5352
    %v5449 = vadd.f32 %v5076, %v5353
    %v5450 = vadd.f32 %v5077, %v5354
    %v5451 = vadd.f32 %v5078, %v5355
    %v5452 = vadd.f32 %v5079, %v5356
    %v5453 = vadd.f32 %v5080, %v5357
    %v5454 = vadd.f32 %v5081, %v5358
    %v5455 = vadd.f32 %v5082, %v5359
    %v5456 = vadd.f32 %v5083, %v5360
    %v5457 = vadd.f32 %v5084, %v5361
    %v5458 = vadd.f32 %v5085, %v5362
    %v5459 = vadd.f32 %v5086, %v5363
    %v5460 = vadd.f32 %v5087, %v5364
    %v5461 = vadd.f32 %v5088, %v5365
    %v5462 = vadd.f32 %v5089, %v5366
    %v5463 = vadd.f32 %v5090, %v5367
    %v5464 = vadd.f32 %v5091, %v5368
    %v5465 = vadd.f32 %v5092, %v5369
    %v5466 = vadd.f32 %v5093, %v5370
    %v5467 = vadd.f32 %v5094, %v5371
    %v5468 = vadd.f32 %v5095, %v5372
    %v5469 = vadd.f32 %v5096, %v5373
    %v5470 = vadd.f32 %v5097, %v5374
    %v5471 = vadd.f32 %v5098, %v5375
    %v5472 = vadd.f32 %v5099, %v5376
    %v5473 = vadd.f32 %v5100, %v5377
    %v5474 = vadd.f32 %v5101, %v5378
    %v5475 = vadd.f32 %v5102, %v5379
    %v5476 = vadd.f32 %v5103, %v5380
    %v5477 = vadd.f32 %v5104, %v5381
    %v5478 = vadd.f32 %v5105, %v5382
    %v5479 = vadd.f32 %v5106, %v5383
    %v5480 = vadd.f32 %v5107, %v5384
    %v5481 = vadd.f32 %v5108, %v5385
    %v5482 = vadd.f32 %v5109, %v5386
    %v5483 = vadd.f32 %v5110, %v5387
    %v5484 = vadd.f32 %v5111, %v5388
    %v5485 = vadd.f32 %v5112, %v5389
    %5486 = vset.pattern.permute.xlu0 15
    %5487 = vperm.xlu0 %5486, %v30
    %v5488 = vpop.permute.xlu0 %5487
    %5490 = vset.pattern.permute.xlu0 15
    %5491 = vperm.xlu0 %5490, %v31
    %v5492 = vpop.permute.xlu0 %5491
    %5494 = vset.pattern.permute.xlu0 15
    %5495 = vperm.xlu0 %5494, %v32
    %v5496 = vpop.permute.xlu0 %5495
    %v5498 = vmul.f32 %v57, %v5488
    %v5499 = vmul.f32 %v61, %v5488
    %v5500 = vmul.f32 %v65, %v5488
    %v5501 = vmul.f32 %v69, %v5488
    %v5502 = vmul.f32 %v73, %v5488
    %v5503 = vmul.f32 %v77, %v5488
    %v5504 = vmul.f32 %v81, %v5488
    %v5505 = vmul.f32 %v85, %v5488
    %v5506 = vmul.f32 %v257, %v5488
    %v5507 = vmul.f32 %v57, %v5492
    %v5508 = vmul.f32 %v61, %v5492
    %v5509 = vmul.f32 %v65, %v5492
    %v5510 = vmul.f32 %v69, %v5492
    %v5511 = vmul.f32 %v73, %v5492
    %v5512 = vmul.f32 %v77, %v5492
    %v5513 = vmul.f32 %v81, %v5492
    %v5514 = vmul.f32 %v85, %v5492
    %v5515 = vmul.f32 %v257, %v5492
    %v5516 = vmul.f32 %v57, %v5496
    %v5517 = vmul.f32 %v61, %v5496
    %v5518 = vmul.f32 %v65, %v5496
    %v5519 = vmul.f32 %v69, %v5496
    %v5520 = vmul.f32 %v73, %v5496
    %v5521 = vmul.f32 %v77, %v5496
    %v5522 = vmul.f32 %v81, %v5496
    %v5523 = vmul.f32 %v85, %v5496
    %v5524 = vmul.f32 %v257, %v5496
    %v5525 = vmul.f32 %v89, %v5488
    %v5526 = vmul.f32 %v93, %v5488
    %v5527 = vmul.f32 %v97, %v5488
    %v5528 = vmul.f32 %v101, %v5488
    %v5529 = vmul.f32 %v105, %v5488
    %v5530 = vmul.f32 %v109, %v5488
    %v5531 = vmul.f32 %v113, %v5488
    %v5532 = vmul.f32 %v117, %v5488
    %v5533 = vmul.f32 %v261, %v5488
    %v5534 = vmul.f32 %v89, %v5492
    %v5535 = vmul.f32 %v93, %v5492
    %v5536 = vmul.f32 %v97, %v5492
    %v5537 = vmul.f32 %v101, %v5492
    %v5538 = vmul.f32 %v105, %v5492
    %v5539 = vmul.f32 %v109, %v5492
    %v5540 = vmul.f32 %v113, %v5492
    %v5541 = vmul.f32 %v117, %v5492
    %v5542 = vmul.f32 %v261, %v5492
    %v5543 = vmul.f32 %v89, %v5496
    %v5544 = vmul.f32 %v93, %v5496
    %v5545 = vmul.f32 %v97, %v5496
    %v5546 = vmul.f32 %v101, %v5496
    %v5547 = vmul.f32 %v105, %v5496
    %v5548 = vmul.f32 %v109, %v5496
    %v5549 = vmul.f32 %v113, %v5496
    %v5550 = vmul.f32 %v117, %v5496
    %v5551 = vmul.f32 %v261, %v5496
    %5606 = vrot.lane.b32.xlu0 %v5498, 113
    %v5607 = vpop.permute.xlu0 %5606
    %5608 = vrot.lane.b32.xlu0 %v5499, 113
    %v5609 = vpop.permute.xlu0 %5608
    %5610 = vrot.lane.b32.xlu0 %v5500, 113
    %v5611 = vpop.permute.xlu0 %5610
    %5612 = vrot.lane.b32.xlu0 %v5501, 113
    %v5613 = vpop.permute.xlu0 %5612
    %5614 = vrot.lane.b32.xlu0 %v5502, 113
    %v5615 = vpop.permute.xlu0 %5614
    %5616 = vrot.lane.b32.xlu0 %v5503, 113
    %v5617 = vpop.permute.xlu0 %5616
    %5618 = vrot.lane.b32.xlu0 %v5504, 113
    %v5619 = vpop.permute.xlu0 %5618
    %5620 = vrot.lane.b32.xlu0 %v5505, 113
    %v5621 = vpop.permute.xlu0 %5620
    %5622 = vrot.lane.b32.xlu0 %v5506, 113
    %v5623 = vpop.permute.xlu0 %5622
    %5624 = vrot.lane.b32.xlu0 %v5507, 113
    %v5625 = vpop.permute.xlu0 %5624
    %5626 = vrot.lane.b32.xlu0 %v5508, 113
    %v5627 = vpop.permute.xlu0 %5626
    %5628 = vrot.lane.b32.xlu0 %v5509, 113
    %v5629 = vpop.permute.xlu0 %5628
    %5630 = vrot.lane.b32.xlu0 %v5510, 113
    %v5631 = vpop.permute.xlu0 %5630
    %5632 = vrot.lane.b32.xlu0 %v5511, 113
    %v5633 = vpop.permute.xlu0 %5632
    %5634 = vrot.lane.b32.xlu0 %v5512, 113
    %v5635 = vpop.permute.xlu0 %5634
    %5636 = vrot.lane.b32.xlu0 %v5513, 113
    %v5637 = vpop.permute.xlu0 %5636
    %5638 = vrot.lane.b32.xlu0 %v5514, 113
    %v5639 = vpop.permute.xlu0 %5638
    %5640 = vrot.lane.b32.xlu0 %v5515, 113
    %v5641 = vpop.permute.xlu0 %5640
    %5642 = vrot.lane.b32.xlu0 %v5516, 113
    %v5643 = vpop.permute.xlu0 %5642
    %5644 = vrot.lane.b32.xlu0 %v5517, 113
    %v5645 = vpop.permute.xlu0 %5644
    %5646 = vrot.lane.b32.xlu0 %v5518, 113
    %v5647 = vpop.permute.xlu0 %5646
    %5648 = vrot.lane.b32.xlu0 %v5519, 113
    %v5649 = vpop.permute.xlu0 %5648
    %5650 = vrot.lane.b32.xlu0 %v5520, 113
    %v5651 = vpop.permute.xlu0 %5650
    %5652 = vrot.lane.b32.xlu0 %v5521, 113
    %v5653 = vpop.permute.xlu0 %5652
    %5654 = vrot.lane.b32.xlu0 %v5522, 113
    %v5655 = vpop.permute.xlu0 %5654
    %5656 = vrot.lane.b32.xlu0 %v5523, 113
    %v5657 = vpop.permute.xlu0 %5656
    %5658 = vrot.lane.b32.xlu0 %v5524, 113
    %v5659 = vpop.permute.xlu0 %5658
    %5660 = vrot.lane.b32.xlu0 %v5525, 113
    %v5661 = vpop.permute.xlu0 %5660
    %5662 = vrot.lane.b32.xlu0 %v5526, 113
    %v5663 = vpop.permute.xlu0 %5662
    %5664 = vrot.lane.b32.xlu0 %v5527, 113
    %v5665 = vpop.permute.xlu0 %5664
    %5666 = vrot.lane.b32.xlu0 %v5528, 113
    %v5667 = vpop.permute.xlu0 %5666
    %5668 = vrot.lane.b32.xlu0 %v5529, 113
    %v5669 = vpop.permute.xlu0 %5668
    %5670 = vrot.lane.b32.xlu0 %v5530, 113
    %v5671 = vpop.permute.xlu0 %5670
    %5672 = vrot.lane.b32.xlu0 %v5531, 113
    %v5673 = vpop.permute.xlu0 %5672
    %5674 = vrot.lane.b32.xlu0 %v5532, 113
    %v5675 = vpop.permute.xlu0 %5674
    %5676 = vrot.lane.b32.xlu0 %v5533, 113
    %v5677 = vpop.permute.xlu0 %5676
    %5678 = vrot.lane.b32.xlu0 %v5534, 113
    %v5679 = vpop.permute.xlu0 %5678
    %5680 = vrot.lane.b32.xlu0 %v5535, 113
    %v5681 = vpop.permute.xlu0 %5680
    %5682 = vrot.lane.b32.xlu0 %v5536, 113
    %v5683 = vpop.permute.xlu0 %5682
    %5684 = vrot.lane.b32.xlu0 %v5537, 113
    %v5685 = vpop.permute.xlu0 %5684
    %5686 = vrot.lane.b32.xlu0 %v5538, 113
    %v5687 = vpop.permute.xlu0 %5686
    %5688 = vrot.lane.b32.xlu0 %v5539, 113
    %v5689 = vpop.permute.xlu0 %5688
    %5690 = vrot.lane.b32.xlu0 %v5540, 113
    %v5691 = vpop.permute.xlu0 %5690
    %5692 = vrot.lane.b32.xlu0 %v5541, 113
    %v5693 = vpop.permute.xlu0 %5692
    %5694 = vrot.lane.b32.xlu0 %v5542, 113
    %v5695 = vpop.permute.xlu0 %5694
    %5696 = vrot.lane.b32.xlu0 %v5543, 113
    %v5697 = vpop.permute.xlu0 %5696
    %5698 = vrot.lane.b32.xlu0 %v5544, 113
    %v5699 = vpop.permute.xlu0 %5698
    %5700 = vrot.lane.b32.xlu0 %v5545, 113
    %v5701 = vpop.permute.xlu0 %5700
    %5702 = vrot.lane.b32.xlu0 %v5546, 113
    %v5703 = vpop.permute.xlu0 %5702
    %5704 = vrot.lane.b32.xlu0 %v5547, 113
    %v5705 = vpop.permute.xlu0 %5704
    %5706 = vrot.lane.b32.xlu0 %v5548, 113
    %v5707 = vpop.permute.xlu0 %5706
    %5708 = vrot.lane.b32.xlu0 %v5549, 113
    %v5709 = vpop.permute.xlu0 %5708
    %5710 = vrot.lane.b32.xlu0 %v5550, 113
    %v5711 = vpop.permute.xlu0 %5710
    %5712 = vrot.lane.b32.xlu0 %v5551, 113
    %v5713 = vpop.permute.xlu0 %5712
    %vm5714 = vcmask 924672
    %v5715 = vsel %vm5714, %v5607, %v5609
    %v5716 = vsel %vm5714, %v5609, %v5611
    %v5717 = vsel %vm5714, %v5611, %v5613
    %v5718 = vsel %vm5714, %v5613, %v5615
    %v5719 = vsel %vm5714, %v5615, %v5617
    %v5720 = vsel %vm5714, %v5617, %v5619
    %v5721 = vsel %vm5714, %v5619, %v5621
    %v5722 = vsel %vm5714, %v5621, %v5623
    %v5723 = vsel %vm5714, %v5625, %v5627
    %v5724 = vsel %vm5714, %v5627, %v5629
    %v5725 = vsel %vm5714, %v5629, %v5631
    %v5726 = vsel %vm5714, %v5631, %v5633
    %v5727 = vsel %vm5714, %v5633, %v5635
    %v5728 = vsel %vm5714, %v5635, %v5637
    %v5729 = vsel %vm5714, %v5637, %v5639
    %v5730 = vsel %vm5714, %v5639, %v5641
    %v5731 = vsel %vm5714, %v5643, %v5645
    %v5732 = vsel %vm5714, %v5645, %v5647
    %v5733 = vsel %vm5714, %v5647, %v5649
    %v5734 = vsel %vm5714, %v5649, %v5651
    %v5735 = vsel %vm5714, %v5651, %v5653
    %v5736 = vsel %vm5714, %v5653, %v5655
    %v5737 = vsel %vm5714, %v5655, %v5657
    %v5738 = vsel %vm5714, %v5657, %v5659
    %v5739 = vsel %vm5714, %v5661, %v5663
    %v5740 = vsel %vm5714, %v5663, %v5665
    %v5741 = vsel %vm5714, %v5665, %v5667
    %v5742 = vsel %vm5714, %v5667, %v5669
    %v5743 = vsel %vm5714, %v5669, %v5671
    %v5744 = vsel %vm5714, %v5671, %v5673
    %v5745 = vsel %vm5714, %v5673, %v5675
    %v5746 = vsel %vm5714, %v5675, %v5677
    %v5747 = vsel %vm5714, %v5679, %v5681
    %v5748 = vsel %vm5714, %v5681, %v5683
    %v5749 = vsel %vm5714, %v5683, %v5685
    %v5750 = vsel %vm5714, %v5685, %v5687
    %v5751 = vsel %vm5714, %v5687, %v5689
    %v5752 = vsel %vm5714, %v5689, %v5691
    %v5753 = vsel %vm5714, %v5691, %v5693
    %v5754 = vsel %vm5714, %v5693, %v5695
    %v5755 = vsel %vm5714, %v5697, %v5699
    %v5756 = vsel %vm5714, %v5699, %v5701
    %v5757 = vsel %vm5714, %v5701, %v5703
    %v5758 = vsel %vm5714, %v5703, %v5705
    %v5759 = vsel %vm5714, %v5705, %v5707
    %v5760 = vsel %vm5714, %v5707, %v5709
    %v5761 = vsel %vm5714, %v5709, %v5711
    %v5762 = vsel %vm5714, %v5711, %v5713
    %v5811 = vadd.f32 %v5438, %v5715
    %v5812 = vadd.f32 %v5439, %v5716
    %v5813 = vadd.f32 %v5440, %v5717
    %v5814 = vadd.f32 %v5441, %v5718
    %v5815 = vadd.f32 %v5442, %v5719
    %v5816 = vadd.f32 %v5443, %v5720
    %v5817 = vadd.f32 %v5444, %v5721
    %v5818 = vadd.f32 %v5445, %v5722
    %v5819 = vadd.f32 %v5446, %v5723
    %v5820 = vadd.f32 %v5447, %v5724
    %v5821 = vadd.f32 %v5448, %v5725
    %v5822 = vadd.f32 %v5449, %v5726
    %v5823 = vadd.f32 %v5450, %v5727
    %v5824 = vadd.f32 %v5451, %v5728
    %v5825 = vadd.f32 %v5452, %v5729
    %v5826 = vadd.f32 %v5453, %v5730
    %v5827 = vadd.f32 %v5454, %v5731
    %v5828 = vadd.f32 %v5455, %v5732
    %v5829 = vadd.f32 %v5456, %v5733
    %v5830 = vadd.f32 %v5457, %v5734
    %v5831 = vadd.f32 %v5458, %v5735
    %v5832 = vadd.f32 %v5459, %v5736
    %v5833 = vadd.f32 %v5460, %v5737
    %v5834 = vadd.f32 %v5461, %v5738
    %v5835 = vadd.f32 %v5462, %v5739
    %v5836 = vadd.f32 %v5463, %v5740
    %v5837 = vadd.f32 %v5464, %v5741
    %v5838 = vadd.f32 %v5465, %v5742
    %v5839 = vadd.f32 %v5466, %v5743
    %v5840 = vadd.f32 %v5467, %v5744
    %v5841 = vadd.f32 %v5468, %v5745
    %v5842 = vadd.f32 %v5469, %v5746
    %v5843 = vadd.f32 %v5470, %v5747
    %v5844 = vadd.f32 %v5471, %v5748
    %v5845 = vadd.f32 %v5472, %v5749
    %v5846 = vadd.f32 %v5473, %v5750
    %v5847 = vadd.f32 %v5474, %v5751
    %v5848 = vadd.f32 %v5475, %v5752
    %v5849 = vadd.f32 %v5476, %v5753
    %v5850 = vadd.f32 %v5477, %v5754
    %v5851 = vadd.f32 %v5478, %v5755
    %v5852 = vadd.f32 %v5479, %v5756
    %v5853 = vadd.f32 %v5480, %v5757
    %v5854 = vadd.f32 %v5481, %v5758
    %v5855 = vadd.f32 %v5482, %v5759
    %v5856 = vadd.f32 %v5483, %v5760
    %v5857 = vadd.f32 %v5484, %v5761
    %v5858 = vadd.f32 %v5485, %v5762
    %5859 = vset.pattern.permute.xlu0 16
    %5860 = vperm.xlu0 %5859, %v30
    %v5861 = vpop.permute.xlu0 %5860
    %5863 = vset.pattern.permute.xlu0 16
    %5864 = vperm.xlu0 %5863, %v31
    %v5865 = vpop.permute.xlu0 %5864
    %5867 = vset.pattern.permute.xlu0 16
    %5868 = vperm.xlu0 %5867, %v32
    %v5869 = vpop.permute.xlu0 %5868
    %v5871 = vmul.f32 %v57, %v5861
    %v5872 = vmul.f32 %v61, %v5861
    %v5873 = vmul.f32 %v65, %v5861
    %v5874 = vmul.f32 %v69, %v5861
    %v5875 = vmul.f32 %v73, %v5861
    %v5876 = vmul.f32 %v77, %v5861
    %v5877 = vmul.f32 %v81, %v5861
    %v5878 = vmul.f32 %v85, %v5861
    %v5879 = vmul.f32 %v257, %v5861
    %v5880 = vmul.f32 %v57, %v5865
    %v5881 = vmul.f32 %v61, %v5865
    %v5882 = vmul.f32 %v65, %v5865
    %v5883 = vmul.f32 %v69, %v5865
    %v5884 = vmul.f32 %v73, %v5865
    %v5885 = vmul.f32 %v77, %v5865
    %v5886 = vmul.f32 %v81, %v5865
    %v5887 = vmul.f32 %v85, %v5865
    %v5888 = vmul.f32 %v257, %v5865
    %v5889 = vmul.f32 %v57, %v5869
    %v5890 = vmul.f32 %v61, %v5869
    %v5891 = vmul.f32 %v65, %v5869
    %v5892 = vmul.f32 %v69, %v5869
    %v5893 = vmul.f32 %v73, %v5869
    %v5894 = vmul.f32 %v77, %v5869
    %v5895 = vmul.f32 %v81, %v5869
    %v5896 = vmul.f32 %v85, %v5869
    %v5897 = vmul.f32 %v257, %v5869
    %v5898 = vmul.f32 %v89, %v5861
    %v5899 = vmul.f32 %v93, %v5861
    %v5900 = vmul.f32 %v97, %v5861
    %v5901 = vmul.f32 %v101, %v5861
    %v5902 = vmul.f32 %v105, %v5861
    %v5903 = vmul.f32 %v109, %v5861
    %v5904 = vmul.f32 %v113, %v5861
    %v5905 = vmul.f32 %v117, %v5861
    %v5906 = vmul.f32 %v261, %v5861
    %v5907 = vmul.f32 %v89, %v5865
    %v5908 = vmul.f32 %v93, %v5865
    %v5909 = vmul.f32 %v97, %v5865
    %v5910 = vmul.f32 %v101, %v5865
    %v5911 = vmul.f32 %v105, %v5865
    %v5912 = vmul.f32 %v109, %v5865
    %v5913 = vmul.f32 %v113, %v5865
    %v5914 = vmul.f32 %v117, %v5865
    %v5915 = vmul.f32 %v261, %v5865
    %v5916 = vmul.f32 %v89, %v5869
    %v5917 = vmul.f32 %v93, %v5869
    %v5918 = vmul.f32 %v97, %v5869
    %v5919 = vmul.f32 %v101, %v5869
    %v5920 = vmul.f32 %v105, %v5869
    %v5921 = vmul.f32 %v109, %v5869
    %v5922 = vmul.f32 %v113, %v5869
    %v5923 = vmul.f32 %v117, %v5869
    %v5924 = vmul.f32 %v261, %v5869
    %5979 = vrot.lane.b32.xlu0 %v5871, 112
    %v5980 = vpop.permute.xlu0 %5979
    %5981 = vrot.lane.b32.xlu0 %v5872, 112
    %v5982 = vpop.permute.xlu0 %5981
    %5983 = vrot.lane.b32.xlu0 %v5873, 112
    %v5984 = vpop.permute.xlu0 %5983
    %5985 = vrot.lane.b32.xlu0 %v5874, 112
    %v5986 = vpop.permute.xlu0 %5985
    %5987 = vrot.lane.b32.xlu0 %v5875, 112
    %v5988 = vpop.permute.xlu0 %5987
    %5989 = vrot.lane.b32.xlu0 %v5876, 112
    %v5990 = vpop.permute.xlu0 %5989
    %5991 = vrot.lane.b32.xlu0 %v5877, 112
    %v5992 = vpop.permute.xlu0 %5991
    %5993 = vrot.lane.b32.xlu0 %v5878, 112
    %v5994 = vpop.permute.xlu0 %5993
    %5995 = vrot.lane.b32.xlu0 %v5879, 112
    %v5996 = vpop.permute.xlu0 %5995
    %5997 = vrot.lane.b32.xlu0 %v5880, 112
    %v5998 = vpop.permute.xlu0 %5997
    %5999 = vrot.lane.b32.xlu0 %v5881, 112
    %v6000 = vpop.permute.xlu0 %5999
    %6001 = vrot.lane.b32.xlu0 %v5882, 112
    %v6002 = vpop.permute.xlu0 %6001
    %6003 = vrot.lane.b32.xlu0 %v5883, 112
    %v6004 = vpop.permute.xlu0 %6003
    %6005 = vrot.lane.b32.xlu0 %v5884, 112
    %v6006 = vpop.permute.xlu0 %6005
    %6007 = vrot.lane.b32.xlu0 %v5885, 112
    %v6008 = vpop.permute.xlu0 %6007
    %6009 = vrot.lane.b32.xlu0 %v5886, 112
    %v6010 = vpop.permute.xlu0 %6009
    %6011 = vrot.lane.b32.xlu0 %v5887, 112
    %v6012 = vpop.permute.xlu0 %6011
    %6013 = vrot.lane.b32.xlu0 %v5888, 112
    %v6014 = vpop.permute.xlu0 %6013
    %6015 = vrot.lane.b32.xlu0 %v5889, 112
    %v6016 = vpop.permute.xlu0 %6015
    %6017 = vrot.lane.b32.xlu0 %v5890, 112
    %v6018 = vpop.permute.xlu0 %6017
    %6019 = vrot.lane.b32.xlu0 %v5891, 112
    %v6020 = vpop.permute.xlu0 %6019
    %6021 = vrot.lane.b32.xlu0 %v5892, 112
    %v6022 = vpop.permute.xlu0 %6021
    %6023 = vrot.lane.b32.xlu0 %v5893, 112
    %v6024 = vpop.permute.xlu0 %6023
    %6025 = vrot.lane.b32.xlu0 %v5894, 112
    %v6026 = vpop.permute.xlu0 %6025
    %6027 = vrot.lane.b32.xlu0 %v5895, 112
    %v6028 = vpop.permute.xlu0 %6027
    %6029 = vrot.lane.b32.xlu0 %v5896, 112
    %v6030 = vpop.permute.xlu0 %6029
    %6031 = vrot.lane.b32.xlu0 %v5897, 112
    %v6032 = vpop.permute.xlu0 %6031
    %6033 = vrot.lane.b32.xlu0 %v5898, 112
    %v6034 = vpop.permute.xlu0 %6033
    %6035 = vrot.lane.b32.xlu0 %v5899, 112
    %v6036 = vpop.permute.xlu0 %6035
    %6037 = vrot.lane.b32.xlu0 %v5900, 112
    %v6038 = vpop.permute.xlu0 %6037
    %6039 = vrot.lane.b32.xlu0 %v5901, 112
    %v6040 = vpop.permute.xlu0 %6039
    %6041 = vrot.lane.b32.xlu0 %v5902, 112
    %v6042 = vpop.permute.xlu0 %6041
    %6043 = vrot.lane.b32.xlu0 %v5903, 112
    %v6044 = vpop.permute.xlu0 %6043
    %6045 = vrot.lane.b32.xlu0 %v5904, 112
    %v6046 = vpop.permute.xlu0 %6045
    %6047 = vrot.lane.b32.xlu0 %v5905, 112
    %v6048 = vpop.permute.xlu0 %6047
    %6049 = vrot.lane.b32.xlu0 %v5906, 112
    %v6050 = vpop.permute.xlu0 %6049
    %6051 = vrot.lane.b32.xlu0 %v5907, 112
    %v6052 = vpop.permute.xlu0 %6051
    %6053 = vrot.lane.b32.xlu0 %v5908, 112
    %v6054 = vpop.permute.xlu0 %6053
    %6055 = vrot.lane.b32.xlu0 %v5909, 112
    %v6056 = vpop.permute.xlu0 %6055
    %6057 = vrot.lane.b32.xlu0 %v5910, 112
    %v6058 = vpop.permute.xlu0 %6057
    %6059 = vrot.lane.b32.xlu0 %v5911, 112
    %v6060 = vpop.permute.xlu0 %6059
    %6061 = vrot.lane.b32.xlu0 %v5912, 112
    %v6062 = vpop.permute.xlu0 %6061
    %6063 = vrot.lane.b32.xlu0 %v5913, 112
    %v6064 = vpop.permute.xlu0 %6063
    %6065 = vrot.lane.b32.xlu0 %v5914, 112
    %v6066 = vpop.permute.xlu0 %6065
    %6067 = vrot.lane.b32.xlu0 %v5915, 112
    %v6068 = vpop.permute.xlu0 %6067
    %6069 = vrot.lane.b32.xlu0 %v5916, 112
    %v6070 = vpop.permute.xlu0 %6069
    %6071 = vrot.lane.b32.xlu0 %v5917, 112
    %v6072 = vpop.permute.xlu0 %6071
    %6073 = vrot.lane.b32.xlu0 %v5918, 112
    %v6074 = vpop.permute.xlu0 %6073
    %6075 = vrot.lane.b32.xlu0 %v5919, 112
    %v6076 = vpop.permute.xlu0 %6075
    %6077 = vrot.lane.b32.xlu0 %v5920, 112
    %v6078 = vpop.permute.xlu0 %6077
    %6079 = vrot.lane.b32.xlu0 %v5921, 112
    %v6080 = vpop.permute.xlu0 %6079
    %6081 = vrot.lane.b32.xlu0 %v5922, 112
    %v6082 = vpop.permute.xlu0 %6081
    %6083 = vrot.lane.b32.xlu0 %v5923, 112
    %v6084 = vpop.permute.xlu0 %6083
    %6085 = vrot.lane.b32.xlu0 %v5924, 112
    %v6086 = vpop.permute.xlu0 %6085
    %vm6087 = vcmask 916480
    %v6088 = vsel %vm6087, %v5980, %v5982
    %v6089 = vsel %vm6087, %v5982, %v5984
    %v6090 = vsel %vm6087, %v5984, %v5986
    %v6091 = vsel %vm6087, %v5986, %v5988
    %v6092 = vsel %vm6087, %v5988, %v5990
    %v6093 = vsel %vm6087, %v5990, %v5992
    %v6094 = vsel %vm6087, %v5992, %v5994
    %v6095 = vsel %vm6087, %v5994, %v5996
    %v6096 = vsel %vm6087, %v5998, %v6000
    %v6097 = vsel %vm6087, %v6000, %v6002
    %v6098 = vsel %vm6087, %v6002, %v6004
    %v6099 = vsel %vm6087, %v6004, %v6006
    %v6100 = vsel %vm6087, %v6006, %v6008
    %v6101 = vsel %vm6087, %v6008, %v6010
    %v6102 = vsel %vm6087, %v6010, %v6012
    %v6103 = vsel %vm6087, %v6012, %v6014
    %v6104 = vsel %vm6087, %v6016, %v6018
    %v6105 = vsel %vm6087, %v6018, %v6020
    %v6106 = vsel %vm6087, %v6020, %v6022
    %v6107 = vsel %vm6087, %v6022, %v6024
    %v6108 = vsel %vm6087, %v6024, %v6026
    %v6109 = vsel %vm6087, %v6026, %v6028
    %v6110 = vsel %vm6087, %v6028, %v6030
    %v6111 = vsel %vm6087, %v6030, %v6032
    %v6112 = vsel %vm6087, %v6034, %v6036
    %v6113 = vsel %vm6087, %v6036, %v6038
    %v6114 = vsel %vm6087, %v6038, %v6040
    %v6115 = vsel %vm6087, %v6040, %v6042
    %v6116 = vsel %vm6087, %v6042, %v6044
    %v6117 = vsel %vm6087, %v6044, %v6046
    %v6118 = vsel %vm6087, %v6046, %v6048
    %v6119 = vsel %vm6087, %v6048, %v6050
    %v6120 = vsel %vm6087, %v6052, %v6054
    %v6121 = vsel %vm6087, %v6054, %v6056
    %v6122 = vsel %vm6087, %v6056, %v6058
    %v6123 = vsel %vm6087, %v6058, %v6060
    %v6124 = vsel %vm6087, %v6060, %v6062
    %v6125 = vsel %vm6087, %v6062, %v6064
    %v6126 = vsel %vm6087, %v6064, %v6066
    %v6127 = vsel %vm6087, %v6066, %v6068
    %v6128 = vsel %vm6087, %v6070, %v6072
    %v6129 = vsel %vm6087, %v6072, %v6074
    %v6130 = vsel %vm6087, %v6074, %v6076
    %v6131 = vsel %vm6087, %v6076, %v6078
    %v6132 = vsel %vm6087, %v6078, %v6080
    %v6133 = vsel %vm6087, %v6080, %v6082
    %v6134 = vsel %vm6087, %v6082, %v6084
    %v6135 = vsel %vm6087, %v6084, %v6086
    %v6184 = vadd.f32 %v5811, %v6088
    %v6185 = vadd.f32 %v5812, %v6089
    %v6186 = vadd.f32 %v5813, %v6090
    %v6187 = vadd.f32 %v5814, %v6091
    %v6188 = vadd.f32 %v5815, %v6092
    %v6189 = vadd.f32 %v5816, %v6093
    %v6190 = vadd.f32 %v5817, %v6094
    %v6191 = vadd.f32 %v5818, %v6095
    %v6192 = vadd.f32 %v5819, %v6096
    %v6193 = vadd.f32 %v5820, %v6097
    %v6194 = vadd.f32 %v5821, %v6098
    %v6195 = vadd.f32 %v5822, %v6099
    %v6196 = vadd.f32 %v5823, %v6100
    %v6197 = vadd.f32 %v5824, %v6101
    %v6198 = vadd.f32 %v5825, %v6102
    %v6199 = vadd.f32 %v5826, %v6103
    %v6200 = vadd.f32 %v5827, %v6104
    %v6201 = vadd.f32 %v5828, %v6105
    %v6202 = vadd.f32 %v5829, %v6106
    %v6203 = vadd.f32 %v5830, %v6107
    %v6204 = vadd.f32 %v5831, %v6108
    %v6205 = vadd.f32 %v5832, %v6109
    %v6206 = vadd.f32 %v5833, %v6110
    %v6207 = vadd.f32 %v5834, %v6111
    %v6208 = vadd.f32 %v5835, %v6112
    %v6209 = vadd.f32 %v5836, %v6113
    %v6210 = vadd.f32 %v5837, %v6114
    %v6211 = vadd.f32 %v5838, %v6115
    %v6212 = vadd.f32 %v5839, %v6116
    %v6213 = vadd.f32 %v5840, %v6117
    %v6214 = vadd.f32 %v5841, %v6118
    %v6215 = vadd.f32 %v5842, %v6119
    %v6216 = vadd.f32 %v5843, %v6120
    %v6217 = vadd.f32 %v5844, %v6121
    %v6218 = vadd.f32 %v5845, %v6122
    %v6219 = vadd.f32 %v5846, %v6123
    %v6220 = vadd.f32 %v5847, %v6124
    %v6221 = vadd.f32 %v5848, %v6125
    %v6222 = vadd.f32 %v5849, %v6126
    %v6223 = vadd.f32 %v5850, %v6127
    %v6224 = vadd.f32 %v5851, %v6128
    %v6225 = vadd.f32 %v5852, %v6129
    %v6226 = vadd.f32 %v5853, %v6130
    %v6227 = vadd.f32 %v5854, %v6131
    %v6228 = vadd.f32 %v5855, %v6132
    %v6229 = vadd.f32 %v5856, %v6133
    %v6230 = vadd.f32 %v5857, %v6134
    %v6231 = vadd.f32 %v5858, %v6135
    %6232 = vset.pattern.permute.xlu0 17
    %6233 = vperm.xlu0 %6232, %v30
    %v6234 = vpop.permute.xlu0 %6233
    %6236 = vset.pattern.permute.xlu0 17
    %6237 = vperm.xlu0 %6236, %v31
    %v6238 = vpop.permute.xlu0 %6237
    %6240 = vset.pattern.permute.xlu0 17
    %6241 = vperm.xlu0 %6240, %v32
    %v6242 = vpop.permute.xlu0 %6241
    %v6244 = vmul.f32 %v57, %v6234
    %v6245 = vmul.f32 %v61, %v6234
    %v6246 = vmul.f32 %v65, %v6234
    %v6247 = vmul.f32 %v69, %v6234
    %v6248 = vmul.f32 %v73, %v6234
    %v6249 = vmul.f32 %v77, %v6234
    %v6250 = vmul.f32 %v81, %v6234
    %v6251 = vmul.f32 %v85, %v6234
    %v6252 = vmul.f32 %v257, %v6234
    %v6253 = vmul.f32 %v57, %v6238
    %v6254 = vmul.f32 %v61, %v6238
    %v6255 = vmul.f32 %v65, %v6238
    %v6256 = vmul.f32 %v69, %v6238
    %v6257 = vmul.f32 %v73, %v6238
    %v6258 = vmul.f32 %v77, %v6238
    %v6259 = vmul.f32 %v81, %v6238
    %v6260 = vmul.f32 %v85, %v6238
    %v6261 = vmul.f32 %v257, %v6238
    %v6262 = vmul.f32 %v57, %v6242
    %v6263 = vmul.f32 %v61, %v6242
    %v6264 = vmul.f32 %v65, %v6242
    %v6265 = vmul.f32 %v69, %v6242
    %v6266 = vmul.f32 %v73, %v6242
    %v6267 = vmul.f32 %v77, %v6242
    %v6268 = vmul.f32 %v81, %v6242
    %v6269 = vmul.f32 %v85, %v6242
    %v6270 = vmul.f32 %v257, %v6242
    %v6271 = vmul.f32 %v89, %v6234
    %v6272 = vmul.f32 %v93, %v6234
    %v6273 = vmul.f32 %v97, %v6234
    %v6274 = vmul.f32 %v101, %v6234
    %v6275 = vmul.f32 %v105, %v6234
    %v6276 = vmul.f32 %v109, %v6234
    %v6277 = vmul.f32 %v113, %v6234
    %v6278 = vmul.f32 %v117, %v6234
    %v6279 = vmul.f32 %v261, %v6234
    %v6280 = vmul.f32 %v89, %v6238
    %v6281 = vmul.f32 %v93, %v6238
    %v6282 = vmul.f32 %v97, %v6238
    %v6283 = vmul.f32 %v101, %v6238
    %v6284 = vmul.f32 %v105, %v6238
    %v6285 = vmul.f32 %v109, %v6238
    %v6286 = vmul.f32 %v113, %v6238
    %v6287 = vmul.f32 %v117, %v6238
    %v6288 = vmul.f32 %v261, %v6238
    %v6289 = vmul.f32 %v89, %v6242
    %v6290 = vmul.f32 %v93, %v6242
    %v6291 = vmul.f32 %v97, %v6242
    %v6292 = vmul.f32 %v101, %v6242
    %v6293 = vmul.f32 %v105, %v6242
    %v6294 = vmul.f32 %v109, %v6242
    %v6295 = vmul.f32 %v113, %v6242
    %v6296 = vmul.f32 %v117, %v6242
    %v6297 = vmul.f32 %v261, %v6242
    %6352 = vrot.lane.b32.xlu0 %v6244, 111
    %v6353 = vpop.permute.xlu0 %6352
    %6354 = vrot.lane.b32.xlu0 %v6245, 111
    %v6355 = vpop.permute.xlu0 %6354
    %6356 = vrot.lane.b32.xlu0 %v6246, 111
    %v6357 = vpop.permute.xlu0 %6356
    %6358 = vrot.lane.b32.xlu0 %v6247, 111
    %v6359 = vpop.permute.xlu0 %6358
    %6360 = vrot.lane.b32.xlu0 %v6248, 111
    %v6361 = vpop.permute.xlu0 %6360
    %6362 = vrot.lane.b32.xlu0 %v6249, 111
    %v6363 = vpop.permute.xlu0 %6362
    %6364 = vrot.lane.b32.xlu0 %v6250, 111
    %v6365 = vpop.permute.xlu0 %6364
    %6366 = vrot.lane.b32.xlu0 %v6251, 111
    %v6367 = vpop.permute.xlu0 %6366
    %6368 = vrot.lane.b32.xlu0 %v6252, 111
    %v6369 = vpop.permute.xlu0 %6368
    %6370 = vrot.lane.b32.xlu0 %v6253, 111
    %v6371 = vpop.permute.xlu0 %6370
    %6372 = vrot.lane.b32.xlu0 %v6254, 111
    %v6373 = vpop.permute.xlu0 %6372
    %6374 = vrot.lane.b32.xlu0 %v6255, 111
    %v6375 = vpop.permute.xlu0 %6374
    %6376 = vrot.lane.b32.xlu0 %v6256, 111
    %v6377 = vpop.permute.xlu0 %6376
    %6378 = vrot.lane.b32.xlu0 %v6257, 111
    %v6379 = vpop.permute.xlu0 %6378
    %6380 = vrot.lane.b32.xlu0 %v6258, 111
    %v6381 = vpop.permute.xlu0 %6380
    %6382 = vrot.lane.b32.xlu0 %v6259, 111
    %v6383 = vpop.permute.xlu0 %6382
    %6384 = vrot.lane.b32.xlu0 %v6260, 111
    %v6385 = vpop.permute.xlu0 %6384
    %6386 = vrot.lane.b32.xlu0 %v6261, 111
    %v6387 = vpop.permute.xlu0 %6386
    %6388 = vrot.lane.b32.xlu0 %v6262, 111
    %v6389 = vpop.permute.xlu0 %6388
    %6390 = vrot.lane.b32.xlu0 %v6263, 111
    %v6391 = vpop.permute.xlu0 %6390
    %6392 = vrot.lane.b32.xlu0 %v6264, 111
    %v6393 = vpop.permute.xlu0 %6392
    %6394 = vrot.lane.b32.xlu0 %v6265, 111
    %v6395 = vpop.permute.xlu0 %6394
    %6396 = vrot.lane.b32.xlu0 %v6266, 111
    %v6397 = vpop.permute.xlu0 %6396
    %6398 = vrot.lane.b32.xlu0 %v6267, 111
    %v6399 = vpop.permute.xlu0 %6398
    %6400 = vrot.lane.b32.xlu0 %v6268, 111
    %v6401 = vpop.permute.xlu0 %6400
    %6402 = vrot.lane.b32.xlu0 %v6269, 111
    %v6403 = vpop.permute.xlu0 %6402
    %6404 = vrot.lane.b32.xlu0 %v6270, 111
    %v6405 = vpop.permute.xlu0 %6404
    %6406 = vrot.lane.b32.xlu0 %v6271, 111
    %v6407 = vpop.permute.xlu0 %6406
    %6408 = vrot.lane.b32.xlu0 %v6272, 111
    %v6409 = vpop.permute.xlu0 %6408
    %6410 = vrot.lane.b32.xlu0 %v6273, 111
    %v6411 = vpop.permute.xlu0 %6410
    %6412 = vrot.lane.b32.xlu0 %v6274, 111
    %v6413 = vpop.permute.xlu0 %6412
    %6414 = vrot.lane.b32.xlu0 %v6275, 111
    %v6415 = vpop.permute.xlu0 %6414
    %6416 = vrot.lane.b32.xlu0 %v6276, 111
    %v6417 = vpop.permute.xlu0 %6416
    %6418 = vrot.lane.b32.xlu0 %v6277, 111
    %v6419 = vpop.permute.xlu0 %6418
    %6420 = vrot.lane.b32.xlu0 %v6278, 111
    %v6421 = vpop.permute.xlu0 %6420
    %6422 = vrot.lane.b32.xlu0 %v6279, 111
    %v6423 = vpop.permute.xlu0 %6422
    %6424 = vrot.lane.b32.xlu0 %v6280, 111
    %v6425 = vpop.permute.xlu0 %6424
    %6426 = vrot.lane.b32.xlu0 %v6281, 111
    %v6427 = vpop.permute.xlu0 %6426
    %6428 = vrot.lane.b32.xlu0 %v6282, 111
    %v6429 = vpop.permute.xlu0 %6428
    %6430 = vrot.lane.b32.xlu0 %v6283, 111
    %v6431 = vpop.permute.xlu0 %6430
    %6432 = vrot.lane.b32.xlu0 %v6284, 111
    %v6433 = vpop.permute.xlu0 %6432
    %6434 = vrot.lane.b32.xlu0 %v6285, 111
    %v6435 = vpop.permute.xlu0 %6434
    %6436 = vrot.lane.b32.xlu0 %v6286, 111
    %v6437 = vpop.permute.xlu0 %6436
    %6438 = vrot.lane.b32.xlu0 %v6287, 111
    %v6439 = vpop.permute.xlu0 %6438
    %6440 = vrot.lane.b32.xlu0 %v6288, 111
    %v6441 = vpop.permute.xlu0 %6440
    %6442 = vrot.lane.b32.xlu0 %v6289, 111
    %v6443 = vpop.permute.xlu0 %6442
    %6444 = vrot.lane.b32.xlu0 %v6290, 111
    %v6445 = vpop.permute.xlu0 %6444
    %6446 = vrot.lane.b32.xlu0 %v6291, 111
    %v6447 = vpop.permute.xlu0 %6446
    %6448 = vrot.lane.b32.xlu0 %v6292, 111
    %v6449 = vpop.permute.xlu0 %6448
    %6450 = vrot.lane.b32.xlu0 %v6293, 111
    %v6451 = vpop.permute.xlu0 %6450
    %6452 = vrot.lane.b32.xlu0 %v6294, 111
    %v6453 = vpop.permute.xlu0 %6452
    %6454 = vrot.lane.b32.xlu0 %v6295, 111
    %v6455 = vpop.permute.xlu0 %6454
    %6456 = vrot.lane.b32.xlu0 %v6296, 111
    %v6457 = vpop.permute.xlu0 %6456
    %6458 = vrot.lane.b32.xlu0 %v6297, 111
    %v6459 = vpop.permute.xlu0 %6458
    %vm6460 = vcmask 908288
    %v6461 = vsel %vm6460, %v6353, %v6355
    %v6462 = vsel %vm6460, %v6355, %v6357
    %v6463 = vsel %vm6460, %v6357, %v6359
    %v6464 = vsel %vm6460, %v6359, %v6361
    %v6465 = vsel %vm6460, %v6361, %v6363
    %v6466 = vsel %vm6460, %v6363, %v6365
    %v6467 = vsel %vm6460, %v6365, %v6367
    %v6468 = vsel %vm6460, %v6367, %v6369
    %v6469 = vsel %vm6460, %v6371, %v6373
    %v6470 = vsel %vm6460, %v6373, %v6375
    %v6471 = vsel %vm6460, %v6375, %v6377
    %v6472 = vsel %vm6460, %v6377, %v6379
    %v6473 = vsel %vm6460, %v6379, %v6381
    %v6474 = vsel %vm6460, %v6381, %v6383
    %v6475 = vsel %vm6460, %v6383, %v6385
    %v6476 = vsel %vm6460, %v6385, %v6387
    %v6477 = vsel %vm6460, %v6389, %v6391
    %v6478 = vsel %vm6460, %v6391, %v6393
    %v6479 = vsel %vm6460, %v6393, %v6395
    %v6480 = vsel %vm6460, %v6395, %v6397
    %v6481 = vsel %vm6460, %v6397, %v6399
    %v6482 = vsel %vm6460, %v6399, %v6401
    %v6483 = vsel %vm6460, %v6401, %v6403
    %v6484 = vsel %vm6460, %v6403, %v6405
    %v6485 = vsel %vm6460, %v6407, %v6409
    %v6486 = vsel %vm6460, %v6409, %v6411
    %v6487 = vsel %vm6460, %v6411, %v6413
    %v6488 = vsel %vm6460, %v6413, %v6415
    %v6489 = vsel %vm6460, %v6415, %v6417
    %v6490 = vsel %vm6460, %v6417, %v6419
    %v6491 = vsel %vm6460, %v6419, %v6421
    %v6492 = vsel %vm6460, %v6421, %v6423
    %v6493 = vsel %vm6460, %v6425, %v6427
    %v6494 = vsel %vm6460, %v6427, %v6429
    %v6495 = vsel %vm6460, %v6429, %v6431
    %v6496 = vsel %vm6460, %v6431, %v6433
    %v6497 = vsel %vm6460, %v6433, %v6435
    %v6498 = vsel %vm6460, %v6435, %v6437
    %v6499 = vsel %vm6460, %v6437, %v6439
    %v6500 = vsel %vm6460, %v6439, %v6441
    %v6501 = vsel %vm6460, %v6443, %v6445
    %v6502 = vsel %vm6460, %v6445, %v6447
    %v6503 = vsel %vm6460, %v6447, %v6449
    %v6504 = vsel %vm6460, %v6449, %v6451
    %v6505 = vsel %vm6460, %v6451, %v6453
    %v6506 = vsel %vm6460, %v6453, %v6455
    %v6507 = vsel %vm6460, %v6455, %v6457
    %v6508 = vsel %vm6460, %v6457, %v6459
    %v6557 = vadd.f32 %v6184, %v6461
    %v6558 = vadd.f32 %v6185, %v6462
    %v6559 = vadd.f32 %v6186, %v6463
    %v6560 = vadd.f32 %v6187, %v6464
    %v6561 = vadd.f32 %v6188, %v6465
    %v6562 = vadd.f32 %v6189, %v6466
    %v6563 = vadd.f32 %v6190, %v6467
    %v6564 = vadd.f32 %v6191, %v6468
    %v6565 = vadd.f32 %v6192, %v6469
    %v6566 = vadd.f32 %v6193, %v6470
    %v6567 = vadd.f32 %v6194, %v6471
    %v6568 = vadd.f32 %v6195, %v6472
    %v6569 = vadd.f32 %v6196, %v6473
    %v6570 = vadd.f32 %v6197, %v6474
    %v6571 = vadd.f32 %v6198, %v6475
    %v6572 = vadd.f32 %v6199, %v6476
    %v6573 = vadd.f32 %v6200, %v6477
    %v6574 = vadd.f32 %v6201, %v6478
    %v6575 = vadd.f32 %v6202, %v6479
    %v6576 = vadd.f32 %v6203, %v6480
    %v6577 = vadd.f32 %v6204, %v6481
    %v6578 = vadd.f32 %v6205, %v6482
    %v6579 = vadd.f32 %v6206, %v6483
    %v6580 = vadd.f32 %v6207, %v6484
    %v6581 = vadd.f32 %v6208, %v6485
    %v6582 = vadd.f32 %v6209, %v6486
    %v6583 = vadd.f32 %v6210, %v6487
    %v6584 = vadd.f32 %v6211, %v6488
    %v6585 = vadd.f32 %v6212, %v6489
    %v6586 = vadd.f32 %v6213, %v6490
    %v6587 = vadd.f32 %v6214, %v6491
    %v6588 = vadd.f32 %v6215, %v6492
    %v6589 = vadd.f32 %v6216, %v6493
    %v6590 = vadd.f32 %v6217, %v6494
    %v6591 = vadd.f32 %v6218, %v6495
    %v6592 = vadd.f32 %v6219, %v6496
    %v6593 = vadd.f32 %v6220, %v6497
    %v6594 = vadd.f32 %v6221, %v6498
    %v6595 = vadd.f32 %v6222, %v6499
    %v6596 = vadd.f32 %v6223, %v6500
    %v6597 = vadd.f32 %v6224, %v6501
    %v6598 = vadd.f32 %v6225, %v6502
    %v6599 = vadd.f32 %v6226, %v6503
    %v6600 = vadd.f32 %v6227, %v6504
    %v6601 = vadd.f32 %v6228, %v6505
    %v6602 = vadd.f32 %v6229, %v6506
    %v6603 = vadd.f32 %v6230, %v6507
    %v6604 = vadd.f32 %v6231, %v6508
    %6605 = vset.pattern.permute.xlu0 18
    %6606 = vperm.xlu0 %6605, %v30
    %v6607 = vpop.permute.xlu0 %6606
    %6609 = vset.pattern.permute.xlu0 18
    %6610 = vperm.xlu0 %6609, %v31
    %v6611 = vpop.permute.xlu0 %6610
    %6613 = vset.pattern.permute.xlu0 18
    %6614 = vperm.xlu0 %6613, %v32
    %v6615 = vpop.permute.xlu0 %6614
    %v6617 = vmul.f32 %v57, %v6607
    %v6618 = vmul.f32 %v61, %v6607
    %v6619 = vmul.f32 %v65, %v6607
    %v6620 = vmul.f32 %v69, %v6607
    %v6621 = vmul.f32 %v73, %v6607
    %v6622 = vmul.f32 %v77, %v6607
    %v6623 = vmul.f32 %v81, %v6607
    %v6624 = vmul.f32 %v85, %v6607
    %v6625 = vmul.f32 %v257, %v6607
    %v6626 = vmul.f32 %v57, %v6611
    %v6627 = vmul.f32 %v61, %v6611
    %v6628 = vmul.f32 %v65, %v6611
    %v6629 = vmul.f32 %v69, %v6611
    %v6630 = vmul.f32 %v73, %v6611
    %v6631 = vmul.f32 %v77, %v6611
    %v6632 = vmul.f32 %v81, %v6611
    %v6633 = vmul.f32 %v85, %v6611
    %v6634 = vmul.f32 %v257, %v6611
    %v6635 = vmul.f32 %v57, %v6615
    %v6636 = vmul.f32 %v61, %v6615
    %v6637 = vmul.f32 %v65, %v6615
    %v6638 = vmul.f32 %v69, %v6615
    %v6639 = vmul.f32 %v73, %v6615
    %v6640 = vmul.f32 %v77, %v6615
    %v6641 = vmul.f32 %v81, %v6615
    %v6642 = vmul.f32 %v85, %v6615
    %v6643 = vmul.f32 %v257, %v6615
    %v6644 = vmul.f32 %v89, %v6607
    %v6645 = vmul.f32 %v93, %v6607
    %v6646 = vmul.f32 %v97, %v6607
    %v6647 = vmul.f32 %v101, %v6607
    %v6648 = vmul.f32 %v105, %v6607
    %v6649 = vmul.f32 %v109, %v6607
    %v6650 = vmul.f32 %v113, %v6607
    %v6651 = vmul.f32 %v117, %v6607
    %v6652 = vmul.f32 %v261, %v6607
    %v6653 = vmul.f32 %v89, %v6611
    %v6654 = vmul.f32 %v93, %v6611
    %v6655 = vmul.f32 %v97, %v6611
    %v6656 = vmul.f32 %v101, %v6611
    %v6657 = vmul.f32 %v105, %v6611
    %v6658 = vmul.f32 %v109, %v6611
    %v6659 = vmul.f32 %v113, %v6611
    %v6660 = vmul.f32 %v117, %v6611
    %v6661 = vmul.f32 %v261, %v6611
    %v6662 = vmul.f32 %v89, %v6615
    %v6663 = vmul.f32 %v93, %v6615
    %v6664 = vmul.f32 %v97, %v6615
    %v6665 = vmul.f32 %v101, %v6615
    %v6666 = vmul.f32 %v105, %v6615
    %v6667 = vmul.f32 %v109, %v6615
    %v6668 = vmul.f32 %v113, %v6615
    %v6669 = vmul.f32 %v117, %v6615
    %v6670 = vmul.f32 %v261, %v6615
    %6725 = vrot.lane.b32.xlu0 %v6617, 110
    %v6726 = vpop.permute.xlu0 %6725
    %6727 = vrot.lane.b32.xlu0 %v6618, 110
    %v6728 = vpop.permute.xlu0 %6727
    %6729 = vrot.lane.b32.xlu0 %v6619, 110
    %v6730 = vpop.permute.xlu0 %6729
    %6731 = vrot.lane.b32.xlu0 %v6620, 110
    %v6732 = vpop.permute.xlu0 %6731
    %6733 = vrot.lane.b32.xlu0 %v6621, 110
    %v6734 = vpop.permute.xlu0 %6733
    %6735 = vrot.lane.b32.xlu0 %v6622, 110
    %v6736 = vpop.permute.xlu0 %6735
    %6737 = vrot.lane.b32.xlu0 %v6623, 110
    %v6738 = vpop.permute.xlu0 %6737
    %6739 = vrot.lane.b32.xlu0 %v6624, 110
    %v6740 = vpop.permute.xlu0 %6739
    %6741 = vrot.lane.b32.xlu0 %v6625, 110
    %v6742 = vpop.permute.xlu0 %6741
    %6743 = vrot.lane.b32.xlu0 %v6626, 110
    %v6744 = vpop.permute.xlu0 %6743
    %6745 = vrot.lane.b32.xlu0 %v6627, 110
    %v6746 = vpop.permute.xlu0 %6745
    %6747 = vrot.lane.b32.xlu0 %v6628, 110
    %v6748 = vpop.permute.xlu0 %6747
    %6749 = vrot.lane.b32.xlu0 %v6629, 110
    %v6750 = vpop.permute.xlu0 %6749
    %6751 = vrot.lane.b32.xlu0 %v6630, 110
    %v6752 = vpop.permute.xlu0 %6751
    %6753 = vrot.lane.b32.xlu0 %v6631, 110
    %v6754 = vpop.permute.xlu0 %6753
    %6755 = vrot.lane.b32.xlu0 %v6632, 110
    %v6756 = vpop.permute.xlu0 %6755
    %6757 = vrot.lane.b32.xlu0 %v6633, 110
    %v6758 = vpop.permute.xlu0 %6757
    %6759 = vrot.lane.b32.xlu0 %v6634, 110
    %v6760 = vpop.permute.xlu0 %6759
    %6761 = vrot.lane.b32.xlu0 %v6635, 110
    %v6762 = vpop.permute.xlu0 %6761
    %6763 = vrot.lane.b32.xlu0 %v6636, 110
    %v6764 = vpop.permute.xlu0 %6763
    %6765 = vrot.lane.b32.xlu0 %v6637, 110
    %v6766 = vpop.permute.xlu0 %6765
    %6767 = vrot.lane.b32.xlu0 %v6638, 110
    %v6768 = vpop.permute.xlu0 %6767
    %6769 = vrot.lane.b32.xlu0 %v6639, 110
    %v6770 = vpop.permute.xlu0 %6769
    %6771 = vrot.lane.b32.xlu0 %v6640, 110
    %v6772 = vpop.permute.xlu0 %6771
    %6773 = vrot.lane.b32.xlu0 %v6641, 110
    %v6774 = vpop.permute.xlu0 %6773
    %6775 = vrot.lane.b32.xlu0 %v6642, 110
    %v6776 = vpop.permute.xlu0 %6775
    %6777 = vrot.lane.b32.xlu0 %v6643, 110
    %v6778 = vpop.permute.xlu0 %6777
    %6779 = vrot.lane.b32.xlu0 %v6644, 110
    %v6780 = vpop.permute.xlu0 %6779
    %6781 = vrot.lane.b32.xlu0 %v6645, 110
    %v6782 = vpop.permute.xlu0 %6781
    %6783 = vrot.lane.b32.xlu0 %v6646, 110
    %v6784 = vpop.permute.xlu0 %6783
    %6785 = vrot.lane.b32.xlu0 %v6647, 110
    %v6786 = vpop.permute.xlu0 %6785
    %6787 = vrot.lane.b32.xlu0 %v6648, 110
    %v6788 = vpop.permute.xlu0 %6787
    %6789 = vrot.lane.b32.xlu0 %v6649, 110
    %v6790 = vpop.permute.xlu0 %6789
    %6791 = vrot.lane.b32.xlu0 %v6650, 110
    %v6792 = vpop.permute.xlu0 %6791
    %6793 = vrot.lane.b32.xlu0 %v6651, 110
    %v6794 = vpop.permute.xlu0 %6793
    %6795 = vrot.lane.b32.xlu0 %v6652, 110
    %v6796 = vpop.permute.xlu0 %6795
    %6797 = vrot.lane.b32.xlu0 %v6653, 110
    %v6798 = vpop.permute.xlu0 %6797
    %6799 = vrot.lane.b32.xlu0 %v6654, 110
    %v6800 = vpop.permute.xlu0 %6799
    %6801 = vrot.lane.b32.xlu0 %v6655, 110
    %v6802 = vpop.permute.xlu0 %6801
    %6803 = vrot.lane.b32.xlu0 %v6656, 110
    %v6804 = vpop.permute.xlu0 %6803
    %6805 = vrot.lane.b32.xlu0 %v6657, 110
    %v6806 = vpop.permute.xlu0 %6805
    %6807 = vrot.lane.b32.xlu0 %v6658, 110
    %v6808 = vpop.permute.xlu0 %6807
    %6809 = vrot.lane.b32.xlu0 %v6659, 110
    %v6810 = vpop.permute.xlu0 %6809
    %6811 = vrot.lane.b32.xlu0 %v6660, 110
    %v6812 = vpop.permute.xlu0 %6811
    %6813 = vrot.lane.b32.xlu0 %v6661, 110
    %v6814 = vpop.permute.xlu0 %6813
    %6815 = vrot.lane.b32.xlu0 %v6662, 110
    %v6816 = vpop.permute.xlu0 %6815
    %6817 = vrot.lane.b32.xlu0 %v6663, 110
    %v6818 = vpop.permute.xlu0 %6817
    %6819 = vrot.lane.b32.xlu0 %v6664, 110
    %v6820 = vpop.permute.xlu0 %6819
    %6821 = vrot.lane.b32.xlu0 %v6665, 110
    %v6822 = vpop.permute.xlu0 %6821
    %6823 = vrot.lane.b32.xlu0 %v6666, 110
    %v6824 = vpop.permute.xlu0 %6823
    %6825 = vrot.lane.b32.xlu0 %v6667, 110
    %v6826 = vpop.permute.xlu0 %6825
    %6827 = vrot.lane.b32.xlu0 %v6668, 110
    %v6828 = vpop.permute.xlu0 %6827
    %6829 = vrot.lane.b32.xlu0 %v6669, 110
    %v6830 = vpop.permute.xlu0 %6829
    %6831 = vrot.lane.b32.xlu0 %v6670, 110
    %v6832 = vpop.permute.xlu0 %6831
    %vm6833 = vcmask 900096
    %v6834 = vsel %vm6833, %v6726, %v6728
    %v6835 = vsel %vm6833, %v6728, %v6730
    %v6836 = vsel %vm6833, %v6730, %v6732
    %v6837 = vsel %vm6833, %v6732, %v6734
    %v6838 = vsel %vm6833, %v6734, %v6736
    %v6839 = vsel %vm6833, %v6736, %v6738
    %v6840 = vsel %vm6833, %v6738, %v6740
    %v6841 = vsel %vm6833, %v6740, %v6742
    %v6842 = vsel %vm6833, %v6744, %v6746
    %v6843 = vsel %vm6833, %v6746, %v6748
    %v6844 = vsel %vm6833, %v6748, %v6750
    %v6845 = vsel %vm6833, %v6750, %v6752
    %v6846 = vsel %vm6833, %v6752, %v6754
    %v6847 = vsel %vm6833, %v6754, %v6756
    %v6848 = vsel %vm6833, %v6756, %v6758
    %v6849 = vsel %vm6833, %v6758, %v6760
    %v6850 = vsel %vm6833, %v6762, %v6764
    %v6851 = vsel %vm6833, %v6764, %v6766
    %v6852 = vsel %vm6833, %v6766, %v6768
    %v6853 = vsel %vm6833, %v6768, %v6770
    %v6854 = vsel %vm6833, %v6770, %v6772
    %v6855 = vsel %vm6833, %v6772, %v6774
    %v6856 = vsel %vm6833, %v6774, %v6776
    %v6857 = vsel %vm6833, %v6776, %v6778
    %v6858 = vsel %vm6833, %v6780, %v6782
    %v6859 = vsel %vm6833, %v6782, %v6784
    %v6860 = vsel %vm6833, %v6784, %v6786
    %v6861 = vsel %vm6833, %v6786, %v6788
    %v6862 = vsel %vm6833, %v6788, %v6790
    %v6863 = vsel %vm6833, %v6790, %v6792
    %v6864 = vsel %vm6833, %v6792, %v6794
    %v6865 = vsel %vm6833, %v6794, %v6796
    %v6866 = vsel %vm6833, %v6798, %v6800
    %v6867 = vsel %vm6833, %v6800, %v6802
    %v6868 = vsel %vm6833, %v6802, %v6804
    %v6869 = vsel %vm6833, %v6804, %v6806
    %v6870 = vsel %vm6833, %v6806, %v6808
    %v6871 = vsel %vm6833, %v6808, %v6810
    %v6872 = vsel %vm6833, %v6810, %v6812
    %v6873 = vsel %vm6833, %v6812, %v6814
    %v6874 = vsel %vm6833, %v6816, %v6818
    %v6875 = vsel %vm6833, %v6818, %v6820
    %v6876 = vsel %vm6833, %v6820, %v6822
    %v6877 = vsel %vm6833, %v6822, %v6824
    %v6878 = vsel %vm6833, %v6824, %v6826
    %v6879 = vsel %vm6833, %v6826, %v6828
    %v6880 = vsel %vm6833, %v6828, %v6830
    %v6881 = vsel %vm6833, %v6830, %v6832
    %v6930 = vadd.f32 %v6557, %v6834
    %v6931 = vadd.f32 %v6558, %v6835
    %v6932 = vadd.f32 %v6559, %v6836
    %v6933 = vadd.f32 %v6560, %v6837
    %v6934 = vadd.f32 %v6561, %v6838
    %v6935 = vadd.f32 %v6562, %v6839
    %v6936 = vadd.f32 %v6563, %v6840
    %v6937 = vadd.f32 %v6564, %v6841
    %v6938 = vadd.f32 %v6565, %v6842
    %v6939 = vadd.f32 %v6566, %v6843
    %v6940 = vadd.f32 %v6567, %v6844
    %v6941 = vadd.f32 %v6568, %v6845
    %v6942 = vadd.f32 %v6569, %v6846
    %v6943 = vadd.f32 %v6570, %v6847
    %v6944 = vadd.f32 %v6571, %v6848
    %v6945 = vadd.f32 %v6572, %v6849
    %v6946 = vadd.f32 %v6573, %v6850
    %v6947 = vadd.f32 %v6574, %v6851
    %v6948 = vadd.f32 %v6575, %v6852
    %v6949 = vadd.f32 %v6576, %v6853
    %v6950 = vadd.f32 %v6577, %v6854
    %v6951 = vadd.f32 %v6578, %v6855
    %v6952 = vadd.f32 %v6579, %v6856
    %v6953 = vadd.f32 %v6580, %v6857
    %v6954 = vadd.f32 %v6581, %v6858
    %v6955 = vadd.f32 %v6582, %v6859
    %v6956 = vadd.f32 %v6583, %v6860
    %v6957 = vadd.f32 %v6584, %v6861
    %v6958 = vadd.f32 %v6585, %v6862
    %v6959 = vadd.f32 %v6586, %v6863
    %v6960 = vadd.f32 %v6587, %v6864
    %v6961 = vadd.f32 %v6588, %v6865
    %v6962 = vadd.f32 %v6589, %v6866
    %v6963 = vadd.f32 %v6590, %v6867
    %v6964 = vadd.f32 %v6591, %v6868
    %v6965 = vadd.f32 %v6592, %v6869
    %v6966 = vadd.f32 %v6593, %v6870
    %v6967 = vadd.f32 %v6594, %v6871
    %v6968 = vadd.f32 %v6595, %v6872
    %v6969 = vadd.f32 %v6596, %v6873
    %v6970 = vadd.f32 %v6597, %v6874
    %v6971 = vadd.f32 %v6598, %v6875
    %v6972 = vadd.f32 %v6599, %v6876
    %v6973 = vadd.f32 %v6600, %v6877
    %v6974 = vadd.f32 %v6601, %v6878
    %v6975 = vadd.f32 %v6602, %v6879
    %v6976 = vadd.f32 %v6603, %v6880
    %v6977 = vadd.f32 %v6604, %v6881
    %6978 = vset.pattern.permute.xlu0 19
    %6979 = vperm.xlu0 %6978, %v30
    %v6980 = vpop.permute.xlu0 %6979
    %6982 = vset.pattern.permute.xlu0 19
    %6983 = vperm.xlu0 %6982, %v31
    %v6984 = vpop.permute.xlu0 %6983
    %6986 = vset.pattern.permute.xlu0 19
    %6987 = vperm.xlu0 %6986, %v32
    %v6988 = vpop.permute.xlu0 %6987
    %v6990 = vmul.f32 %v57, %v6980
    %v6991 = vmul.f32 %v61, %v6980
    %v6992 = vmul.f32 %v65, %v6980
    %v6993 = vmul.f32 %v69, %v6980
    %v6994 = vmul.f32 %v73, %v6980
    %v6995 = vmul.f32 %v77, %v6980
    %v6996 = vmul.f32 %v81, %v6980
    %v6997 = vmul.f32 %v85, %v6980
    %v6998 = vmul.f32 %v257, %v6980
    %v6999 = vmul.f32 %v57, %v6984
    %v7000 = vmul.f32 %v61, %v6984
    %v7001 = vmul.f32 %v65, %v6984
    %v7002 = vmul.f32 %v69, %v6984
    %v7003 = vmul.f32 %v73, %v6984
    %v7004 = vmul.f32 %v77, %v6984
    %v7005 = vmul.f32 %v81, %v6984
    %v7006 = vmul.f32 %v85, %v6984
    %v7007 = vmul.f32 %v257, %v6984
    %v7008 = vmul.f32 %v57, %v6988
    %v7009 = vmul.f32 %v61, %v6988
    %v7010 = vmul.f32 %v65, %v6988
    %v7011 = vmul.f32 %v69, %v6988
    %v7012 = vmul.f32 %v73, %v6988
    %v7013 = vmul.f32 %v77, %v6988
    %v7014 = vmul.f32 %v81, %v6988
    %v7015 = vmul.f32 %v85, %v6988
    %v7016 = vmul.f32 %v257, %v6988
    %v7017 = vmul.f32 %v89, %v6980
    %v7018 = vmul.f32 %v93, %v6980
    %v7019 = vmul.f32 %v97, %v6980
    %v7020 = vmul.f32 %v101, %v6980
    %v7021 = vmul.f32 %v105, %v6980
    %v7022 = vmul.f32 %v109, %v6980
    %v7023 = vmul.f32 %v113, %v6980
    %v7024 = vmul.f32 %v117, %v6980
    %v7025 = vmul.f32 %v261, %v6980
    %v7026 = vmul.f32 %v89, %v6984
    %v7027 = vmul.f32 %v93, %v6984
    %v7028 = vmul.f32 %v97, %v6984
    %v7029 = vmul.f32 %v101, %v6984
    %v7030 = vmul.f32 %v105, %v6984
    %v7031 = vmul.f32 %v109, %v6984
    %v7032 = vmul.f32 %v113, %v6984
    %v7033 = vmul.f32 %v117, %v6984
    %v7034 = vmul.f32 %v261, %v6984
    %v7035 = vmul.f32 %v89, %v6988
    %v7036 = vmul.f32 %v93, %v6988
    %v7037 = vmul.f32 %v97, %v6988
    %v7038 = vmul.f32 %v101, %v6988
    %v7039 = vmul.f32 %v105, %v6988
    %v7040 = vmul.f32 %v109, %v6988
    %v7041 = vmul.f32 %v113, %v6988
    %v7042 = vmul.f32 %v117, %v6988
    %v7043 = vmul.f32 %v261, %v6988
    %7098 = vrot.lane.b32.xlu0 %v6990, 109
    %v7099 = vpop.permute.xlu0 %7098
    %7100 = vrot.lane.b32.xlu0 %v6991, 109
    %v7101 = vpop.permute.xlu0 %7100
    %7102 = vrot.lane.b32.xlu0 %v6992, 109
    %v7103 = vpop.permute.xlu0 %7102
    %7104 = vrot.lane.b32.xlu0 %v6993, 109
    %v7105 = vpop.permute.xlu0 %7104
    %7106 = vrot.lane.b32.xlu0 %v6994, 109
    %v7107 = vpop.permute.xlu0 %7106
    %7108 = vrot.lane.b32.xlu0 %v6995, 109
    %v7109 = vpop.permute.xlu0 %7108
    %7110 = vrot.lane.b32.xlu0 %v6996, 109
    %v7111 = vpop.permute.xlu0 %7110
    %7112 = vrot.lane.b32.xlu0 %v6997, 109
    %v7113 = vpop.permute.xlu0 %7112
    %7114 = vrot.lane.b32.xlu0 %v6998, 109
    %v7115 = vpop.permute.xlu0 %7114
    %7116 = vrot.lane.b32.xlu0 %v6999, 109
    %v7117 = vpop.permute.xlu0 %7116
    %7118 = vrot.lane.b32.xlu0 %v7000, 109
    %v7119 = vpop.permute.xlu0 %7118
    %7120 = vrot.lane.b32.xlu0 %v7001, 109
    %v7121 = vpop.permute.xlu0 %7120
    %7122 = vrot.lane.b32.xlu0 %v7002, 109
    %v7123 = vpop.permute.xlu0 %7122
    %7124 = vrot.lane.b32.xlu0 %v7003, 109
    %v7125 = vpop.permute.xlu0 %7124
    %7126 = vrot.lane.b32.xlu0 %v7004, 109
    %v7127 = vpop.permute.xlu0 %7126
    %7128 = vrot.lane.b32.xlu0 %v7005, 109
    %v7129 = vpop.permute.xlu0 %7128
    %7130 = vrot.lane.b32.xlu0 %v7006, 109
    %v7131 = vpop.permute.xlu0 %7130
    %7132 = vrot.lane.b32.xlu0 %v7007, 109
    %v7133 = vpop.permute.xlu0 %7132
    %7134 = vrot.lane.b32.xlu0 %v7008, 109
    %v7135 = vpop.permute.xlu0 %7134
    %7136 = vrot.lane.b32.xlu0 %v7009, 109
    %v7137 = vpop.permute.xlu0 %7136
    %7138 = vrot.lane.b32.xlu0 %v7010, 109
    %v7139 = vpop.permute.xlu0 %7138
    %7140 = vrot.lane.b32.xlu0 %v7011, 109
    %v7141 = vpop.permute.xlu0 %7140
    %7142 = vrot.lane.b32.xlu0 %v7012, 109
    %v7143 = vpop.permute.xlu0 %7142
    %7144 = vrot.lane.b32.xlu0 %v7013, 109
    %v7145 = vpop.permute.xlu0 %7144
    %7146 = vrot.lane.b32.xlu0 %v7014, 109
    %v7147 = vpop.permute.xlu0 %7146
    %7148 = vrot.lane.b32.xlu0 %v7015, 109
    %v7149 = vpop.permute.xlu0 %7148
    %7150 = vrot.lane.b32.xlu0 %v7016, 109
    %v7151 = vpop.permute.xlu0 %7150
    %7152 = vrot.lane.b32.xlu0 %v7017, 109
    %v7153 = vpop.permute.xlu0 %7152
    %7154 = vrot.lane.b32.xlu0 %v7018, 109
    %v7155 = vpop.permute.xlu0 %7154
    %7156 = vrot.lane.b32.xlu0 %v7019, 109
    %v7157 = vpop.permute.xlu0 %7156
    %7158 = vrot.lane.b32.xlu0 %v7020, 109
    %v7159 = vpop.permute.xlu0 %7158
    %7160 = vrot.lane.b32.xlu0 %v7021, 109
    %v7161 = vpop.permute.xlu0 %7160
    %7162 = vrot.lane.b32.xlu0 %v7022, 109
    %v7163 = vpop.permute.xlu0 %7162
    %7164 = vrot.lane.b32.xlu0 %v7023, 109
    %v7165 = vpop.permute.xlu0 %7164
    %7166 = vrot.lane.b32.xlu0 %v7024, 109
    %v7167 = vpop.permute.xlu0 %7166
    %7168 = vrot.lane.b32.xlu0 %v7025, 109
    %v7169 = vpop.permute.xlu0 %7168
    %7170 = vrot.lane.b32.xlu0 %v7026, 109
    %v7171 = vpop.permute.xlu0 %7170
    %7172 = vrot.lane.b32.xlu0 %v7027, 109
    %v7173 = vpop.permute.xlu0 %7172
    %7174 = vrot.lane.b32.xlu0 %v7028, 109
    %v7175 = vpop.permute.xlu0 %7174
    %7176 = vrot.lane.b32.xlu0 %v7029, 109
    %v7177 = vpop.permute.xlu0 %7176
    %7178 = vrot.lane.b32.xlu0 %v7030, 109
    %v7179 = vpop.permute.xlu0 %7178
    %7180 = vrot.lane.b32.xlu0 %v7031, 109
    %v7181 = vpop.permute.xlu0 %7180
    %7182 = vrot.lane.b32.xlu0 %v7032, 109
    %v7183 = vpop.permute.xlu0 %7182
    %7184 = vrot.lane.b32.xlu0 %v7033, 109
    %v7185 = vpop.permute.xlu0 %7184
    %7186 = vrot.lane.b32.xlu0 %v7034, 109
    %v7187 = vpop.permute.xlu0 %7186
    %7188 = vrot.lane.b32.xlu0 %v7035, 109
    %v7189 = vpop.permute.xlu0 %7188
    %7190 = vrot.lane.b32.xlu0 %v7036, 109
    %v7191 = vpop.permute.xlu0 %7190
    %7192 = vrot.lane.b32.xlu0 %v7037, 109
    %v7193 = vpop.permute.xlu0 %7192
    %7194 = vrot.lane.b32.xlu0 %v7038, 109
    %v7195 = vpop.permute.xlu0 %7194
    %7196 = vrot.lane.b32.xlu0 %v7039, 109
    %v7197 = vpop.permute.xlu0 %7196
    %7198 = vrot.lane.b32.xlu0 %v7040, 109
    %v7199 = vpop.permute.xlu0 %7198
    %7200 = vrot.lane.b32.xlu0 %v7041, 109
    %v7201 = vpop.permute.xlu0 %7200
    %7202 = vrot.lane.b32.xlu0 %v7042, 109
    %v7203 = vpop.permute.xlu0 %7202
    %7204 = vrot.lane.b32.xlu0 %v7043, 109
    %v7205 = vpop.permute.xlu0 %7204
    %vm7206 = vcmask 891904
    %v7207 = vsel %vm7206, %v7099, %v7101
    %v7208 = vsel %vm7206, %v7101, %v7103
    %v7209 = vsel %vm7206, %v7103, %v7105
    %v7210 = vsel %vm7206, %v7105, %v7107
    %v7211 = vsel %vm7206, %v7107, %v7109
    %v7212 = vsel %vm7206, %v7109, %v7111
    %v7213 = vsel %vm7206, %v7111, %v7113
    %v7214 = vsel %vm7206, %v7113, %v7115
    %v7215 = vsel %vm7206, %v7117, %v7119
    %v7216 = vsel %vm7206, %v7119, %v7121
    %v7217 = vsel %vm7206, %v7121, %v7123
    %v7218 = vsel %vm7206, %v7123, %v7125
    %v7219 = vsel %vm7206, %v7125, %v7127
    %v7220 = vsel %vm7206, %v7127, %v7129
    %v7221 = vsel %vm7206, %v7129, %v7131
    %v7222 = vsel %vm7206, %v7131, %v7133
    %v7223 = vsel %vm7206, %v7135, %v7137
    %v7224 = vsel %vm7206, %v7137, %v7139
    %v7225 = vsel %vm7206, %v7139, %v7141
    %v7226 = vsel %vm7206, %v7141, %v7143
    %v7227 = vsel %vm7206, %v7143, %v7145
    %v7228 = vsel %vm7206, %v7145, %v7147
    %v7229 = vsel %vm7206, %v7147, %v7149
    %v7230 = vsel %vm7206, %v7149, %v7151
    %v7231 = vsel %vm7206, %v7153, %v7155
    %v7232 = vsel %vm7206, %v7155, %v7157
    %v7233 = vsel %vm7206, %v7157, %v7159
    %v7234 = vsel %vm7206, %v7159, %v7161
    %v7235 = vsel %vm7206, %v7161, %v7163
    %v7236 = vsel %vm7206, %v7163, %v7165
    %v7237 = vsel %vm7206, %v7165, %v7167
    %v7238 = vsel %vm7206, %v7167, %v7169
    %v7239 = vsel %vm7206, %v7171, %v7173
    %v7240 = vsel %vm7206, %v7173, %v7175
    %v7241 = vsel %vm7206, %v7175, %v7177
    %v7242 = vsel %vm7206, %v7177, %v7179
    %v7243 = vsel %vm7206, %v7179, %v7181
    %v7244 = vsel %vm7206, %v7181, %v7183
    %v7245 = vsel %vm7206, %v7183, %v7185
    %v7246 = vsel %vm7206, %v7185, %v7187
    %v7247 = vsel %vm7206, %v7189, %v7191
    %v7248 = vsel %vm7206, %v7191, %v7193
    %v7249 = vsel %vm7206, %v7193, %v7195
    %v7250 = vsel %vm7206, %v7195, %v7197
    %v7251 = vsel %vm7206, %v7197, %v7199
    %v7252 = vsel %vm7206, %v7199, %v7201
    %v7253 = vsel %vm7206, %v7201, %v7203
    %v7254 = vsel %vm7206, %v7203, %v7205
    %v7303 = vadd.f32 %v6930, %v7207
    %v7304 = vadd.f32 %v6931, %v7208
    %v7305 = vadd.f32 %v6932, %v7209
    %v7306 = vadd.f32 %v6933, %v7210
    %v7307 = vadd.f32 %v6934, %v7211
    %v7308 = vadd.f32 %v6935, %v7212
    %v7309 = vadd.f32 %v6936, %v7213
    %v7310 = vadd.f32 %v6937, %v7214
    %v7311 = vadd.f32 %v6938, %v7215
    %v7312 = vadd.f32 %v6939, %v7216
    %v7313 = vadd.f32 %v6940, %v7217
    %v7314 = vadd.f32 %v6941, %v7218
    %v7315 = vadd.f32 %v6942, %v7219
    %v7316 = vadd.f32 %v6943, %v7220
    %v7317 = vadd.f32 %v6944, %v7221
    %v7318 = vadd.f32 %v6945, %v7222
    %v7319 = vadd.f32 %v6946, %v7223
    %v7320 = vadd.f32 %v6947, %v7224
    %v7321 = vadd.f32 %v6948, %v7225
    %v7322 = vadd.f32 %v6949, %v7226
    %v7323 = vadd.f32 %v6950, %v7227
    %v7324 = vadd.f32 %v6951, %v7228
    %v7325 = vadd.f32 %v6952, %v7229
    %v7326 = vadd.f32 %v6953, %v7230
    %v7327 = vadd.f32 %v6954, %v7231
    %v7328 = vadd.f32 %v6955, %v7232
    %v7329 = vadd.f32 %v6956, %v7233
    %v7330 = vadd.f32 %v6957, %v7234
    %v7331 = vadd.f32 %v6958, %v7235
    %v7332 = vadd.f32 %v6959, %v7236
    %v7333 = vadd.f32 %v6960, %v7237
    %v7334 = vadd.f32 %v6961, %v7238
    %v7335 = vadd.f32 %v6962, %v7239
    %v7336 = vadd.f32 %v6963, %v7240
    %v7337 = vadd.f32 %v6964, %v7241
    %v7338 = vadd.f32 %v6965, %v7242
    %v7339 = vadd.f32 %v6966, %v7243
    %v7340 = vadd.f32 %v6967, %v7244
    %v7341 = vadd.f32 %v6968, %v7245
    %v7342 = vadd.f32 %v6969, %v7246
    %v7343 = vadd.f32 %v6970, %v7247
    %v7344 = vadd.f32 %v6971, %v7248
    %v7345 = vadd.f32 %v6972, %v7249
    %v7346 = vadd.f32 %v6973, %v7250
    %v7347 = vadd.f32 %v6974, %v7251
    %v7348 = vadd.f32 %v6975, %v7252
    %v7349 = vadd.f32 %v6976, %v7253
    %v7350 = vadd.f32 %v6977, %v7254
    %7351 = vset.pattern.permute.xlu0 20
    %7352 = vperm.xlu0 %7351, %v30
    %v7353 = vpop.permute.xlu0 %7352
    %7355 = vset.pattern.permute.xlu0 20
    %7356 = vperm.xlu0 %7355, %v31
    %v7357 = vpop.permute.xlu0 %7356
    %7359 = vset.pattern.permute.xlu0 20
    %7360 = vperm.xlu0 %7359, %v32
    %v7361 = vpop.permute.xlu0 %7360
    %v7363 = vmul.f32 %v57, %v7353
    %v7364 = vmul.f32 %v61, %v7353
    %v7365 = vmul.f32 %v65, %v7353
    %v7366 = vmul.f32 %v69, %v7353
    %v7367 = vmul.f32 %v73, %v7353
    %v7368 = vmul.f32 %v77, %v7353
    %v7369 = vmul.f32 %v81, %v7353
    %v7370 = vmul.f32 %v85, %v7353
    %v7371 = vmul.f32 %v257, %v7353
    %v7372 = vmul.f32 %v57, %v7357
    %v7373 = vmul.f32 %v61, %v7357
    %v7374 = vmul.f32 %v65, %v7357
    %v7375 = vmul.f32 %v69, %v7357
    %v7376 = vmul.f32 %v73, %v7357
    %v7377 = vmul.f32 %v77, %v7357
    %v7378 = vmul.f32 %v81, %v7357
    %v7379 = vmul.f32 %v85, %v7357
    %v7380 = vmul.f32 %v257, %v7357
    %v7381 = vmul.f32 %v57, %v7361
    %v7382 = vmul.f32 %v61, %v7361
    %v7383 = vmul.f32 %v65, %v7361
    %v7384 = vmul.f32 %v69, %v7361
    %v7385 = vmul.f32 %v73, %v7361
    %v7386 = vmul.f32 %v77, %v7361
    %v7387 = vmul.f32 %v81, %v7361
    %v7388 = vmul.f32 %v85, %v7361
    %v7389 = vmul.f32 %v257, %v7361
    %v7390 = vmul.f32 %v89, %v7353
    %v7391 = vmul.f32 %v93, %v7353
    %v7392 = vmul.f32 %v97, %v7353
    %v7393 = vmul.f32 %v101, %v7353
    %v7394 = vmul.f32 %v105, %v7353
    %v7395 = vmul.f32 %v109, %v7353
    %v7396 = vmul.f32 %v113, %v7353
    %v7397 = vmul.f32 %v117, %v7353
    %v7398 = vmul.f32 %v261, %v7353
    %v7399 = vmul.f32 %v89, %v7357
    %v7400 = vmul.f32 %v93, %v7357
    %v7401 = vmul.f32 %v97, %v7357
    %v7402 = vmul.f32 %v101, %v7357
    %v7403 = vmul.f32 %v105, %v7357
    %v7404 = vmul.f32 %v109, %v7357
    %v7405 = vmul.f32 %v113, %v7357
    %v7406 = vmul.f32 %v117, %v7357
    %v7407 = vmul.f32 %v261, %v7357
    %v7408 = vmul.f32 %v89, %v7361
    %v7409 = vmul.f32 %v93, %v7361
    %v7410 = vmul.f32 %v97, %v7361
    %v7411 = vmul.f32 %v101, %v7361
    %v7412 = vmul.f32 %v105, %v7361
    %v7413 = vmul.f32 %v109, %v7361
    %v7414 = vmul.f32 %v113, %v7361
    %v7415 = vmul.f32 %v117, %v7361
    %v7416 = vmul.f32 %v261, %v7361
    %7471 = vrot.lane.b32.xlu0 %v7363, 108
    %v7472 = vpop.permute.xlu0 %7471
    %7473 = vrot.lane.b32.xlu0 %v7364, 108
    %v7474 = vpop.permute.xlu0 %7473
    %7475 = vrot.lane.b32.xlu0 %v7365, 108
    %v7476 = vpop.permute.xlu0 %7475
    %7477 = vrot.lane.b32.xlu0 %v7366, 108
    %v7478 = vpop.permute.xlu0 %7477
    %7479 = vrot.lane.b32.xlu0 %v7367, 108
    %v7480 = vpop.permute.xlu0 %7479
    %7481 = vrot.lane.b32.xlu0 %v7368, 108
    %v7482 = vpop.permute.xlu0 %7481
    %7483 = vrot.lane.b32.xlu0 %v7369, 108
    %v7484 = vpop.permute.xlu0 %7483
    %7485 = vrot.lane.b32.xlu0 %v7370, 108
    %v7486 = vpop.permute.xlu0 %7485
    %7487 = vrot.lane.b32.xlu0 %v7371, 108
    %v7488 = vpop.permute.xlu0 %7487
    %7489 = vrot.lane.b32.xlu0 %v7372, 108
    %v7490 = vpop.permute.xlu0 %7489
    %7491 = vrot.lane.b32.xlu0 %v7373, 108
    %v7492 = vpop.permute.xlu0 %7491
    %7493 = vrot.lane.b32.xlu0 %v7374, 108
    %v7494 = vpop.permute.xlu0 %7493
    %7495 = vrot.lane.b32.xlu0 %v7375, 108
    %v7496 = vpop.permute.xlu0 %7495
    %7497 = vrot.lane.b32.xlu0 %v7376, 108
    %v7498 = vpop.permute.xlu0 %7497
    %7499 = vrot.lane.b32.xlu0 %v7377, 108
    %v7500 = vpop.permute.xlu0 %7499
    %7501 = vrot.lane.b32.xlu0 %v7378, 108
    %v7502 = vpop.permute.xlu0 %7501
    %7503 = vrot.lane.b32.xlu0 %v7379, 108
    %v7504 = vpop.permute.xlu0 %7503
    %7505 = vrot.lane.b32.xlu0 %v7380, 108
    %v7506 = vpop.permute.xlu0 %7505
    %7507 = vrot.lane.b32.xlu0 %v7381, 108
    %v7508 = vpop.permute.xlu0 %7507
    %7509 = vrot.lane.b32.xlu0 %v7382, 108
    %v7510 = vpop.permute.xlu0 %7509
    %7511 = vrot.lane.b32.xlu0 %v7383, 108
    %v7512 = vpop.permute.xlu0 %7511
    %7513 = vrot.lane.b32.xlu0 %v7384, 108
    %v7514 = vpop.permute.xlu0 %7513
    %7515 = vrot.lane.b32.xlu0 %v7385, 108
    %v7516 = vpop.permute.xlu0 %7515
    %7517 = vrot.lane.b32.xlu0 %v7386, 108
    %v7518 = vpop.permute.xlu0 %7517
    %7519 = vrot.lane.b32.xlu0 %v7387, 108
    %v7520 = vpop.permute.xlu0 %7519
    %7521 = vrot.lane.b32.xlu0 %v7388, 108
    %v7522 = vpop.permute.xlu0 %7521
    %7523 = vrot.lane.b32.xlu0 %v7389, 108
    %v7524 = vpop.permute.xlu0 %7523
    %7525 = vrot.lane.b32.xlu0 %v7390, 108
    %v7526 = vpop.permute.xlu0 %7525
    %7527 = vrot.lane.b32.xlu0 %v7391, 108
    %v7528 = vpop.permute.xlu0 %7527
    %7529 = vrot.lane.b32.xlu0 %v7392, 108
    %v7530 = vpop.permute.xlu0 %7529
    %7531 = vrot.lane.b32.xlu0 %v7393, 108
    %v7532 = vpop.permute.xlu0 %7531
    %7533 = vrot.lane.b32.xlu0 %v7394, 108
    %v7534 = vpop.permute.xlu0 %7533
    %7535 = vrot.lane.b32.xlu0 %v7395, 108
    %v7536 = vpop.permute.xlu0 %7535
    %7537 = vrot.lane.b32.xlu0 %v7396, 108
    %v7538 = vpop.permute.xlu0 %7537
    %7539 = vrot.lane.b32.xlu0 %v7397, 108
    %v7540 = vpop.permute.xlu0 %7539
    %7541 = vrot.lane.b32.xlu0 %v7398, 108
    %v7542 = vpop.permute.xlu0 %7541
    %7543 = vrot.lane.b32.xlu0 %v7399, 108
    %v7544 = vpop.permute.xlu0 %7543
    %7545 = vrot.lane.b32.xlu0 %v7400, 108
    %v7546 = vpop.permute.xlu0 %7545
    %7547 = vrot.lane.b32.xlu0 %v7401, 108
    %v7548 = vpop.permute.xlu0 %7547
    %7549 = vrot.lane.b32.xlu0 %v7402, 108
    %v7550 = vpop.permute.xlu0 %7549
    %7551 = vrot.lane.b32.xlu0 %v7403, 108
    %v7552 = vpop.permute.xlu0 %7551
    %7553 = vrot.lane.b32.xlu0 %v7404, 108
    %v7554 = vpop.permute.xlu0 %7553
    %7555 = vrot.lane.b32.xlu0 %v7405, 108
    %v7556 = vpop.permute.xlu0 %7555
    %7557 = vrot.lane.b32.xlu0 %v7406, 108
    %v7558 = vpop.permute.xlu0 %7557
    %7559 = vrot.lane.b32.xlu0 %v7407, 108
    %v7560 = vpop.permute.xlu0 %7559
    %7561 = vrot.lane.b32.xlu0 %v7408, 108
    %v7562 = vpop.permute.xlu0 %7561
    %7563 = vrot.lane.b32.xlu0 %v7409, 108
    %v7564 = vpop.permute.xlu0 %7563
    %7565 = vrot.lane.b32.xlu0 %v7410, 108
    %v7566 = vpop.permute.xlu0 %7565
    %7567 = vrot.lane.b32.xlu0 %v7411, 108
    %v7568 = vpop.permute.xlu0 %7567
    %7569 = vrot.lane.b32.xlu0 %v7412, 108
    %v7570 = vpop.permute.xlu0 %7569
    %7571 = vrot.lane.b32.xlu0 %v7413, 108
    %v7572 = vpop.permute.xlu0 %7571
    %7573 = vrot.lane.b32.xlu0 %v7414, 108
    %v7574 = vpop.permute.xlu0 %7573
    %7575 = vrot.lane.b32.xlu0 %v7415, 108
    %v7576 = vpop.permute.xlu0 %7575
    %7577 = vrot.lane.b32.xlu0 %v7416, 108
    %v7578 = vpop.permute.xlu0 %7577
    %vm7579 = vcmask 883712
    %v7580 = vsel %vm7579, %v7472, %v7474
    %v7581 = vsel %vm7579, %v7474, %v7476
    %v7582 = vsel %vm7579, %v7476, %v7478
    %v7583 = vsel %vm7579, %v7478, %v7480
    %v7584 = vsel %vm7579, %v7480, %v7482
    %v7585 = vsel %vm7579, %v7482, %v7484
    %v7586 = vsel %vm7579, %v7484, %v7486
    %v7587 = vsel %vm7579, %v7486, %v7488
    %v7588 = vsel %vm7579, %v7490, %v7492
    %v7589 = vsel %vm7579, %v7492, %v7494
    %v7590 = vsel %vm7579, %v7494, %v7496
    %v7591 = vsel %vm7579, %v7496, %v7498
    %v7592 = vsel %vm7579, %v7498, %v7500
    %v7593 = vsel %vm7579, %v7500, %v7502
    %v7594 = vsel %vm7579, %v7502, %v7504
    %v7595 = vsel %vm7579, %v7504, %v7506
    %v7596 = vsel %vm7579, %v7508, %v7510
    %v7597 = vsel %vm7579, %v7510, %v7512
    %v7598 = vsel %vm7579, %v7512, %v7514
    %v7599 = vsel %vm7579, %v7514, %v7516
    %v7600 = vsel %vm7579, %v7516, %v7518
    %v7601 = vsel %vm7579, %v7518, %v7520
    %v7602 = vsel %vm7579, %v7520, %v7522
    %v7603 = vsel %vm7579, %v7522, %v7524
    %v7604 = vsel %vm7579, %v7526, %v7528
    %v7605 = vsel %vm7579, %v7528, %v7530
    %v7606 = vsel %vm7579, %v7530, %v7532
    %v7607 = vsel %vm7579, %v7532, %v7534
    %v7608 = vsel %vm7579, %v7534, %v7536
    %v7609 = vsel %vm7579, %v7536, %v7538
    %v7610 = vsel %vm7579, %v7538, %v7540
    %v7611 = vsel %vm7579, %v7540, %v7542
    %v7612 = vsel %vm7579, %v7544, %v7546
    %v7613 = vsel %vm7579, %v7546, %v7548
    %v7614 = vsel %vm7579, %v7548, %v7550
    %v7615 = vsel %vm7579, %v7550, %v7552
    %v7616 = vsel %vm7579, %v7552, %v7554
    %v7617 = vsel %vm7579, %v7554, %v7556
    %v7618 = vsel %vm7579, %v7556, %v7558
    %v7619 = vsel %vm7579, %v7558, %v7560
    %v7620 = vsel %vm7579, %v7562, %v7564
    %v7621 = vsel %vm7579, %v7564, %v7566
    %v7622 = vsel %vm7579, %v7566, %v7568
    %v7623 = vsel %vm7579, %v7568, %v7570
    %v7624 = vsel %vm7579, %v7570, %v7572
    %v7625 = vsel %vm7579, %v7572, %v7574
    %v7626 = vsel %vm7579, %v7574, %v7576
    %v7627 = vsel %vm7579, %v7576, %v7578
    %v7676 = vadd.f32 %v7303, %v7580
    %v7677 = vadd.f32 %v7304, %v7581
    %v7678 = vadd.f32 %v7305, %v7582
    %v7679 = vadd.f32 %v7306, %v7583
    %v7680 = vadd.f32 %v7307, %v7584
    %v7681 = vadd.f32 %v7308, %v7585
    %v7682 = vadd.f32 %v7309, %v7586
    %v7683 = vadd.f32 %v7310, %v7587
    %v7684 = vadd.f32 %v7311, %v7588
    %v7685 = vadd.f32 %v7312, %v7589
    %v7686 = vadd.f32 %v7313, %v7590
    %v7687 = vadd.f32 %v7314, %v7591
    %v7688 = vadd.f32 %v7315, %v7592
    %v7689 = vadd.f32 %v7316, %v7593
    %v7690 = vadd.f32 %v7317, %v7594
    %v7691 = vadd.f32 %v7318, %v7595
    %v7692 = vadd.f32 %v7319, %v7596
    %v7693 = vadd.f32 %v7320, %v7597
    %v7694 = vadd.f32 %v7321, %v7598
    %v7695 = vadd.f32 %v7322, %v7599
    %v7696 = vadd.f32 %v7323, %v7600
    %v7697 = vadd.f32 %v7324, %v7601
    %v7698 = vadd.f32 %v7325, %v7602
    %v7699 = vadd.f32 %v7326, %v7603
    %v7700 = vadd.f32 %v7327, %v7604
    %v7701 = vadd.f32 %v7328, %v7605
    %v7702 = vadd.f32 %v7329, %v7606
    %v7703 = vadd.f32 %v7330, %v7607
    %v7704 = vadd.f32 %v7331, %v7608
    %v7705 = vadd.f32 %v7332, %v7609
    %v7706 = vadd.f32 %v7333, %v7610
    %v7707 = vadd.f32 %v7334, %v7611
    %v7708 = vadd.f32 %v7335, %v7612
    %v7709 = vadd.f32 %v7336, %v7613
    %v7710 = vadd.f32 %v7337, %v7614
    %v7711 = vadd.f32 %v7338, %v7615
    %v7712 = vadd.f32 %v7339, %v7616
    %v7713 = vadd.f32 %v7340, %v7617
    %v7714 = vadd.f32 %v7341, %v7618
    %v7715 = vadd.f32 %v7342, %v7619
    %v7716 = vadd.f32 %v7343, %v7620
    %v7717 = vadd.f32 %v7344, %v7621
    %v7718 = vadd.f32 %v7345, %v7622
    %v7719 = vadd.f32 %v7346, %v7623
    %v7720 = vadd.f32 %v7347, %v7624
    %v7721 = vadd.f32 %v7348, %v7625
    %v7722 = vadd.f32 %v7349, %v7626
    %v7723 = vadd.f32 %v7350, %v7627
    %7724 = vset.pattern.permute.xlu0 21
    %7725 = vperm.xlu0 %7724, %v30
    %v7726 = vpop.permute.xlu0 %7725
    %7728 = vset.pattern.permute.xlu0 21
    %7729 = vperm.xlu0 %7728, %v31
    %v7730 = vpop.permute.xlu0 %7729
    %7732 = vset.pattern.permute.xlu0 21
    %7733 = vperm.xlu0 %7732, %v32
    %v7734 = vpop.permute.xlu0 %7733
    %v7736 = vmul.f32 %v57, %v7726
    %v7737 = vmul.f32 %v61, %v7726
    %v7738 = vmul.f32 %v65, %v7726
    %v7739 = vmul.f32 %v69, %v7726
    %v7740 = vmul.f32 %v73, %v7726
    %v7741 = vmul.f32 %v77, %v7726
    %v7742 = vmul.f32 %v81, %v7726
    %v7743 = vmul.f32 %v85, %v7726
    %v7744 = vmul.f32 %v257, %v7726
    %v7745 = vmul.f32 %v57, %v7730
    %v7746 = vmul.f32 %v61, %v7730
    %v7747 = vmul.f32 %v65, %v7730
    %v7748 = vmul.f32 %v69, %v7730
    %v7749 = vmul.f32 %v73, %v7730
    %v7750 = vmul.f32 %v77, %v7730
    %v7751 = vmul.f32 %v81, %v7730
    %v7752 = vmul.f32 %v85, %v7730
    %v7753 = vmul.f32 %v257, %v7730
    %v7754 = vmul.f32 %v57, %v7734
    %v7755 = vmul.f32 %v61, %v7734
    %v7756 = vmul.f32 %v65, %v7734
    %v7757 = vmul.f32 %v69, %v7734
    %v7758 = vmul.f32 %v73, %v7734
    %v7759 = vmul.f32 %v77, %v7734
    %v7760 = vmul.f32 %v81, %v7734
    %v7761 = vmul.f32 %v85, %v7734
    %v7762 = vmul.f32 %v257, %v7734
    %v7763 = vmul.f32 %v89, %v7726
    %v7764 = vmul.f32 %v93, %v7726
    %v7765 = vmul.f32 %v97, %v7726
    %v7766 = vmul.f32 %v101, %v7726
    %v7767 = vmul.f32 %v105, %v7726
    %v7768 = vmul.f32 %v109, %v7726
    %v7769 = vmul.f32 %v113, %v7726
    %v7770 = vmul.f32 %v117, %v7726
    %v7771 = vmul.f32 %v261, %v7726
    %v7772 = vmul.f32 %v89, %v7730
    %v7773 = vmul.f32 %v93, %v7730
    %v7774 = vmul.f32 %v97, %v7730
    %v7775 = vmul.f32 %v101, %v7730
    %v7776 = vmul.f32 %v105, %v7730
    %v7777 = vmul.f32 %v109, %v7730
    %v7778 = vmul.f32 %v113, %v7730
    %v7779 = vmul.f32 %v117, %v7730
    %v7780 = vmul.f32 %v261, %v7730
    %v7781 = vmul.f32 %v89, %v7734
    %v7782 = vmul.f32 %v93, %v7734
    %v7783 = vmul.f32 %v97, %v7734
    %v7784 = vmul.f32 %v101, %v7734
    %v7785 = vmul.f32 %v105, %v7734
    %v7786 = vmul.f32 %v109, %v7734
    %v7787 = vmul.f32 %v113, %v7734
    %v7788 = vmul.f32 %v117, %v7734
    %v7789 = vmul.f32 %v261, %v7734
    %7844 = vrot.lane.b32.xlu0 %v7736, 107
    %v7845 = vpop.permute.xlu0 %7844
    %7846 = vrot.lane.b32.xlu0 %v7737, 107
    %v7847 = vpop.permute.xlu0 %7846
    %7848 = vrot.lane.b32.xlu0 %v7738, 107
    %v7849 = vpop.permute.xlu0 %7848
    %7850 = vrot.lane.b32.xlu0 %v7739, 107
    %v7851 = vpop.permute.xlu0 %7850
    %7852 = vrot.lane.b32.xlu0 %v7740, 107
    %v7853 = vpop.permute.xlu0 %7852
    %7854 = vrot.lane.b32.xlu0 %v7741, 107
    %v7855 = vpop.permute.xlu0 %7854
    %7856 = vrot.lane.b32.xlu0 %v7742, 107
    %v7857 = vpop.permute.xlu0 %7856
    %7858 = vrot.lane.b32.xlu0 %v7743, 107
    %v7859 = vpop.permute.xlu0 %7858
    %7860 = vrot.lane.b32.xlu0 %v7744, 107
    %v7861 = vpop.permute.xlu0 %7860
    %7862 = vrot.lane.b32.xlu0 %v7745, 107
    %v7863 = vpop.permute.xlu0 %7862
    %7864 = vrot.lane.b32.xlu0 %v7746, 107
    %v7865 = vpop.permute.xlu0 %7864
    %7866 = vrot.lane.b32.xlu0 %v7747, 107
    %v7867 = vpop.permute.xlu0 %7866
    %7868 = vrot.lane.b32.xlu0 %v7748, 107
    %v7869 = vpop.permute.xlu0 %7868
    %7870 = vrot.lane.b32.xlu0 %v7749, 107
    %v7871 = vpop.permute.xlu0 %7870
    %7872 = vrot.lane.b32.xlu0 %v7750, 107
    %v7873 = vpop.permute.xlu0 %7872
    %7874 = vrot.lane.b32.xlu0 %v7751, 107
    %v7875 = vpop.permute.xlu0 %7874
    %7876 = vrot.lane.b32.xlu0 %v7752, 107
    %v7877 = vpop.permute.xlu0 %7876
    %7878 = vrot.lane.b32.xlu0 %v7753, 107
    %v7879 = vpop.permute.xlu0 %7878
    %7880 = vrot.lane.b32.xlu0 %v7754, 107
    %v7881 = vpop.permute.xlu0 %7880
    %7882 = vrot.lane.b32.xlu0 %v7755, 107
    %v7883 = vpop.permute.xlu0 %7882
    %7884 = vrot.lane.b32.xlu0 %v7756, 107
    %v7885 = vpop.permute.xlu0 %7884
    %7886 = vrot.lane.b32.xlu0 %v7757, 107
    %v7887 = vpop.permute.xlu0 %7886
    %7888 = vrot.lane.b32.xlu0 %v7758, 107
    %v7889 = vpop.permute.xlu0 %7888
    %7890 = vrot.lane.b32.xlu0 %v7759, 107
    %v7891 = vpop.permute.xlu0 %7890
    %7892 = vrot.lane.b32.xlu0 %v7760, 107
    %v7893 = vpop.permute.xlu0 %7892
    %7894 = vrot.lane.b32.xlu0 %v7761, 107
    %v7895 = vpop.permute.xlu0 %7894
    %7896 = vrot.lane.b32.xlu0 %v7762, 107
    %v7897 = vpop.permute.xlu0 %7896
    %7898 = vrot.lane.b32.xlu0 %v7763, 107
    %v7899 = vpop.permute.xlu0 %7898
    %7900 = vrot.lane.b32.xlu0 %v7764, 107
    %v7901 = vpop.permute.xlu0 %7900
    %7902 = vrot.lane.b32.xlu0 %v7765, 107
    %v7903 = vpop.permute.xlu0 %7902
    %7904 = vrot.lane.b32.xlu0 %v7766, 107
    %v7905 = vpop.permute.xlu0 %7904
    %7906 = vrot.lane.b32.xlu0 %v7767, 107
    %v7907 = vpop.permute.xlu0 %7906
    %7908 = vrot.lane.b32.xlu0 %v7768, 107
    %v7909 = vpop.permute.xlu0 %7908
    %7910 = vrot.lane.b32.xlu0 %v7769, 107
    %v7911 = vpop.permute.xlu0 %7910
    %7912 = vrot.lane.b32.xlu0 %v7770, 107
    %v7913 = vpop.permute.xlu0 %7912
    %7914 = vrot.lane.b32.xlu0 %v7771, 107
    %v7915 = vpop.permute.xlu0 %7914
    %7916 = vrot.lane.b32.xlu0 %v7772, 107
    %v7917 = vpop.permute.xlu0 %7916
    %7918 = vrot.lane.b32.xlu0 %v7773, 107
    %v7919 = vpop.permute.xlu0 %7918
    %7920 = vrot.lane.b32.xlu0 %v7774, 107
    %v7921 = vpop.permute.xlu0 %7920
    %7922 = vrot.lane.b32.xlu0 %v7775, 107
    %v7923 = vpop.permute.xlu0 %7922
    %7924 = vrot.lane.b32.xlu0 %v7776, 107
    %v7925 = vpop.permute.xlu0 %7924
    %7926 = vrot.lane.b32.xlu0 %v7777, 107
    %v7927 = vpop.permute.xlu0 %7926
    %7928 = vrot.lane.b32.xlu0 %v7778, 107
    %v7929 = vpop.permute.xlu0 %7928
    %7930 = vrot.lane.b32.xlu0 %v7779, 107
    %v7931 = vpop.permute.xlu0 %7930
    %7932 = vrot.lane.b32.xlu0 %v7780, 107
    %v7933 = vpop.permute.xlu0 %7932
    %7934 = vrot.lane.b32.xlu0 %v7781, 107
    %v7935 = vpop.permute.xlu0 %7934
    %7936 = vrot.lane.b32.xlu0 %v7782, 107
    %v7937 = vpop.permute.xlu0 %7936
    %7938 = vrot.lane.b32.xlu0 %v7783, 107
    %v7939 = vpop.permute.xlu0 %7938
    %7940 = vrot.lane.b32.xlu0 %v7784, 107
    %v7941 = vpop.permute.xlu0 %7940
    %7942 = vrot.lane.b32.xlu0 %v7785, 107
    %v7943 = vpop.permute.xlu0 %7942
    %7944 = vrot.lane.b32.xlu0 %v7786, 107
    %v7945 = vpop.permute.xlu0 %7944
    %7946 = vrot.lane.b32.xlu0 %v7787, 107
    %v7947 = vpop.permute.xlu0 %7946
    %7948 = vrot.lane.b32.xlu0 %v7788, 107
    %v7949 = vpop.permute.xlu0 %7948
    %7950 = vrot.lane.b32.xlu0 %v7789, 107
    %v7951 = vpop.permute.xlu0 %7950
    %vm7952 = vcmask 875520
    %v7953 = vsel %vm7952, %v7845, %v7847
    %v7954 = vsel %vm7952, %v7847, %v7849
    %v7955 = vsel %vm7952, %v7849, %v7851
    %v7956 = vsel %vm7952, %v7851, %v7853
    %v7957 = vsel %vm7952, %v7853, %v7855
    %v7958 = vsel %vm7952, %v7855, %v7857
    %v7959 = vsel %vm7952, %v7857, %v7859
    %v7960 = vsel %vm7952, %v7859, %v7861
    %v7961 = vsel %vm7952, %v7863, %v7865
    %v7962 = vsel %vm7952, %v7865, %v7867
    %v7963 = vsel %vm7952, %v7867, %v7869
    %v7964 = vsel %vm7952, %v7869, %v7871
    %v7965 = vsel %vm7952, %v7871, %v7873
    %v7966 = vsel %vm7952, %v7873, %v7875
    %v7967 = vsel %vm7952, %v7875, %v7877
    %v7968 = vsel %vm7952, %v7877, %v7879
    %v7969 = vsel %vm7952, %v7881, %v7883
    %v7970 = vsel %vm7952, %v7883, %v7885
    %v7971 = vsel %vm7952, %v7885, %v7887
    %v7972 = vsel %vm7952, %v7887, %v7889
    %v7973 = vsel %vm7952, %v7889, %v7891
    %v7974 = vsel %vm7952, %v7891, %v7893
    %v7975 = vsel %vm7952, %v7893, %v7895
    %v7976 = vsel %vm7952, %v7895, %v7897
    %v7977 = vsel %vm7952, %v7899, %v7901
    %v7978 = vsel %vm7952, %v7901, %v7903
    %v7979 = vsel %vm7952, %v7903, %v7905
    %v7980 = vsel %vm7952, %v7905, %v7907
    %v7981 = vsel %vm7952, %v7907, %v7909
    %v7982 = vsel %vm7952, %v7909, %v7911
    %v7983 = vsel %vm7952, %v7911, %v7913
    %v7984 = vsel %vm7952, %v7913, %v7915
    %v7985 = vsel %vm7952, %v7917, %v7919
    %v7986 = vsel %vm7952, %v7919, %v7921
    %v7987 = vsel %vm7952, %v7921, %v7923
    %v7988 = vsel %vm7952, %v7923, %v7925
    %v7989 = vsel %vm7952, %v7925, %v7927
    %v7990 = vsel %vm7952, %v7927, %v7929
    %v7991 = vsel %vm7952, %v7929, %v7931
    %v7992 = vsel %vm7952, %v7931, %v7933
    %v7993 = vsel %vm7952, %v7935, %v7937
    %v7994 = vsel %vm7952, %v7937, %v7939
    %v7995 = vsel %vm7952, %v7939, %v7941
    %v7996 = vsel %vm7952, %v7941, %v7943
    %v7997 = vsel %vm7952, %v7943, %v7945
    %v7998 = vsel %vm7952, %v7945, %v7947
    %v7999 = vsel %vm7952, %v7947, %v7949
    %v8000 = vsel %vm7952, %v7949, %v7951
    %v8049 = vadd.f32 %v7676, %v7953
    %v8050 = vadd.f32 %v7677, %v7954
    %v8051 = vadd.f32 %v7678, %v7955
    %v8052 = vadd.f32 %v7679, %v7956
    %v8053 = vadd.f32 %v7680, %v7957
    %v8054 = vadd.f32 %v7681, %v7958
    %v8055 = vadd.f32 %v7682, %v7959
    %v8056 = vadd.f32 %v7683, %v7960
    %v8057 = vadd.f32 %v7684, %v7961
    %v8058 = vadd.f32 %v7685, %v7962
    %v8059 = vadd.f32 %v7686, %v7963
    %v8060 = vadd.f32 %v7687, %v7964
    %v8061 = vadd.f32 %v7688, %v7965
    %v8062 = vadd.f32 %v7689, %v7966
    %v8063 = vadd.f32 %v7690, %v7967
    %v8064 = vadd.f32 %v7691, %v7968
    %v8065 = vadd.f32 %v7692, %v7969
    %v8066 = vadd.f32 %v7693, %v7970
    %v8067 = vadd.f32 %v7694, %v7971
    %v8068 = vadd.f32 %v7695, %v7972
    %v8069 = vadd.f32 %v7696, %v7973
    %v8070 = vadd.f32 %v7697, %v7974
    %v8071 = vadd.f32 %v7698, %v7975
    %v8072 = vadd.f32 %v7699, %v7976
    %v8073 = vadd.f32 %v7700, %v7977
    %v8074 = vadd.f32 %v7701, %v7978
    %v8075 = vadd.f32 %v7702, %v7979
    %v8076 = vadd.f32 %v7703, %v7980
    %v8077 = vadd.f32 %v7704, %v7981
    %v8078 = vadd.f32 %v7705, %v7982
    %v8079 = vadd.f32 %v7706, %v7983
    %v8080 = vadd.f32 %v7707, %v7984
    %v8081 = vadd.f32 %v7708, %v7985
    %v8082 = vadd.f32 %v7709, %v7986
    %v8083 = vadd.f32 %v7710, %v7987
    %v8084 = vadd.f32 %v7711, %v7988
    %v8085 = vadd.f32 %v7712, %v7989
    %v8086 = vadd.f32 %v7713, %v7990
    %v8087 = vadd.f32 %v7714, %v7991
    %v8088 = vadd.f32 %v7715, %v7992
    %v8089 = vadd.f32 %v7716, %v7993
    %v8090 = vadd.f32 %v7717, %v7994
    %v8091 = vadd.f32 %v7718, %v7995
    %v8092 = vadd.f32 %v7719, %v7996
    %v8093 = vadd.f32 %v7720, %v7997
    %v8094 = vadd.f32 %v7721, %v7998
    %v8095 = vadd.f32 %v7722, %v7999
    %v8096 = vadd.f32 %v7723, %v8000
    %8097 = vset.pattern.permute.xlu0 22
    %8098 = vperm.xlu0 %8097, %v30
    %v8099 = vpop.permute.xlu0 %8098
    %8101 = vset.pattern.permute.xlu0 22
    %8102 = vperm.xlu0 %8101, %v31
    %v8103 = vpop.permute.xlu0 %8102
    %8105 = vset.pattern.permute.xlu0 22
    %8106 = vperm.xlu0 %8105, %v32
    %v8107 = vpop.permute.xlu0 %8106
    %v8109 = vmul.f32 %v57, %v8099
    %v8110 = vmul.f32 %v61, %v8099
    %v8111 = vmul.f32 %v65, %v8099
    %v8112 = vmul.f32 %v69, %v8099
    %v8113 = vmul.f32 %v73, %v8099
    %v8114 = vmul.f32 %v77, %v8099
    %v8115 = vmul.f32 %v81, %v8099
    %v8116 = vmul.f32 %v85, %v8099
    %v8117 = vmul.f32 %v257, %v8099
    %v8118 = vmul.f32 %v57, %v8103
    %v8119 = vmul.f32 %v61, %v8103
    %v8120 = vmul.f32 %v65, %v8103
    %v8121 = vmul.f32 %v69, %v8103
    %v8122 = vmul.f32 %v73, %v8103
    %v8123 = vmul.f32 %v77, %v8103
    %v8124 = vmul.f32 %v81, %v8103
    %v8125 = vmul.f32 %v85, %v8103
    %v8126 = vmul.f32 %v257, %v8103
    %v8127 = vmul.f32 %v57, %v8107
    %v8128 = vmul.f32 %v61, %v8107
    %v8129 = vmul.f32 %v65, %v8107
    %v8130 = vmul.f32 %v69, %v8107
    %v8131 = vmul.f32 %v73, %v8107
    %v8132 = vmul.f32 %v77, %v8107
    %v8133 = vmul.f32 %v81, %v8107
    %v8134 = vmul.f32 %v85, %v8107
    %v8135 = vmul.f32 %v257, %v8107
    %v8136 = vmul.f32 %v89, %v8099
    %v8137 = vmul.f32 %v93, %v8099
    %v8138 = vmul.f32 %v97, %v8099
    %v8139 = vmul.f32 %v101, %v8099
    %v8140 = vmul.f32 %v105, %v8099
    %v8141 = vmul.f32 %v109, %v8099
    %v8142 = vmul.f32 %v113, %v8099
    %v8143 = vmul.f32 %v117, %v8099
    %v8144 = vmul.f32 %v261, %v8099
    %v8145 = vmul.f32 %v89, %v8103
    %v8146 = vmul.f32 %v93, %v8103
    %v8147 = vmul.f32 %v97, %v8103
    %v8148 = vmul.f32 %v101, %v8103
    %v8149 = vmul.f32 %v105, %v8103
    %v8150 = vmul.f32 %v109, %v8103
    %v8151 = vmul.f32 %v113, %v8103
    %v8152 = vmul.f32 %v117, %v8103
    %v8153 = vmul.f32 %v261, %v8103
    %v8154 = vmul.f32 %v89, %v8107
    %v8155 = vmul.f32 %v93, %v8107
    %v8156 = vmul.f32 %v97, %v8107
    %v8157 = vmul.f32 %v101, %v8107
    %v8158 = vmul.f32 %v105, %v8107
    %v8159 = vmul.f32 %v109, %v8107
    %v8160 = vmul.f32 %v113, %v8107
    %v8161 = vmul.f32 %v117, %v8107
    %v8162 = vmul.f32 %v261, %v8107
    %8217 = vrot.lane.b32.xlu0 %v8109, 106
    %v8218 = vpop.permute.xlu0 %8217
    %8219 = vrot.lane.b32.xlu0 %v8110, 106
    %v8220 = vpop.permute.xlu0 %8219
    %8221 = vrot.lane.b32.xlu0 %v8111, 106
    %v8222 = vpop.permute.xlu0 %8221
    %8223 = vrot.lane.b32.xlu0 %v8112, 106
    %v8224 = vpop.permute.xlu0 %8223
    %8225 = vrot.lane.b32.xlu0 %v8113, 106
    %v8226 = vpop.permute.xlu0 %8225
    %8227 = vrot.lane.b32.xlu0 %v8114, 106
    %v8228 = vpop.permute.xlu0 %8227
    %8229 = vrot.lane.b32.xlu0 %v8115, 106
    %v8230 = vpop.permute.xlu0 %8229
    %8231 = vrot.lane.b32.xlu0 %v8116, 106
    %v8232 = vpop.permute.xlu0 %8231
    %8233 = vrot.lane.b32.xlu0 %v8117, 106
    %v8234 = vpop.permute.xlu0 %8233
    %8235 = vrot.lane.b32.xlu0 %v8118, 106
    %v8236 = vpop.permute.xlu0 %8235
    %8237 = vrot.lane.b32.xlu0 %v8119, 106
    %v8238 = vpop.permute.xlu0 %8237
    %8239 = vrot.lane.b32.xlu0 %v8120, 106
    %v8240 = vpop.permute.xlu0 %8239
    %8241 = vrot.lane.b32.xlu0 %v8121, 106
    %v8242 = vpop.permute.xlu0 %8241
    %8243 = vrot.lane.b32.xlu0 %v8122, 106
    %v8244 = vpop.permute.xlu0 %8243
    %8245 = vrot.lane.b32.xlu0 %v8123, 106
    %v8246 = vpop.permute.xlu0 %8245
    %8247 = vrot.lane.b32.xlu0 %v8124, 106
    %v8248 = vpop.permute.xlu0 %8247
    %8249 = vrot.lane.b32.xlu0 %v8125, 106
    %v8250 = vpop.permute.xlu0 %8249
    %8251 = vrot.lane.b32.xlu0 %v8126, 106
    %v8252 = vpop.permute.xlu0 %8251
    %8253 = vrot.lane.b32.xlu0 %v8127, 106
    %v8254 = vpop.permute.xlu0 %8253
    %8255 = vrot.lane.b32.xlu0 %v8128, 106
    %v8256 = vpop.permute.xlu0 %8255
    %8257 = vrot.lane.b32.xlu0 %v8129, 106
    %v8258 = vpop.permute.xlu0 %8257
    %8259 = vrot.lane.b32.xlu0 %v8130, 106
    %v8260 = vpop.permute.xlu0 %8259
    %8261 = vrot.lane.b32.xlu0 %v8131, 106
    %v8262 = vpop.permute.xlu0 %8261
    %8263 = vrot.lane.b32.xlu0 %v8132, 106
    %v8264 = vpop.permute.xlu0 %8263
    %8265 = vrot.lane.b32.xlu0 %v8133, 106
    %v8266 = vpop.permute.xlu0 %8265
    %8267 = vrot.lane.b32.xlu0 %v8134, 106
    %v8268 = vpop.permute.xlu0 %8267
    %8269 = vrot.lane.b32.xlu0 %v8135, 106
    %v8270 = vpop.permute.xlu0 %8269
    %8271 = vrot.lane.b32.xlu0 %v8136, 106
    %v8272 = vpop.permute.xlu0 %8271
    %8273 = vrot.lane.b32.xlu0 %v8137, 106
    %v8274 = vpop.permute.xlu0 %8273
    %8275 = vrot.lane.b32.xlu0 %v8138, 106
    %v8276 = vpop.permute.xlu0 %8275
    %8277 = vrot.lane.b32.xlu0 %v8139, 106
    %v8278 = vpop.permute.xlu0 %8277
    %8279 = vrot.lane.b32.xlu0 %v8140, 106
    %v8280 = vpop.permute.xlu0 %8279
    %8281 = vrot.lane.b32.xlu0 %v8141, 106
    %v8282 = vpop.permute.xlu0 %8281
    %8283 = vrot.lane.b32.xlu0 %v8142, 106
    %v8284 = vpop.permute.xlu0 %8283
    %8285 = vrot.lane.b32.xlu0 %v8143, 106
    %v8286 = vpop.permute.xlu0 %8285
    %8287 = vrot.lane.b32.xlu0 %v8144, 106
    %v8288 = vpop.permute.xlu0 %8287
    %8289 = vrot.lane.b32.xlu0 %v8145, 106
    %v8290 = vpop.permute.xlu0 %8289
    %8291 = vrot.lane.b32.xlu0 %v8146, 106
    %v8292 = vpop.permute.xlu0 %8291
    %8293 = vrot.lane.b32.xlu0 %v8147, 106
    %v8294 = vpop.permute.xlu0 %8293
    %8295 = vrot.lane.b32.xlu0 %v8148, 106
    %v8296 = vpop.permute.xlu0 %8295
    %8297 = vrot.lane.b32.xlu0 %v8149, 106
    %v8298 = vpop.permute.xlu0 %8297
    %8299 = vrot.lane.b32.xlu0 %v8150, 106
    %v8300 = vpop.permute.xlu0 %8299
    %8301 = vrot.lane.b32.xlu0 %v8151, 106
    %v8302 = vpop.permute.xlu0 %8301
    %8303 = vrot.lane.b32.xlu0 %v8152, 106
    %v8304 = vpop.permute.xlu0 %8303
    %8305 = vrot.lane.b32.xlu0 %v8153, 106
    %v8306 = vpop.permute.xlu0 %8305
    %8307 = vrot.lane.b32.xlu0 %v8154, 106
    %v8308 = vpop.permute.xlu0 %8307
    %8309 = vrot.lane.b32.xlu0 %v8155, 106
    %v8310 = vpop.permute.xlu0 %8309
    %8311 = vrot.lane.b32.xlu0 %v8156, 106
    %v8312 = vpop.permute.xlu0 %8311
    %8313 = vrot.lane.b32.xlu0 %v8157, 106
    %v8314 = vpop.permute.xlu0 %8313
    %8315 = vrot.lane.b32.xlu0 %v8158, 106
    %v8316 = vpop.permute.xlu0 %8315
    %8317 = vrot.lane.b32.xlu0 %v8159, 106
    %v8318 = vpop.permute.xlu0 %8317
    %8319 = vrot.lane.b32.xlu0 %v8160, 106
    %v8320 = vpop.permute.xlu0 %8319
    %8321 = vrot.lane.b32.xlu0 %v8161, 106
    %v8322 = vpop.permute.xlu0 %8321
    %8323 = vrot.lane.b32.xlu0 %v8162, 106
    %v8324 = vpop.permute.xlu0 %8323
    %vm8325 = vcmask 867328
    %v8326 = vsel %vm8325, %v8218, %v8220
    %v8327 = vsel %vm8325, %v8220, %v8222
    %v8328 = vsel %vm8325, %v8222, %v8224
    %v8329 = vsel %vm8325, %v8224, %v8226
    %v8330 = vsel %vm8325, %v8226, %v8228
    %v8331 = vsel %vm8325, %v8228, %v8230
    %v8332 = vsel %vm8325, %v8230, %v8232
    %v8333 = vsel %vm8325, %v8232, %v8234
    %v8334 = vsel %vm8325, %v8236, %v8238
    %v8335 = vsel %vm8325, %v8238, %v8240
    %v8336 = vsel %vm8325, %v8240, %v8242
    %v8337 = vsel %vm8325, %v8242, %v8244
    %v8338 = vsel %vm8325, %v8244, %v8246
    %v8339 = vsel %vm8325, %v8246, %v8248
    %v8340 = vsel %vm8325, %v8248, %v8250
    %v8341 = vsel %vm8325, %v8250, %v8252
    %v8342 = vsel %vm8325, %v8254, %v8256
    %v8343 = vsel %vm8325, %v8256, %v8258
    %v8344 = vsel %vm8325, %v8258, %v8260
    %v8345 = vsel %vm8325, %v8260, %v8262
    %v8346 = vsel %vm8325, %v8262, %v8264
    %v8347 = vsel %vm8325, %v8264, %v8266
    %v8348 = vsel %vm8325, %v8266, %v8268
    %v8349 = vsel %vm8325, %v8268, %v8270
    %v8350 = vsel %vm8325, %v8272, %v8274
    %v8351 = vsel %vm8325, %v8274, %v8276
    %v8352 = vsel %vm8325, %v8276, %v8278
    %v8353 = vsel %vm8325, %v8278, %v8280
    %v8354 = vsel %vm8325, %v8280, %v8282
    %v8355 = vsel %vm8325, %v8282, %v8284
    %v8356 = vsel %vm8325, %v8284, %v8286
    %v8357 = vsel %vm8325, %v8286, %v8288
    %v8358 = vsel %vm8325, %v8290, %v8292
    %v8359 = vsel %vm8325, %v8292, %v8294
    %v8360 = vsel %vm8325, %v8294, %v8296
    %v8361 = vsel %vm8325, %v8296, %v8298
    %v8362 = vsel %vm8325, %v8298, %v8300
    %v8363 = vsel %vm8325, %v8300, %v8302
    %v8364 = vsel %vm8325, %v8302, %v8304
    %v8365 = vsel %vm8325, %v8304, %v8306
    %v8366 = vsel %vm8325, %v8308, %v8310
    %v8367 = vsel %vm8325, %v8310, %v8312
    %v8368 = vsel %vm8325, %v8312, %v8314
    %v8369 = vsel %vm8325, %v8314, %v8316
    %v8370 = vsel %vm8325, %v8316, %v8318
    %v8371 = vsel %vm8325, %v8318, %v8320
    %v8372 = vsel %vm8325, %v8320, %v8322
    %v8373 = vsel %vm8325, %v8322, %v8324
    %v8422 = vadd.f32 %v8049, %v8326
    %v8423 = vadd.f32 %v8050, %v8327
    %v8424 = vadd.f32 %v8051, %v8328
    %v8425 = vadd.f32 %v8052, %v8329
    %v8426 = vadd.f32 %v8053, %v8330
    %v8427 = vadd.f32 %v8054, %v8331
    %v8428 = vadd.f32 %v8055, %v8332
    %v8429 = vadd.f32 %v8056, %v8333
    %v8430 = vadd.f32 %v8057, %v8334
    %v8431 = vadd.f32 %v8058, %v8335
    %v8432 = vadd.f32 %v8059, %v8336
    %v8433 = vadd.f32 %v8060, %v8337
    %v8434 = vadd.f32 %v8061, %v8338
    %v8435 = vadd.f32 %v8062, %v8339
    %v8436 = vadd.f32 %v8063, %v8340
    %v8437 = vadd.f32 %v8064, %v8341
    %v8438 = vadd.f32 %v8065, %v8342
    %v8439 = vadd.f32 %v8066, %v8343
    %v8440 = vadd.f32 %v8067, %v8344
    %v8441 = vadd.f32 %v8068, %v8345
    %v8442 = vadd.f32 %v8069, %v8346
    %v8443 = vadd.f32 %v8070, %v8347
    %v8444 = vadd.f32 %v8071, %v8348
    %v8445 = vadd.f32 %v8072, %v8349
    %v8446 = vadd.f32 %v8073, %v8350
    %v8447 = vadd.f32 %v8074, %v8351
    %v8448 = vadd.f32 %v8075, %v8352
    %v8449 = vadd.f32 %v8076, %v8353
    %v8450 = vadd.f32 %v8077, %v8354
    %v8451 = vadd.f32 %v8078, %v8355
    %v8452 = vadd.f32 %v8079, %v8356
    %v8453 = vadd.f32 %v8080, %v8357
    %v8454 = vadd.f32 %v8081, %v8358
    %v8455 = vadd.f32 %v8082, %v8359
    %v8456 = vadd.f32 %v8083, %v8360
    %v8457 = vadd.f32 %v8084, %v8361
    %v8458 = vadd.f32 %v8085, %v8362
    %v8459 = vadd.f32 %v8086, %v8363
    %v8460 = vadd.f32 %v8087, %v8364
    %v8461 = vadd.f32 %v8088, %v8365
    %v8462 = vadd.f32 %v8089, %v8366
    %v8463 = vadd.f32 %v8090, %v8367
    %v8464 = vadd.f32 %v8091, %v8368
    %v8465 = vadd.f32 %v8092, %v8369
    %v8466 = vadd.f32 %v8093, %v8370
    %v8467 = vadd.f32 %v8094, %v8371
    %v8468 = vadd.f32 %v8095, %v8372
    %v8469 = vadd.f32 %v8096, %v8373
    %8470 = vset.pattern.permute.xlu0 23
    %8471 = vperm.xlu0 %8470, %v30
    %v8472 = vpop.permute.xlu0 %8471
    %8474 = vset.pattern.permute.xlu0 23
    %8475 = vperm.xlu0 %8474, %v31
    %v8476 = vpop.permute.xlu0 %8475
    %8478 = vset.pattern.permute.xlu0 23
    %8479 = vperm.xlu0 %8478, %v32
    %v8480 = vpop.permute.xlu0 %8479
    %v8482 = vmul.f32 %v57, %v8472
    %v8483 = vmul.f32 %v61, %v8472
    %v8484 = vmul.f32 %v65, %v8472
    %v8485 = vmul.f32 %v69, %v8472
    %v8486 = vmul.f32 %v73, %v8472
    %v8487 = vmul.f32 %v77, %v8472
    %v8488 = vmul.f32 %v81, %v8472
    %v8489 = vmul.f32 %v85, %v8472
    %v8490 = vmul.f32 %v257, %v8472
    %v8491 = vmul.f32 %v57, %v8476
    %v8492 = vmul.f32 %v61, %v8476
    %v8493 = vmul.f32 %v65, %v8476
    %v8494 = vmul.f32 %v69, %v8476
    %v8495 = vmul.f32 %v73, %v8476
    %v8496 = vmul.f32 %v77, %v8476
    %v8497 = vmul.f32 %v81, %v8476
    %v8498 = vmul.f32 %v85, %v8476
    %v8499 = vmul.f32 %v257, %v8476
    %v8500 = vmul.f32 %v57, %v8480
    %v8501 = vmul.f32 %v61, %v8480
    %v8502 = vmul.f32 %v65, %v8480
    %v8503 = vmul.f32 %v69, %v8480
    %v8504 = vmul.f32 %v73, %v8480
    %v8505 = vmul.f32 %v77, %v8480
    %v8506 = vmul.f32 %v81, %v8480
    %v8507 = vmul.f32 %v85, %v8480
    %v8508 = vmul.f32 %v257, %v8480
    %v8509 = vmul.f32 %v89, %v8472
    %v8510 = vmul.f32 %v93, %v8472
    %v8511 = vmul.f32 %v97, %v8472
    %v8512 = vmul.f32 %v101, %v8472
    %v8513 = vmul.f32 %v105, %v8472
    %v8514 = vmul.f32 %v109, %v8472
    %v8515 = vmul.f32 %v113, %v8472
    %v8516 = vmul.f32 %v117, %v8472
    %v8517 = vmul.f32 %v261, %v8472
    %v8518 = vmul.f32 %v89, %v8476
    %v8519 = vmul.f32 %v93, %v8476
    %v8520 = vmul.f32 %v97, %v8476
    %v8521 = vmul.f32 %v101, %v8476
    %v8522 = vmul.f32 %v105, %v8476
    %v8523 = vmul.f32 %v109, %v8476
    %v8524 = vmul.f32 %v113, %v8476
    %v8525 = vmul.f32 %v117, %v8476
    %v8526 = vmul.f32 %v261, %v8476
    %v8527 = vmul.f32 %v89, %v8480
    %v8528 = vmul.f32 %v93, %v8480
    %v8529 = vmul.f32 %v97, %v8480
    %v8530 = vmul.f32 %v101, %v8480
    %v8531 = vmul.f32 %v105, %v8480
    %v8532 = vmul.f32 %v109, %v8480
    %v8533 = vmul.f32 %v113, %v8480
    %v8534 = vmul.f32 %v117, %v8480
    %v8535 = vmul.f32 %v261, %v8480
    %8590 = vrot.lane.b32.xlu0 %v8482, 105
    %v8591 = vpop.permute.xlu0 %8590
    %8592 = vrot.lane.b32.xlu0 %v8483, 105
    %v8593 = vpop.permute.xlu0 %8592
    %8594 = vrot.lane.b32.xlu0 %v8484, 105
    %v8595 = vpop.permute.xlu0 %8594
    %8596 = vrot.lane.b32.xlu0 %v8485, 105
    %v8597 = vpop.permute.xlu0 %8596
    %8598 = vrot.lane.b32.xlu0 %v8486, 105
    %v8599 = vpop.permute.xlu0 %8598
    %8600 = vrot.lane.b32.xlu0 %v8487, 105
    %v8601 = vpop.permute.xlu0 %8600
    %8602 = vrot.lane.b32.xlu0 %v8488, 105
    %v8603 = vpop.permute.xlu0 %8602
    %8604 = vrot.lane.b32.xlu0 %v8489, 105
    %v8605 = vpop.permute.xlu0 %8604
    %8606 = vrot.lane.b32.xlu0 %v8490, 105
    %v8607 = vpop.permute.xlu0 %8606
    %8608 = vrot.lane.b32.xlu0 %v8491, 105
    %v8609 = vpop.permute.xlu0 %8608
    %8610 = vrot.lane.b32.xlu0 %v8492, 105
    %v8611 = vpop.permute.xlu0 %8610
    %8612 = vrot.lane.b32.xlu0 %v8493, 105
    %v8613 = vpop.permute.xlu0 %8612
    %8614 = vrot.lane.b32.xlu0 %v8494, 105
    %v8615 = vpop.permute.xlu0 %8614
    %8616 = vrot.lane.b32.xlu0 %v8495, 105
    %v8617 = vpop.permute.xlu0 %8616
    %8618 = vrot.lane.b32.xlu0 %v8496, 105
    %v8619 = vpop.permute.xlu0 %8618
    %8620 = vrot.lane.b32.xlu0 %v8497, 105
    %v8621 = vpop.permute.xlu0 %8620
    %8622 = vrot.lane.b32.xlu0 %v8498, 105
    %v8623 = vpop.permute.xlu0 %8622
    %8624 = vrot.lane.b32.xlu0 %v8499, 105
    %v8625 = vpop.permute.xlu0 %8624
    %8626 = vrot.lane.b32.xlu0 %v8500, 105
    %v8627 = vpop.permute.xlu0 %8626
    %8628 = vrot.lane.b32.xlu0 %v8501, 105
    %v8629 = vpop.permute.xlu0 %8628
    %8630 = vrot.lane.b32.xlu0 %v8502, 105
    %v8631 = vpop.permute.xlu0 %8630
    %8632 = vrot.lane.b32.xlu0 %v8503, 105
    %v8633 = vpop.permute.xlu0 %8632
    %8634 = vrot.lane.b32.xlu0 %v8504, 105
    %v8635 = vpop.permute.xlu0 %8634
    %8636 = vrot.lane.b32.xlu0 %v8505, 105
    %v8637 = vpop.permute.xlu0 %8636
    %8638 = vrot.lane.b32.xlu0 %v8506, 105
    %v8639 = vpop.permute.xlu0 %8638
    %8640 = vrot.lane.b32.xlu0 %v8507, 105
    %v8641 = vpop.permute.xlu0 %8640
    %8642 = vrot.lane.b32.xlu0 %v8508, 105
    %v8643 = vpop.permute.xlu0 %8642
    %8644 = vrot.lane.b32.xlu0 %v8509, 105
    %v8645 = vpop.permute.xlu0 %8644
    %8646 = vrot.lane.b32.xlu0 %v8510, 105
    %v8647 = vpop.permute.xlu0 %8646
    %8648 = vrot.lane.b32.xlu0 %v8511, 105
    %v8649 = vpop.permute.xlu0 %8648
    %8650 = vrot.lane.b32.xlu0 %v8512, 105
    %v8651 = vpop.permute.xlu0 %8650
    %8652 = vrot.lane.b32.xlu0 %v8513, 105
    %v8653 = vpop.permute.xlu0 %8652
    %8654 = vrot.lane.b32.xlu0 %v8514, 105
    %v8655 = vpop.permute.xlu0 %8654
    %8656 = vrot.lane.b32.xlu0 %v8515, 105
    %v8657 = vpop.permute.xlu0 %8656
    %8658 = vrot.lane.b32.xlu0 %v8516, 105
    %v8659 = vpop.permute.xlu0 %8658
    %8660 = vrot.lane.b32.xlu0 %v8517, 105
    %v8661 = vpop.permute.xlu0 %8660
    %8662 = vrot.lane.b32.xlu0 %v8518, 105
    %v8663 = vpop.permute.xlu0 %8662
    %8664 = vrot.lane.b32.xlu0 %v8519, 105
    %v8665 = vpop.permute.xlu0 %8664
    %8666 = vrot.lane.b32.xlu0 %v8520, 105
    %v8667 = vpop.permute.xlu0 %8666
    %8668 = vrot.lane.b32.xlu0 %v8521, 105
    %v8669 = vpop.permute.xlu0 %8668
    %8670 = vrot.lane.b32.xlu0 %v8522, 105
    %v8671 = vpop.permute.xlu0 %8670
    %8672 = vrot.lane.b32.xlu0 %v8523, 105
    %v8673 = vpop.permute.xlu0 %8672
    %8674 = vrot.lane.b32.xlu0 %v8524, 105
    %v8675 = vpop.permute.xlu0 %8674
    %8676 = vrot.lane.b32.xlu0 %v8525, 105
    %v8677 = vpop.permute.xlu0 %8676
    %8678 = vrot.lane.b32.xlu0 %v8526, 105
    %v8679 = vpop.permute.xlu0 %8678
    %8680 = vrot.lane.b32.xlu0 %v8527, 105
    %v8681 = vpop.permute.xlu0 %8680
    %8682 = vrot.lane.b32.xlu0 %v8528, 105
    %v8683 = vpop.permute.xlu0 %8682
    %8684 = vrot.lane.b32.xlu0 %v8529, 105
    %v8685 = vpop.permute.xlu0 %8684
    %8686 = vrot.lane.b32.xlu0 %v8530, 105
    %v8687 = vpop.permute.xlu0 %8686
    %8688 = vrot.lane.b32.xlu0 %v8531, 105
    %v8689 = vpop.permute.xlu0 %8688
    %8690 = vrot.lane.b32.xlu0 %v8532, 105
    %v8691 = vpop.permute.xlu0 %8690
    %8692 = vrot.lane.b32.xlu0 %v8533, 105
    %v8693 = vpop.permute.xlu0 %8692
    %8694 = vrot.lane.b32.xlu0 %v8534, 105
    %v8695 = vpop.permute.xlu0 %8694
    %8696 = vrot.lane.b32.xlu0 %v8535, 105
    %v8697 = vpop.permute.xlu0 %8696
    %vm8698 = vcmask 859136
    %v8699 = vsel %vm8698, %v8591, %v8593
    %v8700 = vsel %vm8698, %v8593, %v8595
    %v8701 = vsel %vm8698, %v8595, %v8597
    %v8702 = vsel %vm8698, %v8597, %v8599
    %v8703 = vsel %vm8698, %v8599, %v8601
    %v8704 = vsel %vm8698, %v8601, %v8603
    %v8705 = vsel %vm8698, %v8603, %v8605
    %v8706 = vsel %vm8698, %v8605, %v8607
    %v8707 = vsel %vm8698, %v8609, %v8611
    %v8708 = vsel %vm8698, %v8611, %v8613
    %v8709 = vsel %vm8698, %v8613, %v8615
    %v8710 = vsel %vm8698, %v8615, %v8617
    %v8711 = vsel %vm8698, %v8617, %v8619
    %v8712 = vsel %vm8698, %v8619, %v8621
    %v8713 = vsel %vm8698, %v8621, %v8623
    %v8714 = vsel %vm8698, %v8623, %v8625
    %v8715 = vsel %vm8698, %v8627, %v8629
    %v8716 = vsel %vm8698, %v8629, %v8631
    %v8717 = vsel %vm8698, %v8631, %v8633
    %v8718 = vsel %vm8698, %v8633, %v8635
    %v8719 = vsel %vm8698, %v8635, %v8637
    %v8720 = vsel %vm8698, %v8637, %v8639
    %v8721 = vsel %vm8698, %v8639, %v8641
    %v8722 = vsel %vm8698, %v8641, %v8643
    %v8723 = vsel %vm8698, %v8645, %v8647
    %v8724 = vsel %vm8698, %v8647, %v8649
    %v8725 = vsel %vm8698, %v8649, %v8651
    %v8726 = vsel %vm8698, %v8651, %v8653
    %v8727 = vsel %vm8698, %v8653, %v8655
    %v8728 = vsel %vm8698, %v8655, %v8657
    %v8729 = vsel %vm8698, %v8657, %v8659
    %v8730 = vsel %vm8698, %v8659, %v8661
    %v8731 = vsel %vm8698, %v8663, %v8665
    %v8732 = vsel %vm8698, %v8665, %v8667
    %v8733 = vsel %vm8698, %v8667, %v8669
    %v8734 = vsel %vm8698, %v8669, %v8671
    %v8735 = vsel %vm8698, %v8671, %v8673
    %v8736 = vsel %vm8698, %v8673, %v8675
    %v8737 = vsel %vm8698, %v8675, %v8677
    %v8738 = vsel %vm8698, %v8677, %v8679
    %v8739 = vsel %vm8698, %v8681, %v8683
    %v8740 = vsel %vm8698, %v8683, %v8685
    %v8741 = vsel %vm8698, %v8685, %v8687
    %v8742 = vsel %vm8698, %v8687, %v8689
    %v8743 = vsel %vm8698, %v8689, %v8691
    %v8744 = vsel %vm8698, %v8691, %v8693
    %v8745 = vsel %vm8698, %v8693, %v8695
    %v8746 = vsel %vm8698, %v8695, %v8697
    %v8795 = vadd.f32 %v8422, %v8699
    %v8796 = vadd.f32 %v8423, %v8700
    %v8797 = vadd.f32 %v8424, %v8701
    %v8798 = vadd.f32 %v8425, %v8702
    %v8799 = vadd.f32 %v8426, %v8703
    %v8800 = vadd.f32 %v8427, %v8704
    %v8801 = vadd.f32 %v8428, %v8705
    %v8802 = vadd.f32 %v8429, %v8706
    %v8803 = vadd.f32 %v8430, %v8707
    %v8804 = vadd.f32 %v8431, %v8708
    %v8805 = vadd.f32 %v8432, %v8709
    %v8806 = vadd.f32 %v8433, %v8710
    %v8807 = vadd.f32 %v8434, %v8711
    %v8808 = vadd.f32 %v8435, %v8712
    %v8809 = vadd.f32 %v8436, %v8713
    %v8810 = vadd.f32 %v8437, %v8714
    %v8811 = vadd.f32 %v8438, %v8715
    %v8812 = vadd.f32 %v8439, %v8716
    %v8813 = vadd.f32 %v8440, %v8717
    %v8814 = vadd.f32 %v8441, %v8718
    %v8815 = vadd.f32 %v8442, %v8719
    %v8816 = vadd.f32 %v8443, %v8720
    %v8817 = vadd.f32 %v8444, %v8721
    %v8818 = vadd.f32 %v8445, %v8722
    %v8819 = vadd.f32 %v8446, %v8723
    %v8820 = vadd.f32 %v8447, %v8724
    %v8821 = vadd.f32 %v8448, %v8725
    %v8822 = vadd.f32 %v8449, %v8726
    %v8823 = vadd.f32 %v8450, %v8727
    %v8824 = vadd.f32 %v8451, %v8728
    %v8825 = vadd.f32 %v8452, %v8729
    %v8826 = vadd.f32 %v8453, %v8730
    %v8827 = vadd.f32 %v8454, %v8731
    %v8828 = vadd.f32 %v8455, %v8732
    %v8829 = vadd.f32 %v8456, %v8733
    %v8830 = vadd.f32 %v8457, %v8734
    %v8831 = vadd.f32 %v8458, %v8735
    %v8832 = vadd.f32 %v8459, %v8736
    %v8833 = vadd.f32 %v8460, %v8737
    %v8834 = vadd.f32 %v8461, %v8738
    %v8835 = vadd.f32 %v8462, %v8739
    %v8836 = vadd.f32 %v8463, %v8740
    %v8837 = vadd.f32 %v8464, %v8741
    %v8838 = vadd.f32 %v8465, %v8742
    %v8839 = vadd.f32 %v8466, %v8743
    %v8840 = vadd.f32 %v8467, %v8744
    %v8841 = vadd.f32 %v8468, %v8745
    %v8842 = vadd.f32 %v8469, %v8746
    %8843 = vset.pattern.permute.xlu0 24
    %8844 = vperm.xlu0 %8843, %v30
    %v8845 = vpop.permute.xlu0 %8844
    %8847 = vset.pattern.permute.xlu0 24
    %8848 = vperm.xlu0 %8847, %v31
    %v8849 = vpop.permute.xlu0 %8848
    %8851 = vset.pattern.permute.xlu0 24
    %8852 = vperm.xlu0 %8851, %v32
    %v8853 = vpop.permute.xlu0 %8852
    %v8855 = vmul.f32 %v57, %v8845
    %v8856 = vmul.f32 %v61, %v8845
    %v8857 = vmul.f32 %v65, %v8845
    %v8858 = vmul.f32 %v69, %v8845
    %v8859 = vmul.f32 %v73, %v8845
    %v8860 = vmul.f32 %v77, %v8845
    %v8861 = vmul.f32 %v81, %v8845
    %v8862 = vmul.f32 %v85, %v8845
    %v8863 = vmul.f32 %v257, %v8845
    %v8864 = vmul.f32 %v57, %v8849
    %v8865 = vmul.f32 %v61, %v8849
    %v8866 = vmul.f32 %v65, %v8849
    %v8867 = vmul.f32 %v69, %v8849
    %v8868 = vmul.f32 %v73, %v8849
    %v8869 = vmul.f32 %v77, %v8849
    %v8870 = vmul.f32 %v81, %v8849
    %v8871 = vmul.f32 %v85, %v8849
    %v8872 = vmul.f32 %v257, %v8849
    %v8873 = vmul.f32 %v57, %v8853
    %v8874 = vmul.f32 %v61, %v8853
    %v8875 = vmul.f32 %v65, %v8853
    %v8876 = vmul.f32 %v69, %v8853
    %v8877 = vmul.f32 %v73, %v8853
    %v8878 = vmul.f32 %v77, %v8853
    %v8879 = vmul.f32 %v81, %v8853
    %v8880 = vmul.f32 %v85, %v8853
    %v8881 = vmul.f32 %v257, %v8853
    %v8882 = vmul.f32 %v89, %v8845
    %v8883 = vmul.f32 %v93, %v8845
    %v8884 = vmul.f32 %v97, %v8845
    %v8885 = vmul.f32 %v101, %v8845
    %v8886 = vmul.f32 %v105, %v8845
    %v8887 = vmul.f32 %v109, %v8845
    %v8888 = vmul.f32 %v113, %v8845
    %v8889 = vmul.f32 %v117, %v8845
    %v8890 = vmul.f32 %v261, %v8845
    %v8891 = vmul.f32 %v89, %v8849
    %v8892 = vmul.f32 %v93, %v8849
    %v8893 = vmul.f32 %v97, %v8849
    %v8894 = vmul.f32 %v101, %v8849
    %v8895 = vmul.f32 %v105, %v8849
    %v8896 = vmul.f32 %v109, %v8849
    %v8897 = vmul.f32 %v113, %v8849
    %v8898 = vmul.f32 %v117, %v8849
    %v8899 = vmul.f32 %v261, %v8849
    %v8900 = vmul.f32 %v89, %v8853
    %v8901 = vmul.f32 %v93, %v8853
    %v8902 = vmul.f32 %v97, %v8853
    %v8903 = vmul.f32 %v101, %v8853
    %v8904 = vmul.f32 %v105, %v8853
    %v8905 = vmul.f32 %v109, %v8853
    %v8906 = vmul.f32 %v113, %v8853
    %v8907 = vmul.f32 %v117, %v8853
    %v8908 = vmul.f32 %v261, %v8853
    %8963 = vrot.lane.b32.xlu0 %v8855, 104
    %v8964 = vpop.permute.xlu0 %8963
    %8965 = vrot.lane.b32.xlu0 %v8856, 104
    %v8966 = vpop.permute.xlu0 %8965
    %8967 = vrot.lane.b32.xlu0 %v8857, 104
    %v8968 = vpop.permute.xlu0 %8967
    %8969 = vrot.lane.b32.xlu0 %v8858, 104
    %v8970 = vpop.permute.xlu0 %8969
    %8971 = vrot.lane.b32.xlu0 %v8859, 104
    %v8972 = vpop.permute.xlu0 %8971
    %8973 = vrot.lane.b32.xlu0 %v8860, 104
    %v8974 = vpop.permute.xlu0 %8973
    %8975 = vrot.lane.b32.xlu0 %v8861, 104
    %v8976 = vpop.permute.xlu0 %8975
    %8977 = vrot.lane.b32.xlu0 %v8862, 104
    %v8978 = vpop.permute.xlu0 %8977
    %8979 = vrot.lane.b32.xlu0 %v8863, 104
    %v8980 = vpop.permute.xlu0 %8979
    %8981 = vrot.lane.b32.xlu0 %v8864, 104
    %v8982 = vpop.permute.xlu0 %8981
    %8983 = vrot.lane.b32.xlu0 %v8865, 104
    %v8984 = vpop.permute.xlu0 %8983
    %8985 = vrot.lane.b32.xlu0 %v8866, 104
    %v8986 = vpop.permute.xlu0 %8985
    %8987 = vrot.lane.b32.xlu0 %v8867, 104
    %v8988 = vpop.permute.xlu0 %8987
    %8989 = vrot.lane.b32.xlu0 %v8868, 104
    %v8990 = vpop.permute.xlu0 %8989
    %8991 = vrot.lane.b32.xlu0 %v8869, 104
    %v8992 = vpop.permute.xlu0 %8991
    %8993 = vrot.lane.b32.xlu0 %v8870, 104
    %v8994 = vpop.permute.xlu0 %8993
    %8995 = vrot.lane.b32.xlu0 %v8871, 104
    %v8996 = vpop.permute.xlu0 %8995
    %8997 = vrot.lane.b32.xlu0 %v8872, 104
    %v8998 = vpop.permute.xlu0 %8997
    %8999 = vrot.lane.b32.xlu0 %v8873, 104
    %v9000 = vpop.permute.xlu0 %8999
    %9001 = vrot.lane.b32.xlu0 %v8874, 104
    %v9002 = vpop.permute.xlu0 %9001
    %9003 = vrot.lane.b32.xlu0 %v8875, 104
    %v9004 = vpop.permute.xlu0 %9003
    %9005 = vrot.lane.b32.xlu0 %v8876, 104
    %v9006 = vpop.permute.xlu0 %9005
    %9007 = vrot.lane.b32.xlu0 %v8877, 104
    %v9008 = vpop.permute.xlu0 %9007
    %9009 = vrot.lane.b32.xlu0 %v8878, 104
    %v9010 = vpop.permute.xlu0 %9009
    %9011 = vrot.lane.b32.xlu0 %v8879, 104
    %v9012 = vpop.permute.xlu0 %9011
    %9013 = vrot.lane.b32.xlu0 %v8880, 104
    %v9014 = vpop.permute.xlu0 %9013
    %9015 = vrot.lane.b32.xlu0 %v8881, 104
    %v9016 = vpop.permute.xlu0 %9015
    %9017 = vrot.lane.b32.xlu0 %v8882, 104
    %v9018 = vpop.permute.xlu0 %9017
    %9019 = vrot.lane.b32.xlu0 %v8883, 104
    %v9020 = vpop.permute.xlu0 %9019
    %9021 = vrot.lane.b32.xlu0 %v8884, 104
    %v9022 = vpop.permute.xlu0 %9021
    %9023 = vrot.lane.b32.xlu0 %v8885, 104
    %v9024 = vpop.permute.xlu0 %9023
    %9025 = vrot.lane.b32.xlu0 %v8886, 104
    %v9026 = vpop.permute.xlu0 %9025
    %9027 = vrot.lane.b32.xlu0 %v8887, 104
    %v9028 = vpop.permute.xlu0 %9027
    %9029 = vrot.lane.b32.xlu0 %v8888, 104
    %v9030 = vpop.permute.xlu0 %9029
    %9031 = vrot.lane.b32.xlu0 %v8889, 104
    %v9032 = vpop.permute.xlu0 %9031
    %9033 = vrot.lane.b32.xlu0 %v8890, 104
    %v9034 = vpop.permute.xlu0 %9033
    %9035 = vrot.lane.b32.xlu0 %v8891, 104
    %v9036 = vpop.permute.xlu0 %9035
    %9037 = vrot.lane.b32.xlu0 %v8892, 104
    %v9038 = vpop.permute.xlu0 %9037
    %9039 = vrot.lane.b32.xlu0 %v8893, 104
    %v9040 = vpop.permute.xlu0 %9039
    %9041 = vrot.lane.b32.xlu0 %v8894, 104
    %v9042 = vpop.permute.xlu0 %9041
    %9043 = vrot.lane.b32.xlu0 %v8895, 104
    %v9044 = vpop.permute.xlu0 %9043
    %9045 = vrot.lane.b32.xlu0 %v8896, 104
    %v9046 = vpop.permute.xlu0 %9045
    %9047 = vrot.lane.b32.xlu0 %v8897, 104
    %v9048 = vpop.permute.xlu0 %9047
    %9049 = vrot.lane.b32.xlu0 %v8898, 104
    %v9050 = vpop.permute.xlu0 %9049
    %9051 = vrot.lane.b32.xlu0 %v8899, 104
    %v9052 = vpop.permute.xlu0 %9051
    %9053 = vrot.lane.b32.xlu0 %v8900, 104
    %v9054 = vpop.permute.xlu0 %9053
    %9055 = vrot.lane.b32.xlu0 %v8901, 104
    %v9056 = vpop.permute.xlu0 %9055
    %9057 = vrot.lane.b32.xlu0 %v8902, 104
    %v9058 = vpop.permute.xlu0 %9057
    %9059 = vrot.lane.b32.xlu0 %v8903, 104
    %v9060 = vpop.permute.xlu0 %9059
    %9061 = vrot.lane.b32.xlu0 %v8904, 104
    %v9062 = vpop.permute.xlu0 %9061
    %9063 = vrot.lane.b32.xlu0 %v8905, 104
    %v9064 = vpop.permute.xlu0 %9063
    %9065 = vrot.lane.b32.xlu0 %v8906, 104
    %v9066 = vpop.permute.xlu0 %9065
    %9067 = vrot.lane.b32.xlu0 %v8907, 104
    %v9068 = vpop.permute.xlu0 %9067
    %9069 = vrot.lane.b32.xlu0 %v8908, 104
    %v9070 = vpop.permute.xlu0 %9069
    %vm9071 = vcmask 850944
    %v9072 = vsel %vm9071, %v8964, %v8966
    %v9073 = vsel %vm9071, %v8966, %v8968
    %v9074 = vsel %vm9071, %v8968, %v8970
    %v9075 = vsel %vm9071, %v8970, %v8972
    %v9076 = vsel %vm9071, %v8972, %v8974
    %v9077 = vsel %vm9071, %v8974, %v8976
    %v9078 = vsel %vm9071, %v8976, %v8978
    %v9079 = vsel %vm9071, %v8978, %v8980
    %v9080 = vsel %vm9071, %v8982, %v8984
    %v9081 = vsel %vm9071, %v8984, %v8986
    %v9082 = vsel %vm9071, %v8986, %v8988
    %v9083 = vsel %vm9071, %v8988, %v8990
    %v9084 = vsel %vm9071, %v8990, %v8992
    %v9085 = vsel %vm9071, %v8992, %v8994
    %v9086 = vsel %vm9071, %v8994, %v8996
    %v9087 = vsel %vm9071, %v8996, %v8998
    %v9088 = vsel %vm9071, %v9000, %v9002
    %v9089 = vsel %vm9071, %v9002, %v9004
    %v9090 = vsel %vm9071, %v9004, %v9006
    %v9091 = vsel %vm9071, %v9006, %v9008
    %v9092 = vsel %vm9071, %v9008, %v9010
    %v9093 = vsel %vm9071, %v9010, %v9012
    %v9094 = vsel %vm9071, %v9012, %v9014
    %v9095 = vsel %vm9071, %v9014, %v9016
    %v9096 = vsel %vm9071, %v9018, %v9020
    %v9097 = vsel %vm9071, %v9020, %v9022
    %v9098 = vsel %vm9071, %v9022, %v9024
    %v9099 = vsel %vm9071, %v9024, %v9026
    %v9100 = vsel %vm9071, %v9026, %v9028
    %v9101 = vsel %vm9071, %v9028, %v9030
    %v9102 = vsel %vm9071, %v9030, %v9032
    %v9103 = vsel %vm9071, %v9032, %v9034
    %v9104 = vsel %vm9071, %v9036, %v9038
    %v9105 = vsel %vm9071, %v9038, %v9040
    %v9106 = vsel %vm9071, %v9040, %v9042
    %v9107 = vsel %vm9071, %v9042, %v9044
    %v9108 = vsel %vm9071, %v9044, %v9046
    %v9109 = vsel %vm9071, %v9046, %v9048
    %v9110 = vsel %vm9071, %v9048, %v9050
    %v9111 = vsel %vm9071, %v9050, %v9052
    %v9112 = vsel %vm9071, %v9054, %v9056
    %v9113 = vsel %vm9071, %v9056, %v9058
    %v9114 = vsel %vm9071, %v9058, %v9060
    %v9115 = vsel %vm9071, %v9060, %v9062
    %v9116 = vsel %vm9071, %v9062, %v9064
    %v9117 = vsel %vm9071, %v9064, %v9066
    %v9118 = vsel %vm9071, %v9066, %v9068
    %v9119 = vsel %vm9071, %v9068, %v9070
    %v9168 = vadd.f32 %v8795, %v9072
    %v9169 = vadd.f32 %v8796, %v9073
    %v9170 = vadd.f32 %v8797, %v9074
    %v9171 = vadd.f32 %v8798, %v9075
    %v9172 = vadd.f32 %v8799, %v9076
    %v9173 = vadd.f32 %v8800, %v9077
    %v9174 = vadd.f32 %v8801, %v9078
    %v9175 = vadd.f32 %v8802, %v9079
    %v9176 = vadd.f32 %v8803, %v9080
    %v9177 = vadd.f32 %v8804, %v9081
    %v9178 = vadd.f32 %v8805, %v9082
    %v9179 = vadd.f32 %v8806, %v9083
    %v9180 = vadd.f32 %v8807, %v9084
    %v9181 = vadd.f32 %v8808, %v9085
    %v9182 = vadd.f32 %v8809, %v9086
    %v9183 = vadd.f32 %v8810, %v9087
    %v9184 = vadd.f32 %v8811, %v9088
    %v9185 = vadd.f32 %v8812, %v9089
    %v9186 = vadd.f32 %v8813, %v9090
    %v9187 = vadd.f32 %v8814, %v9091
    %v9188 = vadd.f32 %v8815, %v9092
    %v9189 = vadd.f32 %v8816, %v9093
    %v9190 = vadd.f32 %v8817, %v9094
    %v9191 = vadd.f32 %v8818, %v9095
    %v9192 = vadd.f32 %v8819, %v9096
    %v9193 = vadd.f32 %v8820, %v9097
    %v9194 = vadd.f32 %v8821, %v9098
    %v9195 = vadd.f32 %v8822, %v9099
    %v9196 = vadd.f32 %v8823, %v9100
    %v9197 = vadd.f32 %v8824, %v9101
    %v9198 = vadd.f32 %v8825, %v9102
    %v9199 = vadd.f32 %v8826, %v9103
    %v9200 = vadd.f32 %v8827, %v9104
    %v9201 = vadd.f32 %v8828, %v9105
    %v9202 = vadd.f32 %v8829, %v9106
    %v9203 = vadd.f32 %v8830, %v9107
    %v9204 = vadd.f32 %v8831, %v9108
    %v9205 = vadd.f32 %v8832, %v9109
    %v9206 = vadd.f32 %v8833, %v9110
    %v9207 = vadd.f32 %v8834, %v9111
    %v9208 = vadd.f32 %v8835, %v9112
    %v9209 = vadd.f32 %v8836, %v9113
    %v9210 = vadd.f32 %v8837, %v9114
    %v9211 = vadd.f32 %v8838, %v9115
    %v9212 = vadd.f32 %v8839, %v9116
    %v9213 = vadd.f32 %v8840, %v9117
    %v9214 = vadd.f32 %v8841, %v9118
    %v9215 = vadd.f32 %v8842, %v9119
    %9216 = vset.pattern.permute.xlu0 25
    %9217 = vperm.xlu0 %9216, %v30
    %v9218 = vpop.permute.xlu0 %9217
    %9220 = vset.pattern.permute.xlu0 25
    %9221 = vperm.xlu0 %9220, %v31
    %v9222 = vpop.permute.xlu0 %9221
    %9224 = vset.pattern.permute.xlu0 25
    %9225 = vperm.xlu0 %9224, %v32
    %v9226 = vpop.permute.xlu0 %9225
    %v9228 = vmul.f32 %v57, %v9218
    %v9229 = vmul.f32 %v61, %v9218
    %v9230 = vmul.f32 %v65, %v9218
    %v9231 = vmul.f32 %v69, %v9218
    %v9232 = vmul.f32 %v73, %v9218
    %v9233 = vmul.f32 %v77, %v9218
    %v9234 = vmul.f32 %v81, %v9218
    %v9235 = vmul.f32 %v85, %v9218
    %v9236 = vmul.f32 %v257, %v9218
    %v9237 = vmul.f32 %v57, %v9222
    %v9238 = vmul.f32 %v61, %v9222
    %v9239 = vmul.f32 %v65, %v9222
    %v9240 = vmul.f32 %v69, %v9222
    %v9241 = vmul.f32 %v73, %v9222
    %v9242 = vmul.f32 %v77, %v9222
    %v9243 = vmul.f32 %v81, %v9222
    %v9244 = vmul.f32 %v85, %v9222
    %v9245 = vmul.f32 %v257, %v9222
    %v9246 = vmul.f32 %v57, %v9226
    %v9247 = vmul.f32 %v61, %v9226
    %v9248 = vmul.f32 %v65, %v9226
    %v9249 = vmul.f32 %v69, %v9226
    %v9250 = vmul.f32 %v73, %v9226
    %v9251 = vmul.f32 %v77, %v9226
    %v9252 = vmul.f32 %v81, %v9226
    %v9253 = vmul.f32 %v85, %v9226
    %v9254 = vmul.f32 %v257, %v9226
    %v9255 = vmul.f32 %v89, %v9218
    %v9256 = vmul.f32 %v93, %v9218
    %v9257 = vmul.f32 %v97, %v9218
    %v9258 = vmul.f32 %v101, %v9218
    %v9259 = vmul.f32 %v105, %v9218
    %v9260 = vmul.f32 %v109, %v9218
    %v9261 = vmul.f32 %v113, %v9218
    %v9262 = vmul.f32 %v117, %v9218
    %v9263 = vmul.f32 %v261, %v9218
    %v9264 = vmul.f32 %v89, %v9222
    %v9265 = vmul.f32 %v93, %v9222
    %v9266 = vmul.f32 %v97, %v9222
    %v9267 = vmul.f32 %v101, %v9222
    %v9268 = vmul.f32 %v105, %v9222
    %v9269 = vmul.f32 %v109, %v9222
    %v9270 = vmul.f32 %v113, %v9222
    %v9271 = vmul.f32 %v117, %v9222
    %v9272 = vmul.f32 %v261, %v9222
    %v9273 = vmul.f32 %v89, %v9226
    %v9274 = vmul.f32 %v93, %v9226
    %v9275 = vmul.f32 %v97, %v9226
    %v9276 = vmul.f32 %v101, %v9226
    %v9277 = vmul.f32 %v105, %v9226
    %v9278 = vmul.f32 %v109, %v9226
    %v9279 = vmul.f32 %v113, %v9226
    %v9280 = vmul.f32 %v117, %v9226
    %v9281 = vmul.f32 %v261, %v9226
    %9336 = vrot.lane.b32.xlu0 %v9228, 103
    %v9337 = vpop.permute.xlu0 %9336
    %9338 = vrot.lane.b32.xlu0 %v9229, 103
    %v9339 = vpop.permute.xlu0 %9338
    %9340 = vrot.lane.b32.xlu0 %v9230, 103
    %v9341 = vpop.permute.xlu0 %9340
    %9342 = vrot.lane.b32.xlu0 %v9231, 103
    %v9343 = vpop.permute.xlu0 %9342
    %9344 = vrot.lane.b32.xlu0 %v9232, 103
    %v9345 = vpop.permute.xlu0 %9344
    %9346 = vrot.lane.b32.xlu0 %v9233, 103
    %v9347 = vpop.permute.xlu0 %9346
    %9348 = vrot.lane.b32.xlu0 %v9234, 103
    %v9349 = vpop.permute.xlu0 %9348
    %9350 = vrot.lane.b32.xlu0 %v9235, 103
    %v9351 = vpop.permute.xlu0 %9350
    %9352 = vrot.lane.b32.xlu0 %v9236, 103
    %v9353 = vpop.permute.xlu0 %9352
    %9354 = vrot.lane.b32.xlu0 %v9237, 103
    %v9355 = vpop.permute.xlu0 %9354
    %9356 = vrot.lane.b32.xlu0 %v9238, 103
    %v9357 = vpop.permute.xlu0 %9356
    %9358 = vrot.lane.b32.xlu0 %v9239, 103
    %v9359 = vpop.permute.xlu0 %9358
    %9360 = vrot.lane.b32.xlu0 %v9240, 103
    %v9361 = vpop.permute.xlu0 %9360
    %9362 = vrot.lane.b32.xlu0 %v9241, 103
    %v9363 = vpop.permute.xlu0 %9362
    %9364 = vrot.lane.b32.xlu0 %v9242, 103
    %v9365 = vpop.permute.xlu0 %9364
    %9366 = vrot.lane.b32.xlu0 %v9243, 103
    %v9367 = vpop.permute.xlu0 %9366
    %9368 = vrot.lane.b32.xlu0 %v9244, 103
    %v9369 = vpop.permute.xlu0 %9368
    %9370 = vrot.lane.b32.xlu0 %v9245, 103
    %v9371 = vpop.permute.xlu0 %9370
    %9372 = vrot.lane.b32.xlu0 %v9246, 103
    %v9373 = vpop.permute.xlu0 %9372
    %9374 = vrot.lane.b32.xlu0 %v9247, 103
    %v9375 = vpop.permute.xlu0 %9374
    %9376 = vrot.lane.b32.xlu0 %v9248, 103
    %v9377 = vpop.permute.xlu0 %9376
    %9378 = vrot.lane.b32.xlu0 %v9249, 103
    %v9379 = vpop.permute.xlu0 %9378
    %9380 = vrot.lane.b32.xlu0 %v9250, 103
    %v9381 = vpop.permute.xlu0 %9380
    %9382 = vrot.lane.b32.xlu0 %v9251, 103
    %v9383 = vpop.permute.xlu0 %9382
    %9384 = vrot.lane.b32.xlu0 %v9252, 103
    %v9385 = vpop.permute.xlu0 %9384
    %9386 = vrot.lane.b32.xlu0 %v9253, 103
    %v9387 = vpop.permute.xlu0 %9386
    %9388 = vrot.lane.b32.xlu0 %v9254, 103
    %v9389 = vpop.permute.xlu0 %9388
    %9390 = vrot.lane.b32.xlu0 %v9255, 103
    %v9391 = vpop.permute.xlu0 %9390
    %9392 = vrot.lane.b32.xlu0 %v9256, 103
    %v9393 = vpop.permute.xlu0 %9392
    %9394 = vrot.lane.b32.xlu0 %v9257, 103
    %v9395 = vpop.permute.xlu0 %9394
    %9396 = vrot.lane.b32.xlu0 %v9258, 103
    %v9397 = vpop.permute.xlu0 %9396
    %9398 = vrot.lane.b32.xlu0 %v9259, 103
    %v9399 = vpop.permute.xlu0 %9398
    %9400 = vrot.lane.b32.xlu0 %v9260, 103
    %v9401 = vpop.permute.xlu0 %9400
    %9402 = vrot.lane.b32.xlu0 %v9261, 103
    %v9403 = vpop.permute.xlu0 %9402
    %9404 = vrot.lane.b32.xlu0 %v9262, 103
    %v9405 = vpop.permute.xlu0 %9404
    %9406 = vrot.lane.b32.xlu0 %v9263, 103
    %v9407 = vpop.permute.xlu0 %9406
    %9408 = vrot.lane.b32.xlu0 %v9264, 103
    %v9409 = vpop.permute.xlu0 %9408
    %9410 = vrot.lane.b32.xlu0 %v9265, 103
    %v9411 = vpop.permute.xlu0 %9410
    %9412 = vrot.lane.b32.xlu0 %v9266, 103
    %v9413 = vpop.permute.xlu0 %9412
    %9414 = vrot.lane.b32.xlu0 %v9267, 103
    %v9415 = vpop.permute.xlu0 %9414
    %9416 = vrot.lane.b32.xlu0 %v9268, 103
    %v9417 = vpop.permute.xlu0 %9416
    %9418 = vrot.lane.b32.xlu0 %v9269, 103
    %v9419 = vpop.permute.xlu0 %9418
    %9420 = vrot.lane.b32.xlu0 %v9270, 103
    %v9421 = vpop.permute.xlu0 %9420
    %9422 = vrot.lane.b32.xlu0 %v9271, 103
    %v9423 = vpop.permute.xlu0 %9422
    %9424 = vrot.lane.b32.xlu0 %v9272, 103
    %v9425 = vpop.permute.xlu0 %9424
    %9426 = vrot.lane.b32.xlu0 %v9273, 103
    %v9427 = vpop.permute.xlu0 %9426
    %9428 = vrot.lane.b32.xlu0 %v9274, 103
    %v9429 = vpop.permute.xlu0 %9428
    %9430 = vrot.lane.b32.xlu0 %v9275, 103
    %v9431 = vpop.permute.xlu0 %9430
    %9432 = vrot.lane.b32.xlu0 %v9276, 103
    %v9433 = vpop.permute.xlu0 %9432
    %9434 = vrot.lane.b32.xlu0 %v9277, 103
    %v9435 = vpop.permute.xlu0 %9434
    %9436 = vrot.lane.b32.xlu0 %v9278, 103
    %v9437 = vpop.permute.xlu0 %9436
    %9438 = vrot.lane.b32.xlu0 %v9279, 103
    %v9439 = vpop.permute.xlu0 %9438
    %9440 = vrot.lane.b32.xlu0 %v9280, 103
    %v9441 = vpop.permute.xlu0 %9440
    %9442 = vrot.lane.b32.xlu0 %v9281, 103
    %v9443 = vpop.permute.xlu0 %9442
    %vm9444 = vcmask 842752
    %v9445 = vsel %vm9444, %v9337, %v9339
    %v9446 = vsel %vm9444, %v9339, %v9341
    %v9447 = vsel %vm9444, %v9341, %v9343
    %v9448 = vsel %vm9444, %v9343, %v9345
    %v9449 = vsel %vm9444, %v9345, %v9347
    %v9450 = vsel %vm9444, %v9347, %v9349
    %v9451 = vsel %vm9444, %v9349, %v9351
    %v9452 = vsel %vm9444, %v9351, %v9353
    %v9453 = vsel %vm9444, %v9355, %v9357
    %v9454 = vsel %vm9444, %v9357, %v9359
    %v9455 = vsel %vm9444, %v9359, %v9361
    %v9456 = vsel %vm9444, %v9361, %v9363
    %v9457 = vsel %vm9444, %v9363, %v9365
    %v9458 = vsel %vm9444, %v9365, %v9367
    %v9459 = vsel %vm9444, %v9367, %v9369
    %v9460 = vsel %vm9444, %v9369, %v9371
    %v9461 = vsel %vm9444, %v9373, %v9375
    %v9462 = vsel %vm9444, %v9375, %v9377
    %v9463 = vsel %vm9444, %v9377, %v9379
    %v9464 = vsel %vm9444, %v9379, %v9381
    %v9465 = vsel %vm9444, %v9381, %v9383
    %v9466 = vsel %vm9444, %v9383, %v9385
    %v9467 = vsel %vm9444, %v9385, %v9387
    %v9468 = vsel %vm9444, %v9387, %v9389
    %v9469 = vsel %vm9444, %v9391, %v9393
    %v9470 = vsel %vm9444, %v9393, %v9395
    %v9471 = vsel %vm9444, %v9395, %v9397
    %v9472 = vsel %vm9444, %v9397, %v9399
    %v9473 = vsel %vm9444, %v9399, %v9401
    %v9474 = vsel %vm9444, %v9401, %v9403
    %v9475 = vsel %vm9444, %v9403, %v9405
    %v9476 = vsel %vm9444, %v9405, %v9407
    %v9477 = vsel %vm9444, %v9409, %v9411
    %v9478 = vsel %vm9444, %v9411, %v9413
    %v9479 = vsel %vm9444, %v9413, %v9415
    %v9480 = vsel %vm9444, %v9415, %v9417
    %v9481 = vsel %vm9444, %v9417, %v9419
    %v9482 = vsel %vm9444, %v9419, %v9421
    %v9483 = vsel %vm9444, %v9421, %v9423
    %v9484 = vsel %vm9444, %v9423, %v9425
    %v9485 = vsel %vm9444, %v9427, %v9429
    %v9486 = vsel %vm9444, %v9429, %v9431
    %v9487 = vsel %vm9444, %v9431, %v9433
    %v9488 = vsel %vm9444, %v9433, %v9435
    %v9489 = vsel %vm9444, %v9435, %v9437
    %v9490 = vsel %vm9444, %v9437, %v9439
    %v9491 = vsel %vm9444, %v9439, %v9441
    %v9492 = vsel %vm9444, %v9441, %v9443
    %v9541 = vadd.f32 %v9168, %v9445
    %v9542 = vadd.f32 %v9169, %v9446
    %v9543 = vadd.f32 %v9170, %v9447
    %v9544 = vadd.f32 %v9171, %v9448
    %v9545 = vadd.f32 %v9172, %v9449
    %v9546 = vadd.f32 %v9173, %v9450
    %v9547 = vadd.f32 %v9174, %v9451
    %v9548 = vadd.f32 %v9175, %v9452
    %v9549 = vadd.f32 %v9176, %v9453
    %v9550 = vadd.f32 %v9177, %v9454
    %v9551 = vadd.f32 %v9178, %v9455
    %v9552 = vadd.f32 %v9179, %v9456
    %v9553 = vadd.f32 %v9180, %v9457
    %v9554 = vadd.f32 %v9181, %v9458
    %v9555 = vadd.f32 %v9182, %v9459
    %v9556 = vadd.f32 %v9183, %v9460
    %v9557 = vadd.f32 %v9184, %v9461
    %v9558 = vadd.f32 %v9185, %v9462
    %v9559 = vadd.f32 %v9186, %v9463
    %v9560 = vadd.f32 %v9187, %v9464
    %v9561 = vadd.f32 %v9188, %v9465
    %v9562 = vadd.f32 %v9189, %v9466
    %v9563 = vadd.f32 %v9190, %v9467
    %v9564 = vadd.f32 %v9191, %v9468
    %v9565 = vadd.f32 %v9192, %v9469
    %v9566 = vadd.f32 %v9193, %v9470
    %v9567 = vadd.f32 %v9194, %v9471
    %v9568 = vadd.f32 %v9195, %v9472
    %v9569 = vadd.f32 %v9196, %v9473
    %v9570 = vadd.f32 %v9197, %v9474
    %v9571 = vadd.f32 %v9198, %v9475
    %v9572 = vadd.f32 %v9199, %v9476
    %v9573 = vadd.f32 %v9200, %v9477
    %v9574 = vadd.f32 %v9201, %v9478
    %v9575 = vadd.f32 %v9202, %v9479
    %v9576 = vadd.f32 %v9203, %v9480
    %v9577 = vadd.f32 %v9204, %v9481
    %v9578 = vadd.f32 %v9205, %v9482
    %v9579 = vadd.f32 %v9206, %v9483
    %v9580 = vadd.f32 %v9207, %v9484
    %v9581 = vadd.f32 %v9208, %v9485
    %v9582 = vadd.f32 %v9209, %v9486
    %v9583 = vadd.f32 %v9210, %v9487
    %v9584 = vadd.f32 %v9211, %v9488
    %v9585 = vadd.f32 %v9212, %v9489
    %v9586 = vadd.f32 %v9213, %v9490
    %v9587 = vadd.f32 %v9214, %v9491
    %v9588 = vadd.f32 %v9215, %v9492
    %9589 = vset.pattern.permute.xlu0 26
    %9590 = vperm.xlu0 %9589, %v30
    %v9591 = vpop.permute.xlu0 %9590
    %9593 = vset.pattern.permute.xlu0 26
    %9594 = vperm.xlu0 %9593, %v31
    %v9595 = vpop.permute.xlu0 %9594
    %9597 = vset.pattern.permute.xlu0 26
    %9598 = vperm.xlu0 %9597, %v32
    %v9599 = vpop.permute.xlu0 %9598
    %v9601 = vmul.f32 %v57, %v9591
    %v9602 = vmul.f32 %v61, %v9591
    %v9603 = vmul.f32 %v65, %v9591
    %v9604 = vmul.f32 %v69, %v9591
    %v9605 = vmul.f32 %v73, %v9591
    %v9606 = vmul.f32 %v77, %v9591
    %v9607 = vmul.f32 %v81, %v9591
    %v9608 = vmul.f32 %v85, %v9591
    %v9609 = vmul.f32 %v257, %v9591
    %v9610 = vmul.f32 %v57, %v9595
    %v9611 = vmul.f32 %v61, %v9595
    %v9612 = vmul.f32 %v65, %v9595
    %v9613 = vmul.f32 %v69, %v9595
    %v9614 = vmul.f32 %v73, %v9595
    %v9615 = vmul.f32 %v77, %v9595
    %v9616 = vmul.f32 %v81, %v9595
    %v9617 = vmul.f32 %v85, %v9595
    %v9618 = vmul.f32 %v257, %v9595
    %v9619 = vmul.f32 %v57, %v9599
    %v9620 = vmul.f32 %v61, %v9599
    %v9621 = vmul.f32 %v65, %v9599
    %v9622 = vmul.f32 %v69, %v9599
    %v9623 = vmul.f32 %v73, %v9599
    %v9624 = vmul.f32 %v77, %v9599
    %v9625 = vmul.f32 %v81, %v9599
    %v9626 = vmul.f32 %v85, %v9599
    %v9627 = vmul.f32 %v257, %v9599
    %v9628 = vmul.f32 %v89, %v9591
    %v9629 = vmul.f32 %v93, %v9591
    %v9630 = vmul.f32 %v97, %v9591
    %v9631 = vmul.f32 %v101, %v9591
    %v9632 = vmul.f32 %v105, %v9591
    %v9633 = vmul.f32 %v109, %v9591
    %v9634 = vmul.f32 %v113, %v9591
    %v9635 = vmul.f32 %v117, %v9591
    %v9636 = vmul.f32 %v261, %v9591
    %v9637 = vmul.f32 %v89, %v9595
    %v9638 = vmul.f32 %v93, %v9595
    %v9639 = vmul.f32 %v97, %v9595
    %v9640 = vmul.f32 %v101, %v9595
    %v9641 = vmul.f32 %v105, %v9595
    %v9642 = vmul.f32 %v109, %v9595
    %v9643 = vmul.f32 %v113, %v9595
    %v9644 = vmul.f32 %v117, %v9595
    %v9645 = vmul.f32 %v261, %v9595
    %v9646 = vmul.f32 %v89, %v9599
    %v9647 = vmul.f32 %v93, %v9599
    %v9648 = vmul.f32 %v97, %v9599
    %v9649 = vmul.f32 %v101, %v9599
    %v9650 = vmul.f32 %v105, %v9599
    %v9651 = vmul.f32 %v109, %v9599
    %v9652 = vmul.f32 %v113, %v9599
    %v9653 = vmul.f32 %v117, %v9599
    %v9654 = vmul.f32 %v261, %v9599
    %9709 = vrot.lane.b32.xlu0 %v9601, 102
    %v9710 = vpop.permute.xlu0 %9709
    %9711 = vrot.lane.b32.xlu0 %v9602, 102
    %v9712 = vpop.permute.xlu0 %9711
    %9713 = vrot.lane.b32.xlu0 %v9603, 102
    %v9714 = vpop.permute.xlu0 %9713
    %9715 = vrot.lane.b32.xlu0 %v9604, 102
    %v9716 = vpop.permute.xlu0 %9715
    %9717 = vrot.lane.b32.xlu0 %v9605, 102
    %v9718 = vpop.permute.xlu0 %9717
    %9719 = vrot.lane.b32.xlu0 %v9606, 102
    %v9720 = vpop.permute.xlu0 %9719
    %9721 = vrot.lane.b32.xlu0 %v9607, 102
    %v9722 = vpop.permute.xlu0 %9721
    %9723 = vrot.lane.b32.xlu0 %v9608, 102
    %v9724 = vpop.permute.xlu0 %9723
    %9725 = vrot.lane.b32.xlu0 %v9609, 102
    %v9726 = vpop.permute.xlu0 %9725
    %9727 = vrot.lane.b32.xlu0 %v9610, 102
    %v9728 = vpop.permute.xlu0 %9727
    %9729 = vrot.lane.b32.xlu0 %v9611, 102
    %v9730 = vpop.permute.xlu0 %9729
    %9731 = vrot.lane.b32.xlu0 %v9612, 102
    %v9732 = vpop.permute.xlu0 %9731
    %9733 = vrot.lane.b32.xlu0 %v9613, 102
    %v9734 = vpop.permute.xlu0 %9733
    %9735 = vrot.lane.b32.xlu0 %v9614, 102
    %v9736 = vpop.permute.xlu0 %9735
    %9737 = vrot.lane.b32.xlu0 %v9615, 102
    %v9738 = vpop.permute.xlu0 %9737
    %9739 = vrot.lane.b32.xlu0 %v9616, 102
    %v9740 = vpop.permute.xlu0 %9739
    %9741 = vrot.lane.b32.xlu0 %v9617, 102
    %v9742 = vpop.permute.xlu0 %9741
    %9743 = vrot.lane.b32.xlu0 %v9618, 102
    %v9744 = vpop.permute.xlu0 %9743
    %9745 = vrot.lane.b32.xlu0 %v9619, 102
    %v9746 = vpop.permute.xlu0 %9745
    %9747 = vrot.lane.b32.xlu0 %v9620, 102
    %v9748 = vpop.permute.xlu0 %9747
    %9749 = vrot.lane.b32.xlu0 %v9621, 102
    %v9750 = vpop.permute.xlu0 %9749
    %9751 = vrot.lane.b32.xlu0 %v9622, 102
    %v9752 = vpop.permute.xlu0 %9751
    %9753 = vrot.lane.b32.xlu0 %v9623, 102
    %v9754 = vpop.permute.xlu0 %9753
    %9755 = vrot.lane.b32.xlu0 %v9624, 102
    %v9756 = vpop.permute.xlu0 %9755
    %9757 = vrot.lane.b32.xlu0 %v9625, 102
    %v9758 = vpop.permute.xlu0 %9757
    %9759 = vrot.lane.b32.xlu0 %v9626, 102
    %v9760 = vpop.permute.xlu0 %9759
    %9761 = vrot.lane.b32.xlu0 %v9627, 102
    %v9762 = vpop.permute.xlu0 %9761
    %9763 = vrot.lane.b32.xlu0 %v9628, 102
    %v9764 = vpop.permute.xlu0 %9763
    %9765 = vrot.lane.b32.xlu0 %v9629, 102
    %v9766 = vpop.permute.xlu0 %9765
    %9767 = vrot.lane.b32.xlu0 %v9630, 102
    %v9768 = vpop.permute.xlu0 %9767
    %9769 = vrot.lane.b32.xlu0 %v9631, 102
    %v9770 = vpop.permute.xlu0 %9769
    %9771 = vrot.lane.b32.xlu0 %v9632, 102
    %v9772 = vpop.permute.xlu0 %9771
    %9773 = vrot.lane.b32.xlu0 %v9633, 102
    %v9774 = vpop.permute.xlu0 %9773
    %9775 = vrot.lane.b32.xlu0 %v9634, 102
    %v9776 = vpop.permute.xlu0 %9775
    %9777 = vrot.lane.b32.xlu0 %v9635, 102
    %v9778 = vpop.permute.xlu0 %9777
    %9779 = vrot.lane.b32.xlu0 %v9636, 102
    %v9780 = vpop.permute.xlu0 %9779
    %9781 = vrot.lane.b32.xlu0 %v9637, 102
    %v9782 = vpop.permute.xlu0 %9781
    %9783 = vrot.lane.b32.xlu0 %v9638, 102
    %v9784 = vpop.permute.xlu0 %9783
    %9785 = vrot.lane.b32.xlu0 %v9639, 102
    %v9786 = vpop.permute.xlu0 %9785
    %9787 = vrot.lane.b32.xlu0 %v9640, 102
    %v9788 = vpop.permute.xlu0 %9787
    %9789 = vrot.lane.b32.xlu0 %v9641, 102
    %v9790 = vpop.permute.xlu0 %9789
    %9791 = vrot.lane.b32.xlu0 %v9642, 102
    %v9792 = vpop.permute.xlu0 %9791
    %9793 = vrot.lane.b32.xlu0 %v9643, 102
    %v9794 = vpop.permute.xlu0 %9793
    %9795 = vrot.lane.b32.xlu0 %v9644, 102
    %v9796 = vpop.permute.xlu0 %9795
    %9797 = vrot.lane.b32.xlu0 %v9645, 102
    %v9798 = vpop.permute.xlu0 %9797
    %9799 = vrot.lane.b32.xlu0 %v9646, 102
    %v9800 = vpop.permute.xlu0 %9799
    %9801 = vrot.lane.b32.xlu0 %v9647, 102
    %v9802 = vpop.permute.xlu0 %9801
    %9803 = vrot.lane.b32.xlu0 %v9648, 102
    %v9804 = vpop.permute.xlu0 %9803
    %9805 = vrot.lane.b32.xlu0 %v9649, 102
    %v9806 = vpop.permute.xlu0 %9805
    %9807 = vrot.lane.b32.xlu0 %v9650, 102
    %v9808 = vpop.permute.xlu0 %9807
    %9809 = vrot.lane.b32.xlu0 %v9651, 102
    %v9810 = vpop.permute.xlu0 %9809
    %9811 = vrot.lane.b32.xlu0 %v9652, 102
    %v9812 = vpop.permute.xlu0 %9811
    %9813 = vrot.lane.b32.xlu0 %v9653, 102
    %v9814 = vpop.permute.xlu0 %9813
    %9815 = vrot.lane.b32.xlu0 %v9654, 102
    %v9816 = vpop.permute.xlu0 %9815
    %vm9817 = vcmask 834560
    %v9818 = vsel %vm9817, %v9710, %v9712
    %v9819 = vsel %vm9817, %v9712, %v9714
    %v9820 = vsel %vm9817, %v9714, %v9716
    %v9821 = vsel %vm9817, %v9716, %v9718
    %v9822 = vsel %vm9817, %v9718, %v9720
    %v9823 = vsel %vm9817, %v9720, %v9722
    %v9824 = vsel %vm9817, %v9722, %v9724
    %v9825 = vsel %vm9817, %v9724, %v9726
    %v9826 = vsel %vm9817, %v9728, %v9730
    %v9827 = vsel %vm9817, %v9730, %v9732
    %v9828 = vsel %vm9817, %v9732, %v9734
    %v9829 = vsel %vm9817, %v9734, %v9736
    %v9830 = vsel %vm9817, %v9736, %v9738
    %v9831 = vsel %vm9817, %v9738, %v9740
    %v9832 = vsel %vm9817, %v9740, %v9742
    %v9833 = vsel %vm9817, %v9742, %v9744
    %v9834 = vsel %vm9817, %v9746, %v9748
    %v9835 = vsel %vm9817, %v9748, %v9750
    %v9836 = vsel %vm9817, %v9750, %v9752
    %v9837 = vsel %vm9817, %v9752, %v9754
    %v9838 = vsel %vm9817, %v9754, %v9756
    %v9839 = vsel %vm9817, %v9756, %v9758
    %v9840 = vsel %vm9817, %v9758, %v9760
    %v9841 = vsel %vm9817, %v9760, %v9762
    %v9842 = vsel %vm9817, %v9764, %v9766
    %v9843 = vsel %vm9817, %v9766, %v9768
    %v9844 = vsel %vm9817, %v9768, %v9770
    %v9845 = vsel %vm9817, %v9770, %v9772
    %v9846 = vsel %vm9817, %v9772, %v9774
    %v9847 = vsel %vm9817, %v9774, %v9776
    %v9848 = vsel %vm9817, %v9776, %v9778
    %v9849 = vsel %vm9817, %v9778, %v9780
    %v9850 = vsel %vm9817, %v9782, %v9784
    %v9851 = vsel %vm9817, %v9784, %v9786
    %v9852 = vsel %vm9817, %v9786, %v9788
    %v9853 = vsel %vm9817, %v9788, %v9790
    %v9854 = vsel %vm9817, %v9790, %v9792
    %v9855 = vsel %vm9817, %v9792, %v9794
    %v9856 = vsel %vm9817, %v9794, %v9796
    %v9857 = vsel %vm9817, %v9796, %v9798
    %v9858 = vsel %vm9817, %v9800, %v9802
    %v9859 = vsel %vm9817, %v9802, %v9804
    %v9860 = vsel %vm9817, %v9804, %v9806
    %v9861 = vsel %vm9817, %v9806, %v9808
    %v9862 = vsel %vm9817, %v9808, %v9810
    %v9863 = vsel %vm9817, %v9810, %v9812
    %v9864 = vsel %vm9817, %v9812, %v9814
    %v9865 = vsel %vm9817, %v9814, %v9816
    %v9914 = vadd.f32 %v9541, %v9818
    %v9915 = vadd.f32 %v9542, %v9819
    %v9916 = vadd.f32 %v9543, %v9820
    %v9917 = vadd.f32 %v9544, %v9821
    %v9918 = vadd.f32 %v9545, %v9822
    %v9919 = vadd.f32 %v9546, %v9823
    %v9920 = vadd.f32 %v9547, %v9824
    %v9921 = vadd.f32 %v9548, %v9825
    %v9922 = vadd.f32 %v9549, %v9826
    %v9923 = vadd.f32 %v9550, %v9827
    %v9924 = vadd.f32 %v9551, %v9828
    %v9925 = vadd.f32 %v9552, %v9829
    %v9926 = vadd.f32 %v9553, %v9830
    %v9927 = vadd.f32 %v9554, %v9831
    %v9928 = vadd.f32 %v9555, %v9832
    %v9929 = vadd.f32 %v9556, %v9833
    %v9930 = vadd.f32 %v9557, %v9834
    %v9931 = vadd.f32 %v9558, %v9835
    %v9932 = vadd.f32 %v9559, %v9836
    %v9933 = vadd.f32 %v9560, %v9837
    %v9934 = vadd.f32 %v9561, %v9838
    %v9935 = vadd.f32 %v9562, %v9839
    %v9936 = vadd.f32 %v9563, %v9840
    %v9937 = vadd.f32 %v9564, %v9841
    %v9938 = vadd.f32 %v9565, %v9842
    %v9939 = vadd.f32 %v9566, %v9843
    %v9940 = vadd.f32 %v9567, %v9844
    %v9941 = vadd.f32 %v9568, %v9845
    %v9942 = vadd.f32 %v9569, %v9846
    %v9943 = vadd.f32 %v9570, %v9847
    %v9944 = vadd.f32 %v9571, %v9848
    %v9945 = vadd.f32 %v9572, %v9849
    %v9946 = vadd.f32 %v9573, %v9850
    %v9947 = vadd.f32 %v9574, %v9851
    %v9948 = vadd.f32 %v9575, %v9852
    %v9949 = vadd.f32 %v9576, %v9853
    %v9950 = vadd.f32 %v9577, %v9854
    %v9951 = vadd.f32 %v9578, %v9855
    %v9952 = vadd.f32 %v9579, %v9856
    %v9953 = vadd.f32 %v9580, %v9857
    %v9954 = vadd.f32 %v9581, %v9858
    %v9955 = vadd.f32 %v9582, %v9859
    %v9956 = vadd.f32 %v9583, %v9860
    %v9957 = vadd.f32 %v9584, %v9861
    %v9958 = vadd.f32 %v9585, %v9862
    %v9959 = vadd.f32 %v9586, %v9863
    %v9960 = vadd.f32 %v9587, %v9864
    %v9961 = vadd.f32 %v9588, %v9865
    %9962 = vset.pattern.permute.xlu0 27
    %9963 = vperm.xlu0 %9962, %v30
    %v9964 = vpop.permute.xlu0 %9963
    %9966 = vset.pattern.permute.xlu0 27
    %9967 = vperm.xlu0 %9966, %v31
    %v9968 = vpop.permute.xlu0 %9967
    %9970 = vset.pattern.permute.xlu0 27
    %9971 = vperm.xlu0 %9970, %v32
    %v9972 = vpop.permute.xlu0 %9971
    %v9974 = vmul.f32 %v57, %v9964
    %v9975 = vmul.f32 %v61, %v9964
    %v9976 = vmul.f32 %v65, %v9964
    %v9977 = vmul.f32 %v69, %v9964
    %v9978 = vmul.f32 %v73, %v9964
    %v9979 = vmul.f32 %v77, %v9964
    %v9980 = vmul.f32 %v81, %v9964
    %v9981 = vmul.f32 %v85, %v9964
    %v9982 = vmul.f32 %v257, %v9964
    %v9983 = vmul.f32 %v57, %v9968
    %v9984 = vmul.f32 %v61, %v9968
    %v9985 = vmul.f32 %v65, %v9968
    %v9986 = vmul.f32 %v69, %v9968
    %v9987 = vmul.f32 %v73, %v9968
    %v9988 = vmul.f32 %v77, %v9968
    %v9989 = vmul.f32 %v81, %v9968
    %v9990 = vmul.f32 %v85, %v9968
    %v9991 = vmul.f32 %v257, %v9968
    %v9992 = vmul.f32 %v57, %v9972
    %v9993 = vmul.f32 %v61, %v9972
    %v9994 = vmul.f32 %v65, %v9972
    %v9995 = vmul.f32 %v69, %v9972
    %v9996 = vmul.f32 %v73, %v9972
    %v9997 = vmul.f32 %v77, %v9972
    %v9998 = vmul.f32 %v81, %v9972
    %v9999 = vmul.f32 %v85, %v9972
    %v10000 = vmul.f32 %v257, %v9972
    %v10001 = vmul.f32 %v89, %v9964
    %v10002 = vmul.f32 %v93, %v9964
    %v10003 = vmul.f32 %v97, %v9964
    %v10004 = vmul.f32 %v101, %v9964
    %v10005 = vmul.f32 %v105, %v9964
    %v10006 = vmul.f32 %v109, %v9964
    %v10007 = vmul.f32 %v113, %v9964
    %v10008 = vmul.f32 %v117, %v9964
    %v10009 = vmul.f32 %v261, %v9964
    %v10010 = vmul.f32 %v89, %v9968
    %v10011 = vmul.f32 %v93, %v9968
    %v10012 = vmul.f32 %v97, %v9968
    %v10013 = vmul.f32 %v101, %v9968
    %v10014 = vmul.f32 %v105, %v9968
    %v10015 = vmul.f32 %v109, %v9968
    %v10016 = vmul.f32 %v113, %v9968
    %v10017 = vmul.f32 %v117, %v9968
    %v10018 = vmul.f32 %v261, %v9968
    %v10019 = vmul.f32 %v89, %v9972
    %v10020 = vmul.f32 %v93, %v9972
    %v10021 = vmul.f32 %v97, %v9972
    %v10022 = vmul.f32 %v101, %v9972
    %v10023 = vmul.f32 %v105, %v9972
    %v10024 = vmul.f32 %v109, %v9972
    %v10025 = vmul.f32 %v113, %v9972
    %v10026 = vmul.f32 %v117, %v9972
    %v10027 = vmul.f32 %v261, %v9972
    %10082 = vrot.lane.b32.xlu0 %v9974, 101
    %v10083 = vpop.permute.xlu0 %10082
    %10084 = vrot.lane.b32.xlu0 %v9975, 101
    %v10085 = vpop.permute.xlu0 %10084
    %10086 = vrot.lane.b32.xlu0 %v9976, 101
    %v10087 = vpop.permute.xlu0 %10086
    %10088 = vrot.lane.b32.xlu0 %v9977, 101
    %v10089 = vpop.permute.xlu0 %10088
    %10090 = vrot.lane.b32.xlu0 %v9978, 101
    %v10091 = vpop.permute.xlu0 %10090
    %10092 = vrot.lane.b32.xlu0 %v9979, 101
    %v10093 = vpop.permute.xlu0 %10092
    %10094 = vrot.lane.b32.xlu0 %v9980, 101
    %v10095 = vpop.permute.xlu0 %10094
    %10096 = vrot.lane.b32.xlu0 %v9981, 101
    %v10097 = vpop.permute.xlu0 %10096
    %10098 = vrot.lane.b32.xlu0 %v9982, 101
    %v10099 = vpop.permute.xlu0 %10098
    %10100 = vrot.lane.b32.xlu0 %v9983, 101
    %v10101 = vpop.permute.xlu0 %10100
    %10102 = vrot.lane.b32.xlu0 %v9984, 101
    %v10103 = vpop.permute.xlu0 %10102
    %10104 = vrot.lane.b32.xlu0 %v9985, 101
    %v10105 = vpop.permute.xlu0 %10104
    %10106 = vrot.lane.b32.xlu0 %v9986, 101
    %v10107 = vpop.permute.xlu0 %10106
    %10108 = vrot.lane.b32.xlu0 %v9987, 101
    %v10109 = vpop.permute.xlu0 %10108
    %10110 = vrot.lane.b32.xlu0 %v9988, 101
    %v10111 = vpop.permute.xlu0 %10110
    %10112 = vrot.lane.b32.xlu0 %v9989, 101
    %v10113 = vpop.permute.xlu0 %10112
    %10114 = vrot.lane.b32.xlu0 %v9990, 101
    %v10115 = vpop.permute.xlu0 %10114
    %10116 = vrot.lane.b32.xlu0 %v9991, 101
    %v10117 = vpop.permute.xlu0 %10116
    %10118 = vrot.lane.b32.xlu0 %v9992, 101
    %v10119 = vpop.permute.xlu0 %10118
    %10120 = vrot.lane.b32.xlu0 %v9993, 101
    %v10121 = vpop.permute.xlu0 %10120
    %10122 = vrot.lane.b32.xlu0 %v9994, 101
    %v10123 = vpop.permute.xlu0 %10122
    %10124 = vrot.lane.b32.xlu0 %v9995, 101
    %v10125 = vpop.permute.xlu0 %10124
    %10126 = vrot.lane.b32.xlu0 %v9996, 101
    %v10127 = vpop.permute.xlu0 %10126
    %10128 = vrot.lane.b32.xlu0 %v9997, 101
    %v10129 = vpop.permute.xlu0 %10128
    %10130 = vrot.lane.b32.xlu0 %v9998, 101
    %v10131 = vpop.permute.xlu0 %10130
    %10132 = vrot.lane.b32.xlu0 %v9999, 101
    %v10133 = vpop.permute.xlu0 %10132
    %10134 = vrot.lane.b32.xlu0 %v10000, 101
    %v10135 = vpop.permute.xlu0 %10134
    %10136 = vrot.lane.b32.xlu0 %v10001, 101
    %v10137 = vpop.permute.xlu0 %10136
    %10138 = vrot.lane.b32.xlu0 %v10002, 101
    %v10139 = vpop.permute.xlu0 %10138
    %10140 = vrot.lane.b32.xlu0 %v10003, 101
    %v10141 = vpop.permute.xlu0 %10140
    %10142 = vrot.lane.b32.xlu0 %v10004, 101
    %v10143 = vpop.permute.xlu0 %10142
    %10144 = vrot.lane.b32.xlu0 %v10005, 101
    %v10145 = vpop.permute.xlu0 %10144
    %10146 = vrot.lane.b32.xlu0 %v10006, 101
    %v10147 = vpop.permute.xlu0 %10146
    %10148 = vrot.lane.b32.xlu0 %v10007, 101
    %v10149 = vpop.permute.xlu0 %10148
    %10150 = vrot.lane.b32.xlu0 %v10008, 101
    %v10151 = vpop.permute.xlu0 %10150
    %10152 = vrot.lane.b32.xlu0 %v10009, 101
    %v10153 = vpop.permute.xlu0 %10152
    %10154 = vrot.lane.b32.xlu0 %v10010, 101
    %v10155 = vpop.permute.xlu0 %10154
    %10156 = vrot.lane.b32.xlu0 %v10011, 101
    %v10157 = vpop.permute.xlu0 %10156
    %10158 = vrot.lane.b32.xlu0 %v10012, 101
    %v10159 = vpop.permute.xlu0 %10158
    %10160 = vrot.lane.b32.xlu0 %v10013, 101
    %v10161 = vpop.permute.xlu0 %10160
    %10162 = vrot.lane.b32.xlu0 %v10014, 101
    %v10163 = vpop.permute.xlu0 %10162
    %10164 = vrot.lane.b32.xlu0 %v10015, 101
    %v10165 = vpop.permute.xlu0 %10164
    %10166 = vrot.lane.b32.xlu0 %v10016, 101
    %v10167 = vpop.permute.xlu0 %10166
    %10168 = vrot.lane.b32.xlu0 %v10017, 101
    %v10169 = vpop.permute.xlu0 %10168
    %10170 = vrot.lane.b32.xlu0 %v10018, 101
    %v10171 = vpop.permute.xlu0 %10170
    %10172 = vrot.lane.b32.xlu0 %v10019, 101
    %v10173 = vpop.permute.xlu0 %10172
    %10174 = vrot.lane.b32.xlu0 %v10020, 101
    %v10175 = vpop.permute.xlu0 %10174
    %10176 = vrot.lane.b32.xlu0 %v10021, 101
    %v10177 = vpop.permute.xlu0 %10176
    %10178 = vrot.lane.b32.xlu0 %v10022, 101
    %v10179 = vpop.permute.xlu0 %10178
    %10180 = vrot.lane.b32.xlu0 %v10023, 101
    %v10181 = vpop.permute.xlu0 %10180
    %10182 = vrot.lane.b32.xlu0 %v10024, 101
    %v10183 = vpop.permute.xlu0 %10182
    %10184 = vrot.lane.b32.xlu0 %v10025, 101
    %v10185 = vpop.permute.xlu0 %10184
    %10186 = vrot.lane.b32.xlu0 %v10026, 101
    %v10187 = vpop.permute.xlu0 %10186
    %10188 = vrot.lane.b32.xlu0 %v10027, 101
    %v10189 = vpop.permute.xlu0 %10188
    %vm10190 = vcmask 826368
    %v10191 = vsel %vm10190, %v10083, %v10085
    %v10192 = vsel %vm10190, %v10085, %v10087
    %v10193 = vsel %vm10190, %v10087, %v10089
    %v10194 = vsel %vm10190, %v10089, %v10091
    %v10195 = vsel %vm10190, %v10091, %v10093
    %v10196 = vsel %vm10190, %v10093, %v10095
    %v10197 = vsel %vm10190, %v10095, %v10097
    %v10198 = vsel %vm10190, %v10097, %v10099
    %v10199 = vsel %vm10190, %v10101, %v10103
    %v10200 = vsel %vm10190, %v10103, %v10105
    %v10201 = vsel %vm10190, %v10105, %v10107
    %v10202 = vsel %vm10190, %v10107, %v10109
    %v10203 = vsel %vm10190, %v10109, %v10111
    %v10204 = vsel %vm10190, %v10111, %v10113
    %v10205 = vsel %vm10190, %v10113, %v10115
    %v10206 = vsel %vm10190, %v10115, %v10117
    %v10207 = vsel %vm10190, %v10119, %v10121
    %v10208 = vsel %vm10190, %v10121, %v10123
    %v10209 = vsel %vm10190, %v10123, %v10125
    %v10210 = vsel %vm10190, %v10125, %v10127
    %v10211 = vsel %vm10190, %v10127, %v10129
    %v10212 = vsel %vm10190, %v10129, %v10131
    %v10213 = vsel %vm10190, %v10131, %v10133
    %v10214 = vsel %vm10190, %v10133, %v10135
    %v10215 = vsel %vm10190, %v10137, %v10139
    %v10216 = vsel %vm10190, %v10139, %v10141
    %v10217 = vsel %vm10190, %v10141, %v10143
    %v10218 = vsel %vm10190, %v10143, %v10145
    %v10219 = vsel %vm10190, %v10145, %v10147
    %v10220 = vsel %vm10190, %v10147, %v10149
    %v10221 = vsel %vm10190, %v10149, %v10151
    %v10222 = vsel %vm10190, %v10151, %v10153
    %v10223 = vsel %vm10190, %v10155, %v10157
    %v10224 = vsel %vm10190, %v10157, %v10159
    %v10225 = vsel %vm10190, %v10159, %v10161
    %v10226 = vsel %vm10190, %v10161, %v10163
    %v10227 = vsel %vm10190, %v10163, %v10165
    %v10228 = vsel %vm10190, %v10165, %v10167
    %v10229 = vsel %vm10190, %v10167, %v10169
    %v10230 = vsel %vm10190, %v10169, %v10171
    %v10231 = vsel %vm10190, %v10173, %v10175
    %v10232 = vsel %vm10190, %v10175, %v10177
    %v10233 = vsel %vm10190, %v10177, %v10179
    %v10234 = vsel %vm10190, %v10179, %v10181
    %v10235 = vsel %vm10190, %v10181, %v10183
    %v10236 = vsel %vm10190, %v10183, %v10185
    %v10237 = vsel %vm10190, %v10185, %v10187
    %v10238 = vsel %vm10190, %v10187, %v10189
    %v10287 = vadd.f32 %v9914, %v10191
    %v10288 = vadd.f32 %v9915, %v10192
    %v10289 = vadd.f32 %v9916, %v10193
    %v10290 = vadd.f32 %v9917, %v10194
    %v10291 = vadd.f32 %v9918, %v10195
    %v10292 = vadd.f32 %v9919, %v10196
    %v10293 = vadd.f32 %v9920, %v10197
    %v10294 = vadd.f32 %v9921, %v10198
    %v10295 = vadd.f32 %v9922, %v10199
    %v10296 = vadd.f32 %v9923, %v10200
    %v10297 = vadd.f32 %v9924, %v10201
    %v10298 = vadd.f32 %v9925, %v10202
    %v10299 = vadd.f32 %v9926, %v10203
    %v10300 = vadd.f32 %v9927, %v10204
    %v10301 = vadd.f32 %v9928, %v10205
    %v10302 = vadd.f32 %v9929, %v10206
    %v10303 = vadd.f32 %v9930, %v10207
    %v10304 = vadd.f32 %v9931, %v10208
    %v10305 = vadd.f32 %v9932, %v10209
    %v10306 = vadd.f32 %v9933, %v10210
    %v10307 = vadd.f32 %v9934, %v10211
    %v10308 = vadd.f32 %v9935, %v10212
    %v10309 = vadd.f32 %v9936, %v10213
    %v10310 = vadd.f32 %v9937, %v10214
    %v10311 = vadd.f32 %v9938, %v10215
    %v10312 = vadd.f32 %v9939, %v10216
    %v10313 = vadd.f32 %v9940, %v10217
    %v10314 = vadd.f32 %v9941, %v10218
    %v10315 = vadd.f32 %v9942, %v10219
    %v10316 = vadd.f32 %v9943, %v10220
    %v10317 = vadd.f32 %v9944, %v10221
    %v10318 = vadd.f32 %v9945, %v10222
    %v10319 = vadd.f32 %v9946, %v10223
    %v10320 = vadd.f32 %v9947, %v10224
    %v10321 = vadd.f32 %v9948, %v10225
    %v10322 = vadd.f32 %v9949, %v10226
    %v10323 = vadd.f32 %v9950, %v10227
    %v10324 = vadd.f32 %v9951, %v10228
    %v10325 = vadd.f32 %v9952, %v10229
    %v10326 = vadd.f32 %v9953, %v10230
    %v10327 = vadd.f32 %v9954, %v10231
    %v10328 = vadd.f32 %v9955, %v10232
    %v10329 = vadd.f32 %v9956, %v10233
    %v10330 = vadd.f32 %v9957, %v10234
    %v10331 = vadd.f32 %v9958, %v10235
    %v10332 = vadd.f32 %v9959, %v10236
    %v10333 = vadd.f32 %v9960, %v10237
    %v10334 = vadd.f32 %v9961, %v10238
    %10335 = vset.pattern.permute.xlu0 28
    %10336 = vperm.xlu0 %10335, %v30
    %v10337 = vpop.permute.xlu0 %10336
    %10339 = vset.pattern.permute.xlu0 28
    %10340 = vperm.xlu0 %10339, %v31
    %v10341 = vpop.permute.xlu0 %10340
    %10343 = vset.pattern.permute.xlu0 28
    %10344 = vperm.xlu0 %10343, %v32
    %v10345 = vpop.permute.xlu0 %10344
    %v10347 = vmul.f32 %v57, %v10337
    %v10348 = vmul.f32 %v61, %v10337
    %v10349 = vmul.f32 %v65, %v10337
    %v10350 = vmul.f32 %v69, %v10337
    %v10351 = vmul.f32 %v73, %v10337
    %v10352 = vmul.f32 %v77, %v10337
    %v10353 = vmul.f32 %v81, %v10337
    %v10354 = vmul.f32 %v85, %v10337
    %v10355 = vmul.f32 %v257, %v10337
    %v10356 = vmul.f32 %v57, %v10341
    %v10357 = vmul.f32 %v61, %v10341
    %v10358 = vmul.f32 %v65, %v10341
    %v10359 = vmul.f32 %v69, %v10341
    %v10360 = vmul.f32 %v73, %v10341
    %v10361 = vmul.f32 %v77, %v10341
    %v10362 = vmul.f32 %v81, %v10341
    %v10363 = vmul.f32 %v85, %v10341
    %v10364 = vmul.f32 %v257, %v10341
    %v10365 = vmul.f32 %v57, %v10345
    %v10366 = vmul.f32 %v61, %v10345
    %v10367 = vmul.f32 %v65, %v10345
    %v10368 = vmul.f32 %v69, %v10345
    %v10369 = vmul.f32 %v73, %v10345
    %v10370 = vmul.f32 %v77, %v10345
    %v10371 = vmul.f32 %v81, %v10345
    %v10372 = vmul.f32 %v85, %v10345
    %v10373 = vmul.f32 %v257, %v10345
    %v10374 = vmul.f32 %v89, %v10337
    %v10375 = vmul.f32 %v93, %v10337
    %v10376 = vmul.f32 %v97, %v10337
    %v10377 = vmul.f32 %v101, %v10337
    %v10378 = vmul.f32 %v105, %v10337
    %v10379 = vmul.f32 %v109, %v10337
    %v10380 = vmul.f32 %v113, %v10337
    %v10381 = vmul.f32 %v117, %v10337
    %v10382 = vmul.f32 %v261, %v10337
    %v10383 = vmul.f32 %v89, %v10341
    %v10384 = vmul.f32 %v93, %v10341
    %v10385 = vmul.f32 %v97, %v10341
    %v10386 = vmul.f32 %v101, %v10341
    %v10387 = vmul.f32 %v105, %v10341
    %v10388 = vmul.f32 %v109, %v10341
    %v10389 = vmul.f32 %v113, %v10341
    %v10390 = vmul.f32 %v117, %v10341
    %v10391 = vmul.f32 %v261, %v10341
    %v10392 = vmul.f32 %v89, %v10345
    %v10393 = vmul.f32 %v93, %v10345
    %v10394 = vmul.f32 %v97, %v10345
    %v10395 = vmul.f32 %v101, %v10345
    %v10396 = vmul.f32 %v105, %v10345
    %v10397 = vmul.f32 %v109, %v10345
    %v10398 = vmul.f32 %v113, %v10345
    %v10399 = vmul.f32 %v117, %v10345
    %v10400 = vmul.f32 %v261, %v10345
    %10455 = vrot.lane.b32.xlu0 %v10347, 100
    %v10456 = vpop.permute.xlu0 %10455
    %10457 = vrot.lane.b32.xlu0 %v10348, 100
    %v10458 = vpop.permute.xlu0 %10457
    %10459 = vrot.lane.b32.xlu0 %v10349, 100
    %v10460 = vpop.permute.xlu0 %10459
    %10461 = vrot.lane.b32.xlu0 %v10350, 100
    %v10462 = vpop.permute.xlu0 %10461
    %10463 = vrot.lane.b32.xlu0 %v10351, 100
    %v10464 = vpop.permute.xlu0 %10463
    %10465 = vrot.lane.b32.xlu0 %v10352, 100
    %v10466 = vpop.permute.xlu0 %10465
    %10467 = vrot.lane.b32.xlu0 %v10353, 100
    %v10468 = vpop.permute.xlu0 %10467
    %10469 = vrot.lane.b32.xlu0 %v10354, 100
    %v10470 = vpop.permute.xlu0 %10469
    %10471 = vrot.lane.b32.xlu0 %v10355, 100
    %v10472 = vpop.permute.xlu0 %10471
    %10473 = vrot.lane.b32.xlu0 %v10356, 100
    %v10474 = vpop.permute.xlu0 %10473
    %10475 = vrot.lane.b32.xlu0 %v10357, 100
    %v10476 = vpop.permute.xlu0 %10475
    %10477 = vrot.lane.b32.xlu0 %v10358, 100
    %v10478 = vpop.permute.xlu0 %10477
    %10479 = vrot.lane.b32.xlu0 %v10359, 100
    %v10480 = vpop.permute.xlu0 %10479
    %10481 = vrot.lane.b32.xlu0 %v10360, 100
    %v10482 = vpop.permute.xlu0 %10481
    %10483 = vrot.lane.b32.xlu0 %v10361, 100
    %v10484 = vpop.permute.xlu0 %10483
    %10485 = vrot.lane.b32.xlu0 %v10362, 100
    %v10486 = vpop.permute.xlu0 %10485
    %10487 = vrot.lane.b32.xlu0 %v10363, 100
    %v10488 = vpop.permute.xlu0 %10487
    %10489 = vrot.lane.b32.xlu0 %v10364, 100
    %v10490 = vpop.permute.xlu0 %10489
    %10491 = vrot.lane.b32.xlu0 %v10365, 100
    %v10492 = vpop.permute.xlu0 %10491
    %10493 = vrot.lane.b32.xlu0 %v10366, 100
    %v10494 = vpop.permute.xlu0 %10493
    %10495 = vrot.lane.b32.xlu0 %v10367, 100
    %v10496 = vpop.permute.xlu0 %10495
    %10497 = vrot.lane.b32.xlu0 %v10368, 100
    %v10498 = vpop.permute.xlu0 %10497
    %10499 = vrot.lane.b32.xlu0 %v10369, 100
    %v10500 = vpop.permute.xlu0 %10499
    %10501 = vrot.lane.b32.xlu0 %v10370, 100
    %v10502 = vpop.permute.xlu0 %10501
    %10503 = vrot.lane.b32.xlu0 %v10371, 100
    %v10504 = vpop.permute.xlu0 %10503
    %10505 = vrot.lane.b32.xlu0 %v10372, 100
    %v10506 = vpop.permute.xlu0 %10505
    %10507 = vrot.lane.b32.xlu0 %v10373, 100
    %v10508 = vpop.permute.xlu0 %10507
    %10509 = vrot.lane.b32.xlu0 %v10374, 100
    %v10510 = vpop.permute.xlu0 %10509
    %10511 = vrot.lane.b32.xlu0 %v10375, 100
    %v10512 = vpop.permute.xlu0 %10511
    %10513 = vrot.lane.b32.xlu0 %v10376, 100
    %v10514 = vpop.permute.xlu0 %10513
    %10515 = vrot.lane.b32.xlu0 %v10377, 100
    %v10516 = vpop.permute.xlu0 %10515
    %10517 = vrot.lane.b32.xlu0 %v10378, 100
    %v10518 = vpop.permute.xlu0 %10517
    %10519 = vrot.lane.b32.xlu0 %v10379, 100
    %v10520 = vpop.permute.xlu0 %10519
    %10521 = vrot.lane.b32.xlu0 %v10380, 100
    %v10522 = vpop.permute.xlu0 %10521
    %10523 = vrot.lane.b32.xlu0 %v10381, 100
    %v10524 = vpop.permute.xlu0 %10523
    %10525 = vrot.lane.b32.xlu0 %v10382, 100
    %v10526 = vpop.permute.xlu0 %10525
    %10527 = vrot.lane.b32.xlu0 %v10383, 100
    %v10528 = vpop.permute.xlu0 %10527
    %10529 = vrot.lane.b32.xlu0 %v10384, 100
    %v10530 = vpop.permute.xlu0 %10529
    %10531 = vrot.lane.b32.xlu0 %v10385, 100
    %v10532 = vpop.permute.xlu0 %10531
    %10533 = vrot.lane.b32.xlu0 %v10386, 100
    %v10534 = vpop.permute.xlu0 %10533
    %10535 = vrot.lane.b32.xlu0 %v10387, 100
    %v10536 = vpop.permute.xlu0 %10535
    %10537 = vrot.lane.b32.xlu0 %v10388, 100
    %v10538 = vpop.permute.xlu0 %10537
    %10539 = vrot.lane.b32.xlu0 %v10389, 100
    %v10540 = vpop.permute.xlu0 %10539
    %10541 = vrot.lane.b32.xlu0 %v10390, 100
    %v10542 = vpop.permute.xlu0 %10541
    %10543 = vrot.lane.b32.xlu0 %v10391, 100
    %v10544 = vpop.permute.xlu0 %10543
    %10545 = vrot.lane.b32.xlu0 %v10392, 100
    %v10546 = vpop.permute.xlu0 %10545
    %10547 = vrot.lane.b32.xlu0 %v10393, 100
    %v10548 = vpop.permute.xlu0 %10547
    %10549 = vrot.lane.b32.xlu0 %v10394, 100
    %v10550 = vpop.permute.xlu0 %10549
    %10551 = vrot.lane.b32.xlu0 %v10395, 100
    %v10552 = vpop.permute.xlu0 %10551
    %10553 = vrot.lane.b32.xlu0 %v10396, 100
    %v10554 = vpop.permute.xlu0 %10553
    %10555 = vrot.lane.b32.xlu0 %v10397, 100
    %v10556 = vpop.permute.xlu0 %10555
    %10557 = vrot.lane.b32.xlu0 %v10398, 100
    %v10558 = vpop.permute.xlu0 %10557
    %10559 = vrot.lane.b32.xlu0 %v10399, 100
    %v10560 = vpop.permute.xlu0 %10559
    %10561 = vrot.lane.b32.xlu0 %v10400, 100
    %v10562 = vpop.permute.xlu0 %10561
    %vm10563 = vcmask 818176
    %v10564 = vsel %vm10563, %v10456, %v10458
    %v10565 = vsel %vm10563, %v10458, %v10460
    %v10566 = vsel %vm10563, %v10460, %v10462
    %v10567 = vsel %vm10563, %v10462, %v10464
    %v10568 = vsel %vm10563, %v10464, %v10466
    %v10569 = vsel %vm10563, %v10466, %v10468
    %v10570 = vsel %vm10563, %v10468, %v10470
    %v10571 = vsel %vm10563, %v10470, %v10472
    %v10572 = vsel %vm10563, %v10474, %v10476
    %v10573 = vsel %vm10563, %v10476, %v10478
    %v10574 = vsel %vm10563, %v10478, %v10480
    %v10575 = vsel %vm10563, %v10480, %v10482
    %v10576 = vsel %vm10563, %v10482, %v10484
    %v10577 = vsel %vm10563, %v10484, %v10486
    %v10578 = vsel %vm10563, %v10486, %v10488
    %v10579 = vsel %vm10563, %v10488, %v10490
    %v10580 = vsel %vm10563, %v10492, %v10494
    %v10581 = vsel %vm10563, %v10494, %v10496
    %v10582 = vsel %vm10563, %v10496, %v10498
    %v10583 = vsel %vm10563, %v10498, %v10500
    %v10584 = vsel %vm10563, %v10500, %v10502
    %v10585 = vsel %vm10563, %v10502, %v10504
    %v10586 = vsel %vm10563, %v10504, %v10506
    %v10587 = vsel %vm10563, %v10506, %v10508
    %v10588 = vsel %vm10563, %v10510, %v10512
    %v10589 = vsel %vm10563, %v10512, %v10514
    %v10590 = vsel %vm10563, %v10514, %v10516
    %v10591 = vsel %vm10563, %v10516, %v10518
    %v10592 = vsel %vm10563, %v10518, %v10520
    %v10593 = vsel %vm10563, %v10520, %v10522
    %v10594 = vsel %vm10563, %v10522, %v10524
    %v10595 = vsel %vm10563, %v10524, %v10526
    %v10596 = vsel %vm10563, %v10528, %v10530
    %v10597 = vsel %vm10563, %v10530, %v10532
    %v10598 = vsel %vm10563, %v10532, %v10534
    %v10599 = vsel %vm10563, %v10534, %v10536
    %v10600 = vsel %vm10563, %v10536, %v10538
    %v10601 = vsel %vm10563, %v10538, %v10540
    %v10602 = vsel %vm10563, %v10540, %v10542
    %v10603 = vsel %vm10563, %v10542, %v10544
    %v10604 = vsel %vm10563, %v10546, %v10548
    %v10605 = vsel %vm10563, %v10548, %v10550
    %v10606 = vsel %vm10563, %v10550, %v10552
    %v10607 = vsel %vm10563, %v10552, %v10554
    %v10608 = vsel %vm10563, %v10554, %v10556
    %v10609 = vsel %vm10563, %v10556, %v10558
    %v10610 = vsel %vm10563, %v10558, %v10560
    %v10611 = vsel %vm10563, %v10560, %v10562
    %v10660 = vadd.f32 %v10287, %v10564
    %v10661 = vadd.f32 %v10288, %v10565
    %v10662 = vadd.f32 %v10289, %v10566
    %v10663 = vadd.f32 %v10290, %v10567
    %v10664 = vadd.f32 %v10291, %v10568
    %v10665 = vadd.f32 %v10292, %v10569
    %v10666 = vadd.f32 %v10293, %v10570
    %v10667 = vadd.f32 %v10294, %v10571
    %v10668 = vadd.f32 %v10295, %v10572
    %v10669 = vadd.f32 %v10296, %v10573
    %v10670 = vadd.f32 %v10297, %v10574
    %v10671 = vadd.f32 %v10298, %v10575
    %v10672 = vadd.f32 %v10299, %v10576
    %v10673 = vadd.f32 %v10300, %v10577
    %v10674 = vadd.f32 %v10301, %v10578
    %v10675 = vadd.f32 %v10302, %v10579
    %v10676 = vadd.f32 %v10303, %v10580
    %v10677 = vadd.f32 %v10304, %v10581
    %v10678 = vadd.f32 %v10305, %v10582
    %v10679 = vadd.f32 %v10306, %v10583
    %v10680 = vadd.f32 %v10307, %v10584
    %v10681 = vadd.f32 %v10308, %v10585
    %v10682 = vadd.f32 %v10309, %v10586
    %v10683 = vadd.f32 %v10310, %v10587
    %v10684 = vadd.f32 %v10311, %v10588
    %v10685 = vadd.f32 %v10312, %v10589
    %v10686 = vadd.f32 %v10313, %v10590
    %v10687 = vadd.f32 %v10314, %v10591
    %v10688 = vadd.f32 %v10315, %v10592
    %v10689 = vadd.f32 %v10316, %v10593
    %v10690 = vadd.f32 %v10317, %v10594
    %v10691 = vadd.f32 %v10318, %v10595
    %v10692 = vadd.f32 %v10319, %v10596
    %v10693 = vadd.f32 %v10320, %v10597
    %v10694 = vadd.f32 %v10321, %v10598
    %v10695 = vadd.f32 %v10322, %v10599
    %v10696 = vadd.f32 %v10323, %v10600
    %v10697 = vadd.f32 %v10324, %v10601
    %v10698 = vadd.f32 %v10325, %v10602
    %v10699 = vadd.f32 %v10326, %v10603
    %v10700 = vadd.f32 %v10327, %v10604
    %v10701 = vadd.f32 %v10328, %v10605
    %v10702 = vadd.f32 %v10329, %v10606
    %v10703 = vadd.f32 %v10330, %v10607
    %v10704 = vadd.f32 %v10331, %v10608
    %v10705 = vadd.f32 %v10332, %v10609
    %v10706 = vadd.f32 %v10333, %v10610
    %v10707 = vadd.f32 %v10334, %v10611
    %10708 = vset.pattern.permute.xlu0 29
    %10709 = vperm.xlu0 %10708, %v30
    %v10710 = vpop.permute.xlu0 %10709
    %10712 = vset.pattern.permute.xlu0 29
    %10713 = vperm.xlu0 %10712, %v31
    %v10714 = vpop.permute.xlu0 %10713
    %10716 = vset.pattern.permute.xlu0 29
    %10717 = vperm.xlu0 %10716, %v32
    %v10718 = vpop.permute.xlu0 %10717
    %v10720 = vmul.f32 %v57, %v10710
    %v10721 = vmul.f32 %v61, %v10710
    %v10722 = vmul.f32 %v65, %v10710
    %v10723 = vmul.f32 %v69, %v10710
    %v10724 = vmul.f32 %v73, %v10710
    %v10725 = vmul.f32 %v77, %v10710
    %v10726 = vmul.f32 %v81, %v10710
    %v10727 = vmul.f32 %v85, %v10710
    %v10728 = vmul.f32 %v257, %v10710
    %v10729 = vmul.f32 %v57, %v10714
    %v10730 = vmul.f32 %v61, %v10714
    %v10731 = vmul.f32 %v65, %v10714
    %v10732 = vmul.f32 %v69, %v10714
    %v10733 = vmul.f32 %v73, %v10714
    %v10734 = vmul.f32 %v77, %v10714
    %v10735 = vmul.f32 %v81, %v10714
    %v10736 = vmul.f32 %v85, %v10714
    %v10737 = vmul.f32 %v257, %v10714
    %v10738 = vmul.f32 %v57, %v10718
    %v10739 = vmul.f32 %v61, %v10718
    %v10740 = vmul.f32 %v65, %v10718
    %v10741 = vmul.f32 %v69, %v10718
    %v10742 = vmul.f32 %v73, %v10718
    %v10743 = vmul.f32 %v77, %v10718
    %v10744 = vmul.f32 %v81, %v10718
    %v10745 = vmul.f32 %v85, %v10718
    %v10746 = vmul.f32 %v257, %v10718
    %v10747 = vmul.f32 %v89, %v10710
    %v10748 = vmul.f32 %v93, %v10710
    %v10749 = vmul.f32 %v97, %v10710
    %v10750 = vmul.f32 %v101, %v10710
    %v10751 = vmul.f32 %v105, %v10710
    %v10752 = vmul.f32 %v109, %v10710
    %v10753 = vmul.f32 %v113, %v10710
    %v10754 = vmul.f32 %v117, %v10710
    %v10755 = vmul.f32 %v261, %v10710
    %v10756 = vmul.f32 %v89, %v10714
    %v10757 = vmul.f32 %v93, %v10714
    %v10758 = vmul.f32 %v97, %v10714
    %v10759 = vmul.f32 %v101, %v10714
    %v10760 = vmul.f32 %v105, %v10714
    %v10761 = vmul.f32 %v109, %v10714
    %v10762 = vmul.f32 %v113, %v10714
    %v10763 = vmul.f32 %v117, %v10714
    %v10764 = vmul.f32 %v261, %v10714
    %v10765 = vmul.f32 %v89, %v10718
    %v10766 = vmul.f32 %v93, %v10718
    %v10767 = vmul.f32 %v97, %v10718
    %v10768 = vmul.f32 %v101, %v10718
    %v10769 = vmul.f32 %v105, %v10718
    %v10770 = vmul.f32 %v109, %v10718
    %v10771 = vmul.f32 %v113, %v10718
    %v10772 = vmul.f32 %v117, %v10718
    %v10773 = vmul.f32 %v261, %v10718
    %10828 = vrot.lane.b32.xlu0 %v10720, 99
    %v10829 = vpop.permute.xlu0 %10828
    %10830 = vrot.lane.b32.xlu0 %v10721, 99
    %v10831 = vpop.permute.xlu0 %10830
    %10832 = vrot.lane.b32.xlu0 %v10722, 99
    %v10833 = vpop.permute.xlu0 %10832
    %10834 = vrot.lane.b32.xlu0 %v10723, 99
    %v10835 = vpop.permute.xlu0 %10834
    %10836 = vrot.lane.b32.xlu0 %v10724, 99
    %v10837 = vpop.permute.xlu0 %10836
    %10838 = vrot.lane.b32.xlu0 %v10725, 99
    %v10839 = vpop.permute.xlu0 %10838
    %10840 = vrot.lane.b32.xlu0 %v10726, 99
    %v10841 = vpop.permute.xlu0 %10840
    %10842 = vrot.lane.b32.xlu0 %v10727, 99
    %v10843 = vpop.permute.xlu0 %10842
    %10844 = vrot.lane.b32.xlu0 %v10728, 99
    %v10845 = vpop.permute.xlu0 %10844
    %10846 = vrot.lane.b32.xlu0 %v10729, 99
    %v10847 = vpop.permute.xlu0 %10846
    %10848 = vrot.lane.b32.xlu0 %v10730, 99
    %v10849 = vpop.permute.xlu0 %10848
    %10850 = vrot.lane.b32.xlu0 %v10731, 99
    %v10851 = vpop.permute.xlu0 %10850
    %10852 = vrot.lane.b32.xlu0 %v10732, 99
    %v10853 = vpop.permute.xlu0 %10852
    %10854 = vrot.lane.b32.xlu0 %v10733, 99
    %v10855 = vpop.permute.xlu0 %10854
    %10856 = vrot.lane.b32.xlu0 %v10734, 99
    %v10857 = vpop.permute.xlu0 %10856
    %10858 = vrot.lane.b32.xlu0 %v10735, 99
    %v10859 = vpop.permute.xlu0 %10858
    %10860 = vrot.lane.b32.xlu0 %v10736, 99
    %v10861 = vpop.permute.xlu0 %10860
    %10862 = vrot.lane.b32.xlu0 %v10737, 99
    %v10863 = vpop.permute.xlu0 %10862
    %10864 = vrot.lane.b32.xlu0 %v10738, 99
    %v10865 = vpop.permute.xlu0 %10864
    %10866 = vrot.lane.b32.xlu0 %v10739, 99
    %v10867 = vpop.permute.xlu0 %10866
    %10868 = vrot.lane.b32.xlu0 %v10740, 99
    %v10869 = vpop.permute.xlu0 %10868
    %10870 = vrot.lane.b32.xlu0 %v10741, 99
    %v10871 = vpop.permute.xlu0 %10870
    %10872 = vrot.lane.b32.xlu0 %v10742, 99
    %v10873 = vpop.permute.xlu0 %10872
    %10874 = vrot.lane.b32.xlu0 %v10743, 99
    %v10875 = vpop.permute.xlu0 %10874
    %10876 = vrot.lane.b32.xlu0 %v10744, 99
    %v10877 = vpop.permute.xlu0 %10876
    %10878 = vrot.lane.b32.xlu0 %v10745, 99
    %v10879 = vpop.permute.xlu0 %10878
    %10880 = vrot.lane.b32.xlu0 %v10746, 99
    %v10881 = vpop.permute.xlu0 %10880
    %10882 = vrot.lane.b32.xlu0 %v10747, 99
    %v10883 = vpop.permute.xlu0 %10882
    %10884 = vrot.lane.b32.xlu0 %v10748, 99
    %v10885 = vpop.permute.xlu0 %10884
    %10886 = vrot.lane.b32.xlu0 %v10749, 99
    %v10887 = vpop.permute.xlu0 %10886
    %10888 = vrot.lane.b32.xlu0 %v10750, 99
    %v10889 = vpop.permute.xlu0 %10888
    %10890 = vrot.lane.b32.xlu0 %v10751, 99
    %v10891 = vpop.permute.xlu0 %10890
    %10892 = vrot.lane.b32.xlu0 %v10752, 99
    %v10893 = vpop.permute.xlu0 %10892
    %10894 = vrot.lane.b32.xlu0 %v10753, 99
    %v10895 = vpop.permute.xlu0 %10894
    %10896 = vrot.lane.b32.xlu0 %v10754, 99
    %v10897 = vpop.permute.xlu0 %10896
    %10898 = vrot.lane.b32.xlu0 %v10755, 99
    %v10899 = vpop.permute.xlu0 %10898
    %10900 = vrot.lane.b32.xlu0 %v10756, 99
    %v10901 = vpop.permute.xlu0 %10900
    %10902 = vrot.lane.b32.xlu0 %v10757, 99
    %v10903 = vpop.permute.xlu0 %10902
    %10904 = vrot.lane.b32.xlu0 %v10758, 99
    %v10905 = vpop.permute.xlu0 %10904
    %10906 = vrot.lane.b32.xlu0 %v10759, 99
    %v10907 = vpop.permute.xlu0 %10906
    %10908 = vrot.lane.b32.xlu0 %v10760, 99
    %v10909 = vpop.permute.xlu0 %10908
    %10910 = vrot.lane.b32.xlu0 %v10761, 99
    %v10911 = vpop.permute.xlu0 %10910
    %10912 = vrot.lane.b32.xlu0 %v10762, 99
    %v10913 = vpop.permute.xlu0 %10912
    %10914 = vrot.lane.b32.xlu0 %v10763, 99
    %v10915 = vpop.permute.xlu0 %10914
    %10916 = vrot.lane.b32.xlu0 %v10764, 99
    %v10917 = vpop.permute.xlu0 %10916
    %10918 = vrot.lane.b32.xlu0 %v10765, 99
    %v10919 = vpop.permute.xlu0 %10918
    %10920 = vrot.lane.b32.xlu0 %v10766, 99
    %v10921 = vpop.permute.xlu0 %10920
    %10922 = vrot.lane.b32.xlu0 %v10767, 99
    %v10923 = vpop.permute.xlu0 %10922
    %10924 = vrot.lane.b32.xlu0 %v10768, 99
    %v10925 = vpop.permute.xlu0 %10924
    %10926 = vrot.lane.b32.xlu0 %v10769, 99
    %v10927 = vpop.permute.xlu0 %10926
    %10928 = vrot.lane.b32.xlu0 %v10770, 99
    %v10929 = vpop.permute.xlu0 %10928
    %10930 = vrot.lane.b32.xlu0 %v10771, 99
    %v10931 = vpop.permute.xlu0 %10930
    %10932 = vrot.lane.b32.xlu0 %v10772, 99
    %v10933 = vpop.permute.xlu0 %10932
    %10934 = vrot.lane.b32.xlu0 %v10773, 99
    %v10935 = vpop.permute.xlu0 %10934
    %vm10936 = vcmask 809984
    %v10937 = vsel %vm10936, %v10829, %v10831
    %v10938 = vsel %vm10936, %v10831, %v10833
    %v10939 = vsel %vm10936, %v10833, %v10835
    %v10940 = vsel %vm10936, %v10835, %v10837
    %v10941 = vsel %vm10936, %v10837, %v10839
    %v10942 = vsel %vm10936, %v10839, %v10841
    %v10943 = vsel %vm10936, %v10841, %v10843
    %v10944 = vsel %vm10936, %v10843, %v10845
    %v10945 = vsel %vm10936, %v10847, %v10849
    %v10946 = vsel %vm10936, %v10849, %v10851
    %v10947 = vsel %vm10936, %v10851, %v10853
    %v10948 = vsel %vm10936, %v10853, %v10855
    %v10949 = vsel %vm10936, %v10855, %v10857
    %v10950 = vsel %vm10936, %v10857, %v10859
    %v10951 = vsel %vm10936, %v10859, %v10861
    %v10952 = vsel %vm10936, %v10861, %v10863
    %v10953 = vsel %vm10936, %v10865, %v10867
    %v10954 = vsel %vm10936, %v10867, %v10869
    %v10955 = vsel %vm10936, %v10869, %v10871
    %v10956 = vsel %vm10936, %v10871, %v10873
    %v10957 = vsel %vm10936, %v10873, %v10875
    %v10958 = vsel %vm10936, %v10875, %v10877
    %v10959 = vsel %vm10936, %v10877, %v10879
    %v10960 = vsel %vm10936, %v10879, %v10881
    %v10961 = vsel %vm10936, %v10883, %v10885
    %v10962 = vsel %vm10936, %v10885, %v10887
    %v10963 = vsel %vm10936, %v10887, %v10889
    %v10964 = vsel %vm10936, %v10889, %v10891
    %v10965 = vsel %vm10936, %v10891, %v10893
    %v10966 = vsel %vm10936, %v10893, %v10895
    %v10967 = vsel %vm10936, %v10895, %v10897
    %v10968 = vsel %vm10936, %v10897, %v10899
    %v10969 = vsel %vm10936, %v10901, %v10903
    %v10970 = vsel %vm10936, %v10903, %v10905
    %v10971 = vsel %vm10936, %v10905, %v10907
    %v10972 = vsel %vm10936, %v10907, %v10909
    %v10973 = vsel %vm10936, %v10909, %v10911
    %v10974 = vsel %vm10936, %v10911, %v10913
    %v10975 = vsel %vm10936, %v10913, %v10915
    %v10976 = vsel %vm10936, %v10915, %v10917
    %v10977 = vsel %vm10936, %v10919, %v10921
    %v10978 = vsel %vm10936, %v10921, %v10923
    %v10979 = vsel %vm10936, %v10923, %v10925
    %v10980 = vsel %vm10936, %v10925, %v10927
    %v10981 = vsel %vm10936, %v10927, %v10929
    %v10982 = vsel %vm10936, %v10929, %v10931
    %v10983 = vsel %vm10936, %v10931, %v10933
    %v10984 = vsel %vm10936, %v10933, %v10935
    %v11033 = vadd.f32 %v10660, %v10937
    %v11034 = vadd.f32 %v10661, %v10938
    %v11035 = vadd.f32 %v10662, %v10939
    %v11036 = vadd.f32 %v10663, %v10940
    %v11037 = vadd.f32 %v10664, %v10941
    %v11038 = vadd.f32 %v10665, %v10942
    %v11039 = vadd.f32 %v10666, %v10943
    %v11040 = vadd.f32 %v10667, %v10944
    %v11041 = vadd.f32 %v10668, %v10945
    %v11042 = vadd.f32 %v10669, %v10946
    %v11043 = vadd.f32 %v10670, %v10947
    %v11044 = vadd.f32 %v10671, %v10948
    %v11045 = vadd.f32 %v10672, %v10949
    %v11046 = vadd.f32 %v10673, %v10950
    %v11047 = vadd.f32 %v10674, %v10951
    %v11048 = vadd.f32 %v10675, %v10952
    %v11049 = vadd.f32 %v10676, %v10953
    %v11050 = vadd.f32 %v10677, %v10954
    %v11051 = vadd.f32 %v10678, %v10955
    %v11052 = vadd.f32 %v10679, %v10956
    %v11053 = vadd.f32 %v10680, %v10957
    %v11054 = vadd.f32 %v10681, %v10958
    %v11055 = vadd.f32 %v10682, %v10959
    %v11056 = vadd.f32 %v10683, %v10960
    %v11057 = vadd.f32 %v10684, %v10961
    %v11058 = vadd.f32 %v10685, %v10962
    %v11059 = vadd.f32 %v10686, %v10963
    %v11060 = vadd.f32 %v10687, %v10964
    %v11061 = vadd.f32 %v10688, %v10965
    %v11062 = vadd.f32 %v10689, %v10966
    %v11063 = vadd.f32 %v10690, %v10967
    %v11064 = vadd.f32 %v10691, %v10968
    %v11065 = vadd.f32 %v10692, %v10969
    %v11066 = vadd.f32 %v10693, %v10970
    %v11067 = vadd.f32 %v10694, %v10971
    %v11068 = vadd.f32 %v10695, %v10972
    %v11069 = vadd.f32 %v10696, %v10973
    %v11070 = vadd.f32 %v10697, %v10974
    %v11071 = vadd.f32 %v10698, %v10975
    %v11072 = vadd.f32 %v10699, %v10976
    %v11073 = vadd.f32 %v10700, %v10977
    %v11074 = vadd.f32 %v10701, %v10978
    %v11075 = vadd.f32 %v10702, %v10979
    %v11076 = vadd.f32 %v10703, %v10980
    %v11077 = vadd.f32 %v10704, %v10981
    %v11078 = vadd.f32 %v10705, %v10982
    %v11079 = vadd.f32 %v10706, %v10983
    %v11080 = vadd.f32 %v10707, %v10984
    %11081 = vset.pattern.permute.xlu0 30
    %11082 = vperm.xlu0 %11081, %v30
    %v11083 = vpop.permute.xlu0 %11082
    %11085 = vset.pattern.permute.xlu0 30
    %11086 = vperm.xlu0 %11085, %v31
    %v11087 = vpop.permute.xlu0 %11086
    %11089 = vset.pattern.permute.xlu0 30
    %11090 = vperm.xlu0 %11089, %v32
    %v11091 = vpop.permute.xlu0 %11090
    %v11093 = vmul.f32 %v57, %v11083
    %v11094 = vmul.f32 %v61, %v11083
    %v11095 = vmul.f32 %v65, %v11083
    %v11096 = vmul.f32 %v69, %v11083
    %v11097 = vmul.f32 %v73, %v11083
    %v11098 = vmul.f32 %v77, %v11083
    %v11099 = vmul.f32 %v81, %v11083
    %v11100 = vmul.f32 %v85, %v11083
    %v11101 = vmul.f32 %v257, %v11083
    %v11102 = vmul.f32 %v57, %v11087
    %v11103 = vmul.f32 %v61, %v11087
    %v11104 = vmul.f32 %v65, %v11087
    %v11105 = vmul.f32 %v69, %v11087
    %v11106 = vmul.f32 %v73, %v11087
    %v11107 = vmul.f32 %v77, %v11087
    %v11108 = vmul.f32 %v81, %v11087
    %v11109 = vmul.f32 %v85, %v11087
    %v11110 = vmul.f32 %v257, %v11087
    %v11111 = vmul.f32 %v57, %v11091
    %v11112 = vmul.f32 %v61, %v11091
    %v11113 = vmul.f32 %v65, %v11091
    %v11114 = vmul.f32 %v69, %v11091
    %v11115 = vmul.f32 %v73, %v11091
    %v11116 = vmul.f32 %v77, %v11091
    %v11117 = vmul.f32 %v81, %v11091
    %v11118 = vmul.f32 %v85, %v11091
    %v11119 = vmul.f32 %v257, %v11091
    %v11120 = vmul.f32 %v89, %v11083
    %v11121 = vmul.f32 %v93, %v11083
    %v11122 = vmul.f32 %v97, %v11083
    %v11123 = vmul.f32 %v101, %v11083
    %v11124 = vmul.f32 %v105, %v11083
    %v11125 = vmul.f32 %v109, %v11083
    %v11126 = vmul.f32 %v113, %v11083
    %v11127 = vmul.f32 %v117, %v11083
    %v11128 = vmul.f32 %v261, %v11083
    %v11129 = vmul.f32 %v89, %v11087
    %v11130 = vmul.f32 %v93, %v11087
    %v11131 = vmul.f32 %v97, %v11087
    %v11132 = vmul.f32 %v101, %v11087
    %v11133 = vmul.f32 %v105, %v11087
    %v11134 = vmul.f32 %v109, %v11087
    %v11135 = vmul.f32 %v113, %v11087
    %v11136 = vmul.f32 %v117, %v11087
    %v11137 = vmul.f32 %v261, %v11087
    %v11138 = vmul.f32 %v89, %v11091
    %v11139 = vmul.f32 %v93, %v11091
    %v11140 = vmul.f32 %v97, %v11091
    %v11141 = vmul.f32 %v101, %v11091
    %v11142 = vmul.f32 %v105, %v11091
    %v11143 = vmul.f32 %v109, %v11091
    %v11144 = vmul.f32 %v113, %v11091
    %v11145 = vmul.f32 %v117, %v11091
    %v11146 = vmul.f32 %v261, %v11091
    %11201 = vrot.lane.b32.xlu0 %v11093, 98
    %v11202 = vpop.permute.xlu0 %11201
    %11203 = vrot.lane.b32.xlu0 %v11094, 98
    %v11204 = vpop.permute.xlu0 %11203
    %11205 = vrot.lane.b32.xlu0 %v11095, 98
    %v11206 = vpop.permute.xlu0 %11205
    %11207 = vrot.lane.b32.xlu0 %v11096, 98
    %v11208 = vpop.permute.xlu0 %11207
    %11209 = vrot.lane.b32.xlu0 %v11097, 98
    %v11210 = vpop.permute.xlu0 %11209
    %11211 = vrot.lane.b32.xlu0 %v11098, 98
    %v11212 = vpop.permute.xlu0 %11211
    %11213 = vrot.lane.b32.xlu0 %v11099, 98
    %v11214 = vpop.permute.xlu0 %11213
    %11215 = vrot.lane.b32.xlu0 %v11100, 98
    %v11216 = vpop.permute.xlu0 %11215
    %11217 = vrot.lane.b32.xlu0 %v11101, 98
    %v11218 = vpop.permute.xlu0 %11217
    %11219 = vrot.lane.b32.xlu0 %v11102, 98
    %v11220 = vpop.permute.xlu0 %11219
    %11221 = vrot.lane.b32.xlu0 %v11103, 98
    %v11222 = vpop.permute.xlu0 %11221
    %11223 = vrot.lane.b32.xlu0 %v11104, 98
    %v11224 = vpop.permute.xlu0 %11223
    %11225 = vrot.lane.b32.xlu0 %v11105, 98
    %v11226 = vpop.permute.xlu0 %11225
    %11227 = vrot.lane.b32.xlu0 %v11106, 98
    %v11228 = vpop.permute.xlu0 %11227
    %11229 = vrot.lane.b32.xlu0 %v11107, 98
    %v11230 = vpop.permute.xlu0 %11229
    %11231 = vrot.lane.b32.xlu0 %v11108, 98
    %v11232 = vpop.permute.xlu0 %11231
    %11233 = vrot.lane.b32.xlu0 %v11109, 98
    %v11234 = vpop.permute.xlu0 %11233
    %11235 = vrot.lane.b32.xlu0 %v11110, 98
    %v11236 = vpop.permute.xlu0 %11235
    %11237 = vrot.lane.b32.xlu0 %v11111, 98
    %v11238 = vpop.permute.xlu0 %11237
    %11239 = vrot.lane.b32.xlu0 %v11112, 98
    %v11240 = vpop.permute.xlu0 %11239
    %11241 = vrot.lane.b32.xlu0 %v11113, 98
    %v11242 = vpop.permute.xlu0 %11241
    %11243 = vrot.lane.b32.xlu0 %v11114, 98
    %v11244 = vpop.permute.xlu0 %11243
    %11245 = vrot.lane.b32.xlu0 %v11115, 98
    %v11246 = vpop.permute.xlu0 %11245
    %11247 = vrot.lane.b32.xlu0 %v11116, 98
    %v11248 = vpop.permute.xlu0 %11247
    %11249 = vrot.lane.b32.xlu0 %v11117, 98
    %v11250 = vpop.permute.xlu0 %11249
    %11251 = vrot.lane.b32.xlu0 %v11118, 98
    %v11252 = vpop.permute.xlu0 %11251
    %11253 = vrot.lane.b32.xlu0 %v11119, 98
    %v11254 = vpop.permute.xlu0 %11253
    %11255 = vrot.lane.b32.xlu0 %v11120, 98
    %v11256 = vpop.permute.xlu0 %11255
    %11257 = vrot.lane.b32.xlu0 %v11121, 98
    %v11258 = vpop.permute.xlu0 %11257
    %11259 = vrot.lane.b32.xlu0 %v11122, 98
    %v11260 = vpop.permute.xlu0 %11259
    %11261 = vrot.lane.b32.xlu0 %v11123, 98
    %v11262 = vpop.permute.xlu0 %11261
    %11263 = vrot.lane.b32.xlu0 %v11124, 98
    %v11264 = vpop.permute.xlu0 %11263
    %11265 = vrot.lane.b32.xlu0 %v11125, 98
    %v11266 = vpop.permute.xlu0 %11265
    %11267 = vrot.lane.b32.xlu0 %v11126, 98
    %v11268 = vpop.permute.xlu0 %11267
    %11269 = vrot.lane.b32.xlu0 %v11127, 98
    %v11270 = vpop.permute.xlu0 %11269
    %11271 = vrot.lane.b32.xlu0 %v11128, 98
    %v11272 = vpop.permute.xlu0 %11271
    %11273 = vrot.lane.b32.xlu0 %v11129, 98
    %v11274 = vpop.permute.xlu0 %11273
    %11275 = vrot.lane.b32.xlu0 %v11130, 98
    %v11276 = vpop.permute.xlu0 %11275
    %11277 = vrot.lane.b32.xlu0 %v11131, 98
    %v11278 = vpop.permute.xlu0 %11277
    %11279 = vrot.lane.b32.xlu0 %v11132, 98
    %v11280 = vpop.permute.xlu0 %11279
    %11281 = vrot.lane.b32.xlu0 %v11133, 98
    %v11282 = vpop.permute.xlu0 %11281
    %11283 = vrot.lane.b32.xlu0 %v11134, 98
    %v11284 = vpop.permute.xlu0 %11283
    %11285 = vrot.lane.b32.xlu0 %v11135, 98
    %v11286 = vpop.permute.xlu0 %11285
    %11287 = vrot.lane.b32.xlu0 %v11136, 98
    %v11288 = vpop.permute.xlu0 %11287
    %11289 = vrot.lane.b32.xlu0 %v11137, 98
    %v11290 = vpop.permute.xlu0 %11289
    %11291 = vrot.lane.b32.xlu0 %v11138, 98
    %v11292 = vpop.permute.xlu0 %11291
    %11293 = vrot.lane.b32.xlu0 %v11139, 98
    %v11294 = vpop.permute.xlu0 %11293
    %11295 = vrot.lane.b32.xlu0 %v11140, 98
    %v11296 = vpop.permute.xlu0 %11295
    %11297 = vrot.lane.b32.xlu0 %v11141, 98
    %v11298 = vpop.permute.xlu0 %11297
    %11299 = vrot.lane.b32.xlu0 %v11142, 98
    %v11300 = vpop.permute.xlu0 %11299
    %11301 = vrot.lane.b32.xlu0 %v11143, 98
    %v11302 = vpop.permute.xlu0 %11301
    %11303 = vrot.lane.b32.xlu0 %v11144, 98
    %v11304 = vpop.permute.xlu0 %11303
    %11305 = vrot.lane.b32.xlu0 %v11145, 98
    %v11306 = vpop.permute.xlu0 %11305
    %11307 = vrot.lane.b32.xlu0 %v11146, 98
    %v11308 = vpop.permute.xlu0 %11307
    %vm11309 = vcmask 801792
    %v11310 = vsel %vm11309, %v11202, %v11204
    %v11311 = vsel %vm11309, %v11204, %v11206
    %v11312 = vsel %vm11309, %v11206, %v11208
    %v11313 = vsel %vm11309, %v11208, %v11210
    %v11314 = vsel %vm11309, %v11210, %v11212
    %v11315 = vsel %vm11309, %v11212, %v11214
    %v11316 = vsel %vm11309, %v11214, %v11216
    %v11317 = vsel %vm11309, %v11216, %v11218
    %v11318 = vsel %vm11309, %v11220, %v11222
    %v11319 = vsel %vm11309, %v11222, %v11224
    %v11320 = vsel %vm11309, %v11224, %v11226
    %v11321 = vsel %vm11309, %v11226, %v11228
    %v11322 = vsel %vm11309, %v11228, %v11230
    %v11323 = vsel %vm11309, %v11230, %v11232
    %v11324 = vsel %vm11309, %v11232, %v11234
    %v11325 = vsel %vm11309, %v11234, %v11236
    %v11326 = vsel %vm11309, %v11238, %v11240
    %v11327 = vsel %vm11309, %v11240, %v11242
    %v11328 = vsel %vm11309, %v11242, %v11244
    %v11329 = vsel %vm11309, %v11244, %v11246
    %v11330 = vsel %vm11309, %v11246, %v11248
    %v11331 = vsel %vm11309, %v11248, %v11250
    %v11332 = vsel %vm11309, %v11250, %v11252
    %v11333 = vsel %vm11309, %v11252, %v11254
    %v11334 = vsel %vm11309, %v11256, %v11258
    %v11335 = vsel %vm11309, %v11258, %v11260
    %v11336 = vsel %vm11309, %v11260, %v11262
    %v11337 = vsel %vm11309, %v11262, %v11264
    %v11338 = vsel %vm11309, %v11264, %v11266
    %v11339 = vsel %vm11309, %v11266, %v11268
    %v11340 = vsel %vm11309, %v11268, %v11270
    %v11341 = vsel %vm11309, %v11270, %v11272
    %v11342 = vsel %vm11309, %v11274, %v11276
    %v11343 = vsel %vm11309, %v11276, %v11278
    %v11344 = vsel %vm11309, %v11278, %v11280
    %v11345 = vsel %vm11309, %v11280, %v11282
    %v11346 = vsel %vm11309, %v11282, %v11284
    %v11347 = vsel %vm11309, %v11284, %v11286
    %v11348 = vsel %vm11309, %v11286, %v11288
    %v11349 = vsel %vm11309, %v11288, %v11290
    %v11350 = vsel %vm11309, %v11292, %v11294
    %v11351 = vsel %vm11309, %v11294, %v11296
    %v11352 = vsel %vm11309, %v11296, %v11298
    %v11353 = vsel %vm11309, %v11298, %v11300
    %v11354 = vsel %vm11309, %v11300, %v11302
    %v11355 = vsel %vm11309, %v11302, %v11304
    %v11356 = vsel %vm11309, %v11304, %v11306
    %v11357 = vsel %vm11309, %v11306, %v11308
    %v11406 = vadd.f32 %v11033, %v11310
    %v11407 = vadd.f32 %v11034, %v11311
    %v11408 = vadd.f32 %v11035, %v11312
    %v11409 = vadd.f32 %v11036, %v11313
    %v11410 = vadd.f32 %v11037, %v11314
    %v11411 = vadd.f32 %v11038, %v11315
    %v11412 = vadd.f32 %v11039, %v11316
    %v11413 = vadd.f32 %v11040, %v11317
    %v11414 = vadd.f32 %v11041, %v11318
    %v11415 = vadd.f32 %v11042, %v11319
    %v11416 = vadd.f32 %v11043, %v11320
    %v11417 = vadd.f32 %v11044, %v11321
    %v11418 = vadd.f32 %v11045, %v11322
    %v11419 = vadd.f32 %v11046, %v11323
    %v11420 = vadd.f32 %v11047, %v11324
    %v11421 = vadd.f32 %v11048, %v11325
    %v11422 = vadd.f32 %v11049, %v11326
    %v11423 = vadd.f32 %v11050, %v11327
    %v11424 = vadd.f32 %v11051, %v11328
    %v11425 = vadd.f32 %v11052, %v11329
    %v11426 = vadd.f32 %v11053, %v11330
    %v11427 = vadd.f32 %v11054, %v11331
    %v11428 = vadd.f32 %v11055, %v11332
    %v11429 = vadd.f32 %v11056, %v11333
    %v11430 = vadd.f32 %v11057, %v11334
    %v11431 = vadd.f32 %v11058, %v11335
    %v11432 = vadd.f32 %v11059, %v11336
    %v11433 = vadd.f32 %v11060, %v11337
    %v11434 = vadd.f32 %v11061, %v11338
    %v11435 = vadd.f32 %v11062, %v11339
    %v11436 = vadd.f32 %v11063, %v11340
    %v11437 = vadd.f32 %v11064, %v11341
    %v11438 = vadd.f32 %v11065, %v11342
    %v11439 = vadd.f32 %v11066, %v11343
    %v11440 = vadd.f32 %v11067, %v11344
    %v11441 = vadd.f32 %v11068, %v11345
    %v11442 = vadd.f32 %v11069, %v11346
    %v11443 = vadd.f32 %v11070, %v11347
    %v11444 = vadd.f32 %v11071, %v11348
    %v11445 = vadd.f32 %v11072, %v11349
    %v11446 = vadd.f32 %v11073, %v11350
    %v11447 = vadd.f32 %v11074, %v11351
    %v11448 = vadd.f32 %v11075, %v11352
    %v11449 = vadd.f32 %v11076, %v11353
    %v11450 = vadd.f32 %v11077, %v11354
    %v11451 = vadd.f32 %v11078, %v11355
    %v11452 = vadd.f32 %v11079, %v11356
    %v11453 = vadd.f32 %v11080, %v11357
    %11454 = vset.pattern.permute.xlu0 31
    %11455 = vperm.xlu0 %11454, %v30
    %v11456 = vpop.permute.xlu0 %11455
    %11458 = vset.pattern.permute.xlu0 31
    %11459 = vperm.xlu0 %11458, %v31
    %v11460 = vpop.permute.xlu0 %11459
    %11462 = vset.pattern.permute.xlu0 31
    %11463 = vperm.xlu0 %11462, %v32
    %v11464 = vpop.permute.xlu0 %11463
    %v11466 = vmul.f32 %v57, %v11456
    %v11467 = vmul.f32 %v61, %v11456
    %v11468 = vmul.f32 %v65, %v11456
    %v11469 = vmul.f32 %v69, %v11456
    %v11470 = vmul.f32 %v73, %v11456
    %v11471 = vmul.f32 %v77, %v11456
    %v11472 = vmul.f32 %v81, %v11456
    %v11473 = vmul.f32 %v85, %v11456
    %v11474 = vmul.f32 %v257, %v11456
    %v11475 = vmul.f32 %v57, %v11460
    %v11476 = vmul.f32 %v61, %v11460
    %v11477 = vmul.f32 %v65, %v11460
    %v11478 = vmul.f32 %v69, %v11460
    %v11479 = vmul.f32 %v73, %v11460
    %v11480 = vmul.f32 %v77, %v11460
    %v11481 = vmul.f32 %v81, %v11460
    %v11482 = vmul.f32 %v85, %v11460
    %v11483 = vmul.f32 %v257, %v11460
    %v11484 = vmul.f32 %v57, %v11464
    %v11485 = vmul.f32 %v61, %v11464
    %v11486 = vmul.f32 %v65, %v11464
    %v11487 = vmul.f32 %v69, %v11464
    %v11488 = vmul.f32 %v73, %v11464
    %v11489 = vmul.f32 %v77, %v11464
    %v11490 = vmul.f32 %v81, %v11464
    %v11491 = vmul.f32 %v85, %v11464
    %v11492 = vmul.f32 %v257, %v11464
    %v11493 = vmul.f32 %v89, %v11456
    %v11494 = vmul.f32 %v93, %v11456
    %v11495 = vmul.f32 %v97, %v11456
    %v11496 = vmul.f32 %v101, %v11456
    %v11497 = vmul.f32 %v105, %v11456
    %v11498 = vmul.f32 %v109, %v11456
    %v11499 = vmul.f32 %v113, %v11456
    %v11500 = vmul.f32 %v117, %v11456
    %v11501 = vmul.f32 %v261, %v11456
    %v11502 = vmul.f32 %v89, %v11460
    %v11503 = vmul.f32 %v93, %v11460
    %v11504 = vmul.f32 %v97, %v11460
    %v11505 = vmul.f32 %v101, %v11460
    %v11506 = vmul.f32 %v105, %v11460
    %v11507 = vmul.f32 %v109, %v11460
    %v11508 = vmul.f32 %v113, %v11460
    %v11509 = vmul.f32 %v117, %v11460
    %v11510 = vmul.f32 %v261, %v11460
    %v11511 = vmul.f32 %v89, %v11464
    %v11512 = vmul.f32 %v93, %v11464
    %v11513 = vmul.f32 %v97, %v11464
    %v11514 = vmul.f32 %v101, %v11464
    %v11515 = vmul.f32 %v105, %v11464
    %v11516 = vmul.f32 %v109, %v11464
    %v11517 = vmul.f32 %v113, %v11464
    %v11518 = vmul.f32 %v117, %v11464
    %v11519 = vmul.f32 %v261, %v11464
    %11574 = vrot.lane.b32.xlu0 %v11466, 97
    %v11575 = vpop.permute.xlu0 %11574
    %11576 = vrot.lane.b32.xlu0 %v11467, 97
    %v11577 = vpop.permute.xlu0 %11576
    %11578 = vrot.lane.b32.xlu0 %v11468, 97
    %v11579 = vpop.permute.xlu0 %11578
    %11580 = vrot.lane.b32.xlu0 %v11469, 97
    %v11581 = vpop.permute.xlu0 %11580
    %11582 = vrot.lane.b32.xlu0 %v11470, 97
    %v11583 = vpop.permute.xlu0 %11582
    %11584 = vrot.lane.b32.xlu0 %v11471, 97
    %v11585 = vpop.permute.xlu0 %11584
    %11586 = vrot.lane.b32.xlu0 %v11472, 97
    %v11587 = vpop.permute.xlu0 %11586
    %11588 = vrot.lane.b32.xlu0 %v11473, 97
    %v11589 = vpop.permute.xlu0 %11588
    %11590 = vrot.lane.b32.xlu0 %v11474, 97
    %v11591 = vpop.permute.xlu0 %11590
    %11592 = vrot.lane.b32.xlu0 %v11475, 97
    %v11593 = vpop.permute.xlu0 %11592
    %11594 = vrot.lane.b32.xlu0 %v11476, 97
    %v11595 = vpop.permute.xlu0 %11594
    %11596 = vrot.lane.b32.xlu0 %v11477, 97
    %v11597 = vpop.permute.xlu0 %11596
    %11598 = vrot.lane.b32.xlu0 %v11478, 97
    %v11599 = vpop.permute.xlu0 %11598
    %11600 = vrot.lane.b32.xlu0 %v11479, 97
    %v11601 = vpop.permute.xlu0 %11600
    %11602 = vrot.lane.b32.xlu0 %v11480, 97
    %v11603 = vpop.permute.xlu0 %11602
    %11604 = vrot.lane.b32.xlu0 %v11481, 97
    %v11605 = vpop.permute.xlu0 %11604
    %11606 = vrot.lane.b32.xlu0 %v11482, 97
    %v11607 = vpop.permute.xlu0 %11606
    %11608 = vrot.lane.b32.xlu0 %v11483, 97
    %v11609 = vpop.permute.xlu0 %11608
    %11610 = vrot.lane.b32.xlu0 %v11484, 97
    %v11611 = vpop.permute.xlu0 %11610
    %11612 = vrot.lane.b32.xlu0 %v11485, 97
    %v11613 = vpop.permute.xlu0 %11612
    %11614 = vrot.lane.b32.xlu0 %v11486, 97
    %v11615 = vpop.permute.xlu0 %11614
    %11616 = vrot.lane.b32.xlu0 %v11487, 97
    %v11617 = vpop.permute.xlu0 %11616
    %11618 = vrot.lane.b32.xlu0 %v11488, 97
    %v11619 = vpop.permute.xlu0 %11618
    %11620 = vrot.lane.b32.xlu0 %v11489, 97
    %v11621 = vpop.permute.xlu0 %11620
    %11622 = vrot.lane.b32.xlu0 %v11490, 97
    %v11623 = vpop.permute.xlu0 %11622
    %11624 = vrot.lane.b32.xlu0 %v11491, 97
    %v11625 = vpop.permute.xlu0 %11624
    %11626 = vrot.lane.b32.xlu0 %v11492, 97
    %v11627 = vpop.permute.xlu0 %11626
    %11628 = vrot.lane.b32.xlu0 %v11493, 97
    %v11629 = vpop.permute.xlu0 %11628
    %11630 = vrot.lane.b32.xlu0 %v11494, 97
    %v11631 = vpop.permute.xlu0 %11630
    %11632 = vrot.lane.b32.xlu0 %v11495, 97
    %v11633 = vpop.permute.xlu0 %11632
    %11634 = vrot.lane.b32.xlu0 %v11496, 97
    %v11635 = vpop.permute.xlu0 %11634
    %11636 = vrot.lane.b32.xlu0 %v11497, 97
    %v11637 = vpop.permute.xlu0 %11636
    %11638 = vrot.lane.b32.xlu0 %v11498, 97
    %v11639 = vpop.permute.xlu0 %11638
    %11640 = vrot.lane.b32.xlu0 %v11499, 97
    %v11641 = vpop.permute.xlu0 %11640
    %11642 = vrot.lane.b32.xlu0 %v11500, 97
    %v11643 = vpop.permute.xlu0 %11642
    %11644 = vrot.lane.b32.xlu0 %v11501, 97
    %v11645 = vpop.permute.xlu0 %11644
    %11646 = vrot.lane.b32.xlu0 %v11502, 97
    %v11647 = vpop.permute.xlu0 %11646
    %11648 = vrot.lane.b32.xlu0 %v11503, 97
    %v11649 = vpop.permute.xlu0 %11648
    %11650 = vrot.lane.b32.xlu0 %v11504, 97
    %v11651 = vpop.permute.xlu0 %11650
    %11652 = vrot.lane.b32.xlu0 %v11505, 97
    %v11653 = vpop.permute.xlu0 %11652
    %11654 = vrot.lane.b32.xlu0 %v11506, 97
    %v11655 = vpop.permute.xlu0 %11654
    %11656 = vrot.lane.b32.xlu0 %v11507, 97
    %v11657 = vpop.permute.xlu0 %11656
    %11658 = vrot.lane.b32.xlu0 %v11508, 97
    %v11659 = vpop.permute.xlu0 %11658
    %11660 = vrot.lane.b32.xlu0 %v11509, 97
    %v11661 = vpop.permute.xlu0 %11660
    %11662 = vrot.lane.b32.xlu0 %v11510, 97
    %v11663 = vpop.permute.xlu0 %11662
    %11664 = vrot.lane.b32.xlu0 %v11511, 97
    %v11665 = vpop.permute.xlu0 %11664
    %11666 = vrot.lane.b32.xlu0 %v11512, 97
    %v11667 = vpop.permute.xlu0 %11666
    %11668 = vrot.lane.b32.xlu0 %v11513, 97
    %v11669 = vpop.permute.xlu0 %11668
    %11670 = vrot.lane.b32.xlu0 %v11514, 97
    %v11671 = vpop.permute.xlu0 %11670
    %11672 = vrot.lane.b32.xlu0 %v11515, 97
    %v11673 = vpop.permute.xlu0 %11672
    %11674 = vrot.lane.b32.xlu0 %v11516, 97
    %v11675 = vpop.permute.xlu0 %11674
    %11676 = vrot.lane.b32.xlu0 %v11517, 97
    %v11677 = vpop.permute.xlu0 %11676
    %11678 = vrot.lane.b32.xlu0 %v11518, 97
    %v11679 = vpop.permute.xlu0 %11678
    %11680 = vrot.lane.b32.xlu0 %v11519, 97
    %v11681 = vpop.permute.xlu0 %11680
    %vm11682 = vcmask 793600
    %v11683 = vsel %vm11682, %v11575, %v11577
    %v11684 = vsel %vm11682, %v11577, %v11579
    %v11685 = vsel %vm11682, %v11579, %v11581
    %v11686 = vsel %vm11682, %v11581, %v11583
    %v11687 = vsel %vm11682, %v11583, %v11585
    %v11688 = vsel %vm11682, %v11585, %v11587
    %v11689 = vsel %vm11682, %v11587, %v11589
    %v11690 = vsel %vm11682, %v11589, %v11591
    %v11691 = vsel %vm11682, %v11593, %v11595
    %v11692 = vsel %vm11682, %v11595, %v11597
    %v11693 = vsel %vm11682, %v11597, %v11599
    %v11694 = vsel %vm11682, %v11599, %v11601
    %v11695 = vsel %vm11682, %v11601, %v11603
    %v11696 = vsel %vm11682, %v11603, %v11605
    %v11697 = vsel %vm11682, %v11605, %v11607
    %v11698 = vsel %vm11682, %v11607, %v11609
    %v11699 = vsel %vm11682, %v11611, %v11613
    %v11700 = vsel %vm11682, %v11613, %v11615
    %v11701 = vsel %vm11682, %v11615, %v11617
    %v11702 = vsel %vm11682, %v11617, %v11619
    %v11703 = vsel %vm11682, %v11619, %v11621
    %v11704 = vsel %vm11682, %v11621, %v11623
    %v11705 = vsel %vm11682, %v11623, %v11625
    %v11706 = vsel %vm11682, %v11625, %v11627
    %v11707 = vsel %vm11682, %v11629, %v11631
    %v11708 = vsel %vm11682, %v11631, %v11633
    %v11709 = vsel %vm11682, %v11633, %v11635
    %v11710 = vsel %vm11682, %v11635, %v11637
    %v11711 = vsel %vm11682, %v11637, %v11639
    %v11712 = vsel %vm11682, %v11639, %v11641
    %v11713 = vsel %vm11682, %v11641, %v11643
    %v11714 = vsel %vm11682, %v11643, %v11645
    %v11715 = vsel %vm11682, %v11647, %v11649
    %v11716 = vsel %vm11682, %v11649, %v11651
    %v11717 = vsel %vm11682, %v11651, %v11653
    %v11718 = vsel %vm11682, %v11653, %v11655
    %v11719 = vsel %vm11682, %v11655, %v11657
    %v11720 = vsel %vm11682, %v11657, %v11659
    %v11721 = vsel %vm11682, %v11659, %v11661
    %v11722 = vsel %vm11682, %v11661, %v11663
    %v11723 = vsel %vm11682, %v11665, %v11667
    %v11724 = vsel %vm11682, %v11667, %v11669
    %v11725 = vsel %vm11682, %v11669, %v11671
    %v11726 = vsel %vm11682, %v11671, %v11673
    %v11727 = vsel %vm11682, %v11673, %v11675
    %v11728 = vsel %vm11682, %v11675, %v11677
    %v11729 = vsel %vm11682, %v11677, %v11679
    %v11730 = vsel %vm11682, %v11679, %v11681
    %v11779 = vadd.f32 %v11406, %v11683
    %v11780 = vadd.f32 %v11407, %v11684
    %v11781 = vadd.f32 %v11408, %v11685
    %v11782 = vadd.f32 %v11409, %v11686
    %v11783 = vadd.f32 %v11410, %v11687
    %v11784 = vadd.f32 %v11411, %v11688
    %v11785 = vadd.f32 %v11412, %v11689
    %v11786 = vadd.f32 %v11413, %v11690
    %v11787 = vadd.f32 %v11414, %v11691
    %v11788 = vadd.f32 %v11415, %v11692
    %v11789 = vadd.f32 %v11416, %v11693
    %v11790 = vadd.f32 %v11417, %v11694
    %v11791 = vadd.f32 %v11418, %v11695
    %v11792 = vadd.f32 %v11419, %v11696
    %v11793 = vadd.f32 %v11420, %v11697
    %v11794 = vadd.f32 %v11421, %v11698
    %v11795 = vadd.f32 %v11422, %v11699
    %v11796 = vadd.f32 %v11423, %v11700
    %v11797 = vadd.f32 %v11424, %v11701
    %v11798 = vadd.f32 %v11425, %v11702
    %v11799 = vadd.f32 %v11426, %v11703
    %v11800 = vadd.f32 %v11427, %v11704
    %v11801 = vadd.f32 %v11428, %v11705
    %v11802 = vadd.f32 %v11429, %v11706
    %v11803 = vadd.f32 %v11430, %v11707
    %v11804 = vadd.f32 %v11431, %v11708
    %v11805 = vadd.f32 %v11432, %v11709
    %v11806 = vadd.f32 %v11433, %v11710
    %v11807 = vadd.f32 %v11434, %v11711
    %v11808 = vadd.f32 %v11435, %v11712
    %v11809 = vadd.f32 %v11436, %v11713
    %v11810 = vadd.f32 %v11437, %v11714
    %v11811 = vadd.f32 %v11438, %v11715
    %v11812 = vadd.f32 %v11439, %v11716
    %v11813 = vadd.f32 %v11440, %v11717
    %v11814 = vadd.f32 %v11441, %v11718
    %v11815 = vadd.f32 %v11442, %v11719
    %v11816 = vadd.f32 %v11443, %v11720
    %v11817 = vadd.f32 %v11444, %v11721
    %v11818 = vadd.f32 %v11445, %v11722
    %v11819 = vadd.f32 %v11446, %v11723
    %v11820 = vadd.f32 %v11447, %v11724
    %v11821 = vadd.f32 %v11448, %v11725
    %v11822 = vadd.f32 %v11449, %v11726
    %v11823 = vadd.f32 %v11450, %v11727
    %v11824 = vadd.f32 %v11451, %v11728
    %v11825 = vadd.f32 %v11452, %v11729
    %v11826 = vadd.f32 %v11453, %v11730
    %11827 = vset.pattern.permute.xlu0 32
    %11828 = vperm.xlu0 %11827, %v30
    %v11829 = vpop.permute.xlu0 %11828
    %11831 = vset.pattern.permute.xlu0 32
    %11832 = vperm.xlu0 %11831, %v31
    %v11833 = vpop.permute.xlu0 %11832
    %11835 = vset.pattern.permute.xlu0 32
    %11836 = vperm.xlu0 %11835, %v32
    %v11837 = vpop.permute.xlu0 %11836
    %v11839 = vmul.f32 %v57, %v11829
    %v11840 = vmul.f32 %v61, %v11829
    %v11841 = vmul.f32 %v65, %v11829
    %v11842 = vmul.f32 %v69, %v11829
    %v11843 = vmul.f32 %v73, %v11829
    %v11844 = vmul.f32 %v77, %v11829
    %v11845 = vmul.f32 %v81, %v11829
    %v11846 = vmul.f32 %v85, %v11829
    %v11847 = vmul.f32 %v257, %v11829
    %v11848 = vmul.f32 %v57, %v11833
    %v11849 = vmul.f32 %v61, %v11833
    %v11850 = vmul.f32 %v65, %v11833
    %v11851 = vmul.f32 %v69, %v11833
    %v11852 = vmul.f32 %v73, %v11833
    %v11853 = vmul.f32 %v77, %v11833
    %v11854 = vmul.f32 %v81, %v11833
    %v11855 = vmul.f32 %v85, %v11833
    %v11856 = vmul.f32 %v257, %v11833
    %v11857 = vmul.f32 %v57, %v11837
    %v11858 = vmul.f32 %v61, %v11837
    %v11859 = vmul.f32 %v65, %v11837
    %v11860 = vmul.f32 %v69, %v11837
    %v11861 = vmul.f32 %v73, %v11837
    %v11862 = vmul.f32 %v77, %v11837
    %v11863 = vmul.f32 %v81, %v11837
    %v11864 = vmul.f32 %v85, %v11837
    %v11865 = vmul.f32 %v257, %v11837
    %v11866 = vmul.f32 %v89, %v11829
    %v11867 = vmul.f32 %v93, %v11829
    %v11868 = vmul.f32 %v97, %v11829
    %v11869 = vmul.f32 %v101, %v11829
    %v11870 = vmul.f32 %v105, %v11829
    %v11871 = vmul.f32 %v109, %v11829
    %v11872 = vmul.f32 %v113, %v11829
    %v11873 = vmul.f32 %v117, %v11829
    %v11874 = vmul.f32 %v261, %v11829
    %v11875 = vmul.f32 %v89, %v11833
    %v11876 = vmul.f32 %v93, %v11833
    %v11877 = vmul.f32 %v97, %v11833
    %v11878 = vmul.f32 %v101, %v11833
    %v11879 = vmul.f32 %v105, %v11833
    %v11880 = vmul.f32 %v109, %v11833
    %v11881 = vmul.f32 %v113, %v11833
    %v11882 = vmul.f32 %v117, %v11833
    %v11883 = vmul.f32 %v261, %v11833
    %v11884 = vmul.f32 %v89, %v11837
    %v11885 = vmul.f32 %v93, %v11837
    %v11886 = vmul.f32 %v97, %v11837
    %v11887 = vmul.f32 %v101, %v11837
    %v11888 = vmul.f32 %v105, %v11837
    %v11889 = vmul.f32 %v109, %v11837
    %v11890 = vmul.f32 %v113, %v11837
    %v11891 = vmul.f32 %v117, %v11837
    %v11892 = vmul.f32 %v261, %v11837
    %11947 = vrot.lane.b32.xlu0 %v11839, 96
    %v11948 = vpop.permute.xlu0 %11947
    %11949 = vrot.lane.b32.xlu0 %v11840, 96
    %v11950 = vpop.permute.xlu0 %11949
    %11951 = vrot.lane.b32.xlu0 %v11841, 96
    %v11952 = vpop.permute.xlu0 %11951
    %11953 = vrot.lane.b32.xlu0 %v11842, 96
    %v11954 = vpop.permute.xlu0 %11953
    %11955 = vrot.lane.b32.xlu0 %v11843, 96
    %v11956 = vpop.permute.xlu0 %11955
    %11957 = vrot.lane.b32.xlu0 %v11844, 96
    %v11958 = vpop.permute.xlu0 %11957
    %11959 = vrot.lane.b32.xlu0 %v11845, 96
    %v11960 = vpop.permute.xlu0 %11959
    %11961 = vrot.lane.b32.xlu0 %v11846, 96
    %v11962 = vpop.permute.xlu0 %11961
    %11963 = vrot.lane.b32.xlu0 %v11847, 96
    %v11964 = vpop.permute.xlu0 %11963
    %11965 = vrot.lane.b32.xlu0 %v11848, 96
    %v11966 = vpop.permute.xlu0 %11965
    %11967 = vrot.lane.b32.xlu0 %v11849, 96
    %v11968 = vpop.permute.xlu0 %11967
    %11969 = vrot.lane.b32.xlu0 %v11850, 96
    %v11970 = vpop.permute.xlu0 %11969
    %11971 = vrot.lane.b32.xlu0 %v11851, 96
    %v11972 = vpop.permute.xlu0 %11971
    %11973 = vrot.lane.b32.xlu0 %v11852, 96
    %v11974 = vpop.permute.xlu0 %11973
    %11975 = vrot.lane.b32.xlu0 %v11853, 96
    %v11976 = vpop.permute.xlu0 %11975
    %11977 = vrot.lane.b32.xlu0 %v11854, 96
    %v11978 = vpop.permute.xlu0 %11977
    %11979 = vrot.lane.b32.xlu0 %v11855, 96
    %v11980 = vpop.permute.xlu0 %11979
    %11981 = vrot.lane.b32.xlu0 %v11856, 96
    %v11982 = vpop.permute.xlu0 %11981
    %11983 = vrot.lane.b32.xlu0 %v11857, 96
    %v11984 = vpop.permute.xlu0 %11983
    %11985 = vrot.lane.b32.xlu0 %v11858, 96
    %v11986 = vpop.permute.xlu0 %11985
    %11987 = vrot.lane.b32.xlu0 %v11859, 96
    %v11988 = vpop.permute.xlu0 %11987
    %11989 = vrot.lane.b32.xlu0 %v11860, 96
    %v11990 = vpop.permute.xlu0 %11989
    %11991 = vrot.lane.b32.xlu0 %v11861, 96
    %v11992 = vpop.permute.xlu0 %11991
    %11993 = vrot.lane.b32.xlu0 %v11862, 96
    %v11994 = vpop.permute.xlu0 %11993
    %11995 = vrot.lane.b32.xlu0 %v11863, 96
    %v11996 = vpop.permute.xlu0 %11995
    %11997 = vrot.lane.b32.xlu0 %v11864, 96
    %v11998 = vpop.permute.xlu0 %11997
    %11999 = vrot.lane.b32.xlu0 %v11865, 96
    %v12000 = vpop.permute.xlu0 %11999
    %12001 = vrot.lane.b32.xlu0 %v11866, 96
    %v12002 = vpop.permute.xlu0 %12001
    %12003 = vrot.lane.b32.xlu0 %v11867, 96
    %v12004 = vpop.permute.xlu0 %12003
    %12005 = vrot.lane.b32.xlu0 %v11868, 96
    %v12006 = vpop.permute.xlu0 %12005
    %12007 = vrot.lane.b32.xlu0 %v11869, 96
    %v12008 = vpop.permute.xlu0 %12007
    %12009 = vrot.lane.b32.xlu0 %v11870, 96
    %v12010 = vpop.permute.xlu0 %12009
    %12011 = vrot.lane.b32.xlu0 %v11871, 96
    %v12012 = vpop.permute.xlu0 %12011
    %12013 = vrot.lane.b32.xlu0 %v11872, 96
    %v12014 = vpop.permute.xlu0 %12013
    %12015 = vrot.lane.b32.xlu0 %v11873, 96
    %v12016 = vpop.permute.xlu0 %12015
    %12017 = vrot.lane.b32.xlu0 %v11874, 96
    %v12018 = vpop.permute.xlu0 %12017
    %12019 = vrot.lane.b32.xlu0 %v11875, 96
    %v12020 = vpop.permute.xlu0 %12019
    %12021 = vrot.lane.b32.xlu0 %v11876, 96
    %v12022 = vpop.permute.xlu0 %12021
    %12023 = vrot.lane.b32.xlu0 %v11877, 96
    %v12024 = vpop.permute.xlu0 %12023
    %12025 = vrot.lane.b32.xlu0 %v11878, 96
    %v12026 = vpop.permute.xlu0 %12025
    %12027 = vrot.lane.b32.xlu0 %v11879, 96
    %v12028 = vpop.permute.xlu0 %12027
    %12029 = vrot.lane.b32.xlu0 %v11880, 96
    %v12030 = vpop.permute.xlu0 %12029
    %12031 = vrot.lane.b32.xlu0 %v11881, 96
    %v12032 = vpop.permute.xlu0 %12031
    %12033 = vrot.lane.b32.xlu0 %v11882, 96
    %v12034 = vpop.permute.xlu0 %12033
    %12035 = vrot.lane.b32.xlu0 %v11883, 96
    %v12036 = vpop.permute.xlu0 %12035
    %12037 = vrot.lane.b32.xlu0 %v11884, 96
    %v12038 = vpop.permute.xlu0 %12037
    %12039 = vrot.lane.b32.xlu0 %v11885, 96
    %v12040 = vpop.permute.xlu0 %12039
    %12041 = vrot.lane.b32.xlu0 %v11886, 96
    %v12042 = vpop.permute.xlu0 %12041
    %12043 = vrot.lane.b32.xlu0 %v11887, 96
    %v12044 = vpop.permute.xlu0 %12043
    %12045 = vrot.lane.b32.xlu0 %v11888, 96
    %v12046 = vpop.permute.xlu0 %12045
    %12047 = vrot.lane.b32.xlu0 %v11889, 96
    %v12048 = vpop.permute.xlu0 %12047
    %12049 = vrot.lane.b32.xlu0 %v11890, 96
    %v12050 = vpop.permute.xlu0 %12049
    %12051 = vrot.lane.b32.xlu0 %v11891, 96
    %v12052 = vpop.permute.xlu0 %12051
    %12053 = vrot.lane.b32.xlu0 %v11892, 96
    %v12054 = vpop.permute.xlu0 %12053
    %vm12055 = vcmask 785408
    %v12056 = vsel %vm12055, %v11948, %v11950
    %v12057 = vsel %vm12055, %v11950, %v11952
    %v12058 = vsel %vm12055, %v11952, %v11954
    %v12059 = vsel %vm12055, %v11954, %v11956
    %v12060 = vsel %vm12055, %v11956, %v11958
    %v12061 = vsel %vm12055, %v11958, %v11960
    %v12062 = vsel %vm12055, %v11960, %v11962
    %v12063 = vsel %vm12055, %v11962, %v11964
    %v12064 = vsel %vm12055, %v11966, %v11968
    %v12065 = vsel %vm12055, %v11968, %v11970
    %v12066 = vsel %vm12055, %v11970, %v11972
    %v12067 = vsel %vm12055, %v11972, %v11974
    %v12068 = vsel %vm12055, %v11974, %v11976
    %v12069 = vsel %vm12055, %v11976, %v11978
    %v12070 = vsel %vm12055, %v11978, %v11980
    %v12071 = vsel %vm12055, %v11980, %v11982
    %v12072 = vsel %vm12055, %v11984, %v11986
    %v12073 = vsel %vm12055, %v11986, %v11988
    %v12074 = vsel %vm12055, %v11988, %v11990
    %v12075 = vsel %vm12055, %v11990, %v11992
    %v12076 = vsel %vm12055, %v11992, %v11994
    %v12077 = vsel %vm12055, %v11994, %v11996
    %v12078 = vsel %vm12055, %v11996, %v11998
    %v12079 = vsel %vm12055, %v11998, %v12000
    %v12080 = vsel %vm12055, %v12002, %v12004
    %v12081 = vsel %vm12055, %v12004, %v12006
    %v12082 = vsel %vm12055, %v12006, %v12008
    %v12083 = vsel %vm12055, %v12008, %v12010
    %v12084 = vsel %vm12055, %v12010, %v12012
    %v12085 = vsel %vm12055, %v12012, %v12014
    %v12086 = vsel %vm12055, %v12014, %v12016
    %v12087 = vsel %vm12055, %v12016, %v12018
    %v12088 = vsel %vm12055, %v12020, %v12022
    %v12089 = vsel %vm12055, %v12022, %v12024
    %v12090 = vsel %vm12055, %v12024, %v12026
    %v12091 = vsel %vm12055, %v12026, %v12028
    %v12092 = vsel %vm12055, %v12028, %v12030
    %v12093 = vsel %vm12055, %v12030, %v12032
    %v12094 = vsel %vm12055, %v12032, %v12034
    %v12095 = vsel %vm12055, %v12034, %v12036
    %v12096 = vsel %vm12055, %v12038, %v12040
    %v12097 = vsel %vm12055, %v12040, %v12042
    %v12098 = vsel %vm12055, %v12042, %v12044
    %v12099 = vsel %vm12055, %v12044, %v12046
    %v12100 = vsel %vm12055, %v12046, %v12048
    %v12101 = vsel %vm12055, %v12048, %v12050
    %v12102 = vsel %vm12055, %v12050, %v12052
    %v12103 = vsel %vm12055, %v12052, %v12054
    %v12152 = vadd.f32 %v11779, %v12056
    %v12153 = vadd.f32 %v11780, %v12057
    %v12154 = vadd.f32 %v11781, %v12058
    %v12155 = vadd.f32 %v11782, %v12059
    %v12156 = vadd.f32 %v11783, %v12060
    %v12157 = vadd.f32 %v11784, %v12061
    %v12158 = vadd.f32 %v11785, %v12062
    %v12159 = vadd.f32 %v11786, %v12063
    %v12160 = vadd.f32 %v11787, %v12064
    %v12161 = vadd.f32 %v11788, %v12065
    %v12162 = vadd.f32 %v11789, %v12066
    %v12163 = vadd.f32 %v11790, %v12067
    %v12164 = vadd.f32 %v11791, %v12068
    %v12165 = vadd.f32 %v11792, %v12069
    %v12166 = vadd.f32 %v11793, %v12070
    %v12167 = vadd.f32 %v11794, %v12071
    %v12168 = vadd.f32 %v11795, %v12072
    %v12169 = vadd.f32 %v11796, %v12073
    %v12170 = vadd.f32 %v11797, %v12074
    %v12171 = vadd.f32 %v11798, %v12075
    %v12172 = vadd.f32 %v11799, %v12076
    %v12173 = vadd.f32 %v11800, %v12077
    %v12174 = vadd.f32 %v11801, %v12078
    %v12175 = vadd.f32 %v11802, %v12079
    %v12176 = vadd.f32 %v11803, %v12080
    %v12177 = vadd.f32 %v11804, %v12081
    %v12178 = vadd.f32 %v11805, %v12082
    %v12179 = vadd.f32 %v11806, %v12083
    %v12180 = vadd.f32 %v11807, %v12084
    %v12181 = vadd.f32 %v11808, %v12085
    %v12182 = vadd.f32 %v11809, %v12086
    %v12183 = vadd.f32 %v11810, %v12087
    %v12184 = vadd.f32 %v11811, %v12088
    %v12185 = vadd.f32 %v11812, %v12089
    %v12186 = vadd.f32 %v11813, %v12090
    %v12187 = vadd.f32 %v11814, %v12091
    %v12188 = vadd.f32 %v11815, %v12092
    %v12189 = vadd.f32 %v11816, %v12093
    %v12190 = vadd.f32 %v11817, %v12094
    %v12191 = vadd.f32 %v11818, %v12095
    %v12192 = vadd.f32 %v11819, %v12096
    %v12193 = vadd.f32 %v11820, %v12097
    %v12194 = vadd.f32 %v11821, %v12098
    %v12195 = vadd.f32 %v11822, %v12099
    %v12196 = vadd.f32 %v11823, %v12100
    %v12197 = vadd.f32 %v11824, %v12101
    %v12198 = vadd.f32 %v11825, %v12102
    %v12199 = vadd.f32 %v11826, %v12103
    %12200 = vset.pattern.permute.xlu0 33
    %12201 = vperm.xlu0 %12200, %v30
    %v12202 = vpop.permute.xlu0 %12201
    %12204 = vset.pattern.permute.xlu0 33
    %12205 = vperm.xlu0 %12204, %v31
    %v12206 = vpop.permute.xlu0 %12205
    %12208 = vset.pattern.permute.xlu0 33
    %12209 = vperm.xlu0 %12208, %v32
    %v12210 = vpop.permute.xlu0 %12209
    %v12212 = vmul.f32 %v57, %v12202
    %v12213 = vmul.f32 %v61, %v12202
    %v12214 = vmul.f32 %v65, %v12202
    %v12215 = vmul.f32 %v69, %v12202
    %v12216 = vmul.f32 %v73, %v12202
    %v12217 = vmul.f32 %v77, %v12202
    %v12218 = vmul.f32 %v81, %v12202
    %v12219 = vmul.f32 %v85, %v12202
    %v12220 = vmul.f32 %v257, %v12202
    %v12221 = vmul.f32 %v57, %v12206
    %v12222 = vmul.f32 %v61, %v12206
    %v12223 = vmul.f32 %v65, %v12206
    %v12224 = vmul.f32 %v69, %v12206
    %v12225 = vmul.f32 %v73, %v12206
    %v12226 = vmul.f32 %v77, %v12206
    %v12227 = vmul.f32 %v81, %v12206
    %v12228 = vmul.f32 %v85, %v12206
    %v12229 = vmul.f32 %v257, %v12206
    %v12230 = vmul.f32 %v57, %v12210
    %v12231 = vmul.f32 %v61, %v12210
    %v12232 = vmul.f32 %v65, %v12210
    %v12233 = vmul.f32 %v69, %v12210
    %v12234 = vmul.f32 %v73, %v12210
    %v12235 = vmul.f32 %v77, %v12210
    %v12236 = vmul.f32 %v81, %v12210
    %v12237 = vmul.f32 %v85, %v12210
    %v12238 = vmul.f32 %v257, %v12210
    %v12239 = vmul.f32 %v89, %v12202
    %v12240 = vmul.f32 %v93, %v12202
    %v12241 = vmul.f32 %v97, %v12202
    %v12242 = vmul.f32 %v101, %v12202
    %v12243 = vmul.f32 %v105, %v12202
    %v12244 = vmul.f32 %v109, %v12202
    %v12245 = vmul.f32 %v113, %v12202
    %v12246 = vmul.f32 %v117, %v12202
    %v12247 = vmul.f32 %v261, %v12202
    %v12248 = vmul.f32 %v89, %v12206
    %v12249 = vmul.f32 %v93, %v12206
    %v12250 = vmul.f32 %v97, %v12206
    %v12251 = vmul.f32 %v101, %v12206
    %v12252 = vmul.f32 %v105, %v12206
    %v12253 = vmul.f32 %v109, %v12206
    %v12254 = vmul.f32 %v113, %v12206
    %v12255 = vmul.f32 %v117, %v12206
    %v12256 = vmul.f32 %v261, %v12206
    %v12257 = vmul.f32 %v89, %v12210
    %v12258 = vmul.f32 %v93, %v12210
    %v12259 = vmul.f32 %v97, %v12210
    %v12260 = vmul.f32 %v101, %v12210
    %v12261 = vmul.f32 %v105, %v12210
    %v12262 = vmul.f32 %v109, %v12210
    %v12263 = vmul.f32 %v113, %v12210
    %v12264 = vmul.f32 %v117, %v12210
    %v12265 = vmul.f32 %v261, %v12210
    %12320 = vrot.lane.b32.xlu0 %v12212, 95
    %v12321 = vpop.permute.xlu0 %12320
    %12322 = vrot.lane.b32.xlu0 %v12213, 95
    %v12323 = vpop.permute.xlu0 %12322
    %12324 = vrot.lane.b32.xlu0 %v12214, 95
    %v12325 = vpop.permute.xlu0 %12324
    %12326 = vrot.lane.b32.xlu0 %v12215, 95
    %v12327 = vpop.permute.xlu0 %12326
    %12328 = vrot.lane.b32.xlu0 %v12216, 95
    %v12329 = vpop.permute.xlu0 %12328
    %12330 = vrot.lane.b32.xlu0 %v12217, 95
    %v12331 = vpop.permute.xlu0 %12330
    %12332 = vrot.lane.b32.xlu0 %v12218, 95
    %v12333 = vpop.permute.xlu0 %12332
    %12334 = vrot.lane.b32.xlu0 %v12219, 95
    %v12335 = vpop.permute.xlu0 %12334
    %12336 = vrot.lane.b32.xlu0 %v12220, 95
    %v12337 = vpop.permute.xlu0 %12336
    %12338 = vrot.lane.b32.xlu0 %v12221, 95
    %v12339 = vpop.permute.xlu0 %12338
    %12340 = vrot.lane.b32.xlu0 %v12222, 95
    %v12341 = vpop.permute.xlu0 %12340
    %12342 = vrot.lane.b32.xlu0 %v12223, 95
    %v12343 = vpop.permute.xlu0 %12342
    %12344 = vrot.lane.b32.xlu0 %v12224, 95
    %v12345 = vpop.permute.xlu0 %12344
    %12346 = vrot.lane.b32.xlu0 %v12225, 95
    %v12347 = vpop.permute.xlu0 %12346
    %12348 = vrot.lane.b32.xlu0 %v12226, 95
    %v12349 = vpop.permute.xlu0 %12348
    %12350 = vrot.lane.b32.xlu0 %v12227, 95
    %v12351 = vpop.permute.xlu0 %12350
    %12352 = vrot.lane.b32.xlu0 %v12228, 95
    %v12353 = vpop.permute.xlu0 %12352
    %12354 = vrot.lane.b32.xlu0 %v12229, 95
    %v12355 = vpop.permute.xlu0 %12354
    %12356 = vrot.lane.b32.xlu0 %v12230, 95
    %v12357 = vpop.permute.xlu0 %12356
    %12358 = vrot.lane.b32.xlu0 %v12231, 95
    %v12359 = vpop.permute.xlu0 %12358
    %12360 = vrot.lane.b32.xlu0 %v12232, 95
    %v12361 = vpop.permute.xlu0 %12360
    %12362 = vrot.lane.b32.xlu0 %v12233, 95
    %v12363 = vpop.permute.xlu0 %12362
    %12364 = vrot.lane.b32.xlu0 %v12234, 95
    %v12365 = vpop.permute.xlu0 %12364
    %12366 = vrot.lane.b32.xlu0 %v12235, 95
    %v12367 = vpop.permute.xlu0 %12366
    %12368 = vrot.lane.b32.xlu0 %v12236, 95
    %v12369 = vpop.permute.xlu0 %12368
    %12370 = vrot.lane.b32.xlu0 %v12237, 95
    %v12371 = vpop.permute.xlu0 %12370
    %12372 = vrot.lane.b32.xlu0 %v12238, 95
    %v12373 = vpop.permute.xlu0 %12372
    %12374 = vrot.lane.b32.xlu0 %v12239, 95
    %v12375 = vpop.permute.xlu0 %12374
    %12376 = vrot.lane.b32.xlu0 %v12240, 95
    %v12377 = vpop.permute.xlu0 %12376
    %12378 = vrot.lane.b32.xlu0 %v12241, 95
    %v12379 = vpop.permute.xlu0 %12378
    %12380 = vrot.lane.b32.xlu0 %v12242, 95
    %v12381 = vpop.permute.xlu0 %12380
    %12382 = vrot.lane.b32.xlu0 %v12243, 95
    %v12383 = vpop.permute.xlu0 %12382
    %12384 = vrot.lane.b32.xlu0 %v12244, 95
    %v12385 = vpop.permute.xlu0 %12384
    %12386 = vrot.lane.b32.xlu0 %v12245, 95
    %v12387 = vpop.permute.xlu0 %12386
    %12388 = vrot.lane.b32.xlu0 %v12246, 95
    %v12389 = vpop.permute.xlu0 %12388
    %12390 = vrot.lane.b32.xlu0 %v12247, 95
    %v12391 = vpop.permute.xlu0 %12390
    %12392 = vrot.lane.b32.xlu0 %v12248, 95
    %v12393 = vpop.permute.xlu0 %12392
    %12394 = vrot.lane.b32.xlu0 %v12249, 95
    %v12395 = vpop.permute.xlu0 %12394
    %12396 = vrot.lane.b32.xlu0 %v12250, 95
    %v12397 = vpop.permute.xlu0 %12396
    %12398 = vrot.lane.b32.xlu0 %v12251, 95
    %v12399 = vpop.permute.xlu0 %12398
    %12400 = vrot.lane.b32.xlu0 %v12252, 95
    %v12401 = vpop.permute.xlu0 %12400
    %12402 = vrot.lane.b32.xlu0 %v12253, 95
    %v12403 = vpop.permute.xlu0 %12402
    %12404 = vrot.lane.b32.xlu0 %v12254, 95
    %v12405 = vpop.permute.xlu0 %12404
    %12406 = vrot.lane.b32.xlu0 %v12255, 95
    %v12407 = vpop.permute.xlu0 %12406
    %12408 = vrot.lane.b32.xlu0 %v12256, 95
    %v12409 = vpop.permute.xlu0 %12408
    %12410 = vrot.lane.b32.xlu0 %v12257, 95
    %v12411 = vpop.permute.xlu0 %12410
    %12412 = vrot.lane.b32.xlu0 %v12258, 95
    %v12413 = vpop.permute.xlu0 %12412
    %12414 = vrot.lane.b32.xlu0 %v12259, 95
    %v12415 = vpop.permute.xlu0 %12414
    %12416 = vrot.lane.b32.xlu0 %v12260, 95
    %v12417 = vpop.permute.xlu0 %12416
    %12418 = vrot.lane.b32.xlu0 %v12261, 95
    %v12419 = vpop.permute.xlu0 %12418
    %12420 = vrot.lane.b32.xlu0 %v12262, 95
    %v12421 = vpop.permute.xlu0 %12420
    %12422 = vrot.lane.b32.xlu0 %v12263, 95
    %v12423 = vpop.permute.xlu0 %12422
    %12424 = vrot.lane.b32.xlu0 %v12264, 95
    %v12425 = vpop.permute.xlu0 %12424
    %12426 = vrot.lane.b32.xlu0 %v12265, 95
    %v12427 = vpop.permute.xlu0 %12426
    %vm12428 = vcmask 777216
    %v12429 = vsel %vm12428, %v12321, %v12323
    %v12430 = vsel %vm12428, %v12323, %v12325
    %v12431 = vsel %vm12428, %v12325, %v12327
    %v12432 = vsel %vm12428, %v12327, %v12329
    %v12433 = vsel %vm12428, %v12329, %v12331
    %v12434 = vsel %vm12428, %v12331, %v12333
    %v12435 = vsel %vm12428, %v12333, %v12335
    %v12436 = vsel %vm12428, %v12335, %v12337
    %v12437 = vsel %vm12428, %v12339, %v12341
    %v12438 = vsel %vm12428, %v12341, %v12343
    %v12439 = vsel %vm12428, %v12343, %v12345
    %v12440 = vsel %vm12428, %v12345, %v12347
    %v12441 = vsel %vm12428, %v12347, %v12349
    %v12442 = vsel %vm12428, %v12349, %v12351
    %v12443 = vsel %vm12428, %v12351, %v12353
    %v12444 = vsel %vm12428, %v12353, %v12355
    %v12445 = vsel %vm12428, %v12357, %v12359
    %v12446 = vsel %vm12428, %v12359, %v12361
    %v12447 = vsel %vm12428, %v12361, %v12363
    %v12448 = vsel %vm12428, %v12363, %v12365
    %v12449 = vsel %vm12428, %v12365, %v12367
    %v12450 = vsel %vm12428, %v12367, %v12369
    %v12451 = vsel %vm12428, %v12369, %v12371
    %v12452 = vsel %vm12428, %v12371, %v12373
    %v12453 = vsel %vm12428, %v12375, %v12377
    %v12454 = vsel %vm12428, %v12377, %v12379
    %v12455 = vsel %vm12428, %v12379, %v12381
    %v12456 = vsel %vm12428, %v12381, %v12383
    %v12457 = vsel %vm12428, %v12383, %v12385
    %v12458 = vsel %vm12428, %v12385, %v12387
    %v12459 = vsel %vm12428, %v12387, %v12389
    %v12460 = vsel %vm12428, %v12389, %v12391
    %v12461 = vsel %vm12428, %v12393, %v12395
    %v12462 = vsel %vm12428, %v12395, %v12397
    %v12463 = vsel %vm12428, %v12397, %v12399
    %v12464 = vsel %vm12428, %v12399, %v12401
    %v12465 = vsel %vm12428, %v12401, %v12403
    %v12466 = vsel %vm12428, %v12403, %v12405
    %v12467 = vsel %vm12428, %v12405, %v12407
    %v12468 = vsel %vm12428, %v12407, %v12409
    %v12469 = vsel %vm12428, %v12411, %v12413
    %v12470 = vsel %vm12428, %v12413, %v12415
    %v12471 = vsel %vm12428, %v12415, %v12417
    %v12472 = vsel %vm12428, %v12417, %v12419
    %v12473 = vsel %vm12428, %v12419, %v12421
    %v12474 = vsel %vm12428, %v12421, %v12423
    %v12475 = vsel %vm12428, %v12423, %v12425
    %v12476 = vsel %vm12428, %v12425, %v12427
    %v12525 = vadd.f32 %v12152, %v12429
    %v12526 = vadd.f32 %v12153, %v12430
    %v12527 = vadd.f32 %v12154, %v12431
    %v12528 = vadd.f32 %v12155, %v12432
    %v12529 = vadd.f32 %v12156, %v12433
    %v12530 = vadd.f32 %v12157, %v12434
    %v12531 = vadd.f32 %v12158, %v12435
    %v12532 = vadd.f32 %v12159, %v12436
    %v12533 = vadd.f32 %v12160, %v12437
    %v12534 = vadd.f32 %v12161, %v12438
    %v12535 = vadd.f32 %v12162, %v12439
    %v12536 = vadd.f32 %v12163, %v12440
    %v12537 = vadd.f32 %v12164, %v12441
    %v12538 = vadd.f32 %v12165, %v12442
    %v12539 = vadd.f32 %v12166, %v12443
    %v12540 = vadd.f32 %v12167, %v12444
    %v12541 = vadd.f32 %v12168, %v12445
    %v12542 = vadd.f32 %v12169, %v12446
    %v12543 = vadd.f32 %v12170, %v12447
    %v12544 = vadd.f32 %v12171, %v12448
    %v12545 = vadd.f32 %v12172, %v12449
    %v12546 = vadd.f32 %v12173, %v12450
    %v12547 = vadd.f32 %v12174, %v12451
    %v12548 = vadd.f32 %v12175, %v12452
    %v12549 = vadd.f32 %v12176, %v12453
    %v12550 = vadd.f32 %v12177, %v12454
    %v12551 = vadd.f32 %v12178, %v12455
    %v12552 = vadd.f32 %v12179, %v12456
    %v12553 = vadd.f32 %v12180, %v12457
    %v12554 = vadd.f32 %v12181, %v12458
    %v12555 = vadd.f32 %v12182, %v12459
    %v12556 = vadd.f32 %v12183, %v12460
    %v12557 = vadd.f32 %v12184, %v12461
    %v12558 = vadd.f32 %v12185, %v12462
    %v12559 = vadd.f32 %v12186, %v12463
    %v12560 = vadd.f32 %v12187, %v12464
    %v12561 = vadd.f32 %v12188, %v12465
    %v12562 = vadd.f32 %v12189, %v12466
    %v12563 = vadd.f32 %v12190, %v12467
    %v12564 = vadd.f32 %v12191, %v12468
    %v12565 = vadd.f32 %v12192, %v12469
    %v12566 = vadd.f32 %v12193, %v12470
    %v12567 = vadd.f32 %v12194, %v12471
    %v12568 = vadd.f32 %v12195, %v12472
    %v12569 = vadd.f32 %v12196, %v12473
    %v12570 = vadd.f32 %v12197, %v12474
    %v12571 = vadd.f32 %v12198, %v12475
    %v12572 = vadd.f32 %v12199, %v12476
    %12574 = vset.pattern.permute.xlu0 0
    %12575 = vperm.xlu0 %12574, %v33
    %v12576 = vpop.permute.xlu0 %12575
    %12579 = vset.pattern.permute.xlu0 0
    %12580 = vperm.xlu0 %12579, %v34
    %v12581 = vpop.permute.xlu0 %12580
    %12584 = vset.pattern.permute.xlu0 0
    %12585 = vperm.xlu0 %12584, %v35
    %v12586 = vpop.permute.xlu0 %12585
    %v12588 = vadd.f32 %v12525, %v12576
    %v12589 = vadd.f32 %v12526, %v12576
    %v12590 = vadd.f32 %v12527, %v12576
    %v12591 = vadd.f32 %v12528, %v12576
    %v12592 = vadd.f32 %v12529, %v12576
    %v12593 = vadd.f32 %v12530, %v12576
    %v12594 = vadd.f32 %v12531, %v12576
    %v12595 = vadd.f32 %v12532, %v12576
    %v12596 = vadd.f32 %v12533, %v12581
    %v12597 = vadd.f32 %v12534, %v12581
    %v12598 = vadd.f32 %v12535, %v12581
    %v12599 = vadd.f32 %v12536, %v12581
    %v12600 = vadd.f32 %v12537, %v12581
    %v12601 = vadd.f32 %v12538, %v12581
    %v12602 = vadd.f32 %v12539, %v12581
    %v12603 = vadd.f32 %v12540, %v12581
    %v12604 = vadd.f32 %v12541, %v12586
    %v12605 = vadd.f32 %v12542, %v12586
    %v12606 = vadd.f32 %v12543, %v12586
    %v12607 = vadd.f32 %v12544, %v12586
    %v12608 = vadd.f32 %v12545, %v12586
    %v12609 = vadd.f32 %v12546, %v12586
    %v12610 = vadd.f32 %v12547, %v12586
    %v12611 = vadd.f32 %v12548, %v12586
    %v12612 = vadd.f32 %v12549, %v12576
    %v12613 = vadd.f32 %v12550, %v12576
    %v12614 = vadd.f32 %v12551, %v12576
    %v12615 = vadd.f32 %v12552, %v12576
    %v12616 = vadd.f32 %v12553, %v12576
    %v12617 = vadd.f32 %v12554, %v12576
    %v12618 = vadd.f32 %v12555, %v12576
    %v12619 = vadd.f32 %v12556, %v12576
    %v12620 = vadd.f32 %v12557, %v12581
    %v12621 = vadd.f32 %v12558, %v12581
    %v12622 = vadd.f32 %v12559, %v12581
    %v12623 = vadd.f32 %v12560, %v12581
    %v12624 = vadd.f32 %v12561, %v12581
    %v12625 = vadd.f32 %v12562, %v12581
    %v12626 = vadd.f32 %v12563, %v12581
    %v12627 = vadd.f32 %v12564, %v12581
    %v12628 = vadd.f32 %v12565, %v12586
    %v12629 = vadd.f32 %v12566, %v12586
    %v12630 = vadd.f32 %v12567, %v12586
    %v12631 = vadd.f32 %v12568, %v12586
    %v12632 = vadd.f32 %v12569, %v12586
    %v12633 = vadd.f32 %v12570, %v12586
    %v12634 = vadd.f32 %v12571, %v12586
    %v12635 = vadd.f32 %v12572, %v12586
    %v12684 = vcombine.low %v12588, %v12589
    %v12685 = vcombine.high %v12588, %v12589
    %v12686 = vcombine.low %v12590, %v12591
    %v12687 = vcombine.high %v12590, %v12591
    %v12689 = vunpack.c.l.s4 1983009808
    %v12690 = vunpack.c.0.s8 %v12689
    %v12691 = vlaneseq
    %v12692 = vshrl.u32 %v12691, 7
    %v12693 = vsub.s32 %v12690, %v12692
    %v12694 = vrot.slane %v12684, %v12693
    %v12696 = vunpack.c.l.s4 1983009808
    %v12697 = vunpack.c.0.s8 %v12696
    %v12698 = vlaneseq
    %v12699 = vshrl.u32 %v12698, 7
    %v12700 = vsub.s32 %v12697, %v12699
    %v12701 = vrot.slane %v12685, %v12700
    %v12703 = vunpack.c.l.s4 1983009808
    %v12704 = vunpack.c.0.s8 %v12703
    %v12705 = vlaneseq
    %v12706 = vshrl.u32 %v12705, 7
    %v12707 = vsub.s32 %v12704, %v12706
    %v12708 = vrot.slane %v12686, %v12707
    %v12710 = vunpack.c.l.s4 1983009808
    %v12711 = vunpack.c.0.s8 %v12710
    %v12712 = vlaneseq
    %v12713 = vshrl.u32 %v12712, 7
    %v12714 = vsub.s32 %v12711, %v12713
    %v12715 = vrot.slane %v12687, %v12714
    %v12716 = vcombine.low %v12694, %v12708
    %v12717 = vcombine.high %v12694, %v12708
    %v12718 = vcombine.low %v12701, %v12715
    %v12719 = vcombine.high %v12701, %v12715
    %v12720 = vcombine.low %v12596, %v12597
    %v12721 = vcombine.high %v12596, %v12597
    %v12722 = vcombine.low %v12598, %v12599
    %v12723 = vcombine.high %v12598, %v12599
    %v12725 = vunpack.c.l.s4 1983009808
    %v12726 = vunpack.c.0.s8 %v12725
    %v12727 = vlaneseq
    %v12728 = vshrl.u32 %v12727, 7
    %v12729 = vsub.s32 %v12726, %v12728
    %v12730 = vrot.slane %v12720, %v12729
    %v12732 = vunpack.c.l.s4 1983009808
    %v12733 = vunpack.c.0.s8 %v12732
    %v12734 = vlaneseq
    %v12735 = vshrl.u32 %v12734, 7
    %v12736 = vsub.s32 %v12733, %v12735
    %v12737 = vrot.slane %v12721, %v12736
    %v12739 = vunpack.c.l.s4 1983009808
    %v12740 = vunpack.c.0.s8 %v12739
    %v12741 = vlaneseq
    %v12742 = vshrl.u32 %v12741, 7
    %v12743 = vsub.s32 %v12740, %v12742
    %v12744 = vrot.slane %v12722, %v12743
    %v12746 = vunpack.c.l.s4 1983009808
    %v12747 = vunpack.c.0.s8 %v12746
    %v12748 = vlaneseq
    %v12749 = vshrl.u32 %v12748, 7
    %v12750 = vsub.s32 %v12747, %v12749
    %v12751 = vrot.slane %v12723, %v12750
    %v12752 = vcombine.low %v12730, %v12744
    %v12753 = vcombine.high %v12730, %v12744
    %v12754 = vcombine.low %v12737, %v12751
    %v12755 = vcombine.high %v12737, %v12751
    %v12756 = vcombine.low %v12604, %v12605
    %v12757 = vcombine.low %v12606, %v12607
    %v12759 = vunpack.c.l.s4 1983009808
    %v12760 = vunpack.c.0.s8 %v12759
    %v12761 = vlaneseq
    %v12762 = vshrl.u32 %v12761, 7
    %v12763 = vsub.s32 %v12760, %v12762
    %v12764 = vrot.slane %v12756, %v12763
    %v12766 = vunpack.c.l.s4 1983009808
    %v12767 = vunpack.c.0.s8 %v12766
    %v12768 = vlaneseq
    %v12769 = vshrl.u32 %v12768, 7
    %v12770 = vsub.s32 %v12767, %v12769
    %v12771 = vrot.slane %v12757, %v12770
    %v12772 = vcombine.low %v12764, %v12771
    %v12773 = vcombine.high %v12764, %v12771
    %v12774 = vcombine.low %v12592, %v12593
    %v12775 = vcombine.high %v12592, %v12593
    %v12776 = vcombine.low %v12594, %v12595
    %v12777 = vcombine.high %v12594, %v12595
    %v12779 = vunpack.c.l.s4 1983009808
    %v12780 = vunpack.c.0.s8 %v12779
    %v12781 = vlaneseq
    %v12782 = vshrl.u32 %v12781, 7
    %v12783 = vsub.s32 %v12780, %v12782
    %v12784 = vrot.slane %v12774, %v12783
    %v12786 = vunpack.c.l.s4 1983009808
    %v12787 = vunpack.c.0.s8 %v12786
    %v12788 = vlaneseq
    %v12789 = vshrl.u32 %v12788, 7
    %v12790 = vsub.s32 %v12787, %v12789
    %v12791 = vrot.slane %v12775, %v12790
    %v12793 = vunpack.c.l.s4 1983009808
    %v12794 = vunpack.c.0.s8 %v12793
    %v12795 = vlaneseq
    %v12796 = vshrl.u32 %v12795, 7
    %v12797 = vsub.s32 %v12794, %v12796
    %v12798 = vrot.slane %v12776, %v12797
    %v12800 = vunpack.c.l.s4 1983009808
    %v12801 = vunpack.c.0.s8 %v12800
    %v12802 = vlaneseq
    %v12803 = vshrl.u32 %v12802, 7
    %v12804 = vsub.s32 %v12801, %v12803
    %v12805 = vrot.slane %v12777, %v12804
    %v12806 = vcombine.low %v12784, %v12798
    %v12807 = vcombine.high %v12784, %v12798
    %v12808 = vcombine.low %v12791, %v12805
    %v12809 = vcombine.high %v12791, %v12805
    %v12810 = vcombine.low %v12600, %v12601
    %v12811 = vcombine.high %v12600, %v12601
    %v12812 = vcombine.low %v12602, %v12603
    %v12813 = vcombine.high %v12602, %v12603
    %v12815 = vunpack.c.l.s4 1983009808
    %v12816 = vunpack.c.0.s8 %v12815
    %v12817 = vlaneseq
    %v12818 = vshrl.u32 %v12817, 7
    %v12819 = vsub.s32 %v12816, %v12818
    %v12820 = vrot.slane %v12810, %v12819
    %v12822 = vunpack.c.l.s4 1983009808
    %v12823 = vunpack.c.0.s8 %v12822
    %v12824 = vlaneseq
    %v12825 = vshrl.u32 %v12824, 7
    %v12826 = vsub.s32 %v12823, %v12825
    %v12827 = vrot.slane %v12811, %v12826
    %v12829 = vunpack.c.l.s4 1983009808
    %v12830 = vunpack.c.0.s8 %v12829
    %v12831 = vlaneseq
    %v12832 = vshrl.u32 %v12831, 7
    %v12833 = vsub.s32 %v12830, %v12832
    %v12834 = vrot.slane %v12812, %v12833
    %v12836 = vunpack.c.l.s4 1983009808
    %v12837 = vunpack.c.0.s8 %v12836
    %v12838 = vlaneseq
    %v12839 = vshrl.u32 %v12838, 7
    %v12840 = vsub.s32 %v12837, %v12839
    %v12841 = vrot.slane %v12813, %v12840
    %v12842 = vcombine.low %v12820, %v12834
    %v12843 = vcombine.high %v12820, %v12834
    %v12844 = vcombine.low %v12827, %v12841
    %v12845 = vcombine.high %v12827, %v12841
    %v12846 = vcombine.low %v12608, %v12609
    %v12847 = vcombine.low %v12610, %v12611
    %v12849 = vunpack.c.l.s4 1983009808
    %v12850 = vunpack.c.0.s8 %v12849
    %v12851 = vlaneseq
    %v12852 = vshrl.u32 %v12851, 7
    %v12853 = vsub.s32 %v12850, %v12852
    %v12854 = vrot.slane %v12846, %v12853
    %v12856 = vunpack.c.l.s4 1983009808
    %v12857 = vunpack.c.0.s8 %v12856
    %v12858 = vlaneseq
    %v12859 = vshrl.u32 %v12858, 7
    %v12860 = vsub.s32 %v12857, %v12859
    %v12861 = vrot.slane %v12847, %v12860
    %v12862 = vcombine.low %v12854, %v12861
    %v12863 = vcombine.high %v12854, %v12861
    %v12864 = vcombine.low %v12612, %v12613
    %v12865 = vcombine.high %v12612, %v12613
    %v12866 = vcombine.low %v12614, %v12615
    %v12867 = vcombine.high %v12614, %v12615
    %v12869 = vunpack.c.l.s4 1983009808
    %v12870 = vunpack.c.0.s8 %v12869
    %v12871 = vlaneseq
    %v12872 = vshrl.u32 %v12871, 7
    %v12873 = vsub.s32 %v12870, %v12872
    %v12874 = vrot.slane %v12864, %v12873
    %v12876 = vunpack.c.l.s4 1983009808
    %v12877 = vunpack.c.0.s8 %v12876
    %v12878 = vlaneseq
    %v12879 = vshrl.u32 %v12878, 7
    %v12880 = vsub.s32 %v12877, %v12879
    %v12881 = vrot.slane %v12865, %v12880
    %v12883 = vunpack.c.l.s4 1983009808
    %v12884 = vunpack.c.0.s8 %v12883
    %v12885 = vlaneseq
    %v12886 = vshrl.u32 %v12885, 7
    %v12887 = vsub.s32 %v12884, %v12886
    %v12888 = vrot.slane %v12866, %v12887
    %v12890 = vunpack.c.l.s4 1983009808
    %v12891 = vunpack.c.0.s8 %v12890
    %v12892 = vlaneseq
    %v12893 = vshrl.u32 %v12892, 7
    %v12894 = vsub.s32 %v12891, %v12893
    %v12895 = vrot.slane %v12867, %v12894
    %v12896 = vcombine.low %v12874, %v12888
    %v12897 = vcombine.high %v12874, %v12888
    %v12898 = vcombine.low %v12881, %v12895
    %v12899 = vcombine.high %v12881, %v12895
    %v12900 = vcombine.low %v12620, %v12621
    %v12901 = vcombine.high %v12620, %v12621
    %v12902 = vcombine.low %v12622, %v12623
    %v12903 = vcombine.high %v12622, %v12623
    %v12905 = vunpack.c.l.s4 1983009808
    %v12906 = vunpack.c.0.s8 %v12905
    %v12907 = vlaneseq
    %v12908 = vshrl.u32 %v12907, 7
    %v12909 = vsub.s32 %v12906, %v12908
    %v12910 = vrot.slane %v12900, %v12909
    %v12912 = vunpack.c.l.s4 1983009808
    %v12913 = vunpack.c.0.s8 %v12912
    %v12914 = vlaneseq
    %v12915 = vshrl.u32 %v12914, 7
    %v12916 = vsub.s32 %v12913, %v12915
    %v12917 = vrot.slane %v12901, %v12916
    %v12919 = vunpack.c.l.s4 1983009808
    %v12920 = vunpack.c.0.s8 %v12919
    %v12921 = vlaneseq
    %v12922 = vshrl.u32 %v12921, 7
    %v12923 = vsub.s32 %v12920, %v12922
    %v12924 = vrot.slane %v12902, %v12923
    %v12926 = vunpack.c.l.s4 1983009808
    %v12927 = vunpack.c.0.s8 %v12926
    %v12928 = vlaneseq
    %v12929 = vshrl.u32 %v12928, 7
    %v12930 = vsub.s32 %v12927, %v12929
    %v12931 = vrot.slane %v12903, %v12930
    %v12932 = vcombine.low %v12910, %v12924
    %v12933 = vcombine.high %v12910, %v12924
    %v12934 = vcombine.low %v12917, %v12931
    %v12935 = vcombine.high %v12917, %v12931
    %v12936 = vcombine.low %v12628, %v12629
    %v12937 = vcombine.low %v12630, %v12631
    %v12939 = vunpack.c.l.s4 1983009808
    %v12940 = vunpack.c.0.s8 %v12939
    %v12941 = vlaneseq
    %v12942 = vshrl.u32 %v12941, 7
    %v12943 = vsub.s32 %v12940, %v12942
    %v12944 = vrot.slane %v12936, %v12943
    %v12946 = vunpack.c.l.s4 1983009808
    %v12947 = vunpack.c.0.s8 %v12946
    %v12948 = vlaneseq
    %v12949 = vshrl.u32 %v12948, 7
    %v12950 = vsub.s32 %v12947, %v12949
    %v12951 = vrot.slane %v12937, %v12950
    %v12952 = vcombine.low %v12944, %v12951
    %v12953 = vcombine.high %v12944, %v12951
    %v12954 = vcombine.low %v12616, %v12617
    %v12955 = vcombine.high %v12616, %v12617
    %v12956 = vcombine.low %v12618, %v12619
    %v12957 = vcombine.high %v12618, %v12619
    %v12959 = vunpack.c.l.s4 1983009808
    %v12960 = vunpack.c.0.s8 %v12959
    %v12961 = vlaneseq
    %v12962 = vshrl.u32 %v12961, 7
    %v12963 = vsub.s32 %v12960, %v12962
    %v12964 = vrot.slane %v12954, %v12963
    %v12966 = vunpack.c.l.s4 1983009808
    %v12967 = vunpack.c.0.s8 %v12966
    %v12968 = vlaneseq
    %v12969 = vshrl.u32 %v12968, 7
    %v12970 = vsub.s32 %v12967, %v12969
    %v12971 = vrot.slane %v12955, %v12970
    %v12973 = vunpack.c.l.s4 1983009808
    %v12974 = vunpack.c.0.s8 %v12973
    %v12975 = vlaneseq
    %v12976 = vshrl.u32 %v12975, 7
    %v12977 = vsub.s32 %v12974, %v12976
    %v12978 = vrot.slane %v12956, %v12977
    %v12980 = vunpack.c.l.s4 1983009808
    %v12981 = vunpack.c.0.s8 %v12980
    %v12982 = vlaneseq
    %v12983 = vshrl.u32 %v12982, 7
    %v12984 = vsub.s32 %v12981, %v12983
    %v12985 = vrot.slane %v12957, %v12984
    %v12986 = vcombine.low %v12964, %v12978
    %v12987 = vcombine.high %v12964, %v12978
    %v12988 = vcombine.low %v12971, %v12985
    %v12989 = vcombine.high %v12971, %v12985
    %v12990 = vcombine.low %v12624, %v12625
    %v12991 = vcombine.high %v12624, %v12625
    %v12992 = vcombine.low %v12626, %v12627
    %v12993 = vcombine.high %v12626, %v12627
    %v12995 = vunpack.c.l.s4 1983009808
    %v12996 = vunpack.c.0.s8 %v12995
    %v12997 = vlaneseq
    %v12998 = vshrl.u32 %v12997, 7
    %v12999 = vsub.s32 %v12996, %v12998
    %v13000 = vrot.slane %v12990, %v12999
    %v13002 = vunpack.c.l.s4 1983009808
    %v13003 = vunpack.c.0.s8 %v13002
    %v13004 = vlaneseq
    %v13005 = vshrl.u32 %v13004, 7
    %v13006 = vsub.s32 %v13003, %v13005
    %v13007 = vrot.slane %v12991, %v13006
    %v13009 = vunpack.c.l.s4 1983009808
    %v13010 = vunpack.c.0.s8 %v13009
    %v13011 = vlaneseq
    %v13012 = vshrl.u32 %v13011, 7
    %v13013 = vsub.s32 %v13010, %v13012
    %v13014 = vrot.slane %v12992, %v13013
    %v13016 = vunpack.c.l.s4 1983009808
    %v13017 = vunpack.c.0.s8 %v13016
    %v13018 = vlaneseq
    %v13019 = vshrl.u32 %v13018, 7
    %v13020 = vsub.s32 %v13017, %v13019
    %v13021 = vrot.slane %v12993, %v13020
    %v13022 = vcombine.low %v13000, %v13014
    %v13023 = vcombine.high %v13000, %v13014
    %v13024 = vcombine.low %v13007, %v13021
    %v13025 = vcombine.high %v13007, %v13021
    %v13026 = vcombine.low %v12632, %v12633
    %v13027 = vcombine.low %v12634, %v12635
    %v13029 = vunpack.c.l.s4 1983009808
    %v13030 = vunpack.c.0.s8 %v13029
    %v13031 = vlaneseq
    %v13032 = vshrl.u32 %v13031, 7
    %v13033 = vsub.s32 %v13030, %v13032
    %v13034 = vrot.slane %v13026, %v13033
    %v13036 = vunpack.c.l.s4 1983009808
    %v13037 = vunpack.c.0.s8 %v13036
    %v13038 = vlaneseq
    %v13039 = vshrl.u32 %v13038, 7
    %v13040 = vsub.s32 %v13037, %v13039
    %v13041 = vrot.slane %v13027, %v13040
    %v13042 = vcombine.low %v13034, %v13041
    %v13043 = vcombine.high %v13034, %v13041
    %v13084 = vcombine.low %v12716, %v12806
    %v13085 = vcombine.high %v12716, %v12806
    %v13087 = vunpack.c.l.s4 1934713408
    %v13088 = vunpack.c.0.s8 %v13087
    %v13089 = vlaneseq
    %v13090 = vshrl.u32 %v13089, 7
    %v13091 = vsub.s32 %v13088, %v13090
    %v13092 = vrot.slane %v13084, %v13091
    %v13094 = vunpack.c.l.s4 1934713408
    %v13095 = vunpack.c.0.s8 %v13094
    %v13096 = vlaneseq
    %v13097 = vshrl.u32 %v13096, 7
    %v13098 = vsub.s32 %v13095, %v13097
    %v13099 = vrot.slane %v13085, %v13098
    %v13100 = vcombine.low %v13092, %v13099
    %v13101 = vcombine.high %v13092, %v13099
    %v13102 = vcombine.low %v12717, %v12807
    %v13103 = vcombine.high %v12717, %v12807
    %v13105 = vunpack.c.l.s4 1934713408
    %v13106 = vunpack.c.0.s8 %v13105
    %v13107 = vlaneseq
    %v13108 = vshrl.u32 %v13107, 7
    %v13109 = vsub.s32 %v13106, %v13108
    %v13110 = vrot.slane %v13102, %v13109
    %v13112 = vunpack.c.l.s4 1934713408
    %v13113 = vunpack.c.0.s8 %v13112
    %v13114 = vlaneseq
    %v13115 = vshrl.u32 %v13114, 7
    %v13116 = vsub.s32 %v13113, %v13115
    %v13117 = vrot.slane %v13103, %v13116
    %v13118 = vcombine.low %v13110, %v13117
    %v13119 = vcombine.high %v13110, %v13117
    %v13120 = vcombine.low %v12718, %v12808
    %v13121 = vcombine.high %v12718, %v12808
    %v13123 = vunpack.c.l.s4 1934713408
    %v13124 = vunpack.c.0.s8 %v13123
    %v13125 = vlaneseq
    %v13126 = vshrl.u32 %v13125, 7
    %v13127 = vsub.s32 %v13124, %v13126
    %v13128 = vrot.slane %v13120, %v13127
    %v13130 = vunpack.c.l.s4 1934713408
    %v13131 = vunpack.c.0.s8 %v13130
    %v13132 = vlaneseq
    %v13133 = vshrl.u32 %v13132, 7
    %v13134 = vsub.s32 %v13131, %v13133
    %v13135 = vrot.slane %v13121, %v13134
    %v13136 = vcombine.low %v13128, %v13135
    %v13137 = vcombine.high %v13128, %v13135
    %v13138 = vcombine.low %v12719, %v12809
    %v13139 = vcombine.high %v12719, %v12809
    %v13141 = vunpack.c.l.s4 1934713408
    %v13142 = vunpack.c.0.s8 %v13141
    %v13143 = vlaneseq
    %v13144 = vshrl.u32 %v13143, 7
    %v13145 = vsub.s32 %v13142, %v13144
    %v13146 = vrot.slane %v13138, %v13145
    %v13148 = vunpack.c.l.s4 1934713408
    %v13149 = vunpack.c.0.s8 %v13148
    %v13150 = vlaneseq
    %v13151 = vshrl.u32 %v13150, 7
    %v13152 = vsub.s32 %v13149, %v13151
    %v13153 = vrot.slane %v13139, %v13152
    %v13154 = vcombine.low %v13146, %v13153
    %v13155 = vcombine.high %v13146, %v13153
    %v13156 = vcombine.low %v12752, %v12842
    %v13157 = vcombine.high %v12752, %v12842
    %v13159 = vunpack.c.l.s4 1934713408
    %v13160 = vunpack.c.0.s8 %v13159
    %v13161 = vlaneseq
    %v13162 = vshrl.u32 %v13161, 7
    %v13163 = vsub.s32 %v13160, %v13162
    %v13164 = vrot.slane %v13156, %v13163
    %v13166 = vunpack.c.l.s4 1934713408
    %v13167 = vunpack.c.0.s8 %v13166
    %v13168 = vlaneseq
    %v13169 = vshrl.u32 %v13168, 7
    %v13170 = vsub.s32 %v13167, %v13169
    %v13171 = vrot.slane %v13157, %v13170
    %v13172 = vcombine.low %v13164, %v13171
    %v13173 = vcombine.high %v13164, %v13171
    %v13174 = vcombine.low %v12753, %v12843
    %v13175 = vcombine.high %v12753, %v12843
    %v13177 = vunpack.c.l.s4 1934713408
    %v13178 = vunpack.c.0.s8 %v13177
    %v13179 = vlaneseq
    %v13180 = vshrl.u32 %v13179, 7
    %v13181 = vsub.s32 %v13178, %v13180
    %v13182 = vrot.slane %v13174, %v13181
    %v13184 = vunpack.c.l.s4 1934713408
    %v13185 = vunpack.c.0.s8 %v13184
    %v13186 = vlaneseq
    %v13187 = vshrl.u32 %v13186, 7
    %v13188 = vsub.s32 %v13185, %v13187
    %v13189 = vrot.slane %v13175, %v13188
    %v13190 = vcombine.low %v13182, %v13189
    %v13191 = vcombine.high %v13182, %v13189
    %v13192 = vcombine.low %v12754, %v12844
    %v13193 = vcombine.high %v12754, %v12844
    %v13195 = vunpack.c.l.s4 1934713408
    %v13196 = vunpack.c.0.s8 %v13195
    %v13197 = vlaneseq
    %v13198 = vshrl.u32 %v13197, 7
    %v13199 = vsub.s32 %v13196, %v13198
    %v13200 = vrot.slane %v13192, %v13199
    %v13202 = vunpack.c.l.s4 1934713408
    %v13203 = vunpack.c.0.s8 %v13202
    %v13204 = vlaneseq
    %v13205 = vshrl.u32 %v13204, 7
    %v13206 = vsub.s32 %v13203, %v13205
    %v13207 = vrot.slane %v13193, %v13206
    %v13208 = vcombine.low %v13200, %v13207
    %v13209 = vcombine.high %v13200, %v13207
    %v13210 = vcombine.low %v12755, %v12845
    %v13211 = vcombine.high %v12755, %v12845
    %v13213 = vunpack.c.l.s4 1934713408
    %v13214 = vunpack.c.0.s8 %v13213
    %v13215 = vlaneseq
    %v13216 = vshrl.u32 %v13215, 7
    %v13217 = vsub.s32 %v13214, %v13216
    %v13218 = vrot.slane %v13210, %v13217
    %v13220 = vunpack.c.l.s4 1934713408
    %v13221 = vunpack.c.0.s8 %v13220
    %v13222 = vlaneseq
    %v13223 = vshrl.u32 %v13222, 7
    %v13224 = vsub.s32 %v13221, %v13223
    %v13225 = vrot.slane %v13211, %v13224
    %v13226 = vcombine.low %v13218, %v13225
    %v13227 = vcombine.high %v13218, %v13225
    %v13228 = vcombine.low %v12772, %v12862
    %v13229 = vcombine.high %v12772, %v12862
    %v13231 = vunpack.c.l.s4 1934713408
    %v13232 = vunpack.c.0.s8 %v13231
    %v13233 = vlaneseq
    %v13234 = vshrl.u32 %v13233, 7
    %v13235 = vsub.s32 %v13232, %v13234
    %v13236 = vrot.slane %v13228, %v13235
    %v13238 = vunpack.c.l.s4 1934713408
    %v13239 = vunpack.c.0.s8 %v13238
    %v13240 = vlaneseq
    %v13241 = vshrl.u32 %v13240, 7
    %v13242 = vsub.s32 %v13239, %v13241
    %v13243 = vrot.slane %v13229, %v13242
    %v13244 = vcombine.low %v13236, %v13243
    %v13245 = vcombine.high %v13236, %v13243
    %v13246 = vcombine.low %v12773, %v12863
    %v13247 = vcombine.high %v12773, %v12863
    %v13249 = vunpack.c.l.s4 1934713408
    %v13250 = vunpack.c.0.s8 %v13249
    %v13251 = vlaneseq
    %v13252 = vshrl.u32 %v13251, 7
    %v13253 = vsub.s32 %v13250, %v13252
    %v13254 = vrot.slane %v13246, %v13253
    %v13256 = vunpack.c.l.s4 1934713408
    %v13257 = vunpack.c.0.s8 %v13256
    %v13258 = vlaneseq
    %v13259 = vshrl.u32 %v13258, 7
    %v13260 = vsub.s32 %v13257, %v13259
    %v13261 = vrot.slane %v13247, %v13260
    %v13262 = vcombine.low %v13254, %v13261
    %v13263 = vcombine.high %v13254, %v13261
    %v13264 = vcombine.low %v12896, %v12986
    %v13265 = vcombine.high %v12896, %v12986
    %v13267 = vunpack.c.l.s4 1934713408
    %v13268 = vunpack.c.0.s8 %v13267
    %v13269 = vlaneseq
    %v13270 = vshrl.u32 %v13269, 7
    %v13271 = vsub.s32 %v13268, %v13270
    %v13272 = vrot.slane %v13264, %v13271
    %v13274 = vunpack.c.l.s4 1934713408
    %v13275 = vunpack.c.0.s8 %v13274
    %v13276 = vlaneseq
    %v13277 = vshrl.u32 %v13276, 7
    %v13278 = vsub.s32 %v13275, %v13277
    %v13279 = vrot.slane %v13265, %v13278
    %v13280 = vcombine.low %v13272, %v13279
    %v13281 = vcombine.high %v13272, %v13279
    %v13282 = vcombine.low %v12897, %v12987
    %v13283 = vcombine.high %v12897, %v12987
    %v13285 = vunpack.c.l.s4 1934713408
    %v13286 = vunpack.c.0.s8 %v13285
    %v13287 = vlaneseq
    %v13288 = vshrl.u32 %v13287, 7
    %v13289 = vsub.s32 %v13286, %v13288
    %v13290 = vrot.slane %v13282, %v13289
    %v13292 = vunpack.c.l.s4 1934713408
    %v13293 = vunpack.c.0.s8 %v13292
    %v13294 = vlaneseq
    %v13295 = vshrl.u32 %v13294, 7
    %v13296 = vsub.s32 %v13293, %v13295
    %v13297 = vrot.slane %v13283, %v13296
    %v13298 = vcombine.low %v13290, %v13297
    %v13299 = vcombine.high %v13290, %v13297
    %v13300 = vcombine.low %v12898, %v12988
    %v13301 = vcombine.high %v12898, %v12988
    %v13303 = vunpack.c.l.s4 1934713408
    %v13304 = vunpack.c.0.s8 %v13303
    %v13305 = vlaneseq
    %v13306 = vshrl.u32 %v13305, 7
    %v13307 = vsub.s32 %v13304, %v13306
    %v13308 = vrot.slane %v13300, %v13307
    %v13310 = vunpack.c.l.s4 1934713408
    %v13311 = vunpack.c.0.s8 %v13310
    %v13312 = vlaneseq
    %v13313 = vshrl.u32 %v13312, 7
    %v13314 = vsub.s32 %v13311, %v13313
    %v13315 = vrot.slane %v13301, %v13314
    %v13316 = vcombine.low %v13308, %v13315
    %v13317 = vcombine.high %v13308, %v13315
    %v13318 = vcombine.low %v12899, %v12989
    %v13319 = vcombine.high %v12899, %v12989
    %v13321 = vunpack.c.l.s4 1934713408
    %v13322 = vunpack.c.0.s8 %v13321
    %v13323 = vlaneseq
    %v13324 = vshrl.u32 %v13323, 7
    %v13325 = vsub.s32 %v13322, %v13324
    %v13326 = vrot.slane %v13318, %v13325
    %v13328 = vunpack.c.l.s4 1934713408
    %v13329 = vunpack.c.0.s8 %v13328
    %v13330 = vlaneseq
    %v13331 = vshrl.u32 %v13330, 7
    %v13332 = vsub.s32 %v13329, %v13331
    %v13333 = vrot.slane %v13319, %v13332
    %v13334 = vcombine.low %v13326, %v13333
    %v13335 = vcombine.high %v13326, %v13333
    %v13336 = vcombine.low %v12932, %v13022
    %v13337 = vcombine.high %v12932, %v13022
    %v13339 = vunpack.c.l.s4 1934713408
    %v13340 = vunpack.c.0.s8 %v13339
    %v13341 = vlaneseq
    %v13342 = vshrl.u32 %v13341, 7
    %v13343 = vsub.s32 %v13340, %v13342
    %v13344 = vrot.slane %v13336, %v13343
    %v13346 = vunpack.c.l.s4 1934713408
    %v13347 = vunpack.c.0.s8 %v13346
    %v13348 = vlaneseq
    %v13349 = vshrl.u32 %v13348, 7
    %v13350 = vsub.s32 %v13347, %v13349
    %v13351 = vrot.slane %v13337, %v13350
    %v13352 = vcombine.low %v13344, %v13351
    %v13353 = vcombine.high %v13344, %v13351
    %v13354 = vcombine.low %v12933, %v13023
    %v13355 = vcombine.high %v12933, %v13023
    %v13357 = vunpack.c.l.s4 1934713408
    %v13358 = vunpack.c.0.s8 %v13357
    %v13359 = vlaneseq
    %v13360 = vshrl.u32 %v13359, 7
    %v13361 = vsub.s32 %v13358, %v13360
    %v13362 = vrot.slane %v13354, %v13361
    %v13364 = vunpack.c.l.s4 1934713408
    %v13365 = vunpack.c.0.s8 %v13364
    %v13366 = vlaneseq
    %v13367 = vshrl.u32 %v13366, 7
    %v13368 = vsub.s32 %v13365, %v13367
    %v13369 = vrot.slane %v13355, %v13368
    %v13370 = vcombine.low %v13362, %v13369
    %v13371 = vcombine.high %v13362, %v13369
    %v13372 = vcombine.low %v12934, %v13024
    %v13373 = vcombine.high %v12934, %v13024
    %v13375 = vunpack.c.l.s4 1934713408
    %v13376 = vunpack.c.0.s8 %v13375
    %v13377 = vlaneseq
    %v13378 = vshrl.u32 %v13377, 7
    %v13379 = vsub.s32 %v13376, %v13378
    %v13380 = vrot.slane %v13372, %v13379
    %v13382 = vunpack.c.l.s4 1934713408
    %v13383 = vunpack.c.0.s8 %v13382
    %v13384 = vlaneseq
    %v13385 = vshrl.u32 %v13384, 7
    %v13386 = vsub.s32 %v13383, %v13385
    %v13387 = vrot.slane %v13373, %v13386
    %v13388 = vcombine.low %v13380, %v13387
    %v13389 = vcombine.high %v13380, %v13387
    %v13390 = vcombine.low %v12935, %v13025
    %v13391 = vcombine.high %v12935, %v13025
    %v13393 = vunpack.c.l.s4 1934713408
    %v13394 = vunpack.c.0.s8 %v13393
    %v13395 = vlaneseq
    %v13396 = vshrl.u32 %v13395, 7
    %v13397 = vsub.s32 %v13394, %v13396
    %v13398 = vrot.slane %v13390, %v13397
    %v13400 = vunpack.c.l.s4 1934713408
    %v13401 = vunpack.c.0.s8 %v13400
    %v13402 = vlaneseq
    %v13403 = vshrl.u32 %v13402, 7
    %v13404 = vsub.s32 %v13401, %v13403
    %v13405 = vrot.slane %v13391, %v13404
    %v13406 = vcombine.low %v13398, %v13405
    %v13407 = vcombine.high %v13398, %v13405
    %v13408 = vcombine.low %v12952, %v13042
    %v13409 = vcombine.high %v12952, %v13042
    %v13411 = vunpack.c.l.s4 1934713408
    %v13412 = vunpack.c.0.s8 %v13411
    %v13413 = vlaneseq
    %v13414 = vshrl.u32 %v13413, 7
    %v13415 = vsub.s32 %v13412, %v13414
    %v13416 = vrot.slane %v13408, %v13415
    %v13418 = vunpack.c.l.s4 1934713408
    %v13419 = vunpack.c.0.s8 %v13418
    %v13420 = vlaneseq
    %v13421 = vshrl.u32 %v13420, 7
    %v13422 = vsub.s32 %v13419, %v13421
    %v13423 = vrot.slane %v13409, %v13422
    %v13424 = vcombine.low %v13416, %v13423
    %v13425 = vcombine.high %v13416, %v13423
    %v13426 = vcombine.low %v12953, %v13043
    %v13427 = vcombine.high %v12953, %v13043
    %v13429 = vunpack.c.l.s4 1934713408
    %v13430 = vunpack.c.0.s8 %v13429
    %v13431 = vlaneseq
    %v13432 = vshrl.u32 %v13431, 7
    %v13433 = vsub.s32 %v13430, %v13432
    %v13434 = vrot.slane %v13426, %v13433
    %v13436 = vunpack.c.l.s4 1934713408
    %v13437 = vunpack.c.0.s8 %v13436
    %v13438 = vlaneseq
    %v13439 = vshrl.u32 %v13438, 7
    %v13440 = vsub.s32 %v13437, %v13439
    %v13441 = vrot.slane %v13427, %v13440
    %v13442 = vcombine.low %v13434, %v13441
    %v13443 = vcombine.high %v13434, %v13441
    %v13484 = vcombine.high %v13100, %v13100
    %v13486 = vunpack.c.l.s4 1983009808
    %v13487 = vunpack.c.0.s8 %v13486
    %v13488 = vlaneseq
    %v13489 = vshrl.u32 %v13488, 7
    %v13490 = vsub.s32 %v13487, %v13489
    %v13491 = vrot.slane %v13100, %v13490
    %v13493 = vunpack.c.l.s4 1983009808
    %v13494 = vunpack.c.0.s8 %v13493
    %v13495 = vlaneseq
    %v13496 = vshrl.u32 %v13495, 7
    %v13497 = vsub.s32 %v13494, %v13496
    %v13498 = vrot.slane %v13484, %v13497
    %v13499 = vcombine.high %v13491, %v13491
    %v13500 = vcombine.high %v13498, %v13498
    %v13501 = vcombine.high %v13101, %v13101
    %v13503 = vunpack.c.l.s4 1983009808
    %v13504 = vunpack.c.0.s8 %v13503
    %v13505 = vlaneseq
    %v13506 = vshrl.u32 %v13505, 7
    %v13507 = vsub.s32 %v13504, %v13506
    %v13508 = vrot.slane %v13101, %v13507
    %v13510 = vunpack.c.l.s4 1983009808
    %v13511 = vunpack.c.0.s8 %v13510
    %v13512 = vlaneseq
    %v13513 = vshrl.u32 %v13512, 7
    %v13514 = vsub.s32 %v13511, %v13513
    %v13515 = vrot.slane %v13501, %v13514
    %v13516 = vcombine.high %v13508, %v13508
    %v13517 = vcombine.high %v13515, %v13515
    %v13518 = vcombine.high %v13118, %v13118
    %v13520 = vunpack.c.l.s4 1983009808
    %v13521 = vunpack.c.0.s8 %v13520
    %v13522 = vlaneseq
    %v13523 = vshrl.u32 %v13522, 7
    %v13524 = vsub.s32 %v13521, %v13523
    %v13525 = vrot.slane %v13118, %v13524
    %v13527 = vunpack.c.l.s4 1983009808
    %v13528 = vunpack.c.0.s8 %v13527
    %v13529 = vlaneseq
    %v13530 = vshrl.u32 %v13529, 7
    %v13531 = vsub.s32 %v13528, %v13530
    %v13532 = vrot.slane %v13518, %v13531
    %v13533 = vcombine.high %v13525, %v13525
    %v13534 = vcombine.high %v13532, %v13532
    %v13535 = vcombine.high %v13119, %v13119
    %v13537 = vunpack.c.l.s4 1983009808
    %v13538 = vunpack.c.0.s8 %v13537
    %v13539 = vlaneseq
    %v13540 = vshrl.u32 %v13539, 7
    %v13541 = vsub.s32 %v13538, %v13540
    %v13542 = vrot.slane %v13119, %v13541
    %v13544 = vunpack.c.l.s4 1983009808
    %v13545 = vunpack.c.0.s8 %v13544
    %v13546 = vlaneseq
    %v13547 = vshrl.u32 %v13546, 7
    %v13548 = vsub.s32 %v13545, %v13547
    %v13549 = vrot.slane %v13535, %v13548
    %v13550 = vcombine.high %v13542, %v13542
    %v13551 = vcombine.high %v13549, %v13549
    %v13552 = vcombine.high %v13136, %v13136
    %v13554 = vunpack.c.l.s4 1983009808
    %v13555 = vunpack.c.0.s8 %v13554
    %v13556 = vlaneseq
    %v13557 = vshrl.u32 %v13556, 7
    %v13558 = vsub.s32 %v13555, %v13557
    %v13559 = vrot.slane %v13136, %v13558
    %v13561 = vunpack.c.l.s4 1983009808
    %v13562 = vunpack.c.0.s8 %v13561
    %v13563 = vlaneseq
    %v13564 = vshrl.u32 %v13563, 7
    %v13565 = vsub.s32 %v13562, %v13564
    %v13566 = vrot.slane %v13552, %v13565
    %v13567 = vcombine.high %v13559, %v13559
    %v13568 = vcombine.high %v13566, %v13566
    %v13569 = vcombine.high %v13137, %v13137
    %v13571 = vunpack.c.l.s4 1983009808
    %v13572 = vunpack.c.0.s8 %v13571
    %v13573 = vlaneseq
    %v13574 = vshrl.u32 %v13573, 7
    %v13575 = vsub.s32 %v13572, %v13574
    %v13576 = vrot.slane %v13137, %v13575
    %v13578 = vunpack.c.l.s4 1983009808
    %v13579 = vunpack.c.0.s8 %v13578
    %v13580 = vlaneseq
    %v13581 = vshrl.u32 %v13580, 7
    %v13582 = vsub.s32 %v13579, %v13581
    %v13583 = vrot.slane %v13569, %v13582
    %v13584 = vcombine.high %v13576, %v13576
    %v13585 = vcombine.high %v13583, %v13583
    %v13586 = vcombine.high %v13154, %v13154
    %v13588 = vunpack.c.l.s4 1983009808
    %v13589 = vunpack.c.0.s8 %v13588
    %v13590 = vlaneseq
    %v13591 = vshrl.u32 %v13590, 7
    %v13592 = vsub.s32 %v13589, %v13591
    %v13593 = vrot.slane %v13154, %v13592
    %v13595 = vunpack.c.l.s4 1983009808
    %v13596 = vunpack.c.0.s8 %v13595
    %v13597 = vlaneseq
    %v13598 = vshrl.u32 %v13597, 7
    %v13599 = vsub.s32 %v13596, %v13598
    %v13600 = vrot.slane %v13586, %v13599
    %v13601 = vcombine.high %v13593, %v13593
    %v13602 = vcombine.high %v13600, %v13600
    %v13603 = vcombine.high %v13155, %v13155
    %v13605 = vunpack.c.l.s4 1983009808
    %v13606 = vunpack.c.0.s8 %v13605
    %v13607 = vlaneseq
    %v13608 = vshrl.u32 %v13607, 7
    %v13609 = vsub.s32 %v13606, %v13608
    %v13610 = vrot.slane %v13155, %v13609
    %v13612 = vunpack.c.l.s4 1983009808
    %v13613 = vunpack.c.0.s8 %v13612
    %v13614 = vlaneseq
    %v13615 = vshrl.u32 %v13614, 7
    %v13616 = vsub.s32 %v13613, %v13615
    %v13617 = vrot.slane %v13603, %v13616
    %v13618 = vcombine.high %v13610, %v13610
    %v13619 = vcombine.high %v13617, %v13617
    %v13620 = vcombine.high %v13172, %v13172
    %v13622 = vunpack.c.l.s4 1983009808
    %v13623 = vunpack.c.0.s8 %v13622
    %v13624 = vlaneseq
    %v13625 = vshrl.u32 %v13624, 7
    %v13626 = vsub.s32 %v13623, %v13625
    %v13627 = vrot.slane %v13172, %v13626
    %v13629 = vunpack.c.l.s4 1983009808
    %v13630 = vunpack.c.0.s8 %v13629
    %v13631 = vlaneseq
    %v13632 = vshrl.u32 %v13631, 7
    %v13633 = vsub.s32 %v13630, %v13632
    %v13634 = vrot.slane %v13620, %v13633
    %v13635 = vcombine.high %v13627, %v13627
    %v13636 = vcombine.high %v13634, %v13634
    %v13637 = vcombine.high %v13173, %v13173
    %v13639 = vunpack.c.l.s4 1983009808
    %v13640 = vunpack.c.0.s8 %v13639
    %v13641 = vlaneseq
    %v13642 = vshrl.u32 %v13641, 7
    %v13643 = vsub.s32 %v13640, %v13642
    %v13644 = vrot.slane %v13173, %v13643
    %v13646 = vunpack.c.l.s4 1983009808
    %v13647 = vunpack.c.0.s8 %v13646
    %v13648 = vlaneseq
    %v13649 = vshrl.u32 %v13648, 7
    %v13650 = vsub.s32 %v13647, %v13649
    %v13651 = vrot.slane %v13637, %v13650
    %v13652 = vcombine.high %v13644, %v13644
    %v13653 = vcombine.high %v13651, %v13651
    %v13654 = vcombine.high %v13190, %v13190
    %v13656 = vunpack.c.l.s4 1983009808
    %v13657 = vunpack.c.0.s8 %v13656
    %v13658 = vlaneseq
    %v13659 = vshrl.u32 %v13658, 7
    %v13660 = vsub.s32 %v13657, %v13659
    %v13661 = vrot.slane %v13190, %v13660
    %v13663 = vunpack.c.l.s4 1983009808
    %v13664 = vunpack.c.0.s8 %v13663
    %v13665 = vlaneseq
    %v13666 = vshrl.u32 %v13665, 7
    %v13667 = vsub.s32 %v13664, %v13666
    %v13668 = vrot.slane %v13654, %v13667
    %v13669 = vcombine.high %v13661, %v13661
    %v13670 = vcombine.high %v13668, %v13668
    %v13671 = vcombine.high %v13191, %v13191
    %v13673 = vunpack.c.l.s4 1983009808
    %v13674 = vunpack.c.0.s8 %v13673
    %v13675 = vlaneseq
    %v13676 = vshrl.u32 %v13675, 7
    %v13677 = vsub.s32 %v13674, %v13676
    %v13678 = vrot.slane %v13191, %v13677
    %v13680 = vunpack.c.l.s4 1983009808
    %v13681 = vunpack.c.0.s8 %v13680
    %v13682 = vlaneseq
    %v13683 = vshrl.u32 %v13682, 7
    %v13684 = vsub.s32 %v13681, %v13683
    %v13685 = vrot.slane %v13671, %v13684
    %v13686 = vcombine.high %v13678, %v13678
    %v13687 = vcombine.high %v13685, %v13685
    %v13688 = vcombine.high %v13208, %v13208
    %v13690 = vunpack.c.l.s4 1983009808
    %v13691 = vunpack.c.0.s8 %v13690
    %v13692 = vlaneseq
    %v13693 = vshrl.u32 %v13692, 7
    %v13694 = vsub.s32 %v13691, %v13693
    %v13695 = vrot.slane %v13208, %v13694
    %v13697 = vunpack.c.l.s4 1983009808
    %v13698 = vunpack.c.0.s8 %v13697
    %v13699 = vlaneseq
    %v13700 = vshrl.u32 %v13699, 7
    %v13701 = vsub.s32 %v13698, %v13700
    %v13702 = vrot.slane %v13688, %v13701
    %v13703 = vcombine.high %v13695, %v13695
    %v13704 = vcombine.high %v13702, %v13702
    %v13705 = vcombine.high %v13209, %v13209
    %v13707 = vunpack.c.l.s4 1983009808
    %v13708 = vunpack.c.0.s8 %v13707
    %v13709 = vlaneseq
    %v13710 = vshrl.u32 %v13709, 7
    %v13711 = vsub.s32 %v13708, %v13710
    %v13712 = vrot.slane %v13209, %v13711
    %v13714 = vunpack.c.l.s4 1983009808
    %v13715 = vunpack.c.0.s8 %v13714
    %v13716 = vlaneseq
    %v13717 = vshrl.u32 %v13716, 7
    %v13718 = vsub.s32 %v13715, %v13717
    %v13719 = vrot.slane %v13705, %v13718
    %v13720 = vcombine.high %v13712, %v13712
    %v13721 = vcombine.high %v13719, %v13719
    %v13722 = vcombine.high %v13226, %v13226
    %v13724 = vunpack.c.l.s4 1983009808
    %v13725 = vunpack.c.0.s8 %v13724
    %v13726 = vlaneseq
    %v13727 = vshrl.u32 %v13726, 7
    %v13728 = vsub.s32 %v13725, %v13727
    %v13729 = vrot.slane %v13226, %v13728
    %v13731 = vunpack.c.l.s4 1983009808
    %v13732 = vunpack.c.0.s8 %v13731
    %v13733 = vlaneseq
    %v13734 = vshrl.u32 %v13733, 7
    %v13735 = vsub.s32 %v13732, %v13734
    %v13736 = vrot.slane %v13722, %v13735
    %v13737 = vcombine.high %v13729, %v13729
    %v13738 = vcombine.high %v13736, %v13736
    %v13739 = vcombine.high %v13227, %v13227
    %v13741 = vunpack.c.l.s4 1983009808
    %v13742 = vunpack.c.0.s8 %v13741
    %v13743 = vlaneseq
    %v13744 = vshrl.u32 %v13743, 7
    %v13745 = vsub.s32 %v13742, %v13744
    %v13746 = vrot.slane %v13227, %v13745
    %v13748 = vunpack.c.l.s4 1983009808
    %v13749 = vunpack.c.0.s8 %v13748
    %v13750 = vlaneseq
    %v13751 = vshrl.u32 %v13750, 7
    %v13752 = vsub.s32 %v13749, %v13751
    %v13753 = vrot.slane %v13739, %v13752
    %v13754 = vcombine.high %v13746, %v13746
    %v13755 = vcombine.high %v13753, %v13753
    %v13756 = vcombine.high %v13244, %v13244
    %v13758 = vunpack.c.l.s4 1983009808
    %v13759 = vunpack.c.0.s8 %v13758
    %v13760 = vlaneseq
    %v13761 = vshrl.u32 %v13760, 7
    %v13762 = vsub.s32 %v13759, %v13761
    %v13763 = vrot.slane %v13244, %v13762
    %v13765 = vunpack.c.l.s4 1983009808
    %v13766 = vunpack.c.0.s8 %v13765
    %v13767 = vlaneseq
    %v13768 = vshrl.u32 %v13767, 7
    %v13769 = vsub.s32 %v13766, %v13768
    %v13770 = vrot.slane %v13756, %v13769
    %v13771 = vcombine.high %v13763, %v13763
    %v13772 = vcombine.high %v13770, %v13770
    %v13773 = vcombine.high %v13245, %v13245
    %v13775 = vunpack.c.l.s4 1983009808
    %v13776 = vunpack.c.0.s8 %v13775
    %v13777 = vlaneseq
    %v13778 = vshrl.u32 %v13777, 7
    %v13779 = vsub.s32 %v13776, %v13778
    %v13780 = vrot.slane %v13245, %v13779
    %v13782 = vunpack.c.l.s4 1983009808
    %v13783 = vunpack.c.0.s8 %v13782
    %v13784 = vlaneseq
    %v13785 = vshrl.u32 %v13784, 7
    %v13786 = vsub.s32 %v13783, %v13785
    %v13787 = vrot.slane %v13773, %v13786
    %v13788 = vcombine.high %v13780, %v13780
    %v13789 = vcombine.high %v13787, %v13787
    %v13790 = vcombine.high %v13262, %v13262
    %v13792 = vunpack.c.l.s4 1983009808
    %v13793 = vunpack.c.0.s8 %v13792
    %v13794 = vlaneseq
    %v13795 = vshrl.u32 %v13794, 7
    %v13796 = vsub.s32 %v13793, %v13795
    %v13797 = vrot.slane %v13262, %v13796
    %v13799 = vunpack.c.l.s4 1983009808
    %v13800 = vunpack.c.0.s8 %v13799
    %v13801 = vlaneseq
    %v13802 = vshrl.u32 %v13801, 7
    %v13803 = vsub.s32 %v13800, %v13802
    %v13804 = vrot.slane %v13790, %v13803
    %v13805 = vcombine.high %v13797, %v13797
    %v13806 = vcombine.high %v13804, %v13804
    %v13807 = vcombine.high %v13263, %v13263
    %v13809 = vunpack.c.l.s4 1983009808
    %v13810 = vunpack.c.0.s8 %v13809
    %v13811 = vlaneseq
    %v13812 = vshrl.u32 %v13811, 7
    %v13813 = vsub.s32 %v13810, %v13812
    %v13814 = vrot.slane %v13263, %v13813
    %v13816 = vunpack.c.l.s4 1983009808
    %v13817 = vunpack.c.0.s8 %v13816
    %v13818 = vlaneseq
    %v13819 = vshrl.u32 %v13818, 7
    %v13820 = vsub.s32 %v13817, %v13819
    %v13821 = vrot.slane %v13807, %v13820
    %v13822 = vcombine.high %v13814, %v13814
    %v13823 = vcombine.high %v13821, %v13821
    %v13824 = vcombine.high %v13280, %v13280
    %v13826 = vunpack.c.l.s4 1983009808
    %v13827 = vunpack.c.0.s8 %v13826
    %v13828 = vlaneseq
    %v13829 = vshrl.u32 %v13828, 7
    %v13830 = vsub.s32 %v13827, %v13829
    %v13831 = vrot.slane %v13280, %v13830
    %v13833 = vunpack.c.l.s4 1983009808
    %v13834 = vunpack.c.0.s8 %v13833
    %v13835 = vlaneseq
    %v13836 = vshrl.u32 %v13835, 7
    %v13837 = vsub.s32 %v13834, %v13836
    %v13838 = vrot.slane %v13824, %v13837
    %v13839 = vcombine.high %v13831, %v13831
    %v13840 = vcombine.high %v13838, %v13838
    %v13841 = vcombine.high %v13281, %v13281
    %v13843 = vunpack.c.l.s4 1983009808
    %v13844 = vunpack.c.0.s8 %v13843
    %v13845 = vlaneseq
    %v13846 = vshrl.u32 %v13845, 7
    %v13847 = vsub.s32 %v13844, %v13846
    %v13848 = vrot.slane %v13281, %v13847
    %v13850 = vunpack.c.l.s4 1983009808
    %v13851 = vunpack.c.0.s8 %v13850
    %v13852 = vlaneseq
    %v13853 = vshrl.u32 %v13852, 7
    %v13854 = vsub.s32 %v13851, %v13853
    %v13855 = vrot.slane %v13841, %v13854
    %v13856 = vcombine.high %v13848, %v13848
    %v13857 = vcombine.high %v13855, %v13855
    %v13858 = vcombine.high %v13298, %v13298
    %v13860 = vunpack.c.l.s4 1983009808
    %v13861 = vunpack.c.0.s8 %v13860
    %v13862 = vlaneseq
    %v13863 = vshrl.u32 %v13862, 7
    %v13864 = vsub.s32 %v13861, %v13863
    %v13865 = vrot.slane %v13298, %v13864
    %v13867 = vunpack.c.l.s4 1983009808
    %v13868 = vunpack.c.0.s8 %v13867
    %v13869 = vlaneseq
    %v13870 = vshrl.u32 %v13869, 7
    %v13871 = vsub.s32 %v13868, %v13870
    %v13872 = vrot.slane %v13858, %v13871
    %v13873 = vcombine.high %v13865, %v13865
    %v13874 = vcombine.high %v13872, %v13872
    %v13875 = vcombine.high %v13299, %v13299
    %v13877 = vunpack.c.l.s4 1983009808
    %v13878 = vunpack.c.0.s8 %v13877
    %v13879 = vlaneseq
    %v13880 = vshrl.u32 %v13879, 7
    %v13881 = vsub.s32 %v13878, %v13880
    %v13882 = vrot.slane %v13299, %v13881
    %v13884 = vunpack.c.l.s4 1983009808
    %v13885 = vunpack.c.0.s8 %v13884
    %v13886 = vlaneseq
    %v13887 = vshrl.u32 %v13886, 7
    %v13888 = vsub.s32 %v13885, %v13887
    %v13889 = vrot.slane %v13875, %v13888
    %v13890 = vcombine.high %v13882, %v13882
    %v13891 = vcombine.high %v13889, %v13889
    %v13892 = vcombine.high %v13316, %v13316
    %v13894 = vunpack.c.l.s4 1983009808
    %v13895 = vunpack.c.0.s8 %v13894
    %v13896 = vlaneseq
    %v13897 = vshrl.u32 %v13896, 7
    %v13898 = vsub.s32 %v13895, %v13897
    %v13899 = vrot.slane %v13316, %v13898
    %v13901 = vunpack.c.l.s4 1983009808
    %v13902 = vunpack.c.0.s8 %v13901
    %v13903 = vlaneseq
    %v13904 = vshrl.u32 %v13903, 7
    %v13905 = vsub.s32 %v13902, %v13904
    %v13906 = vrot.slane %v13892, %v13905
    %v13907 = vcombine.high %v13899, %v13899
    %v13908 = vcombine.high %v13906, %v13906
    %v13909 = vcombine.high %v13317, %v13317
    %v13911 = vunpack.c.l.s4 1983009808
    %v13912 = vunpack.c.0.s8 %v13911
    %v13913 = vlaneseq
    %v13914 = vshrl.u32 %v13913, 7
    %v13915 = vsub.s32 %v13912, %v13914
    %v13916 = vrot.slane %v13317, %v13915
    %v13918 = vunpack.c.l.s4 1983009808
    %v13919 = vunpack.c.0.s8 %v13918
    %v13920 = vlaneseq
    %v13921 = vshrl.u32 %v13920, 7
    %v13922 = vsub.s32 %v13919, %v13921
    %v13923 = vrot.slane %v13909, %v13922
    %v13924 = vcombine.high %v13916, %v13916
    %v13925 = vcombine.high %v13923, %v13923
    %v13926 = vcombine.high %v13334, %v13334
    %v13928 = vunpack.c.l.s4 1983009808
    %v13929 = vunpack.c.0.s8 %v13928
    %v13930 = vlaneseq
    %v13931 = vshrl.u32 %v13930, 7
    %v13932 = vsub.s32 %v13929, %v13931
    %v13933 = vrot.slane %v13334, %v13932
    %v13935 = vunpack.c.l.s4 1983009808
    %v13936 = vunpack.c.0.s8 %v13935
    %v13937 = vlaneseq
    %v13938 = vshrl.u32 %v13937, 7
    %v13939 = vsub.s32 %v13936, %v13938
    %v13940 = vrot.slane %v13926, %v13939
    %v13941 = vcombine.high %v13933, %v13933
    %v13942 = vcombine.high %v13940, %v13940
    %v13943 = vcombine.high %v13335, %v13335
    %v13945 = vunpack.c.l.s4 1983009808
    %v13946 = vunpack.c.0.s8 %v13945
    %v13947 = vlaneseq
    %v13948 = vshrl.u32 %v13947, 7
    %v13949 = vsub.s32 %v13946, %v13948
    %v13950 = vrot.slane %v13335, %v13949
    %v13952 = vunpack.c.l.s4 1983009808
    %v13953 = vunpack.c.0.s8 %v13952
    %v13954 = vlaneseq
    %v13955 = vshrl.u32 %v13954, 7
    %v13956 = vsub.s32 %v13953, %v13955
    %v13957 = vrot.slane %v13943, %v13956
    %v13958 = vcombine.high %v13950, %v13950
    %v13959 = vcombine.high %v13957, %v13957
    %v13960 = vcombine.high %v13352, %v13352
    %v13962 = vunpack.c.l.s4 1983009808
    %v13963 = vunpack.c.0.s8 %v13962
    %v13964 = vlaneseq
    %v13965 = vshrl.u32 %v13964, 7
    %v13966 = vsub.s32 %v13963, %v13965
    %v13967 = vrot.slane %v13352, %v13966
    %v13969 = vunpack.c.l.s4 1983009808
    %v13970 = vunpack.c.0.s8 %v13969
    %v13971 = vlaneseq
    %v13972 = vshrl.u32 %v13971, 7
    %v13973 = vsub.s32 %v13970, %v13972
    %v13974 = vrot.slane %v13960, %v13973
    %v13975 = vcombine.high %v13967, %v13967
    %v13976 = vcombine.high %v13974, %v13974
    %v13977 = vcombine.high %v13353, %v13353
    %v13979 = vunpack.c.l.s4 1983009808
    %v13980 = vunpack.c.0.s8 %v13979
    %v13981 = vlaneseq
    %v13982 = vshrl.u32 %v13981, 7
    %v13983 = vsub.s32 %v13980, %v13982
    %v13984 = vrot.slane %v13353, %v13983
    %v13986 = vunpack.c.l.s4 1983009808
    %v13987 = vunpack.c.0.s8 %v13986
    %v13988 = vlaneseq
    %v13989 = vshrl.u32 %v13988, 7
    %v13990 = vsub.s32 %v13987, %v13989
    %v13991 = vrot.slane %v13977, %v13990
    %v13992 = vcombine.high %v13984, %v13984
    %v13993 = vcombine.high %v13991, %v13991
    %v13994 = vcombine.high %v13370, %v13370
    %v13996 = vunpack.c.l.s4 1983009808
    %v13997 = vunpack.c.0.s8 %v13996
    %v13998 = vlaneseq
    %v13999 = vshrl.u32 %v13998, 7
    %v14000 = vsub.s32 %v13997, %v13999
    %v14001 = vrot.slane %v13370, %v14000
    %v14003 = vunpack.c.l.s4 1983009808
    %v14004 = vunpack.c.0.s8 %v14003
    %v14005 = vlaneseq
    %v14006 = vshrl.u32 %v14005, 7
    %v14007 = vsub.s32 %v14004, %v14006
    %v14008 = vrot.slane %v13994, %v14007
    %v14009 = vcombine.high %v14001, %v14001
    %v14010 = vcombine.high %v14008, %v14008
    %v14011 = vcombine.high %v13371, %v13371
    %v14013 = vunpack.c.l.s4 1983009808
    %v14014 = vunpack.c.0.s8 %v14013
    %v14015 = vlaneseq
    %v14016 = vshrl.u32 %v14015, 7
    %v14017 = vsub.s32 %v14014, %v14016
    %v14018 = vrot.slane %v13371, %v14017
    %v14020 = vunpack.c.l.s4 1983009808
    %v14021 = vunpack.c.0.s8 %v14020
    %v14022 = vlaneseq
    %v14023 = vshrl.u32 %v14022, 7
    %v14024 = vsub.s32 %v14021, %v14023
    %v14025 = vrot.slane %v14011, %v14024
    %v14026 = vcombine.high %v14018, %v14018
    %v14027 = vcombine.high %v14025, %v14025
    %v14028 = vcombine.high %v13388, %v13388
    %v14030 = vunpack.c.l.s4 1983009808
    %v14031 = vunpack.c.0.s8 %v14030
    %v14032 = vlaneseq
    %v14033 = vshrl.u32 %v14032, 7
    %v14034 = vsub.s32 %v14031, %v14033
    %v14035 = vrot.slane %v13388, %v14034
    %v14037 = vunpack.c.l.s4 1983009808
    %v14038 = vunpack.c.0.s8 %v14037
    %v14039 = vlaneseq
    %v14040 = vshrl.u32 %v14039, 7
    %v14041 = vsub.s32 %v14038, %v14040
    %v14042 = vrot.slane %v14028, %v14041
    %v14043 = vcombine.high %v14035, %v14035
    %v14044 = vcombine.high %v14042, %v14042
    %v14045 = vcombine.high %v13389, %v13389
    %v14047 = vunpack.c.l.s4 1983009808
    %v14048 = vunpack.c.0.s8 %v14047
    %v14049 = vlaneseq
    %v14050 = vshrl.u32 %v14049, 7
    %v14051 = vsub.s32 %v14048, %v14050
    %v14052 = vrot.slane %v13389, %v14051
    %v14054 = vunpack.c.l.s4 1983009808
    %v14055 = vunpack.c.0.s8 %v14054
    %v14056 = vlaneseq
    %v14057 = vshrl.u32 %v14056, 7
    %v14058 = vsub.s32 %v14055, %v14057
    %v14059 = vrot.slane %v14045, %v14058
    %v14060 = vcombine.high %v14052, %v14052
    %v14061 = vcombine.high %v14059, %v14059
    %v14062 = vcombine.high %v13406, %v13406
    %v14064 = vunpack.c.l.s4 1983009808
    %v14065 = vunpack.c.0.s8 %v14064
    %v14066 = vlaneseq
    %v14067 = vshrl.u32 %v14066, 7
    %v14068 = vsub.s32 %v14065, %v14067
    %v14069 = vrot.slane %v13406, %v14068
    %v14071 = vunpack.c.l.s4 1983009808
    %v14072 = vunpack.c.0.s8 %v14071
    %v14073 = vlaneseq
    %v14074 = vshrl.u32 %v14073, 7
    %v14075 = vsub.s32 %v14072, %v14074
    %v14076 = vrot.slane %v14062, %v14075
    %v14077 = vcombine.high %v14069, %v14069
    %v14078 = vcombine.high %v14076, %v14076
    %v14079 = vcombine.high %v13407, %v13407
    %v14081 = vunpack.c.l.s4 1983009808
    %v14082 = vunpack.c.0.s8 %v14081
    %v14083 = vlaneseq
    %v14084 = vshrl.u32 %v14083, 7
    %v14085 = vsub.s32 %v14082, %v14084
    %v14086 = vrot.slane %v13407, %v14085
    %v14088 = vunpack.c.l.s4 1983009808
    %v14089 = vunpack.c.0.s8 %v14088
    %v14090 = vlaneseq
    %v14091 = vshrl.u32 %v14090, 7
    %v14092 = vsub.s32 %v14089, %v14091
    %v14093 = vrot.slane %v14079, %v14092
    %v14094 = vcombine.high %v14086, %v14086
    %v14095 = vcombine.high %v14093, %v14093
    %v14096 = vcombine.high %v13424, %v13424
    %v14098 = vunpack.c.l.s4 1983009808
    %v14099 = vunpack.c.0.s8 %v14098
    %v14100 = vlaneseq
    %v14101 = vshrl.u32 %v14100, 7
    %v14102 = vsub.s32 %v14099, %v14101
    %v14103 = vrot.slane %v13424, %v14102
    %v14105 = vunpack.c.l.s4 1983009808
    %v14106 = vunpack.c.0.s8 %v14105
    %v14107 = vlaneseq
    %v14108 = vshrl.u32 %v14107, 7
    %v14109 = vsub.s32 %v14106, %v14108
    %v14110 = vrot.slane %v14096, %v14109
    %v14111 = vcombine.high %v14103, %v14103
    %v14112 = vcombine.high %v14110, %v14110
    %v14113 = vcombine.high %v13425, %v13425
    %v14115 = vunpack.c.l.s4 1983009808
    %v14116 = vunpack.c.0.s8 %v14115
    %v14117 = vlaneseq
    %v14118 = vshrl.u32 %v14117, 7
    %v14119 = vsub.s32 %v14116, %v14118
    %v14120 = vrot.slane %v13425, %v14119
    %v14122 = vunpack.c.l.s4 1983009808
    %v14123 = vunpack.c.0.s8 %v14122
    %v14124 = vlaneseq
    %v14125 = vshrl.u32 %v14124, 7
    %v14126 = vsub.s32 %v14123, %v14125
    %v14127 = vrot.slane %v14113, %v14126
    %v14128 = vcombine.high %v14120, %v14120
    %v14129 = vcombine.high %v14127, %v14127
    %v14130 = vcombine.high %v13442, %v13442
    %v14132 = vunpack.c.l.s4 1983009808
    %v14133 = vunpack.c.0.s8 %v14132
    %v14134 = vlaneseq
    %v14135 = vshrl.u32 %v14134, 7
    %v14136 = vsub.s32 %v14133, %v14135
    %v14137 = vrot.slane %v13442, %v14136
    %v14139 = vunpack.c.l.s4 1983009808
    %v14140 = vunpack.c.0.s8 %v14139
    %v14141 = vlaneseq
    %v14142 = vshrl.u32 %v14141, 7
    %v14143 = vsub.s32 %v14140, %v14142
    %v14144 = vrot.slane %v14130, %v14143
    %v14145 = vcombine.high %v14137, %v14137
    %v14146 = vcombine.high %v14144, %v14144
    %v14147 = vcombine.high %v13443, %v13443
    %v14149 = vunpack.c.l.s4 1983009808
    %v14150 = vunpack.c.0.s8 %v14149
    %v14151 = vlaneseq
    %v14152 = vshrl.u32 %v14151, 7
    %v14153 = vsub.s32 %v14150, %v14152
    %v14154 = vrot.slane %v13443, %v14153
    %v14156 = vunpack.c.l.s4 1983009808
    %v14157 = vunpack.c.0.s8 %v14156
    %v14158 = vlaneseq
    %v14159 = vshrl.u32 %v14158, 7
    %v14160 = vsub.s32 %v14157, %v14159
    %v14161 = vrot.slane %v14147, %v14160
    %v14162 = vcombine.high %v14154, %v14154
    %v14163 = vcombine.high %v14161, %v14161
    %vm14324 = vcmask 1041408
    %v14325 = vsel %vm14324, %v13491, -inf
    %v14326 = vsel %vm14324, %v13499, -inf
    %v14327 = vmax.f32 %v14325, %v14326
    %v14328 = vsel %vm14324, %v13498, -inf
    %v14329 = vmax.f32 %v14327, %v14328
    %v14330 = vsel %vm14324, %v13500, -inf
    %v14331 = vmax.f32 %v14329, %v14330
    %14332 = vmax.xlane.f32.xlu0 %v14331
    %v14333 = vpop.xlane.xlu0 %14332
    %v14334 = vsel %vm14324, %v13508, -inf
    %v14335 = vsel %vm14324, %v13516, -inf
    %v14336 = vmax.f32 %v14334, %v14335
    %v14337 = vsel %vm14324, %v13515, -inf
    %v14338 = vmax.f32 %v14336, %v14337
    %v14339 = vsel %vm14324, %v13517, -inf
    %v14340 = vmax.f32 %v14338, %v14339
    %14341 = vmax.xlane.f32.xlu0 %v14340
    %v14342 = vpop.xlane.xlu0 %14341
    %v14343 = vsel %vm14324, %v13525, -inf
    %v14344 = vsel %vm14324, %v13533, -inf
    %v14345 = vmax.f32 %v14343, %v14344
    %v14346 = vsel %vm14324, %v13532, -inf
    %v14347 = vmax.f32 %v14345, %v14346
    %v14348 = vsel %vm14324, %v13534, -inf
    %v14349 = vmax.f32 %v14347, %v14348
    %14350 = vmax.xlane.f32.xlu0 %v14349
    %v14351 = vpop.xlane.xlu0 %14350
    %v14352 = vsel %vm14324, %v13542, -inf
    %v14353 = vsel %vm14324, %v13550, -inf
    %v14354 = vmax.f32 %v14352, %v14353
    %v14355 = vsel %vm14324, %v13549, -inf
    %v14356 = vmax.f32 %v14354, %v14355
    %v14357 = vsel %vm14324, %v13551, -inf
    %v14358 = vmax.f32 %v14356, %v14357
    %14359 = vmax.xlane.f32.xlu0 %v14358
    %v14360 = vpop.xlane.xlu0 %14359
    %v14361 = vsel %vm14324, %v13559, -inf
    %v14362 = vsel %vm14324, %v13567, -inf
    %v14363 = vmax.f32 %v14361, %v14362
    %v14364 = vsel %vm14324, %v13566, -inf
    %v14365 = vmax.f32 %v14363, %v14364
    %v14366 = vsel %vm14324, %v13568, -inf
    %v14367 = vmax.f32 %v14365, %v14366
    %14368 = vmax.xlane.f32.xlu0 %v14367
    %v14369 = vpop.xlane.xlu0 %14368
    %v14370 = vsel %vm14324, %v13576, -inf
    %v14371 = vsel %vm14324, %v13584, -inf
    %v14372 = vmax.f32 %v14370, %v14371
    %v14373 = vsel %vm14324, %v13583, -inf
    %v14374 = vmax.f32 %v14372, %v14373
    %v14375 = vsel %vm14324, %v13585, -inf
    %v14376 = vmax.f32 %v14374, %v14375
    %14377 = vmax.xlane.f32.xlu0 %v14376
    %v14378 = vpop.xlane.xlu0 %14377
    %v14379 = vsel %vm14324, %v13593, -inf
    %v14380 = vsel %vm14324, %v13601, -inf
    %v14381 = vmax.f32 %v14379, %v14380
    %v14382 = vsel %vm14324, %v13600, -inf
    %v14383 = vmax.f32 %v14381, %v14382
    %v14384 = vsel %vm14324, %v13602, -inf
    %v14385 = vmax.f32 %v14383, %v14384
    %14386 = vmax.xlane.f32.xlu0 %v14385
    %v14387 = vpop.xlane.xlu0 %14386
    %v14388 = vsel %vm14324, %v13610, -inf
    %v14389 = vsel %vm14324, %v13618, -inf
    %v14390 = vmax.f32 %v14388, %v14389
    %v14391 = vsel %vm14324, %v13617, -inf
    %v14392 = vmax.f32 %v14390, %v14391
    %v14393 = vsel %vm14324, %v13619, -inf
    %v14394 = vmax.f32 %v14392, %v14393
    %14395 = vmax.xlane.f32.xlu0 %v14394
    %v14396 = vpop.xlane.xlu0 %14395
    %v14397 = vsel %vm14324, %v13627, -inf
    %v14398 = vsel %vm14324, %v13635, -inf
    %v14399 = vmax.f32 %v14397, %v14398
    %v14400 = vsel %vm14324, %v13634, -inf
    %v14401 = vmax.f32 %v14399, %v14400
    %v14402 = vsel %vm14324, %v13636, -inf
    %v14403 = vmax.f32 %v14401, %v14402
    %14404 = vmax.xlane.f32.xlu0 %v14403
    %v14405 = vpop.xlane.xlu0 %14404
    %v14406 = vsel %vm14324, %v13644, -inf
    %v14407 = vsel %vm14324, %v13652, -inf
    %v14408 = vmax.f32 %v14406, %v14407
    %v14409 = vsel %vm14324, %v13651, -inf
    %v14410 = vmax.f32 %v14408, %v14409
    %v14411 = vsel %vm14324, %v13653, -inf
    %v14412 = vmax.f32 %v14410, %v14411
    %14413 = vmax.xlane.f32.xlu0 %v14412
    %v14414 = vpop.xlane.xlu0 %14413
    %v14415 = vsel %vm14324, %v13661, -inf
    %v14416 = vsel %vm14324, %v13669, -inf
    %v14417 = vmax.f32 %v14415, %v14416
    %v14418 = vsel %vm14324, %v13668, -inf
    %v14419 = vmax.f32 %v14417, %v14418
    %v14420 = vsel %vm14324, %v13670, -inf
    %v14421 = vmax.f32 %v14419, %v14420
    %14422 = vmax.xlane.f32.xlu0 %v14421
    %v14423 = vpop.xlane.xlu0 %14422
    %v14424 = vsel %vm14324, %v13678, -inf
    %v14425 = vsel %vm14324, %v13686, -inf
    %v14426 = vmax.f32 %v14424, %v14425
    %v14427 = vsel %vm14324, %v13685, -inf
    %v14428 = vmax.f32 %v14426, %v14427
    %v14429 = vsel %vm14324, %v13687, -inf
    %v14430 = vmax.f32 %v14428, %v14429
    %14431 = vmax.xlane.f32.xlu0 %v14430
    %v14432 = vpop.xlane.xlu0 %14431
    %v14433 = vsel %vm14324, %v13695, -inf
    %v14434 = vsel %vm14324, %v13703, -inf
    %v14435 = vmax.f32 %v14433, %v14434
    %v14436 = vsel %vm14324, %v13702, -inf
    %v14437 = vmax.f32 %v14435, %v14436
    %v14438 = vsel %vm14324, %v13704, -inf
    %v14439 = vmax.f32 %v14437, %v14438
    %14440 = vmax.xlane.f32.xlu0 %v14439
    %v14441 = vpop.xlane.xlu0 %14440
    %v14442 = vsel %vm14324, %v13712, -inf
    %v14443 = vsel %vm14324, %v13720, -inf
    %v14444 = vmax.f32 %v14442, %v14443
    %v14445 = vsel %vm14324, %v13719, -inf
    %v14446 = vmax.f32 %v14444, %v14445
    %v14447 = vsel %vm14324, %v13721, -inf
    %v14448 = vmax.f32 %v14446, %v14447
    %14449 = vmax.xlane.f32.xlu0 %v14448
    %v14450 = vpop.xlane.xlu0 %14449
    %v14451 = vsel %vm14324, %v13729, -inf
    %v14452 = vsel %vm14324, %v13737, -inf
    %v14453 = vmax.f32 %v14451, %v14452
    %v14454 = vsel %vm14324, %v13736, -inf
    %v14455 = vmax.f32 %v14453, %v14454
    %v14456 = vsel %vm14324, %v13738, -inf
    %v14457 = vmax.f32 %v14455, %v14456
    %14458 = vmax.xlane.f32.xlu0 %v14457
    %v14459 = vpop.xlane.xlu0 %14458
    %v14460 = vsel %vm14324, %v13746, -inf
    %v14461 = vsel %vm14324, %v13754, -inf
    %v14462 = vmax.f32 %v14460, %v14461
    %v14463 = vsel %vm14324, %v13753, -inf
    %v14464 = vmax.f32 %v14462, %v14463
    %v14465 = vsel %vm14324, %v13755, -inf
    %v14466 = vmax.f32 %v14464, %v14465
    %14467 = vmax.xlane.f32.xlu0 %v14466
    %v14468 = vpop.xlane.xlu0 %14467
    %v14469 = vsel %vm14324, %v13763, -inf
    %v14470 = vsel %vm14324, %v13771, -inf
    %v14471 = vmax.f32 %v14469, %v14470
    %v14472 = vsel %vm14324, %v13770, -inf
    %v14473 = vmax.f32 %v14471, %v14472
    %v14474 = vsel %vm14324, %v13772, -inf
    %v14475 = vmax.f32 %v14473, %v14474
    %14476 = vmax.xlane.f32.xlu0 %v14475
    %v14477 = vpop.xlane.xlu0 %14476
    %v14478 = vsel %vm14324, %v13780, -inf
    %v14479 = vsel %vm14324, %v13788, -inf
    %v14480 = vmax.f32 %v14478, %v14479
    %v14481 = vsel %vm14324, %v13787, -inf
    %v14482 = vmax.f32 %v14480, %v14481
    %v14483 = vsel %vm14324, %v13789, -inf
    %v14484 = vmax.f32 %v14482, %v14483
    %14485 = vmax.xlane.f32.xlu0 %v14484
    %v14486 = vpop.xlane.xlu0 %14485
    %v14487 = vsel %vm14324, %v13797, -inf
    %v14488 = vsel %vm14324, %v13805, -inf
    %v14489 = vmax.f32 %v14487, %v14488
    %v14490 = vsel %vm14324, %v13804, -inf
    %v14491 = vmax.f32 %v14489, %v14490
    %v14492 = vsel %vm14324, %v13806, -inf
    %v14493 = vmax.f32 %v14491, %v14492
    %14494 = vmax.xlane.f32.xlu0 %v14493
    %v14495 = vpop.xlane.xlu0 %14494
    %v14496 = vsel %vm14324, %v13814, -inf
    %v14497 = vsel %vm14324, %v13822, -inf
    %v14498 = vmax.f32 %v14496, %v14497
    %v14499 = vsel %vm14324, %v13821, -inf
    %v14500 = vmax.f32 %v14498, %v14499
    %v14501 = vsel %vm14324, %v13823, -inf
    %v14502 = vmax.f32 %v14500, %v14501
    %14503 = vmax.xlane.f32.xlu0 %v14502
    %v14504 = vpop.xlane.xlu0 %14503
    %v14505 = vsel %vm14324, %v13831, -inf
    %v14506 = vsel %vm14324, %v13839, -inf
    %v14507 = vmax.f32 %v14505, %v14506
    %v14508 = vsel %vm14324, %v13838, -inf
    %v14509 = vmax.f32 %v14507, %v14508
    %v14510 = vsel %vm14324, %v13840, -inf
    %v14511 = vmax.f32 %v14509, %v14510
    %14512 = vmax.xlane.f32.xlu0 %v14511
    %v14513 = vpop.xlane.xlu0 %14512
    %v14514 = vsel %vm14324, %v13848, -inf
    %v14515 = vsel %vm14324, %v13856, -inf
    %v14516 = vmax.f32 %v14514, %v14515
    %v14517 = vsel %vm14324, %v13855, -inf
    %v14518 = vmax.f32 %v14516, %v14517
    %v14519 = vsel %vm14324, %v13857, -inf
    %v14520 = vmax.f32 %v14518, %v14519
    %14521 = vmax.xlane.f32.xlu0 %v14520
    %v14522 = vpop.xlane.xlu0 %14521
    %v14523 = vsel %vm14324, %v13865, -inf
    %v14524 = vsel %vm14324, %v13873, -inf
    %v14525 = vmax.f32 %v14523, %v14524
    %v14526 = vsel %vm14324, %v13872, -inf
    %v14527 = vmax.f32 %v14525, %v14526
    %v14528 = vsel %vm14324, %v13874, -inf
    %v14529 = vmax.f32 %v14527, %v14528
    %14530 = vmax.xlane.f32.xlu0 %v14529
    %v14531 = vpop.xlane.xlu0 %14530
    %v14532 = vsel %vm14324, %v13882, -inf
    %v14533 = vsel %vm14324, %v13890, -inf
    %v14534 = vmax.f32 %v14532, %v14533
    %v14535 = vsel %vm14324, %v13889, -inf
    %v14536 = vmax.f32 %v14534, %v14535
    %v14537 = vsel %vm14324, %v13891, -inf
    %v14538 = vmax.f32 %v14536, %v14537
    %14539 = vmax.xlane.f32.xlu0 %v14538
    %v14540 = vpop.xlane.xlu0 %14539
    %v14541 = vsel %vm14324, %v13899, -inf
    %v14542 = vsel %vm14324, %v13907, -inf
    %v14543 = vmax.f32 %v14541, %v14542
    %v14544 = vsel %vm14324, %v13906, -inf
    %v14545 = vmax.f32 %v14543, %v14544
    %v14546 = vsel %vm14324, %v13908, -inf
    %v14547 = vmax.f32 %v14545, %v14546
    %14548 = vmax.xlane.f32.xlu0 %v14547
    %v14549 = vpop.xlane.xlu0 %14548
    %v14550 = vsel %vm14324, %v13916, -inf
    %v14551 = vsel %vm14324, %v13924, -inf
    %v14552 = vmax.f32 %v14550, %v14551
    %v14553 = vsel %vm14324, %v13923, -inf
    %v14554 = vmax.f32 %v14552, %v14553
    %v14555 = vsel %vm14324, %v13925, -inf
    %v14556 = vmax.f32 %v14554, %v14555
    %14557 = vmax.xlane.f32.xlu0 %v14556
    %v14558 = vpop.xlane.xlu0 %14557
    %v14559 = vsel %vm14324, %v13933, -inf
    %v14560 = vsel %vm14324, %v13941, -inf
    %v14561 = vmax.f32 %v14559, %v14560
    %v14562 = vsel %vm14324, %v13940, -inf
    %v14563 = vmax.f32 %v14561, %v14562
    %v14564 = vsel %vm14324, %v13942, -inf
    %v14565 = vmax.f32 %v14563, %v14564
    %14566 = vmax.xlane.f32.xlu0 %v14565
    %v14567 = vpop.xlane.xlu0 %14566
    %v14568 = vsel %vm14324, %v13950, -inf
    %v14569 = vsel %vm14324, %v13958, -inf
    %v14570 = vmax.f32 %v14568, %v14569
    %v14571 = vsel %vm14324, %v13957, -inf
    %v14572 = vmax.f32 %v14570, %v14571
    %v14573 = vsel %vm14324, %v13959, -inf
    %v14574 = vmax.f32 %v14572, %v14573
    %14575 = vmax.xlane.f32.xlu0 %v14574
    %v14576 = vpop.xlane.xlu0 %14575
    %v14577 = vsel %vm14324, %v13967, -inf
    %v14578 = vsel %vm14324, %v13975, -inf
    %v14579 = vmax.f32 %v14577, %v14578
    %v14580 = vsel %vm14324, %v13974, -inf
    %v14581 = vmax.f32 %v14579, %v14580
    %v14582 = vsel %vm14324, %v13976, -inf
    %v14583 = vmax.f32 %v14581, %v14582
    %14584 = vmax.xlane.f32.xlu0 %v14583
    %v14585 = vpop.xlane.xlu0 %14584
    %v14586 = vsel %vm14324, %v13984, -inf
    %v14587 = vsel %vm14324, %v13992, -inf
    %v14588 = vmax.f32 %v14586, %v14587
    %v14589 = vsel %vm14324, %v13991, -inf
    %v14590 = vmax.f32 %v14588, %v14589
    %v14591 = vsel %vm14324, %v13993, -inf
    %v14592 = vmax.f32 %v14590, %v14591
    %14593 = vmax.xlane.f32.xlu0 %v14592
    %v14594 = vpop.xlane.xlu0 %14593
    %v14595 = vsel %vm14324, %v14001, -inf
    %v14596 = vsel %vm14324, %v14009, -inf
    %v14597 = vmax.f32 %v14595, %v14596
    %v14598 = vsel %vm14324, %v14008, -inf
    %v14599 = vmax.f32 %v14597, %v14598
    %v14600 = vsel %vm14324, %v14010, -inf
    %v14601 = vmax.f32 %v14599, %v14600
    %14602 = vmax.xlane.f32.xlu0 %v14601
    %v14603 = vpop.xlane.xlu0 %14602
    %v14604 = vsel %vm14324, %v14018, -inf
    %v14605 = vsel %vm14324, %v14026, -inf
    %v14606 = vmax.f32 %v14604, %v14605
    %v14607 = vsel %vm14324, %v14025, -inf
    %v14608 = vmax.f32 %v14606, %v14607
    %v14609 = vsel %vm14324, %v14027, -inf
    %v14610 = vmax.f32 %v14608, %v14609
    %14611 = vmax.xlane.f32.xlu0 %v14610
    %v14612 = vpop.xlane.xlu0 %14611
    %v14613 = vsel %vm14324, %v14035, -inf
    %v14614 = vsel %vm14324, %v14043, -inf
    %v14615 = vmax.f32 %v14613, %v14614
    %v14616 = vsel %vm14324, %v14042, -inf
    %v14617 = vmax.f32 %v14615, %v14616
    %v14618 = vsel %vm14324, %v14044, -inf
    %v14619 = vmax.f32 %v14617, %v14618
    %14620 = vmax.xlane.f32.xlu0 %v14619
    %v14621 = vpop.xlane.xlu0 %14620
    %v14622 = vsel %vm14324, %v14052, -inf
    %v14623 = vsel %vm14324, %v14060, -inf
    %v14624 = vmax.f32 %v14622, %v14623
    %v14625 = vsel %vm14324, %v14059, -inf
    %v14626 = vmax.f32 %v14624, %v14625
    %v14627 = vsel %vm14324, %v14061, -inf
    %v14628 = vmax.f32 %v14626, %v14627
    %14629 = vmax.xlane.f32.xlu0 %v14628
    %v14630 = vpop.xlane.xlu0 %14629
    %v14631 = vsel %vm14324, %v14069, -inf
    %v14632 = vsel %vm14324, %v14077, -inf
    %v14633 = vmax.f32 %v14631, %v14632
    %v14634 = vsel %vm14324, %v14076, -inf
    %v14635 = vmax.f32 %v14633, %v14634
    %v14636 = vsel %vm14324, %v14078, -inf
    %v14637 = vmax.f32 %v14635, %v14636
    %14638 = vmax.xlane.f32.xlu0 %v14637
    %v14639 = vpop.xlane.xlu0 %14638
    %v14640 = vsel %vm14324, %v14086, -inf
    %v14641 = vsel %vm14324, %v14094, -inf
    %v14642 = vmax.f32 %v14640, %v14641
    %v14643 = vsel %vm14324, %v14093, -inf
    %v14644 = vmax.f32 %v14642, %v14643
    %v14645 = vsel %vm14324, %v14095, -inf
    %v14646 = vmax.f32 %v14644, %v14645
    %14647 = vmax.xlane.f32.xlu0 %v14646
    %v14648 = vpop.xlane.xlu0 %14647
    %v14649 = vsel %vm14324, %v14103, -inf
    %v14650 = vsel %vm14324, %v14111, -inf
    %v14651 = vmax.f32 %v14649, %v14650
    %v14652 = vsel %vm14324, %v14110, -inf
    %v14653 = vmax.f32 %v14651, %v14652
    %v14654 = vsel %vm14324, %v14112, -inf
    %v14655 = vmax.f32 %v14653, %v14654
    %14656 = vmax.xlane.f32.xlu0 %v14655
    %v14657 = vpop.xlane.xlu0 %14656
    %v14658 = vsel %vm14324, %v14120, -inf
    %v14659 = vsel %vm14324, %v14128, -inf
    %v14660 = vmax.f32 %v14658, %v14659
    %v14661 = vsel %vm14324, %v14127, -inf
    %v14662 = vmax.f32 %v14660, %v14661
    %v14663 = vsel %vm14324, %v14129, -inf
    %v14664 = vmax.f32 %v14662, %v14663
    %14665 = vmax.xlane.f32.xlu0 %v14664
    %v14666 = vpop.xlane.xlu0 %14665
    %v14667 = vsel %vm14324, %v14137, -inf
    %v14668 = vsel %vm14324, %v14145, -inf
    %v14669 = vmax.f32 %v14667, %v14668
    %v14670 = vsel %vm14324, %v14144, -inf
    %v14671 = vmax.f32 %v14669, %v14670
    %v14672 = vsel %vm14324, %v14146, -inf
    %v14673 = vmax.f32 %v14671, %v14672
    %14674 = vmax.xlane.f32.xlu0 %v14673
    %v14675 = vpop.xlane.xlu0 %14674
    %v14676 = vsel %vm14324, %v14154, -inf
    %v14677 = vsel %vm14324, %v14162, -inf
    %v14678 = vmax.f32 %v14676, %v14677
    %v14679 = vsel %vm14324, %v14161, -inf
    %v14680 = vmax.f32 %v14678, %v14679
    %v14681 = vsel %vm14324, %v14163, -inf
    %v14682 = vmax.f32 %v14680, %v14681
    %14683 = vmax.xlane.f32.xlu0 %v14682
    %v14684 = vpop.xlane.xlu0 %14683
    %v14725 = vlaneseq
    %v14726 = vand.u32 %v14725, 127
    %v14727 = vlaneseq
    %v14728 = vshrl.u32 %v14727, 7
    %v14729 = vsub.s32 %v14726, %v14728
    %v14730 = vrot.slane %v14333, %v14729
    %v14731 = vlaneseq
    %v14732 = vshrl.u32 %v14731, 7
    %v14733 = vsub.s32 %v14726, %v14732
    %v14734 = vrot.slane %v14342, %v14733
    %v14735 = vlaneseq
    %v14736 = vshrl.u32 %v14735, 7
    %v14737 = vsub.s32 %v14726, %v14736
    %v14738 = vrot.slane %v14351, %v14737
    %v14739 = vlaneseq
    %v14740 = vshrl.u32 %v14739, 7
    %v14741 = vsub.s32 %v14726, %v14740
    %v14742 = vrot.slane %v14360, %v14741
    %v14743 = vlaneseq
    %v14744 = vshrl.u32 %v14743, 7
    %v14745 = vsub.s32 %v14726, %v14744
    %v14746 = vrot.slane %v14369, %v14745
    %v14747 = vlaneseq
    %v14748 = vshrl.u32 %v14747, 7
    %v14749 = vsub.s32 %v14726, %v14748
    %v14750 = vrot.slane %v14378, %v14749
    %v14751 = vlaneseq
    %v14752 = vshrl.u32 %v14751, 7
    %v14753 = vsub.s32 %v14726, %v14752
    %v14754 = vrot.slane %v14387, %v14753
    %v14755 = vlaneseq
    %v14756 = vshrl.u32 %v14755, 7
    %v14757 = vsub.s32 %v14726, %v14756
    %v14758 = vrot.slane %v14396, %v14757
    %v14759 = vlaneseq
    %v14760 = vshrl.u32 %v14759, 7
    %v14761 = vsub.s32 %v14726, %v14760
    %v14762 = vrot.slane %v14405, %v14761
    %v14763 = vlaneseq
    %v14764 = vshrl.u32 %v14763, 7
    %v14765 = vsub.s32 %v14726, %v14764
    %v14766 = vrot.slane %v14414, %v14765
    %v14767 = vlaneseq
    %v14768 = vshrl.u32 %v14767, 7
    %v14769 = vsub.s32 %v14726, %v14768
    %v14770 = vrot.slane %v14423, %v14769
    %v14771 = vlaneseq
    %v14772 = vshrl.u32 %v14771, 7
    %v14773 = vsub.s32 %v14726, %v14772
    %v14774 = vrot.slane %v14432, %v14773
    %v14775 = vlaneseq
    %v14776 = vshrl.u32 %v14775, 7
    %v14777 = vsub.s32 %v14726, %v14776
    %v14778 = vrot.slane %v14441, %v14777
    %v14779 = vlaneseq
    %v14780 = vshrl.u32 %v14779, 7
    %v14781 = vsub.s32 %v14726, %v14780
    %v14782 = vrot.slane %v14450, %v14781
    %v14783 = vlaneseq
    %v14784 = vshrl.u32 %v14783, 7
    %v14785 = vsub.s32 %v14726, %v14784
    %v14786 = vrot.slane %v14459, %v14785
    %v14787 = vlaneseq
    %v14788 = vshrl.u32 %v14787, 7
    %v14789 = vsub.s32 %v14726, %v14788
    %v14790 = vrot.slane %v14468, %v14789
    %v14791 = vlaneseq
    %v14792 = vshrl.u32 %v14791, 7
    %v14793 = vsub.s32 %v14726, %v14792
    %v14794 = vrot.slane %v14477, %v14793
    %v14795 = vlaneseq
    %v14796 = vshrl.u32 %v14795, 7
    %v14797 = vsub.s32 %v14726, %v14796
    %v14798 = vrot.slane %v14486, %v14797
    %v14799 = vlaneseq
    %v14800 = vshrl.u32 %v14799, 7
    %v14801 = vsub.s32 %v14726, %v14800
    %v14802 = vrot.slane %v14495, %v14801
    %v14803 = vlaneseq
    %v14804 = vshrl.u32 %v14803, 7
    %v14805 = vsub.s32 %v14726, %v14804
    %v14806 = vrot.slane %v14504, %v14805
    %v14807 = vlaneseq
    %v14808 = vshrl.u32 %v14807, 7
    %v14809 = vsub.s32 %v14726, %v14808
    %v14810 = vrot.slane %v14513, %v14809
    %v14811 = vlaneseq
    %v14812 = vshrl.u32 %v14811, 7
    %v14813 = vsub.s32 %v14726, %v14812
    %v14814 = vrot.slane %v14522, %v14813
    %v14815 = vlaneseq
    %v14816 = vshrl.u32 %v14815, 7
    %v14817 = vsub.s32 %v14726, %v14816
    %v14818 = vrot.slane %v14531, %v14817
    %v14819 = vlaneseq
    %v14820 = vshrl.u32 %v14819, 7
    %v14821 = vsub.s32 %v14726, %v14820
    %v14822 = vrot.slane %v14540, %v14821
    %v14823 = vlaneseq
    %v14824 = vshrl.u32 %v14823, 7
    %v14825 = vsub.s32 %v14726, %v14824
    %v14826 = vrot.slane %v14549, %v14825
    %v14827 = vlaneseq
    %v14828 = vshrl.u32 %v14827, 7
    %v14829 = vsub.s32 %v14726, %v14828
    %v14830 = vrot.slane %v14558, %v14829
    %v14831 = vlaneseq
    %v14832 = vshrl.u32 %v14831, 7
    %v14833 = vsub.s32 %v14726, %v14832
    %v14834 = vrot.slane %v14567, %v14833
    %v14835 = vlaneseq
    %v14836 = vshrl.u32 %v14835, 7
    %v14837 = vsub.s32 %v14726, %v14836
    %v14838 = vrot.slane %v14576, %v14837
    %v14839 = vlaneseq
    %v14840 = vshrl.u32 %v14839, 7
    %v14841 = vsub.s32 %v14726, %v14840
    %v14842 = vrot.slane %v14585, %v14841
    %v14843 = vlaneseq
    %v14844 = vshrl.u32 %v14843, 7
    %v14845 = vsub.s32 %v14726, %v14844
    %v14846 = vrot.slane %v14594, %v14845
    %v14847 = vlaneseq
    %v14848 = vshrl.u32 %v14847, 7
    %v14849 = vsub.s32 %v14726, %v14848
    %v14850 = vrot.slane %v14603, %v14849
    %v14851 = vlaneseq
    %v14852 = vshrl.u32 %v14851, 7
    %v14853 = vsub.s32 %v14726, %v14852
    %v14854 = vrot.slane %v14612, %v14853
    %v14855 = vlaneseq
    %v14856 = vshrl.u32 %v14855, 7
    %v14857 = vsub.s32 %v14726, %v14856
    %v14858 = vrot.slane %v14621, %v14857
    %v14859 = vlaneseq
    %v14860 = vshrl.u32 %v14859, 7
    %v14861 = vsub.s32 %v14726, %v14860
    %v14862 = vrot.slane %v14630, %v14861
    %v14863 = vlaneseq
    %v14864 = vshrl.u32 %v14863, 7
    %v14865 = vsub.s32 %v14726, %v14864
    %v14866 = vrot.slane %v14639, %v14865
    %v14867 = vlaneseq
    %v14868 = vshrl.u32 %v14867, 7
    %v14869 = vsub.s32 %v14726, %v14868
    %v14870 = vrot.slane %v14648, %v14869
    %v14871 = vlaneseq
    %v14872 = vshrl.u32 %v14871, 7
    %v14873 = vsub.s32 %v14726, %v14872
    %v14874 = vrot.slane %v14657, %v14873
    %v14875 = vlaneseq
    %v14876 = vshrl.u32 %v14875, 7
    %v14877 = vsub.s32 %v14726, %v14876
    %v14878 = vrot.slane %v14666, %v14877
    %v14879 = vlaneseq
    %v14880 = vshrl.u32 %v14879, 7
    %v14881 = vsub.s32 %v14726, %v14880
    %v14882 = vrot.slane %v14675, %v14881
    %v14883 = vlaneseq
    %v14884 = vshrl.u32 %v14883, 7
    %v14885 = vsub.s32 %v14726, %v14884
    %v14886 = vrot.slane %v14684, %v14885
    %vm14887 = vcmask 1041409
    %v14888 = vsel %vm14887, %v14734, %v14730
    %vm14889 = vcmask 1042434
    %v14890 = vsel %vm14889, %v14738, %v14888
    %vm14891 = vcmask 1043459
    %v14892 = vsel %vm14891, %v14742, %v14890
    %vm14893 = vcmask 1044484
    %v14894 = vsel %vm14893, %v14746, %v14892
    %vm14895 = vcmask 1045509
    %v14896 = vsel %vm14895, %v14750, %v14894
    %vm14897 = vcmask 1046534
    %v14898 = vsel %vm14897, %v14754, %v14896
    %vm14899 = vcmask 1047559
    %v14900 = vsel %vm14899, %v14758, %v14898
    %v14901 = vsel %vm14887, %v14766, %v14762
    %v14902 = vsel %vm14889, %v14770, %v14901
    %v14903 = vsel %vm14891, %v14774, %v14902
    %v14904 = vsel %vm14893, %v14778, %v14903
    %v14905 = vsel %vm14895, %v14782, %v14904
    %v14906 = vsel %vm14897, %v14786, %v14905
    %v14907 = vsel %vm14899, %v14790, %v14906
    %v14908 = vsel %vm14887, %v14798, %v14794
    %v14909 = vsel %vm14889, %v14802, %v14908
    %v14910 = vsel %vm14891, %v14806, %v14909
    %v14911 = vsel %vm14887, %v14814, %v14810
    %v14912 = vsel %vm14889, %v14818, %v14911
    %v14913 = vsel %vm14891, %v14822, %v14912
    %v14914 = vsel %vm14893, %v14826, %v14913
    %v14915 = vsel %vm14895, %v14830, %v14914
    %v14916 = vsel %vm14897, %v14834, %v14915
    %v14917 = vsel %vm14899, %v14838, %v14916
    %v14918 = vsel %vm14887, %v14846, %v14842
    %v14919 = vsel %vm14889, %v14850, %v14918
    %v14920 = vsel %vm14891, %v14854, %v14919
    %v14921 = vsel %vm14893, %v14858, %v14920
    %v14922 = vsel %vm14895, %v14862, %v14921
    %v14923 = vsel %vm14897, %v14866, %v14922
    %v14924 = vsel %vm14899, %v14870, %v14923
    %v14925 = vsel %vm14887, %v14878, %v14874
    %v14926 = vsel %vm14889, %v14882, %v14925
    %v14927 = vsel %vm14891, %v14886, %v14926
    %v14932 = vcombine.high %v14900, 0.0
    %v14934 = vunpack.c.l.s4 1983009808
    %v14935 = vunpack.c.0.s8 %v14934
    %v14936 = vlaneseq
    %v14937 = vshrl.u32 %v14936, 7
    %v14938 = vsub.s32 %v14935, %v14937
    %v14939 = vrot.slane %v14900, %v14938
    %v14941 = vunpack.c.l.s4 1983009808
    %v14942 = vunpack.c.0.s8 %v14941
    %v14943 = vlaneseq
    %v14944 = vshrl.u32 %v14943, 7
    %v14945 = vsub.s32 %v14942, %v14944
    %v14946 = vrot.slane %v14932, %v14945
    %v14947 = vcombine.high %v14917, 0.0
    %v14949 = vunpack.c.l.s4 1983009808
    %v14950 = vunpack.c.0.s8 %v14949
    %v14951 = vlaneseq
    %v14952 = vshrl.u32 %v14951, 7
    %v14953 = vsub.s32 %v14950, %v14952
    %v14954 = vrot.slane %v14917, %v14953
    %v14956 = vunpack.c.l.s4 1983009808
    %v14957 = vunpack.c.0.s8 %v14956
    %v14958 = vlaneseq
    %v14959 = vshrl.u32 %v14958, 7
    %v14960 = vsub.s32 %v14957, %v14959
    %v14961 = vrot.slane %v14947, %v14960
    %v14962 = vcombine.low %v14939, %v14954
    %v14963 = vcombine.high %v14939, %v14954
    %v14965 = vunpack.c.l.s4 1934713408
    %v14966 = vunpack.c.0.s8 %v14965
    %v14967 = vlaneseq
    %v14968 = vshrl.u32 %v14967, 7
    %v14969 = vsub.s32 %v14966, %v14968
    %v14970 = vrot.slane %v14962, %v14969
    %v14972 = vunpack.c.l.s4 1934713408
    %v14973 = vunpack.c.0.s8 %v14972
    %v14974 = vlaneseq
    %v14975 = vshrl.u32 %v14974, 7
    %v14976 = vsub.s32 %v14973, %v14975
    %v14977 = vrot.slane %v14963, %v14976
    %v14978 = vcombine.low %v14946, %v14961
    %v14979 = vcombine.high %v14946, %v14961
    %v14981 = vunpack.c.l.s4 1934713408
    %v14982 = vunpack.c.0.s8 %v14981
    %v14983 = vlaneseq
    %v14984 = vshrl.u32 %v14983, 7
    %v14985 = vsub.s32 %v14982, %v14984
    %v14986 = vrot.slane %v14978, %v14985
    %v14988 = vunpack.c.l.s4 1934713408
    %v14989 = vunpack.c.0.s8 %v14988
    %v14990 = vlaneseq
    %v14991 = vshrl.u32 %v14990, 7
    %v14992 = vsub.s32 %v14989, %v14991
    %v14993 = vrot.slane %v14979, %v14992
    %v14994 = vcombine.high %v14970, 0.0
    %v14995 = vcombine.high %v14977, 0.0
    %v14996 = vcombine.high %v14986, 0.0
    %v14997 = vcombine.high %v14993, 0.0
    %v14998 = vcombine.high %v14907, 0.0
    %v15000 = vunpack.c.l.s4 1983009808
    %v15001 = vunpack.c.0.s8 %v15000
    %v15002 = vlaneseq
    %v15003 = vshrl.u32 %v15002, 7
    %v15004 = vsub.s32 %v15001, %v15003
    %v15005 = vrot.slane %v14907, %v15004
    %v15007 = vunpack.c.l.s4 1983009808
    %v15008 = vunpack.c.0.s8 %v15007
    %v15009 = vlaneseq
    %v15010 = vshrl.u32 %v15009, 7
    %v15011 = vsub.s32 %v15008, %v15010
    %v15012 = vrot.slane %v14998, %v15011
    %v15013 = vcombine.high %v14924, 0.0
    %v15015 = vunpack.c.l.s4 1983009808
    %v15016 = vunpack.c.0.s8 %v15015
    %v15017 = vlaneseq
    %v15018 = vshrl.u32 %v15017, 7
    %v15019 = vsub.s32 %v15016, %v15018
    %v15020 = vrot.slane %v14924, %v15019
    %v15022 = vunpack.c.l.s4 1983009808
    %v15023 = vunpack.c.0.s8 %v15022
    %v15024 = vlaneseq
    %v15025 = vshrl.u32 %v15024, 7
    %v15026 = vsub.s32 %v15023, %v15025
    %v15027 = vrot.slane %v15013, %v15026
    %v15028 = vcombine.low %v15005, %v15020
    %v15029 = vcombine.high %v15005, %v15020
    %v15031 = vunpack.c.l.s4 1934713408
    %v15032 = vunpack.c.0.s8 %v15031
    %v15033 = vlaneseq
    %v15034 = vshrl.u32 %v15033, 7
    %v15035 = vsub.s32 %v15032, %v15034
    %v15036 = vrot.slane %v15028, %v15035
    %v15038 = vunpack.c.l.s4 1934713408
    %v15039 = vunpack.c.0.s8 %v15038
    %v15040 = vlaneseq
    %v15041 = vshrl.u32 %v15040, 7
    %v15042 = vsub.s32 %v15039, %v15041
    %v15043 = vrot.slane %v15029, %v15042
    %v15044 = vcombine.low %v15012, %v15027
    %v15045 = vcombine.high %v15012, %v15027
    %v15047 = vunpack.c.l.s4 1934713408
    %v15048 = vunpack.c.0.s8 %v15047
    %v15049 = vlaneseq
    %v15050 = vshrl.u32 %v15049, 7
    %v15051 = vsub.s32 %v15048, %v15050
    %v15052 = vrot.slane %v15044, %v15051
    %v15054 = vunpack.c.l.s4 1934713408
    %v15055 = vunpack.c.0.s8 %v15054
    %v15056 = vlaneseq
    %v15057 = vshrl.u32 %v15056, 7
    %v15058 = vsub.s32 %v15055, %v15057
    %v15059 = vrot.slane %v15045, %v15058
    %v15060 = vcombine.high %v15036, 0.0
    %v15061 = vcombine.high %v15043, 0.0
    %v15062 = vcombine.high %v15052, 0.0
    %v15063 = vcombine.high %v15059, 0.0
    %v15066 = vunpack.c.l.s4 1983009808
    %v15067 = vunpack.c.0.s8 %v15066
    %v15068 = vlaneseq
    %v15069 = vshrl.u32 %v15068, 7
    %v15070 = vsub.s32 %v15067, %v15069
    %v15071 = vrot.slane %v14910, %v15070
    %v15074 = vunpack.c.l.s4 1983009808
    %v15075 = vunpack.c.0.s8 %v15074
    %v15076 = vlaneseq
    %v15077 = vshrl.u32 %v15076, 7
    %v15078 = vsub.s32 %v15075, %v15077
    %v15079 = vrot.slane %v14927, %v15078
    %v15080 = vcombine.low %v15071, %v15079
    %v15081 = vcombine.high %v15071, %v15079
    %v15083 = vunpack.c.l.s4 1934713408
    %v15084 = vunpack.c.0.s8 %v15083
    %v15085 = vlaneseq
    %v15086 = vshrl.u32 %v15085, 7
    %v15087 = vsub.s32 %v15084, %v15086
    %v15088 = vrot.slane %v15080, %v15087
    %v15090 = vunpack.c.l.s4 1934713408
    %v15091 = vunpack.c.0.s8 %v15090
    %v15092 = vlaneseq
    %v15093 = vshrl.u32 %v15092, 7
    %v15094 = vsub.s32 %v15091, %v15093
    %v15095 = vrot.slane %v15081, %v15094
    %v15096 = vcombine.high %v15088, 0.0
    %v15097 = vcombine.high %v15095, 0.0
    %15099 = vrot.lane.b32.xlu0 %v14994, 2
    %v15100 = vpop.permute.xlu0 %15099
    %15103 = vrot.lane.b32.xlu0 %v14977, 4
    %v15104 = vpop.permute.xlu0 %15103
    %15107 = vrot.lane.b32.xlu0 %v14995, 6
    %v15108 = vpop.permute.xlu0 %15107
    %15111 = vrot.lane.b32.xlu0 %v14986, 8
    %v15112 = vpop.permute.xlu0 %15111
    %15115 = vrot.lane.b32.xlu0 %v14996, 10
    %v15116 = vpop.permute.xlu0 %15115
    %15119 = vrot.lane.b32.xlu0 %v14993, 12
    %v15120 = vpop.permute.xlu0 %15119
    %15123 = vrot.lane.b32.xlu0 %v14997, 14
    %v15124 = vpop.permute.xlu0 %15123
    %15127 = vrot.lane.b32.xlu0 %v15036, 16
    %v15128 = vpop.permute.xlu0 %15127
    %15131 = vrot.lane.b32.xlu0 %v15060, 18
    %v15132 = vpop.permute.xlu0 %15131
    %15135 = vrot.lane.b32.xlu0 %v15043, 20
    %v15136 = vpop.permute.xlu0 %15135
    %15139 = vrot.lane.b32.xlu0 %v15061, 22
    %v15140 = vpop.permute.xlu0 %15139
    %15143 = vrot.lane.b32.xlu0 %v15052, 24
    %v15144 = vpop.permute.xlu0 %15143
    %15147 = vrot.lane.b32.xlu0 %v15062, 26
    %v15148 = vpop.permute.xlu0 %15147
    %15151 = vrot.lane.b32.xlu0 %v15059, 28
    %v15152 = vpop.permute.xlu0 %15151
    %15155 = vrot.lane.b32.xlu0 %v15063, 30
    %v15156 = vpop.permute.xlu0 %15155
    %15159 = vrot.lane.b32.xlu0 %v15088, 32
    %v15160 = vpop.permute.xlu0 %15159
    %15163 = vrot.lane.b32.xlu0 %v15096, 34
    %v15164 = vpop.permute.xlu0 %15163
    %15167 = vrot.lane.b32.xlu0 %v15095, 36
    %v15168 = vpop.permute.xlu0 %15167
    %15171 = vrot.lane.b32.xlu0 %v15097, 38
    %v15172 = vpop.permute.xlu0 %15171
    %vm15174 = vcmask 15360
    %v15175 = vsel %vm15174, %v14970, %v15100
    %vm15176 = vcmask 31744
    %v15177 = vsel %vm15176, %v15175, %v15104
    %vm15178 = vcmask 48128
    %v15179 = vsel %vm15178, %v15177, %v15108
    %vm15180 = vcmask 64512
    %v15181 = vsel %vm15180, %v15179, %v15112
    %vm15182 = vcmask 80896
    %v15183 = vsel %vm15182, %v15181, %v15116
    %vm15184 = vcmask 97280
    %v15185 = vsel %vm15184, %v15183, %v15120
    %vm15186 = vcmask 113664
    %v15187 = vsel %vm15186, %v15185, %v15124
    %vm15188 = vcmask 130048
    %v15189 = vsel %vm15188, %v15187, %v15128
    %vm15190 = vcmask 146432
    %v15191 = vsel %vm15190, %v15189, %v15132
    %vm15192 = vcmask 162816
    %v15193 = vsel %vm15192, %v15191, %v15136
    %vm15194 = vcmask 179200
    %v15195 = vsel %vm15194, %v15193, %v15140
    %vm15196 = vcmask 195584
    %v15197 = vsel %vm15196, %v15195, %v15144
    %vm15198 = vcmask 211968
    %v15199 = vsel %vm15198, %v15197, %v15148
    %vm15200 = vcmask 228352
    %v15201 = vsel %vm15200, %v15199, %v15152
    %vm15202 = vcmask 244736
    %v15203 = vsel %vm15202, %v15201, %v15156
    %vm15204 = vcmask 261120
    %v15205 = vsel %vm15204, %v15203, %v15160
    %vm15206 = vcmask 277504
    %v15207 = vsel %vm15206, %v15205, %v15164
    %vm15208 = vcmask 293888
    %v15209 = vsel %vm15208, %v15207, %v15168
    %vm15210 = vcmask 310272
    %v15211 = vsel %vm15210, %v15209, %v15172
    %vm15212 = vcmask 320512
    %15213 = vst.msk [vmem:[#allocation5] sm:$0x3] %vm15212, %v15211
    // Predicated region
    $region18: #{tpu_custom_call.1} parent=1 // pred_check
      _
    $region19: #{tpu_custom_call.1} parent=1 // pred_check_branch
      %15215 = sbr.rel (0) target = $region21
    $region20: #{tpu_custom_call.1} parent=1 // pred_region
      %s15217 = ssub.s32 32, 32
      %15218 = vsyncadd [#allocation4], %s15217
      %s15220 = sshll.u32 [#allocation5], 4
      %s15221 = int_to_ptr.vmem [resolvable:$true] %s15220
      %15223 = dma.vmem_to_hbm [thread:$0]  %s15221, 32, %s3, [#allocation4]
    $region21: #{tpu_custom_call.1} parent=1 // pred_fallthru
      _
    // Predicated region
    $region22: #{tpu_custom_call.1} parent=1 // pred_check
      _
    $region23: #{tpu_custom_call.1} parent=1 // pred_check_branch
      %15225 = sbr.rel (0) target = $region25
    $region24: #{tpu_custom_call.1} parent=1 // pred_region
      %15226 = dma.done [#allocation4], 32
    $region25: #{tpu_custom_call.1} parent=1 // pred_fallthru
      _
    %15227 = vsyncpa [#allocation3], 1
    %15228 = vsyncpa [#allocation4], 1

</llo_original>
